<compile_context>
chip_gen: v7x
topology: tpu7x:2x2x1
jax: 0.10.0
libtpu: 0.0.40
codegen_flags: <defaults>
</compile_context>

<pallas_src>
import jax
import jax.numpy as jnp
from jax.experimental import pallas as pl
from jax.experimental.pallas import tpu as pltpu


# ---------------------------------------------------------------------------
# Core fused matmul Pallas kernel
# ---------------------------------------------------------------------------

def _round_up(x, m):
    return ((x + m - 1) // m) * m


def _pick_row_tile(m):
    """Pick (row_tile, padded_M). Large M -> 256-row bands (MXU-sized, grid
    parallel for the v7x dual TensorCores); small M -> one sublane-aligned
    block."""
    if m >= 256:
        return 256, _round_up(m, 256)
    mp = _round_up(m, 8)
    return mp, mp


def fused_matmul(x2d, w, b, *, scale=None, shift=None, relu=False,
                 out_proj=None, out_dtype=jnp.bfloat16):
    """One Pallas kernel computing:  (M,K) @ (K,C) + bias
         [-> ReLU] [-> * scale + shift] [-> @ Wout + bout]
    MXU inputs are bf16; accumulation / epilogue in f32."""
    M, K = x2d.shape
    C = w.shape[-1]
    has_bn = scale is not None
    has_proj = out_proj is not None

    TM, Mp = _pick_row_tile(M)
    if Mp != M:
        x2d = jnp.pad(x2d, ((0, Mp - M), (0, 0)))

    args = [x2d.astype(jnp.bfloat16),
            w.astype(jnp.bfloat16),
            b.reshape(1, C).astype(jnp.float32)]
    in_specs = [
        pl.BlockSpec((TM, K), lambda i: (i, 0)),
        pl.BlockSpec((K, C), lambda i: (0, 0)),
        pl.BlockSpec((1, C), lambda i: (0, 0)),
    ]
    if has_bn:
        args += [scale.reshape(1, C).astype(jnp.float32),
                 shift.reshape(1, C).astype(jnp.float32)]
        in_specs += [pl.BlockSpec((1, C), lambda i: (0, 0)),
                     pl.BlockSpec((1, C), lambda i: (0, 0))]

    n_out = C
    proj_is_vec = False
    if has_proj:
        wo, bo = out_proj
        n_out = wo.shape[-1]
        proj_is_vec = (n_out == 1)
        if proj_is_vec:
            # Cout=1: VPU multiply + cross-lane reduce, avoid an N=1 MXU matmul.
            args.append(wo.reshape(1, C).astype(jnp.float32))
            in_specs.append(pl.BlockSpec((1, C), lambda i: (0, 0)))
        else:
            args.append(wo.astype(jnp.bfloat16))
            in_specs.append(pl.BlockSpec((C, n_out), lambda i: (0, 0)))
        args.append(bo.reshape(1, n_out).astype(jnp.float32))
        in_specs.append(pl.BlockSpec((1, n_out), lambda i: (0, 0)))

    def kernel(*refs):
        x_ref, w_ref, b_ref = refs[0], refs[1], refs[2]
        idx = 3
        y = jnp.dot(x_ref[...], w_ref[...],
                    preferred_element_type=jnp.float32) + b_ref[...]
        if relu:
            y = jnp.maximum(y, 0.0)
        if has_bn:
            sc_ref, sh_ref = refs[idx], refs[idx + 1]
            idx += 2
            y = y * sc_ref[...] + sh_ref[...]
        if has_proj:
            wo_ref, bo_ref = refs[idx], refs[idx + 1]
            idx += 2
            if proj_is_vec:
                y = jnp.sum(y * wo_ref[...], axis=-1, keepdims=True) + bo_ref[...]
            else:
                y = jnp.dot(y.astype(jnp.bfloat16), wo_ref[...],
                            preferred_element_type=jnp.float32) + bo_ref[...]
        o_ref = refs[idx]
        o_ref[...] = y.astype(o_ref.dtype)

    out = pl.pallas_call(
        kernel,
        out_shape=jax.ShapeDtypeStruct((Mp, n_out), out_dtype),
        grid=(Mp // TM,),
        in_specs=in_specs,
        out_specs=pl.BlockSpec((TM, n_out), lambda i: (i, 0)),
        compiler_params=pltpu.CompilerParams(
            dimension_semantics=("parallel",),
            vmem_limit_bytes=64 * 1024 * 1024),
    )(*args)
    return out[:M] if Mp != M else out


# ---------------------------------------------------------------------------
# Layer wrappers (glue: im2col / pooling / reshapes; Pallas does the FLOPs)
# ---------------------------------------------------------------------------

def im2col3x3(x):
    """(N,H,W,C) -> (N*H*W, 9*C). Tap order (ky, kx) matches
    w.reshape(9*Cin, Cout)."""
    N, H, W, C = x.shape
    xp = jnp.pad(x, ((0, 0), (1, 1), (1, 1), (0, 0)))
    cols = [xp[:, ky:ky + H, kx:kx + W, :] for ky in range(3) for kx in range(3)]
    return jnp.concatenate(cols, axis=-1).reshape(N * H * W, 9 * C)


def conv3x3_relu_bn(x, w, b, scale, shift, *, out_proj=None,
                    out_dtype=jnp.bfloat16):
    """3x3 conv (pad=1) -> ReLU -> folded BN, optional fused 1x1 out-conv.
    x: (N,H,W,Cin), w: (3,3,Cin,Cout)."""
    N, H, W, Cin = x.shape
    patches = im2col3x3(x)
    y = fused_matmul(patches, w.reshape(9 * Cin, -1), b,
                     scale=scale, shift=shift, relu=True,
                     out_proj=out_proj, out_dtype=out_dtype)
    return y.reshape(N, H, W, y.shape[-1])


def maxpool2x2(x):
    # TODO(synk): plain-JAX glue; could be fused into the preceding conv
    #             epilogue to save one HBM round-trip per down block.
    N, H, W, C = x.shape
    return x.reshape(N, H // 2, 2, W // 2, 2, C).max(axis=(2, 4))


def conv_transpose2x2(x, w, b):
    """ConvTranspose2d(k=2, s=2) as a single lane-dense matmul Cin -> 4*Cout.
    x: (N,Hi,Wi,Cin), w: (2,2,Cin,Cout)."""
    N, Hi, Wi, Cin = x.shape
    Cout = w.shape[-1]
    w2 = jnp.transpose(w, (2, 0, 1, 3)).reshape(Cin, 4 * Cout)  # (Cin, r,s,Cout)
    b4 = jnp.tile(b, 4)                                          # bias per (r,s)
    y = fused_matmul(x.reshape(N * Hi * Wi, Cin), w2, b4)        # (M, 4*Cout)
    y = y.reshape(N, Hi, Wi, 2, 2, Cout)
    y = jnp.transpose(y, (0, 1, 3, 2, 4, 5)).reshape(N, 2 * Hi, 2 * Wi, Cout)
    return y


# ---------------------------------------------------------------------------
# Model composition
# ---------------------------------------------------------------------------

def double_conv(x, p, *, out_proj=None):
    x = conv3x3_relu_bn(x, p["w1"], p["b1"], p["scale1"], p["shift1"])
    return conv3x3_relu_bn(
        x, p["w2"], p["b2"], p["scale2"], p["shift2"],
        out_proj=out_proj,
        out_dtype=jnp.float32 if out_proj is not None else jnp.bfloat16)


def up_block(x1, x2, p, *, out_proj=None):
    x1 = conv_transpose2x2(x1, p["up_w"], p["up_b"])
    dY = x2.shape[1] - x1.shape[1]
    dX = x2.shape[2] - x1.shape[2]
    if dY or dX:
        x1 = jnp.pad(x1, ((0, 0), (dY // 2, dY - dY // 2),
                          (dX // 2, dX - dX // 2), (0, 0)))
    # TODO(synk): concat materialization could be removed via split-K
    #             accumulation (two partial dots) in the first conv kernel.
    x = jnp.concatenate([x2, x1], axis=-1)        # torch.cat([x2, x1], dim=1)
    return double_conv(x, p["dc"], out_proj=out_proj)


def unet_forward(x_nchw, params):
    x = jnp.transpose(x_nchw, (0, 2, 3, 1)).astype(jnp.bfloat16)  # NCHW->NHWC
    x1 = double_conv(x, params["inc"])
    x2 = double_conv(maxpool2x2(x1), params["down1"])
    x3 = double_conv(maxpool2x2(x2), params["down2"])
    x4 = double_conv(maxpool2x2(x3), params["down3"])
    # dropout_rate = 0.0 -> nn.Identity
    u = up_block(x4, x3, params["up1"])
    u = up_block(u, x2, params["up2"])
    out_proj = (params["outc"]["w"], params["outc"]["b"])
    u = up_block(u, x1, params["up3"], out_proj=out_proj)  # 1x1 OutConv fused
    return jnp.transpose(u, (0, 3, 1, 2))                  # NHWC -> NCHW (f32)


# ---------------------------------------------------------------------------
# Deterministic parameter initialization
# ---------------------------------------------------------------------------

def _bn_params(key, c):
    k1, k2, k3, k4 = jax.random.split(key, 4)
    gamma = 1.0 + 0.1 * jax.random.normal(k1, (c,), jnp.float32)
    beta = 0.1 * jax.random.normal(k2, (c,), jnp.float32)
    mean = 0.1 * jax.random.normal(k3, (c,), jnp.float32)
    var = jax.random.uniform(k4, (c,), jnp.float32, 0.5, 1.5)
    scale = gamma / jnp.sqrt(var + 1e-5)
    shift = beta - mean * scale
    return scale, shift


def init_double_conv(key, cin, cout):
    ks = jax.random.split(key, 6)
    s1, sh1 = _bn_params(ks[2], cout)
    s2, sh2 = _bn_params(ks[5], cout)
    return dict(
        w1=0.1 * jax.random.normal(ks[0], (3, 3, cin, cout), jnp.float32),
        b1=0.1 * jax.random.normal(ks[1], (cout,), jnp.float32),
        scale1=s1, shift1=sh1,
        w2=0.1 * jax.random.normal(ks[3], (3, 3, cout, cout), jnp.float32),
        b2=0.1 * jax.random.normal(ks[4], (cout,), jnp.float32),
        scale2=s2, shift2=sh2,
    )


def init_up(key, in_ch, out_ch):
    k1, k2, k3 = jax.random.split(key, 3)
    return dict(
        up_w=0.1 * jax.random.normal(k1, (2, 2, in_ch, in_ch // 2), jnp.float32),
        up_b=0.1 * jax.random.normal(k2, (in_ch // 2,), jnp.float32),
        dc=init_double_conv(k3, in_ch, out_ch),
    )


def init_params(key, in_channels, out_channels, features):
    f0, f1, f2, f3 = features
    ks = jax.random.split(key, 9)
    return dict(
        inc=init_double_conv(ks[0], in_channels, f0),
        down1=init_double_conv(ks[1], f0, f1),
        down2=init_double_conv(ks[2], f1, f2),
        down3=init_double_conv(ks[3], f2, f3),
        up1=init_up(ks[4], f3, f2),
        up2=init_up(ks[5], f2, f1),
        up3=init_up(ks[6], f1, f0),
        outc=dict(
            w=0.1 * jax.random.normal(ks[7], (f0, out_channels), jnp.float32),
            b=0.1 * jax.random.normal(ks[8], (out_channels,), jnp.float32),
        ),
    )


# ---------------------------------------------------------------------------

if __name__ == "__main__":
    key = jax.random.PRNGKey(0)
    kx, kp = jax.random.split(key)

    in_channels, out_channels = 5, 1
    features = [8, 16, 32, 64]          # small feature sizes (configurable)
    N, H, W = 2, 16, 16

    x = jax.random.normal(kx, (N, in_channels, H, W), jnp.float32)   # NCHW input
    params = init_params(kp, in_channels, out_channels, features)

    fwd = jax.jit(unet_forward)
    y = jax.block_until_ready(fwd(x, params))

    assert y.shape == (N, out_channels, H, W), y.shape
    assert jnp.all(jnp.isfinite(y))
    print("KERNEL_OK")
</pallas_src>

<mosaic_0001>
module attributes {stable_mosaic.version = 11 : i64} {
  func.func @kernel(%arg0: i32, %arg1: memref<256x45xbf16, #tpu.memory_space<vmem>>, %arg2: memref<45x8xbf16, #tpu.memory_space<vmem>>, %arg3: memref<1x8xf32, #tpu.memory_space<vmem>>, %arg4: memref<1x8xf32, #tpu.memory_space<vmem>>, %arg5: memref<1x8xf32, #tpu.memory_space<vmem>>, %arg6: memref<256x8xbf16, #tpu.memory_space<vmem>>) attributes {dimension_semantics = [#tpu.dimension_semantics<parallel>], iteration_bounds = array<i64: 2>, scalar_prefetch = 0 : i64, scratch_operands = 0 : i64, tpu.core_type = #tpu.core_type<tc>, window_params = [{transform_indices = @transform_0, window_bounds = array<i64: 256, 45>}, {pipeline_mode = #tpu.pipeline_mode<synchronous>, transform_indices = @transform_1, window_bounds = array<i64: 45, 8>}, {pipeline_mode = #tpu.pipeline_mode<synchronous>, transform_indices = @transform_2, window_bounds = array<i64: 1, 8>}, {pipeline_mode = #tpu.pipeline_mode<synchronous>, transform_indices = @transform_3, window_bounds = array<i64: 1, 8>}, {pipeline_mode = #tpu.pipeline_mode<synchronous>, transform_indices = @transform_4, window_bounds = array<i64: 1, 8>}, {transform_indices = @transform_5, window_bounds = array<i64: 256, 8>}]} {
    %c0 = arith.constant 0 : index
    %c0_0 = arith.constant 0 : index
    %0 = vector.load %arg1[%c0, %c0_0] : memref<256x45xbf16, #tpu.memory_space<vmem>>, vector<256x45xbf16>
    %c0_1 = arith.constant 0 : index
    %c0_2 = arith.constant 0 : index
    %1 = vector.load %arg2[%c0_1, %c0_2] : memref<45x8xbf16, #tpu.memory_space<vmem>>, vector<45x8xbf16>
    %cst = arith.constant dense<0.000000e+00> : vector<256x8xf32>
    %2 = tpu.matmul %0, %1, %cst {dimension_numbers = #tpu.dot_dimension_numbers<[1], [0], [0], [1], [0, 0, 1, 1], [], []>} : vector<256x45xbf16>, vector<45x8xbf16>, vector<256x8xf32> -> vector<256x8xf32>
    %c0_3 = arith.constant 0 : index
    %c0_4 = arith.constant 0 : index
    %3 = vector.load %arg3[%c0_3, %c0_4] : memref<1x8xf32, #tpu.memory_space<vmem>>, vector<1x8xf32>
    %4 = vector.broadcast %3 : vector<1x8xf32> to vector<256x8xf32>
    %5 = arith.addf %2, %4 : vector<256x8xf32>
    %cst_5 = arith.constant 0.000000e+00 : f32
    %6 = vector.broadcast %cst_5 : f32 to vector<256x8xf32>
    %7 = arith.maximumf %5, %6 : vector<256x8xf32>
    %c0_6 = arith.constant 0 : index
    %c0_7 = arith.constant 0 : index
    %8 = vector.load %arg4[%c0_6, %c0_7] : memref<1x8xf32, #tpu.memory_space<vmem>>, vector<1x8xf32>
    %9 = vector.broadcast %8 : vector<1x8xf32> to vector<256x8xf32>
    %10 = arith.mulf %7, %9 : vector<256x8xf32>
    %c0_8 = arith.constant 0 : index
    %c0_9 = arith.constant 0 : index
    %11 = vector.load %arg5[%c0_8, %c0_9] : memref<1x8xf32, #tpu.memory_space<vmem>>, vector<1x8xf32>
    %12 = vector.broadcast %11 : vector<1x8xf32> to vector<256x8xf32>
    %13 = arith.addf %10, %12 : vector<256x8xf32>
    %14 = arith.truncf %13 : vector<256x8xf32> to vector<256x8xbf16>
    %c0_10 = arith.constant 0 : index
    %c0_11 = arith.constant 0 : index
    %15 = vector.load %arg6[%c0_10, %c0_11] : memref<256x8xbf16, #tpu.memory_space<vmem>>, vector<256x8xbf16>
    tpu.vector_store %arg6[%c0_10, %c0_11], %14 {strides = array<i32>} : memref<256x8xbf16, #tpu.memory_space<vmem>>, vector<256x8xbf16>,
    return
  }
  func.func @transform_0(%arg0: i32) -> (i32, i32) {
    %c0_i32 = arith.constant 0 : i32
    %c0_i32_0 = arith.constant 0 : i32
    return %arg0, %c0_i32 : i32, i32
  }
  func.func @transform_1(%arg0: i32) -> (i32, i32) {
    %c0_i32 = arith.constant 0 : i32
    %c0_i32_0 = arith.constant 0 : i32
    %c0_i32_1 = arith.constant 0 : i32
    return %c0_i32, %c0_i32_0 : i32, i32
  }
  func.func @transform_2(%arg0: i32) -> (i32, i32) {
    %c0_i32 = arith.constant 0 : i32
    %c0_i32_0 = arith.constant 0 : i32
    %c0_i32_1 = arith.constant 0 : i32
    return %c0_i32, %c0_i32_0 : i32, i32
  }
  func.func @transform_3(%arg0: i32) -> (i32, i32) {
    %c0_i32 = arith.constant 0 : i32
    %c0_i32_0 = arith.constant 0 : i32
    %c0_i32_1 = arith.constant 0 : i32
    return %c0_i32, %c0_i32_0 : i32, i32
  }
  func.func @transform_4(%arg0: i32) -> (i32, i32) {
    %c0_i32 = arith.constant 0 : i32
    %c0_i32_0 = arith.constant 0 : i32
    %c0_i32_1 = arith.constant 0 : i32
    return %c0_i32, %c0_i32_0 : i32, i32
  }
  func.func @transform_5(%arg0: i32) -> (i32, i32) {
    %c0_i32 = arith.constant 0 : i32
    %c0_i32_0 = arith.constant 0 : i32
    return %arg0, %c0_i32 : i32, i32
  }
}

module attributes {stable_mosaic.version = 11 : i64} {
  func.func @kernel(%arg0: i32, %arg1: memref<256x72xbf16, #tpu.memory_space<vmem>>, %arg2: memref<72x8xbf16, #tpu.memory_space<vmem>>, %arg3: memref<1x8xf32, #tpu.memory_space<vmem>>, %arg4: memref<1x8xf32, #tpu.memory_space<vmem>>, %arg5: memref<1x8xf32, #tpu.memory_space<vmem>>, %arg6: memref<256x8xbf16, #tpu.memory_space<vmem>>) attributes {dimension_semantics = [#tpu.dimension_semantics<parallel>], iteration_bounds = array<i64: 2>, scalar_prefetch = 0 : i64, scratch_operands = 0 : i64, tpu.core_type = #tpu.core_type<tc>, window_params = [{transform_indices = @transform_0, window_bounds = array<i64: 256, 72>}, {pipeline_mode = #tpu.pipeline_mode<synchronous>, transform_indices = @transform_1, window_bounds = array<i64: 72, 8>}, {pipeline_mode = #tpu.pipeline_mode<synchronous>, transform_indices = @transform_2, window_bounds = array<i64: 1, 8>}, {pipeline_mode = #tpu.pipeline_mode<synchronous>, transform_indices = @transform_3, window_bounds = array<i64: 1, 8>}, {pipeline_mode = #tpu.pipeline_mode<synchronous>, transform_indices = @transform_4, window_bounds = array<i64: 1, 8>}, {transform_indices = @transform_5, window_bounds = array<i64: 256, 8>}]} {
    %c0 = arith.constant 0 : index
    %c0_0 = arith.constant 0 : index
    %0 = vector.load %arg1[%c0, %c0_0] : memref<256x72xbf16, #tpu.memory_space<vmem>>, vector<256x72xbf16>
    %c0_1 = arith.constant 0 : index
    %c0_2 = arith.constant 0 : index
    %1 = vector.load %arg2[%c0_1, %c0_2] : memref<72x8xbf16, #tpu.memory_space<vmem>>, vector<72x8xbf16>
    %cst = arith.constant dense<0.000000e+00> : vector<256x8xf32>
    %2 = tpu.matmul %0, %1, %cst {dimension_numbers = #tpu.dot_dimension_numbers<[1], [0], [0], [1], [0, 0, 1, 1], [], []>} : vector<256x72xbf16>, vector<72x8xbf16>, vector<256x8xf32> -> vector<256x8xf32>
    %c0_3 = arith.constant 0 : index
    %c0_4 = arith.constant 0 : index
    %3 = vector.load %arg3[%c0_3, %c0_4] : memref<1x8xf32, #tpu.memory_space<vmem>>, vector<1x8xf32>
    %4 = vector.broadcast %3 : vector<1x8xf32> to vector<256x8xf32>
    %5 = arith.addf %2, %4 : vector<256x8xf32>
    %cst_5 = arith.constant 0.000000e+00 : f32
    %6 = vector.broadcast %cst_5 : f32 to vector<256x8xf32>
    %7 = arith.maximumf %5, %6 : vector<256x8xf32>
    %c0_6 = arith.constant 0 : index
    %c0_7 = arith.constant 0 : index
    %8 = vector.load %arg4[%c0_6, %c0_7] : memref<1x8xf32, #tpu.memory_space<vmem>>, vector<1x8xf32>
    %9 = vector.broadcast %8 : vector<1x8xf32> to vector<256x8xf32>
    %10 = arith.mulf %7, %9 : vector<256x8xf32>
    %c0_8 = arith.constant 0 : index
    %c0_9 = arith.constant 0 : index
    %11 = vector.load %arg5[%c0_8, %c0_9] : memref<1x8xf32, #tpu.memory_space<vmem>>, vector<1x8xf32>
    %12 = vector.broadcast %11 : vector<1x8xf32> to vector<256x8xf32>
    %13 = arith.addf %10, %12 : vector<256x8xf32>
    %14 = arith.truncf %13 : vector<256x8xf32> to vector<256x8xbf16>
    %c0_10 = arith.constant 0 : index
    %c0_11 = arith.constant 0 : index
    %15 = vector.load %arg6[%c0_10, %c0_11] : memref<256x8xbf16, #tpu.memory_space<vmem>>, vector<256x8xbf16>
    tpu.vector_store %arg6[%c0_10, %c0_11], %14 {strides = array<i32>} : memref<256x8xbf16, #tpu.memory_space<vmem>>, vector<256x8xbf16>,
    return
  }
  func.func @transform_0(%arg0: i32) -> (i32, i32) {
    %c0_i32 = arith.constant 0 : i32
    %c0_i32_0 = arith.constant 0 : i32
    return %arg0, %c0_i32 : i32, i32
  }
  func.func @transform_1(%arg0: i32) -> (i32, i32) {
    %c0_i32 = arith.constant 0 : i32
    %c0_i32_0 = arith.constant 0 : i32
    %c0_i32_1 = arith.constant 0 : i32
    return %c0_i32, %c0_i32_0 : i32, i32
  }
  func.func @transform_2(%arg0: i32) -> (i32, i32) {
    %c0_i32 = arith.constant 0 : i32
    %c0_i32_0 = arith.constant 0 : i32
    %c0_i32_1 = arith.constant 0 : i32
    return %c0_i32, %c0_i32_0 : i32, i32
  }
  func.func @transform_3(%arg0: i32) -> (i32, i32) {
    %c0_i32 = arith.constant 0 : i32
    %c0_i32_0 = arith.constant 0 : i32
    %c0_i32_1 = arith.constant 0 : i32
    return %c0_i32, %c0_i32_0 : i32, i32
  }
  func.func @transform_4(%arg0: i32) -> (i32, i32) {
    %c0_i32 = arith.constant 0 : i32
    %c0_i32_0 = arith.constant 0 : i32
    %c0_i32_1 = arith.constant 0 : i32
    return %c0_i32, %c0_i32_0 : i32, i32
  }
  func.func @transform_5(%arg0: i32) -> (i32, i32) {
    %c0_i32 = arith.constant 0 : i32
    %c0_i32_0 = arith.constant 0 : i32
    return %arg0, %c0_i32 : i32, i32
  }
}

module attributes {stable_mosaic.version = 11 : i64} {
  func.func @kernel(%arg0: i32, %arg1: memref<128x72xbf16, #tpu.memory_space<vmem>>, %arg2: memref<72x16xbf16, #tpu.memory_space<vmem>>, %arg3: memref<1x16xf32, #tpu.memory_space<vmem>>, %arg4: memref<1x16xf32, #tpu.memory_space<vmem>>, %arg5: memref<1x16xf32, #tpu.memory_space<vmem>>, %arg6: memref<128x16xbf16, #tpu.memory_space<vmem>>) attributes {dimension_semantics = [#tpu.dimension_semantics<parallel>], iteration_bounds = array<i64: 1>, scalar_prefetch = 0 : i64, scratch_operands = 0 : i64, tpu.core_type = #tpu.core_type<tc>, window_params = [{transform_indices = @transform_0, window_bounds = array<i64: 128, 72>}, {pipeline_mode = #tpu.pipeline_mode<synchronous>, transform_indices = @transform_1, window_bounds = array<i64: 72, 16>}, {pipeline_mode = #tpu.pipeline_mode<synchronous>, transform_indices = @transform_2, window_bounds = array<i64: 1, 16>}, {pipeline_mode = #tpu.pipeline_mode<synchronous>, transform_indices = @transform_3, window_bounds = array<i64: 1, 16>}, {pipeline_mode = #tpu.pipeline_mode<synchronous>, transform_indices = @transform_4, window_bounds = array<i64: 1, 16>}, {transform_indices = @transform_5, window_bounds = array<i64: 128, 16>}]} {
    %c0 = arith.constant 0 : index
    %c0_0 = arith.constant 0 : index
    %0 = vector.load %arg1[%c0, %c0_0] : memref<128x72xbf16, #tpu.memory_space<vmem>>, vector<128x72xbf16>
    %c0_1 = arith.constant 0 : index
    %c0_2 = arith.constant 0 : index
    %1 = vector.load %arg2[%c0_1, %c0_2] : memref<72x16xbf16, #tpu.memory_space<vmem>>, vector<72x16xbf16>
    %cst = arith.constant dense<0.000000e+00> : vector<128x16xf32>
    %2 = tpu.matmul %0, %1, %cst {dimension_numbers = #tpu.dot_dimension_numbers<[1], [0], [0], [1], [0, 0, 1, 1], [], []>} : vector<128x72xbf16>, vector<72x16xbf16>, vector<128x16xf32> -> vector<128x16xf32>
    %c0_3 = arith.constant 0 : index
    %c0_4 = arith.constant 0 : index
    %3 = vector.load %arg3[%c0_3, %c0_4] : memref<1x16xf32, #tpu.memory_space<vmem>>, vector<1x16xf32>
    %4 = vector.broadcast %3 : vector<1x16xf32> to vector<128x16xf32>
    %5 = arith.addf %2, %4 : vector<128x16xf32>
    %cst_5 = arith.constant 0.000000e+00 : f32
    %6 = vector.broadcast %cst_5 : f32 to vector<128x16xf32>
    %7 = arith.maximumf %5, %6 : vector<128x16xf32>
    %c0_6 = arith.constant 0 : index
    %c0_7 = arith.constant 0 : index
    %8 = vector.load %arg4[%c0_6, %c0_7] : memref<1x16xf32, #tpu.memory_space<vmem>>, vector<1x16xf32>
    %9 = vector.broadcast %8 : vector<1x16xf32> to vector<128x16xf32>
    %10 = arith.mulf %7, %9 : vector<128x16xf32>
    %c0_8 = arith.constant 0 : index
    %c0_9 = arith.constant 0 : index
    %11 = vector.load %arg5[%c0_8, %c0_9] : memref<1x16xf32, #tpu.memory_space<vmem>>, vector<1x16xf32>
    %12 = vector.broadcast %11 : vector<1x16xf32> to vector<128x16xf32>
    %13 = arith.addf %10, %12 : vector<128x16xf32>
    %14 = arith.truncf %13 : vector<128x16xf32> to vector<128x16xbf16>
    %c0_10 = arith.constant 0 : index
    %c0_11 = arith.constant 0 : index
    %15 = vector.load %arg6[%c0_10, %c0_11] : memref<128x16xbf16, #tpu.memory_space<vmem>>, vector<128x16xbf16>
    tpu.vector_store %arg6[%c0_10, %c0_11], %14 {strides = array<i32>} : memref<128x16xbf16, #tpu.memory_space<vmem>>, vector<128x16xbf16>,
    return
  }
  func.func @transform_0(%arg0: i32) -> (i32, i32) {
    %c0_i32 = arith.constant 0 : i32
    %c0_i32_0 = arith.constant 0 : i32
    return %arg0, %c0_i32 : i32, i32
  }
  func.func @transform_1(%arg0: i32) -> (i32, i32) {
    %c0_i32 = arith.constant 0 : i32
    %c0_i32_0 = arith.constant 0 : i32
    %c0_i32_1 = arith.constant 0 : i32
    return %c0_i32, %c0_i32_0 : i32, i32
  }
  func.func @transform_2(%arg0: i32) -> (i32, i32) {
    %c0_i32 = arith.constant 0 : i32
    %c0_i32_0 = arith.constant 0 : i32
    %c0_i32_1 = arith.constant 0 : i32
    return %c0_i32, %c0_i32_0 : i32, i32
  }
  func.func @transform_3(%arg0: i32) -> (i32, i32) {
    %c0_i32 = arith.constant 0 : i32
    %c0_i32_0 = arith.constant 0 : i32
    %c0_i32_1 = arith.constant 0 : i32
    return %c0_i32, %c0_i32_0 : i32, i32
  }
  func.func @transform_4(%arg0: i32) -> (i32, i32) {
    %c0_i32 = arith.constant 0 : i32
    %c0_i32_0 = arith.constant 0 : i32
    %c0_i32_1 = arith.constant 0 : i32
    return %c0_i32, %c0_i32_0 : i32, i32
  }
  func.func @transform_5(%arg0: i32) -> (i32, i32) {
    %c0_i32 = arith.constant 0 : i32
    %c0_i32_0 = arith.constant 0 : i32
    return %arg0, %c0_i32 : i32, i32
  }
}

module attributes {stable_mosaic.version = 11 : i64} {
  func.func @kernel(%arg0: i32, %arg1: memref<128x144xbf16, #tpu.memory_space<vmem>>, %arg2: memref<144x16xbf16, #tpu.memory_space<vmem>>, %arg3: memref<1x16xf32, #tpu.memory_space<vmem>>, %arg4: memref<1x16xf32, #tpu.memory_space<vmem>>, %arg5: memref<1x16xf32, #tpu.memory_space<vmem>>, %arg6: memref<128x16xbf16, #tpu.memory_space<vmem>>) attributes {dimension_semantics = [#tpu.dimension_semantics<parallel>], iteration_bounds = array<i64: 1>, scalar_prefetch = 0 : i64, scratch_operands = 0 : i64, tpu.core_type = #tpu.core_type<tc>, window_params = [{transform_indices = @transform_0, window_bounds = array<i64: 128, 144>}, {pipeline_mode = #tpu.pipeline_mode<synchronous>, transform_indices = @transform_1, window_bounds = array<i64: 144, 16>}, {pipeline_mode = #tpu.pipeline_mode<synchronous>, transform_indices = @transform_2, window_bounds = array<i64: 1, 16>}, {pipeline_mode = #tpu.pipeline_mode<synchronous>, transform_indices = @transform_3, window_bounds = array<i64: 1, 16>}, {pipeline_mode = #tpu.pipeline_mode<synchronous>, transform_indices = @transform_4, window_bounds = array<i64: 1, 16>}, {transform_indices = @transform_5, window_bounds = array<i64: 128, 16>}]} {
    %c0 = arith.constant 0 : index
    %c0_0 = arith.constant 0 : index
    %0 = vector.load %arg1[%c0, %c0_0] : memref<128x144xbf16, #tpu.memory_space<vmem>>, vector<128x144xbf16>
    %c0_1 = arith.constant 0 : index
    %c0_2 = arith.constant 0 : index
    %1 = vector.load %arg2[%c0_1, %c0_2] : memref<144x16xbf16, #tpu.memory_space<vmem>>, vector<144x16xbf16>
    %cst = arith.constant dense<0.000000e+00> : vector<128x16xf32>
    %2 = tpu.matmul %0, %1, %cst {dimension_numbers = #tpu.dot_dimension_numbers<[1], [0], [0], [1], [0, 0, 1, 1], [], []>} : vector<128x144xbf16>, vector<144x16xbf16>, vector<128x16xf32> -> vector<128x16xf32>
    %c0_3 = arith.constant 0 : index
    %c0_4 = arith.constant 0 : index
    %3 = vector.load %arg3[%c0_3, %c0_4] : memref<1x16xf32, #tpu.memory_space<vmem>>, vector<1x16xf32>
    %4 = vector.broadcast %3 : vector<1x16xf32> to vector<128x16xf32>
    %5 = arith.addf %2, %4 : vector<128x16xf32>
    %cst_5 = arith.constant 0.000000e+00 : f32
    %6 = vector.broadcast %cst_5 : f32 to vector<128x16xf32>
    %7 = arith.maximumf %5, %6 : vector<128x16xf32>
    %c0_6 = arith.constant 0 : index
    %c0_7 = arith.constant 0 : index
    %8 = vector.load %arg4[%c0_6, %c0_7] : memref<1x16xf32, #tpu.memory_space<vmem>>, vector<1x16xf32>
    %9 = vector.broadcast %8 : vector<1x16xf32> to vector<128x16xf32>
    %10 = arith.mulf %7, %9 : vector<128x16xf32>
    %c0_8 = arith.constant 0 : index
    %c0_9 = arith.constant 0 : index
    %11 = vector.load %arg5[%c0_8, %c0_9] : memref<1x16xf32, #tpu.memory_space<vmem>>, vector<1x16xf32>
    %12 = vector.broadcast %11 : vector<1x16xf32> to vector<128x16xf32>
    %13 = arith.addf %10, %12 : vector<128x16xf32>
    %14 = arith.truncf %13 : vector<128x16xf32> to vector<128x16xbf16>
    %c0_10 = arith.constant 0 : index
    %c0_11 = arith.constant 0 : index
    %15 = vector.load %arg6[%c0_10, %c0_11] : memref<128x16xbf16, #tpu.memory_space<vmem>>, vector<128x16xbf16>
    tpu.vector_store %arg6[%c0_10, %c0_11], %14 {strides = array<i32>} : memref<128x16xbf16, #tpu.memory_space<vmem>>, vector<128x16xbf16>,
    return
  }
  func.func @transform_0(%arg0: i32) -> (i32, i32) {
    %c0_i32 = arith.constant 0 : i32
    %c0_i32_0 = arith.constant 0 : i32
    return %arg0, %c0_i32 : i32, i32
  }
  func.func @transform_1(%arg0: i32) -> (i32, i32) {
    %c0_i32 = arith.constant 0 : i32
    %c0_i32_0 = arith.constant 0 : i32
    %c0_i32_1 = arith.constant 0 : i32
    return %c0_i32, %c0_i32_0 : i32, i32
  }
  func.func @transform_2(%arg0: i32) -> (i32, i32) {
    %c0_i32 = arith.constant 0 : i32
    %c0_i32_0 = arith.constant 0 : i32
    %c0_i32_1 = arith.constant 0 : i32
    return %c0_i32, %c0_i32_0 : i32, i32
  }
  func.func @transform_3(%arg0: i32) -> (i32, i32) {
    %c0_i32 = arith.constant 0 : i32
    %c0_i32_0 = arith.constant 0 : i32
    %c0_i32_1 = arith.constant 0 : i32
    return %c0_i32, %c0_i32_0 : i32, i32
  }
  func.func @transform_4(%arg0: i32) -> (i32, i32) {
    %c0_i32 = arith.constant 0 : i32
    %c0_i32_0 = arith.constant 0 : i32
    %c0_i32_1 = arith.constant 0 : i32
    return %c0_i32, %c0_i32_0 : i32, i32
  }
  func.func @transform_5(%arg0: i32) -> (i32, i32) {
    %c0_i32 = arith.constant 0 : i32
    %c0_i32_0 = arith.constant 0 : i32
    return %arg0, %c0_i32 : i32, i32
  }
}

module attributes {stable_mosaic.version = 11 : i64} {
  func.func @kernel(%arg0: i32, %arg1: memref<32x144xbf16, #tpu.memory_space<vmem>>, %arg2: memref<144x32xbf16, #tpu.memory_space<vmem>>, %arg3: memref<1x32xf32, #tpu.memory_space<vmem>>, %arg4: memref<1x32xf32, #tpu.memory_space<vmem>>, %arg5: memref<1x32xf32, #tpu.memory_space<vmem>>, %arg6: memref<32x32xbf16, #tpu.memory_space<vmem>>) attributes {dimension_semantics = [#tpu.dimension_semantics<parallel>], iteration_bounds = array<i64: 1>, scalar_prefetch = 0 : i64, scratch_operands = 0 : i64, tpu.core_type = #tpu.core_type<tc>, window_params = [{transform_indices = @transform_0, window_bounds = array<i64: 32, 144>}, {pipeline_mode = #tpu.pipeline_mode<synchronous>, transform_indices = @transform_1, window_bounds = array<i64: 144, 32>}, {pipeline_mode = #tpu.pipeline_mode<synchronous>, transform_indices = @transform_2, window_bounds = array<i64: 1, 32>}, {pipeline_mode = #tpu.pipeline_mode<synchronous>, transform_indices = @transform_3, window_bounds = array<i64: 1, 32>}, {pipeline_mode = #tpu.pipeline_mode<synchronous>, transform_indices = @transform_4, window_bounds = array<i64: 1, 32>}, {transform_indices = @transform_5, window_bounds = array<i64: 32, 32>}]} {
    %c0 = arith.constant 0 : index
    %c0_0 = arith.constant 0 : index
    %0 = vector.load %arg1[%c0, %c0_0] : memref<32x144xbf16, #tpu.memory_space<vmem>>, vector<32x144xbf16>
    %c0_1 = arith.constant 0 : index
    %c0_2 = arith.constant 0 : index
    %1 = vector.load %arg2[%c0_1, %c0_2] : memref<144x32xbf16, #tpu.memory_space<vmem>>, vector<144x32xbf16>
    %cst = arith.constant dense<0.000000e+00> : vector<32x32xf32>
    %2 = tpu.matmul %0, %1, %cst {dimension_numbers = #tpu.dot_dimension_numbers<[1], [0], [0], [1], [0, 0, 1, 1], [], []>} : vector<32x144xbf16>, vector<144x32xbf16>, vector<32x32xf32> -> vector<32x32xf32>
    %c0_3 = arith.constant 0 : index
    %c0_4 = arith.constant 0 : index
    %3 = vector.load %arg3[%c0_3, %c0_4] : memref<1x32xf32, #tpu.memory_space<vmem>>, vector<1x32xf32>
    %4 = vector.broadcast %3 : vector<1x32xf32> to vector<32x32xf32>
    %5 = arith.addf %2, %4 : vector<32x32xf32>
    %cst_5 = arith.constant 0.000000e+00 : f32
    %6 = vector.broadcast %cst_5 : f32 to vector<32x32xf32>
    %7 = arith.maximumf %5, %6 : vector<32x32xf32>
    %c0_6 = arith.constant 0 : index
    %c0_7 = arith.constant 0 : index
    %8 = vector.load %arg4[%c0_6, %c0_7] : memref<1x32xf32, #tpu.memory_space<vmem>>, vector<1x32xf32>
    %9 = vector.broadcast %8 : vector<1x32xf32> to vector<32x32xf32>
    %10 = arith.mulf %7, %9 : vector<32x32xf32>
    %c0_8 = arith.constant 0 : index
    %c0_9 = arith.constant 0 : index
    %11 = vector.load %arg5[%c0_8, %c0_9] : memref<1x32xf32, #tpu.memory_space<vmem>>, vector<1x32xf32>
    %12 = vector.broadcast %11 : vector<1x32xf32> to vector<32x32xf32>
    %13 = arith.addf %10, %12 : vector<32x32xf32>
    %14 = arith.truncf %13 : vector<32x32xf32> to vector<32x32xbf16>
    %c0_10 = arith.constant 0 : index
    %c0_11 = arith.constant 0 : index
    %15 = vector.load %arg6[%c0_10, %c0_11] : memref<32x32xbf16, #tpu.memory_space<vmem>>, vector<32x32xbf16>
    tpu.vector_store %arg6[%c0_10, %c0_11], %14 {strides = array<i32>} : memref<32x32xbf16, #tpu.memory_space<vmem>>, vector<32x32xbf16>,
    return
  }
  func.func @transform_0(%arg0: i32) -> (i32, i32) {
    %c0_i32 = arith.constant 0 : i32
    %c0_i32_0 = arith.constant 0 : i32
    return %arg0, %c0_i32 : i32, i32
  }
  func.func @transform_1(%arg0: i32) -> (i32, i32) {
    %c0_i32 = arith.constant 0 : i32
    %c0_i32_0 = arith.constant 0 : i32
    %c0_i32_1 = arith.constant 0 : i32
    return %c0_i32, %c0_i32_0 : i32, i32
  }
  func.func @transform_2(%arg0: i32) -> (i32, i32) {
    %c0_i32 = arith.constant 0 : i32
    %c0_i32_0 = arith.constant 0 : i32
    %c0_i32_1 = arith.constant 0 : i32
    return %c0_i32, %c0_i32_0 : i32, i32
  }
  func.func @transform_3(%arg0: i32) -> (i32, i32) {
    %c0_i32 = arith.constant 0 : i32
    %c0_i32_0 = arith.constant 0 : i32
    %c0_i32_1 = arith.constant 0 : i32
    return %c0_i32, %c0_i32_0 : i32, i32
  }
  func.func @transform_4(%arg0: i32) -> (i32, i32) {
    %c0_i32 = arith.constant 0 : i32
    %c0_i32_0 = arith.constant 0 : i32
    %c0_i32_1 = arith.constant 0 : i32
    return %c0_i32, %c0_i32_0 : i32, i32
  }
  func.func @transform_5(%arg0: i32) -> (i32, i32) {
    %c0_i32 = arith.constant 0 : i32
    %c0_i32_0 = arith.constant 0 : i32
    return %arg0, %c0_i32 : i32, i32
  }
}

module attributes {stable_mosaic.version = 11 : i64} {
  func.func @kernel(%arg0: i32, %arg1: memref<32x288xbf16, #tpu.memory_space<vmem>>, %arg2: memref<288x32xbf16, #tpu.memory_space<vmem>>, %arg3: memref<1x32xf32, #tpu.memory_space<vmem>>, %arg4: memref<1x32xf32, #tpu.memory_space<vmem>>, %arg5: memref<1x32xf32, #tpu.memory_space<vmem>>, %arg6: memref<32x32xbf16, #tpu.memory_space<vmem>>) attributes {dimension_semantics = [#tpu.dimension_semantics<parallel>], iteration_bounds = array<i64: 1>, scalar_prefetch = 0 : i64, scratch_operands = 0 : i64, tpu.core_type = #tpu.core_type<tc>, window_params = [{transform_indices = @transform_0, window_bounds = array<i64: 32, 288>}, {pipeline_mode = #tpu.pipeline_mode<synchronous>, transform_indices = @transform_1, window_bounds = array<i64: 288, 32>}, {pipeline_mode = #tpu.pipeline_mode<synchronous>, transform_indices = @transform_2, window_bounds = array<i64: 1, 32>}, {pipeline_mode = #tpu.pipeline_mode<synchronous>, transform_indices = @transform_3, window_bounds = array<i64: 1, 32>}, {pipeline_mode = #tpu.pipeline_mode<synchronous>, transform_indices = @transform_4, window_bounds = array<i64: 1, 32>}, {transform_indices = @transform_5, window_bounds = array<i64: 32, 32>}]} {
    %c0 = arith.constant 0 : index
    %c0_0 = arith.constant 0 : index
    %0 = vector.load %arg1[%c0, %c0_0] : memref<32x288xbf16, #tpu.memory_space<vmem>>, vector<32x288xbf16>
    %c0_1 = arith.constant 0 : index
    %c0_2 = arith.constant 0 : index
    %1 = vector.load %arg2[%c0_1, %c0_2] : memref<288x32xbf16, #tpu.memory_space<vmem>>, vector<288x32xbf16>
    %cst = arith.constant dense<0.000000e+00> : vector<32x32xf32>
    %2 = tpu.matmul %0, %1, %cst {dimension_numbers = #tpu.dot_dimension_numbers<[1], [0], [0], [1], [0, 0, 1, 1], [], []>} : vector<32x288xbf16>, vector<288x32xbf16>, vector<32x32xf32> -> vector<32x32xf32>
    %c0_3 = arith.constant 0 : index
    %c0_4 = arith.constant 0 : index
    %3 = vector.load %arg3[%c0_3, %c0_4] : memref<1x32xf32, #tpu.memory_space<vmem>>, vector<1x32xf32>
    %4 = vector.broadcast %3 : vector<1x32xf32> to vector<32x32xf32>
    %5 = arith.addf %2, %4 : vector<32x32xf32>
    %cst_5 = arith.constant 0.000000e+00 : f32
    %6 = vector.broadcast %cst_5 : f32 to vector<32x32xf32>
    %7 = arith.maximumf %5, %6 : vector<32x32xf32>
    %c0_6 = arith.constant 0 : index
    %c0_7 = arith.constant 0 : index
    %8 = vector.load %arg4[%c0_6, %c0_7] : memref<1x32xf32, #tpu.memory_space<vmem>>, vector<1x32xf32>
    %9 = vector.broadcast %8 : vector<1x32xf32> to vector<32x32xf32>
    %10 = arith.mulf %7, %9 : vector<32x32xf32>
    %c0_8 = arith.constant 0 : index
    %c0_9 = arith.constant 0 : index
    %11 = vector.load %arg5[%c0_8, %c0_9] : memref<1x32xf32, #tpu.memory_space<vmem>>, vector<1x32xf32>
    %12 = vector.broadcast %11 : vector<1x32xf32> to vector<32x32xf32>
    %13 = arith.addf %10, %12 : vector<32x32xf32>
    %14 = arith.truncf %13 : vector<32x32xf32> to vector<32x32xbf16>
    %c0_10 = arith.constant 0 : index
    %c0_11 = arith.constant 0 : index
    %15 = vector.load %arg6[%c0_10, %c0_11] : memref<32x32xbf16, #tpu.memory_space<vmem>>, vector<32x32xbf16>
    tpu.vector_store %arg6[%c0_10, %c0_11], %14 {strides = array<i32>} : memref<32x32xbf16, #tpu.memory_space<vmem>>, vector<32x32xbf16>,
    return
  }
  func.func @transform_0(%arg0: i32) -> (i32, i32) {
    %c0_i32 = arith.constant 0 : i32
    %c0_i32_0 = arith.constant 0 : i32
    return %arg0, %c0_i32 : i32, i32
  }
  func.func @transform_1(%arg0: i32) -> (i32, i32) {
    %c0_i32 = arith.constant 0 : i32
    %c0_i32_0 = arith.constant 0 : i32
    %c0_i32_1 = arith.constant 0 : i32
    return %c0_i32, %c0_i32_0 : i32, i32
  }
  func.func @transform_2(%arg0: i32) -> (i32, i32) {
    %c0_i32 = arith.constant 0 : i32
    %c0_i32_0 = arith.constant 0 : i32
    %c0_i32_1 = arith.constant 0 : i32
    return %c0_i32, %c0_i32_0 : i32, i32
  }
  func.func @transform_3(%arg0: i32) -> (i32, i32) {
    %c0_i32 = arith.constant 0 : i32
    %c0_i32_0 = arith.constant 0 : i32
    %c0_i32_1 = arith.constant 0 : i32
    return %c0_i32, %c0_i32_0 : i32, i32
  }
  func.func @transform_4(%arg0: i32) -> (i32, i32) {
    %c0_i32 = arith.constant 0 : i32
    %c0_i32_0 = arith.constant 0 : i32
    %c0_i32_1 = arith.constant 0 : i32
    return %c0_i32, %c0_i32_0 : i32, i32
  }
  func.func @transform_5(%arg0: i32) -> (i32, i32) {
    %c0_i32 = arith.constant 0 : i32
    %c0_i32_0 = arith.constant 0 : i32
    return %arg0, %c0_i32 : i32, i32
  }
}

module attributes {stable_mosaic.version = 11 : i64} {
  func.func @kernel(%arg0: i32, %arg1: memref<8x288xbf16, #tpu.memory_space<vmem>>, %arg2: memref<288x64xbf16, #tpu.memory_space<vmem>>, %arg3: memref<1x64xf32, #tpu.memory_space<vmem>>, %arg4: memref<1x64xf32, #tpu.memory_space<vmem>>, %arg5: memref<1x64xf32, #tpu.memory_space<vmem>>, %arg6: memref<8x64xbf16, #tpu.memory_space<vmem>>) attributes {dimension_semantics = [#tpu.dimension_semantics<parallel>], iteration_bounds = array<i64: 1>, scalar_prefetch = 0 : i64, scratch_operands = 0 : i64, tpu.core_type = #tpu.core_type<tc>, window_params = [{transform_indices = @transform_0, window_bounds = array<i64: 8, 288>}, {pipeline_mode = #tpu.pipeline_mode<synchronous>, transform_indices = @transform_1, window_bounds = array<i64: 288, 64>}, {pipeline_mode = #tpu.pipeline_mode<synchronous>, transform_indices = @transform_2, window_bounds = array<i64: 1, 64>}, {pipeline_mode = #tpu.pipeline_mode<synchronous>, transform_indices = @transform_3, window_bounds = array<i64: 1, 64>}, {pipeline_mode = #tpu.pipeline_mode<synchronous>, transform_indices = @transform_4, window_bounds = array<i64: 1, 64>}, {transform_indices = @transform_5, window_bounds = array<i64: 8, 64>}]} {
    %c0 = arith.constant 0 : index
    %c0_0 = arith.constant 0 : index
    %0 = vector.load %arg1[%c0, %c0_0] : memref<8x288xbf16, #tpu.memory_space<vmem>>, vector<8x288xbf16>
    %c0_1 = arith.constant 0 : index
    %c0_2 = arith.constant 0 : index
    %1 = vector.load %arg2[%c0_1, %c0_2] : memref<288x64xbf16, #tpu.memory_space<vmem>>, vector<288x64xbf16>
    %cst = arith.constant dense<0.000000e+00> : vector<8x64xf32>
    %2 = tpu.matmul %0, %1, %cst {dimension_numbers = #tpu.dot_dimension_numbers<[1], [0], [0], [1], [0, 0, 1, 1], [], []>} : vector<8x288xbf16>, vector<288x64xbf16>, vector<8x64xf32> -> vector<8x64xf32>
    %c0_3 = arith.constant 0 : index
    %c0_4 = arith.constant 0 : index
    %3 = vector.load %arg3[%c0_3, %c0_4] : memref<1x64xf32, #tpu.memory_space<vmem>>, vector<1x64xf32>
    %4 = vector.broadcast %3 : vector<1x64xf32> to vector<8x64xf32>
    %5 = arith.addf %2, %4 : vector<8x64xf32>
    %cst_5 = arith.constant 0.000000e+00 : f32
    %6 = vector.broadcast %cst_5 : f32 to vector<8x64xf32>
    %7 = arith.maximumf %5, %6 : vector<8x64xf32>
    %c0_6 = arith.constant 0 : index
    %c0_7 = arith.constant 0 : index
    %8 = vector.load %arg4[%c0_6, %c0_7] : memref<1x64xf32, #tpu.memory_space<vmem>>, vector<1x64xf32>
    %9 = vector.broadcast %8 : vector<1x64xf32> to vector<8x64xf32>
    %10 = arith.mulf %7, %9 : vector<8x64xf32>
    %c0_8 = arith.constant 0 : index
    %c0_9 = arith.constant 0 : index
    %11 = vector.load %arg5[%c0_8, %c0_9] : memref<1x64xf32, #tpu.memory_space<vmem>>, vector<1x64xf32>
    %12 = vector.broadcast %11 : vector<1x64xf32> to vector<8x64xf32>
    %13 = arith.addf %10, %12 : vector<8x64xf32>
    %14 = arith.truncf %13 : vector<8x64xf32> to vector<8x64xbf16>
    %c0_10 = arith.constant 0 : index
    %c0_11 = arith.constant 0 : index
    %15 = vector.load %arg6[%c0_10, %c0_11] : memref<8x64xbf16, #tpu.memory_space<vmem>>, vector<8x64xbf16>
    tpu.vector_store %arg6[%c0_10, %c0_11], %14 {strides = array<i32>} : memref<8x64xbf16, #tpu.memory_space<vmem>>, vector<8x64xbf16>,
    return
  }
  func.func @transform_0(%arg0: i32) -> (i32, i32) {
    %c0_i32 = arith.constant 0 : i32
    %c0_i32_0 = arith.constant 0 : i32
    return %arg0, %c0_i32 : i32, i32
  }
  func.func @transform_1(%arg0: i32) -> (i32, i32) {
    %c0_i32 = arith.constant 0 : i32
    %c0_i32_0 = arith.constant 0 : i32
    %c0_i32_1 = arith.constant 0 : i32
    return %c0_i32, %c0_i32_0 : i32, i32
  }
  func.func @transform_2(%arg0: i32) -> (i32, i32) {
    %c0_i32 = arith.constant 0 : i32
    %c0_i32_0 = arith.constant 0 : i32
    %c0_i32_1 = arith.constant 0 : i32
    return %c0_i32, %c0_i32_0 : i32, i32
  }
  func.func @transform_3(%arg0: i32) -> (i32, i32) {
    %c0_i32 = arith.constant 0 : i32
    %c0_i32_0 = arith.constant 0 : i32
    %c0_i32_1 = arith.constant 0 : i32
    return %c0_i32, %c0_i32_0 : i32, i32
  }
  func.func @transform_4(%arg0: i32) -> (i32, i32) {
    %c0_i32 = arith.constant 0 : i32
    %c0_i32_0 = arith.constant 0 : i32
    %c0_i32_1 = arith.constant 0 : i32
    return %c0_i32, %c0_i32_0 : i32, i32
  }
  func.func @transform_5(%arg0: i32) -> (i32, i32) {
    %c0_i32 = arith.constant 0 : i32
    %c0_i32_0 = arith.constant 0 : i32
    return %arg0, %c0_i32 : i32, i32
  }
}

module attributes {stable_mosaic.version = 11 : i64} {
  func.func @kernel(%arg0: i32, %arg1: memref<8x576xbf16, #tpu.memory_space<vmem>>, %arg2: memref<576x64xbf16, #tpu.memory_space<vmem>>, %arg3: memref<1x64xf32, #tpu.memory_space<vmem>>, %arg4: memref<1x64xf32, #tpu.memory_space<vmem>>, %arg5: memref<1x64xf32, #tpu.memory_space<vmem>>, %arg6: memref<8x64xbf16, #tpu.memory_space<vmem>>) attributes {dimension_semantics = [#tpu.dimension_semantics<parallel>], iteration_bounds = array<i64: 1>, scalar_prefetch = 0 : i64, scratch_operands = 0 : i64, tpu.core_type = #tpu.core_type<tc>, window_params = [{transform_indices = @transform_0, window_bounds = array<i64: 8, 576>}, {pipeline_mode = #tpu.pipeline_mode<synchronous>, transform_indices = @transform_1, window_bounds = array<i64: 576, 64>}, {pipeline_mode = #tpu.pipeline_mode<synchronous>, transform_indices = @transform_2, window_bounds = array<i64: 1, 64>}, {pipeline_mode = #tpu.pipeline_mode<synchronous>, transform_indices = @transform_3, window_bounds = array<i64: 1, 64>}, {pipeline_mode = #tpu.pipeline_mode<synchronous>, transform_indices = @transform_4, window_bounds = array<i64: 1, 64>}, {transform_indices = @transform_5, window_bounds = array<i64: 8, 64>}]} {
    %c0 = arith.constant 0 : index
    %c0_0 = arith.constant 0 : index
    %0 = vector.load %arg1[%c0, %c0_0] : memref<8x576xbf16, #tpu.memory_space<vmem>>, vector<8x576xbf16>
    %c0_1 = arith.constant 0 : index
    %c0_2 = arith.constant 0 : index
    %1 = vector.load %arg2[%c0_1, %c0_2] : memref<576x64xbf16, #tpu.memory_space<vmem>>, vector<576x64xbf16>
    %cst = arith.constant dense<0.000000e+00> : vector<8x64xf32>
    %2 = tpu.matmul %0, %1, %cst {dimension_numbers = #tpu.dot_dimension_numbers<[1], [0], [0], [1], [0, 0, 1, 1], [], []>} : vector<8x576xbf16>, vector<576x64xbf16>, vector<8x64xf32> -> vector<8x64xf32>
    %c0_3 = arith.constant 0 : index
    %c0_4 = arith.constant 0 : index
    %3 = vector.load %arg3[%c0_3, %c0_4] : memref<1x64xf32, #tpu.memory_space<vmem>>, vector<1x64xf32>
    %4 = vector.broadcast %3 : vector<1x64xf32> to vector<8x64xf32>
    %5 = arith.addf %2, %4 : vector<8x64xf32>
    %cst_5 = arith.constant 0.000000e+00 : f32
    %6 = vector.broadcast %cst_5 : f32 to vector<8x64xf32>
    %7 = arith.maximumf %5, %6 : vector<8x64xf32>
    %c0_6 = arith.constant 0 : index
    %c0_7 = arith.constant 0 : index
    %8 = vector.load %arg4[%c0_6, %c0_7] : memref<1x64xf32, #tpu.memory_space<vmem>>, vector<1x64xf32>
    %9 = vector.broadcast %8 : vector<1x64xf32> to vector<8x64xf32>
    %10 = arith.mulf %7, %9 : vector<8x64xf32>
    %c0_8 = arith.constant 0 : index
    %c0_9 = arith.constant 0 : index
    %11 = vector.load %arg5[%c0_8, %c0_9] : memref<1x64xf32, #tpu.memory_space<vmem>>, vector<1x64xf32>
    %12 = vector.broadcast %11 : vector<1x64xf32> to vector<8x64xf32>
    %13 = arith.addf %10, %12 : vector<8x64xf32>
    %14 = arith.truncf %13 : vector<8x64xf32> to vector<8x64xbf16>
    %c0_10 = arith.constant 0 : index
    %c0_11 = arith.constant 0 : index
    %15 = vector.load %arg6[%c0_10, %c0_11] : memref<8x64xbf16, #tpu.memory_space<vmem>>, vector<8x64xbf16>
    tpu.vector_store %arg6[%c0_10, %c0_11], %14 {strides = array<i32>} : memref<8x64xbf16, #tpu.memory_space<vmem>>, vector<8x64xbf16>,
    return
  }
  func.func @transform_0(%arg0: i32) -> (i32, i32) {
    %c0_i32 = arith.constant 0 : i32
    %c0_i32_0 = arith.constant 0 : i32
    return %arg0, %c0_i32 : i32, i32
  }
  func.func @transform_1(%arg0: i32) -> (i32, i32) {
    %c0_i32 = arith.constant 0 : i32
    %c0_i32_0 = arith.constant 0 : i32
    %c0_i32_1 = arith.constant 0 : i32
    return %c0_i32, %c0_i32_0 : i32, i32
  }
  func.func @transform_2(%arg0: i32) -> (i32, i32) {
    %c0_i32 = arith.constant 0 : i32
    %c0_i32_0 = arith.constant 0 : i32
    %c0_i32_1 = arith.constant 0 : i32
    return %c0_i32, %c0_i32_0 : i32, i32
  }
  func.func @transform_3(%arg0: i32) -> (i32, i32) {
    %c0_i32 = arith.constant 0 : i32
    %c0_i32_0 = arith.constant 0 : i32
    %c0_i32_1 = arith.constant 0 : i32
    return %c0_i32, %c0_i32_0 : i32, i32
  }
  func.func @transform_4(%arg0: i32) -> (i32, i32) {
    %c0_i32 = arith.constant 0 : i32
    %c0_i32_0 = arith.constant 0 : i32
    %c0_i32_1 = arith.constant 0 : i32
    return %c0_i32, %c0_i32_0 : i32, i32
  }
  func.func @transform_5(%arg0: i32) -> (i32, i32) {
    %c0_i32 = arith.constant 0 : i32
    %c0_i32_0 = arith.constant 0 : i32
    return %arg0, %c0_i32 : i32, i32
  }
}

module attributes {stable_mosaic.version = 11 : i64} {
  func.func @kernel(%arg0: i32, %arg1: memref<8x64xbf16, #tpu.memory_space<vmem>>, %arg2: memref<64x128xbf16, #tpu.memory_space<vmem>>, %arg3: memref<1x128xf32, #tpu.memory_space<vmem>>, %arg4: memref<8x128xbf16, #tpu.memory_space<vmem>>) attributes {dimension_semantics = [#tpu.dimension_semantics<parallel>], iteration_bounds = array<i64: 1>, scalar_prefetch = 0 : i64, scratch_operands = 0 : i64, tpu.core_type = #tpu.core_type<tc>, window_params = [{transform_indices = @transform_0, window_bounds = array<i64: 8, 64>}, {pipeline_mode = #tpu.pipeline_mode<synchronous>, transform_indices = @transform_1, window_bounds = array<i64: 64, 128>}, {pipeline_mode = #tpu.pipeline_mode<synchronous>, transform_indices = @transform_2, window_bounds = array<i64: 1, 128>}, {transform_indices = @transform_3, window_bounds = array<i64: 8, 128>}]} {
    %c0 = arith.constant 0 : index
    %c0_0 = arith.constant 0 : index
    %0 = vector.load %arg1[%c0, %c0_0] : memref<8x64xbf16, #tpu.memory_space<vmem>>, vector<8x64xbf16>
    %c0_1 = arith.constant 0 : index
    %c0_2 = arith.constant 0 : index
    %1 = vector.load %arg2[%c0_1, %c0_2] : memref<64x128xbf16, #tpu.memory_space<vmem>>, vector<64x128xbf16>
    %cst = arith.constant dense<0.000000e+00> : vector<8x128xf32>
    %2 = tpu.matmul %0, %1, %cst {dimension_numbers = #tpu.dot_dimension_numbers<[1], [0], [0], [1], [0, 0, 1, 1], [], []>} : vector<8x64xbf16>, vector<64x128xbf16>, vector<8x128xf32> -> vector<8x128xf32>
    %c0_3 = arith.constant 0 : index
    %c0_4 = arith.constant 0 : index
    %3 = vector.load %arg3[%c0_3, %c0_4] : memref<1x128xf32, #tpu.memory_space<vmem>>, vector<1x128xf32>
    %4 = vector.broadcast %3 : vector<1x128xf32> to vector<8x128xf32>
    %5 = arith.addf %2, %4 : vector<8x128xf32>
    %6 = arith.truncf %5 : vector<8x128xf32> to vector<8x128xbf16>
    %c0_5 = arith.constant 0 : index
    %c0_6 = arith.constant 0 : index
    %7 = vector.load %arg4[%c0_5, %c0_6] : memref<8x128xbf16, #tpu.memory_space<vmem>>, vector<8x128xbf16>
    tpu.vector_store %arg4[%c0_5, %c0_6], %6 {strides = array<i32>} : memref<8x128xbf16, #tpu.memory_space<vmem>>, vector<8x128xbf16>,
    return
  }
  func.func @transform_0(%arg0: i32) -> (i32, i32) {
    %c0_i32 = arith.constant 0 : i32
    %c0_i32_0 = arith.constant 0 : i32
    return %arg0, %c0_i32 : i32, i32
  }
  func.func @transform_1(%arg0: i32) -> (i32, i32) {
    %c0_i32 = arith.constant 0 : i32
    %c0_i32_0 = arith.constant 0 : i32
    %c0_i32_1 = arith.constant 0 : i32
    return %c0_i32, %c0_i32_0 : i32, i32
  }
  func.func @transform_2(%arg0: i32) -> (i32, i32) {
    %c0_i32 = arith.constant 0 : i32
    %c0_i32_0 = arith.constant 0 : i32
    %c0_i32_1 = arith.constant 0 : i32
    return %c0_i32, %c0_i32_0 : i32, i32
  }
  func.func @transform_3(%arg0: i32) -> (i32, i32) {
    %c0_i32 = arith.constant 0 : i32
    %c0_i32_0 = arith.constant 0 : i32
    return %arg0, %c0_i32 : i32, i32
  }
}

module attributes {stable_mosaic.version = 11 : i64} {
  func.func @kernel(%arg0: i32, %arg1: memref<32x576xbf16, #tpu.memory_space<vmem>>, %arg2: memref<576x32xbf16, #tpu.memory_space<vmem>>, %arg3: memref<1x32xf32, #tpu.memory_space<vmem>>, %arg4: memref<1x32xf32, #tpu.memory_space<vmem>>, %arg5: memref<1x32xf32, #tpu.memory_space<vmem>>, %arg6: memref<32x32xbf16, #tpu.memory_space<vmem>>) attributes {dimension_semantics = [#tpu.dimension_semantics<parallel>], iteration_bounds = array<i64: 1>, scalar_prefetch = 0 : i64, scratch_operands = 0 : i64, tpu.core_type = #tpu.core_type<tc>, window_params = [{transform_indices = @transform_0, window_bounds = array<i64: 32, 576>}, {pipeline_mode = #tpu.pipeline_mode<synchronous>, transform_indices = @transform_1, window_bounds = array<i64: 576, 32>}, {pipeline_mode = #tpu.pipeline_mode<synchronous>, transform_indices = @transform_2, window_bounds = array<i64: 1, 32>}, {pipeline_mode = #tpu.pipeline_mode<synchronous>, transform_indices = @transform_3, window_bounds = array<i64: 1, 32>}, {pipeline_mode = #tpu.pipeline_mode<synchronous>, transform_indices = @transform_4, window_bounds = array<i64: 1, 32>}, {transform_indices = @transform_5, window_bounds = array<i64: 32, 32>}]} {
    %c0 = arith.constant 0 : index
    %c0_0 = arith.constant 0 : index
    %0 = vector.load %arg1[%c0, %c0_0] : memref<32x576xbf16, #tpu.memory_space<vmem>>, vector<32x576xbf16>
    %c0_1 = arith.constant 0 : index
    %c0_2 = arith.constant 0 : index
    %1 = vector.load %arg2[%c0_1, %c0_2] : memref<576x32xbf16, #tpu.memory_space<vmem>>, vector<576x32xbf16>
    %cst = arith.constant dense<0.000000e+00> : vector<32x32xf32>
    %2 = tpu.matmul %0, %1, %cst {dimension_numbers = #tpu.dot_dimension_numbers<[1], [0], [0], [1], [0, 0, 1, 1], [], []>} : vector<32x576xbf16>, vector<576x32xbf16>, vector<32x32xf32> -> vector<32x32xf32>
    %c0_3 = arith.constant 0 : index
    %c0_4 = arith.constant 0 : index
    %3 = vector.load %arg3[%c0_3, %c0_4] : memref<1x32xf32, #tpu.memory_space<vmem>>, vector<1x32xf32>
    %4 = vector.broadcast %3 : vector<1x32xf32> to vector<32x32xf32>
    %5 = arith.addf %2, %4 : vector<32x32xf32>
    %cst_5 = arith.constant 0.000000e+00 : f32
    %6 = vector.broadcast %cst_5 : f32 to vector<32x32xf32>
    %7 = arith.maximumf %5, %6 : vector<32x32xf32>
    %c0_6 = arith.constant 0 : index
    %c0_7 = arith.constant 0 : index
    %8 = vector.load %arg4[%c0_6, %c0_7] : memref<1x32xf32, #tpu.memory_space<vmem>>, vector<1x32xf32>
    %9 = vector.broadcast %8 : vector<1x32xf32> to vector<32x32xf32>
    %10 = arith.mulf %7, %9 : vector<32x32xf32>
    %c0_8 = arith.constant 0 : index
    %c0_9 = arith.constant 0 : index
    %11 = vector.load %arg5[%c0_8, %c0_9] : memref<1x32xf32, #tpu.memory_space<vmem>>, vector<1x32xf32>
    %12 = vector.broadcast %11 : vector<1x32xf32> to vector<32x32xf32>
    %13 = arith.addf %10, %12 : vector<32x32xf32>
    %14 = arith.truncf %13 : vector<32x32xf32> to vector<32x32xbf16>
    %c0_10 = arith.constant 0 : index
    %c0_11 = arith.constant 0 : index
    %15 = vector.load %arg6[%c0_10, %c0_11] : memref<32x32xbf16, #tpu.memory_space<vmem>>, vector<32x32xbf16>
    tpu.vector_store %arg6[%c0_10, %c0_11], %14 {strides = array<i32>} : memref<32x32xbf16, #tpu.memory_space<vmem>>, vector<32x32xbf16>,
    return
  }
  func.func @transform_0(%arg0: i32) -> (i32, i32) {
    %c0_i32 = arith.constant 0 : i32
    %c0_i32_0 = arith.constant 0 : i32
    return %arg0, %c0_i32 : i32, i32
  }
  func.func @transform_1(%arg0: i32) -> (i32, i32) {
    %c0_i32 = arith.constant 0 : i32
    %c0_i32_0 = arith.constant 0 : i32
    %c0_i32_1 = arith.constant 0 : i32
    return %c0_i32, %c0_i32_0 : i32, i32
  }
  func.func @transform_2(%arg0: i32) -> (i32, i32) {
    %c0_i32 = arith.constant 0 : i32
    %c0_i32_0 = arith.constant 0 : i32
    %c0_i32_1 = arith.constant 0 : i32
    return %c0_i32, %c0_i32_0 : i32, i32
  }
  func.func @transform_3(%arg0: i32) -> (i32, i32) {
    %c0_i32 = arith.constant 0 : i32
    %c0_i32_0 = arith.constant 0 : i32
    %c0_i32_1 = arith.constant 0 : i32
    return %c0_i32, %c0_i32_0 : i32, i32
  }
  func.func @transform_4(%arg0: i32) -> (i32, i32) {
    %c0_i32 = arith.constant 0 : i32
    %c0_i32_0 = arith.constant 0 : i32
    %c0_i32_1 = arith.constant 0 : i32
    return %c0_i32, %c0_i32_0 : i32, i32
  }
  func.func @transform_5(%arg0: i32) -> (i32, i32) {
    %c0_i32 = arith.constant 0 : i32
    %c0_i32_0 = arith.constant 0 : i32
    return %arg0, %c0_i32 : i32, i32
  }
}

module attributes {stable_mosaic.version = 11 : i64} {
  func.func @kernel(%arg0: i32, %arg1: memref<32x32xbf16, #tpu.memory_space<vmem>>, %arg2: memref<32x64xbf16, #tpu.memory_space<vmem>>, %arg3: memref<1x64xf32, #tpu.memory_space<vmem>>, %arg4: memref<32x64xbf16, #tpu.memory_space<vmem>>) attributes {dimension_semantics = [#tpu.dimension_semantics<parallel>], iteration_bounds = array<i64: 1>, scalar_prefetch = 0 : i64, scratch_operands = 0 : i64, tpu.core_type = #tpu.core_type<tc>, window_params = [{transform_indices = @transform_0, window_bounds = array<i64: 32, 32>}, {pipeline_mode = #tpu.pipeline_mode<synchronous>, transform_indices = @transform_1, window_bounds = array<i64: 32, 64>}, {pipeline_mode = #tpu.pipeline_mode<synchronous>, transform_indices = @transform_2, window_bounds = array<i64: 1, 64>}, {transform_indices = @transform_3, window_bounds = array<i64: 32, 64>}]} {
    %c0 = arith.constant 0 : index
    %c0_0 = arith.constant 0 : index
    %0 = vector.load %arg1[%c0, %c0_0] : memref<32x32xbf16, #tpu.memory_space<vmem>>, vector<32x32xbf16>
    %c0_1 = arith.constant 0 : index
    %c0_2 = arith.constant 0 : index
    %1 = vector.load %arg2[%c0_1, %c0_2] : memref<32x64xbf16, #tpu.memory_space<vmem>>, vector<32x64xbf16>
    %cst = arith.constant dense<0.000000e+00> : vector<32x64xf32>
    %2 = tpu.matmul %0, %1, %cst {dimension_numbers = #tpu.dot_dimension_numbers<[1], [0], [0], [1], [0, 0, 1, 1], [], []>} : vector<32x32xbf16>, vector<32x64xbf16>, vector<32x64xf32> -> vector<32x64xf32>
    %c0_3 = arith.constant 0 : index
    %c0_4 = arith.constant 0 : index
    %3 = vector.load %arg3[%c0_3, %c0_4] : memref<1x64xf32, #tpu.memory_space<vmem>>, vector<1x64xf32>
    %4 = vector.broadcast %3 : vector<1x64xf32> to vector<32x64xf32>
    %5 = arith.addf %2, %4 : vector<32x64xf32>
    %6 = arith.truncf %5 : vector<32x64xf32> to vector<32x64xbf16>
    %c0_5 = arith.constant 0 : index
    %c0_6 = arith.constant 0 : index
    %7 = vector.load %arg4[%c0_5, %c0_6] : memref<32x64xbf16, #tpu.memory_space<vmem>>, vector<32x64xbf16>
    tpu.vector_store %arg4[%c0_5, %c0_6], %6 {strides = array<i32>} : memref<32x64xbf16, #tpu.memory_space<vmem>>, vector<32x64xbf16>,
    return
  }
  func.func @transform_0(%arg0: i32) -> (i32, i32) {
    %c0_i32 = arith.constant 0 : i32
    %c0_i32_0 = arith.constant 0 : i32
    return %arg0, %c0_i32 : i32, i32
  }
  func.func @transform_1(%arg0: i32) -> (i32, i32) {
    %c0_i32 = arith.constant 0 : i32
    %c0_i32_0 = arith.constant 0 : i32
    %c0_i32_1 = arith.constant 0 : i32
    return %c0_i32, %c0_i32_0 : i32, i32
  }
  func.func @transform_2(%arg0: i32) -> (i32, i32) {
    %c0_i32 = arith.constant 0 : i32
    %c0_i32_0 = arith.constant 0 : i32
    %c0_i32_1 = arith.constant 0 : i32
    return %c0_i32, %c0_i32_0 : i32, i32
  }
  func.func @transform_3(%arg0: i32) -> (i32, i32) {
    %c0_i32 = arith.constant 0 : i32
    %c0_i32_0 = arith.constant 0 : i32
    return %arg0, %c0_i32 : i32, i32
  }
}

module attributes {stable_mosaic.version = 11 : i64} {
  func.func @kernel(%arg0: i32, %arg1: memref<128x288xbf16, #tpu.memory_space<vmem>>, %arg2: memref<288x16xbf16, #tpu.memory_space<vmem>>, %arg3: memref<1x16xf32, #tpu.memory_space<vmem>>, %arg4: memref<1x16xf32, #tpu.memory_space<vmem>>, %arg5: memref<1x16xf32, #tpu.memory_space<vmem>>, %arg6: memref<128x16xbf16, #tpu.memory_space<vmem>>) attributes {dimension_semantics = [#tpu.dimension_semantics<parallel>], iteration_bounds = array<i64: 1>, scalar_prefetch = 0 : i64, scratch_operands = 0 : i64, tpu.core_type = #tpu.core_type<tc>, window_params = [{transform_indices = @transform_0, window_bounds = array<i64: 128, 288>}, {pipeline_mode = #tpu.pipeline_mode<synchronous>, transform_indices = @transform_1, window_bounds = array<i64: 288, 16>}, {pipeline_mode = #tpu.pipeline_mode<synchronous>, transform_indices = @transform_2, window_bounds = array<i64: 1, 16>}, {pipeline_mode = #tpu.pipeline_mode<synchronous>, transform_indices = @transform_3, window_bounds = array<i64: 1, 16>}, {pipeline_mode = #tpu.pipeline_mode<synchronous>, transform_indices = @transform_4, window_bounds = array<i64: 1, 16>}, {transform_indices = @transform_5, window_bounds = array<i64: 128, 16>}]} {
    %c0 = arith.constant 0 : index
    %c0_0 = arith.constant 0 : index
    %0 = vector.load %arg1[%c0, %c0_0] : memref<128x288xbf16, #tpu.memory_space<vmem>>, vector<128x288xbf16>
    %c0_1 = arith.constant 0 : index
    %c0_2 = arith.constant 0 : index
    %1 = vector.load %arg2[%c0_1, %c0_2] : memref<288x16xbf16, #tpu.memory_space<vmem>>, vector<288x16xbf16>
    %cst = arith.constant dense<0.000000e+00> : vector<128x16xf32>
    %2 = tpu.matmul %0, %1, %cst {dimension_numbers = #tpu.dot_dimension_numbers<[1], [0], [0], [1], [0, 0, 1, 1], [], []>} : vector<128x288xbf16>, vector<288x16xbf16>, vector<128x16xf32> -> vector<128x16xf32>
    %c0_3 = arith.constant 0 : index
    %c0_4 = arith.constant 0 : index
    %3 = vector.load %arg3[%c0_3, %c0_4] : memref<1x16xf32, #tpu.memory_space<vmem>>, vector<1x16xf32>
    %4 = vector.broadcast %3 : vector<1x16xf32> to vector<128x16xf32>
    %5 = arith.addf %2, %4 : vector<128x16xf32>
    %cst_5 = arith.constant 0.000000e+00 : f32
    %6 = vector.broadcast %cst_5 : f32 to vector<128x16xf32>
    %7 = arith.maximumf %5, %6 : vector<128x16xf32>
    %c0_6 = arith.constant 0 : index
    %c0_7 = arith.constant 0 : index
    %8 = vector.load %arg4[%c0_6, %c0_7] : memref<1x16xf32, #tpu.memory_space<vmem>>, vector<1x16xf32>
    %9 = vector.broadcast %8 : vector<1x16xf32> to vector<128x16xf32>
    %10 = arith.mulf %7, %9 : vector<128x16xf32>
    %c0_8 = arith.constant 0 : index
    %c0_9 = arith.constant 0 : index
    %11 = vector.load %arg5[%c0_8, %c0_9] : memref<1x16xf32, #tpu.memory_space<vmem>>, vector<1x16xf32>
    %12 = vector.broadcast %11 : vector<1x16xf32> to vector<128x16xf32>
    %13 = arith.addf %10, %12 : vector<128x16xf32>
    %14 = arith.truncf %13 : vector<128x16xf32> to vector<128x16xbf16>
    %c0_10 = arith.constant 0 : index
    %c0_11 = arith.constant 0 : index
    %15 = vector.load %arg6[%c0_10, %c0_11] : memref<128x16xbf16, #tpu.memory_space<vmem>>, vector<128x16xbf16>
    tpu.vector_store %arg6[%c0_10, %c0_11], %14 {strides = array<i32>} : memref<128x16xbf16, #tpu.memory_space<vmem>>, vector<128x16xbf16>,
    return
  }
  func.func @transform_0(%arg0: i32) -> (i32, i32) {
    %c0_i32 = arith.constant 0 : i32
    %c0_i32_0 = arith.constant 0 : i32
    return %arg0, %c0_i32 : i32, i32
  }
  func.func @transform_1(%arg0: i32) -> (i32, i32) {
    %c0_i32 = arith.constant 0 : i32
    %c0_i32_0 = arith.constant 0 : i32
    %c0_i32_1 = arith.constant 0 : i32
    return %c0_i32, %c0_i32_0 : i32, i32
  }
  func.func @transform_2(%arg0: i32) -> (i32, i32) {
    %c0_i32 = arith.constant 0 : i32
    %c0_i32_0 = arith.constant 0 : i32
    %c0_i32_1 = arith.constant 0 : i32
    return %c0_i32, %c0_i32_0 : i32, i32
  }
  func.func @transform_3(%arg0: i32) -> (i32, i32) {
    %c0_i32 = arith.constant 0 : i32
    %c0_i32_0 = arith.constant 0 : i32
    %c0_i32_1 = arith.constant 0 : i32
    return %c0_i32, %c0_i32_0 : i32, i32
  }
  func.func @transform_4(%arg0: i32) -> (i32, i32) {
    %c0_i32 = arith.constant 0 : i32
    %c0_i32_0 = arith.constant 0 : i32
    %c0_i32_1 = arith.constant 0 : i32
    return %c0_i32, %c0_i32_0 : i32, i32
  }
  func.func @transform_5(%arg0: i32) -> (i32, i32) {
    %c0_i32 = arith.constant 0 : i32
    %c0_i32_0 = arith.constant 0 : i32
    return %arg0, %c0_i32 : i32, i32
  }
}

module attributes {stable_mosaic.version = 11 : i64} {
  func.func @kernel(%arg0: i32, %arg1: memref<128x16xbf16, #tpu.memory_space<vmem>>, %arg2: memref<16x32xbf16, #tpu.memory_space<vmem>>, %arg3: memref<1x32xf32, #tpu.memory_space<vmem>>, %arg4: memref<128x32xbf16, #tpu.memory_space<vmem>>) attributes {dimension_semantics = [#tpu.dimension_semantics<parallel>], iteration_bounds = array<i64: 1>, scalar_prefetch = 0 : i64, scratch_operands = 0 : i64, tpu.core_type = #tpu.core_type<tc>, window_params = [{transform_indices = @transform_0, window_bounds = array<i64: 128, 16>}, {pipeline_mode = #tpu.pipeline_mode<synchronous>, transform_indices = @transform_1, window_bounds = array<i64: 16, 32>}, {pipeline_mode = #tpu.pipeline_mode<synchronous>, transform_indices = @transform_2, window_bounds = array<i64: 1, 32>}, {transform_indices = @transform_3, window_bounds = array<i64: 128, 32>}]} {
    %c0 = arith.constant 0 : index
    %c0_0 = arith.constant 0 : index
    %0 = vector.load %arg1[%c0, %c0_0] : memref<128x16xbf16, #tpu.memory_space<vmem>>, vector<128x16xbf16>
    %c0_1 = arith.constant 0 : index
    %c0_2 = arith.constant 0 : index
    %1 = vector.load %arg2[%c0_1, %c0_2] : memref<16x32xbf16, #tpu.memory_space<vmem>>, vector<16x32xbf16>
    %cst = arith.constant dense<0.000000e+00> : vector<128x32xf32>
    %2 = tpu.matmul %0, %1, %cst {dimension_numbers = #tpu.dot_dimension_numbers<[1], [0], [0], [1], [0, 0, 1, 1], [], []>} : vector<128x16xbf16>, vector<16x32xbf16>, vector<128x32xf32> -> vector<128x32xf32>
    %c0_3 = arith.constant 0 : index
    %c0_4 = arith.constant 0 : index
    %3 = vector.load %arg3[%c0_3, %c0_4] : memref<1x32xf32, #tpu.memory_space<vmem>>, vector<1x32xf32>
    %4 = vector.broadcast %3 : vector<1x32xf32> to vector<128x32xf32>
    %5 = arith.addf %2, %4 : vector<128x32xf32>
    %6 = arith.truncf %5 : vector<128x32xf32> to vector<128x32xbf16>
    %c0_5 = arith.constant 0 : index
    %c0_6 = arith.constant 0 : index
    %7 = vector.load %arg4[%c0_5, %c0_6] : memref<128x32xbf16, #tpu.memory_space<vmem>>, vector<128x32xbf16>
    tpu.vector_store %arg4[%c0_5, %c0_6], %6 {strides = array<i32>} : memref<128x32xbf16, #tpu.memory_space<vmem>>, vector<128x32xbf16>,
    return
  }
  func.func @transform_0(%arg0: i32) -> (i32, i32) {
    %c0_i32 = arith.constant 0 : i32
    %c0_i32_0 = arith.constant 0 : i32
    return %arg0, %c0_i32 : i32, i32
  }
  func.func @transform_1(%arg0: i32) -> (i32, i32) {
    %c0_i32 = arith.constant 0 : i32
    %c0_i32_0 = arith.constant 0 : i32
    %c0_i32_1 = arith.constant 0 : i32
    return %c0_i32, %c0_i32_0 : i32, i32
  }
  func.func @transform_2(%arg0: i32) -> (i32, i32) {
    %c0_i32 = arith.constant 0 : i32
    %c0_i32_0 = arith.constant 0 : i32
    %c0_i32_1 = arith.constant 0 : i32
    return %c0_i32, %c0_i32_0 : i32, i32
  }
  func.func @transform_3(%arg0: i32) -> (i32, i32) {
    %c0_i32 = arith.constant 0 : i32
    %c0_i32_0 = arith.constant 0 : i32
    return %arg0, %c0_i32 : i32, i32
  }
}

module attributes {stable_mosaic.version = 11 : i64} {
  func.func @kernel(%arg0: i32, %arg1: memref<256x72xbf16, #tpu.memory_space<vmem>>, %arg2: memref<72x8xbf16, #tpu.memory_space<vmem>>, %arg3: memref<1x8xf32, #tpu.memory_space<vmem>>, %arg4: memref<1x8xf32, #tpu.memory_space<vmem>>, %arg5: memref<1x8xf32, #tpu.memory_space<vmem>>, %arg6: memref<1x8xf32, #tpu.memory_space<vmem>>, %arg7: memref<1x1xf32, #tpu.memory_space<vmem>>, %arg8: memref<256x1xf32, #tpu.memory_space<vmem>>) attributes {dimension_semantics = [#tpu.dimension_semantics<parallel>], iteration_bounds = array<i64: 2>, scalar_prefetch = 0 : i64, scratch_operands = 0 : i64, tpu.core_type = #tpu.core_type<tc>, window_params = [{transform_indices = @transform_0, window_bounds = array<i64: 256, 72>}, {pipeline_mode = #tpu.pipeline_mode<synchronous>, transform_indices = @transform_1, window_bounds = array<i64: 72, 8>}, {pipeline_mode = #tpu.pipeline_mode<synchronous>, transform_indices = @transform_2, window_bounds = array<i64: 1, 8>}, {pipeline_mode = #tpu.pipeline_mode<synchronous>, transform_indices = @transform_3, window_bounds = array<i64: 1, 8>}, {pipeline_mode = #tpu.pipeline_mode<synchronous>, transform_indices = @transform_4, window_bounds = array<i64: 1, 8>}, {pipeline_mode = #tpu.pipeline_mode<synchronous>, transform_indices = @transform_5, window_bounds = array<i64: 1, 8>}, {pipeline_mode = #tpu.pipeline_mode<synchronous>, transform_indices = @transform_6, window_bounds = array<i64: 1, 1>}, {transform_indices = @transform_7, window_bounds = array<i64: 256, 1>}]} {
    %c0 = arith.constant 0 : index
    %c0_0 = arith.constant 0 : index
    %0 = vector.load %arg1[%c0, %c0_0] : memref<256x72xbf16, #tpu.memory_space<vmem>>, vector<256x72xbf16>
    %c0_1 = arith.constant 0 : index
    %c0_2 = arith.constant 0 : index
    %1 = vector.load %arg2[%c0_1, %c0_2] : memref<72x8xbf16, #tpu.memory_space<vmem>>, vector<72x8xbf16>
    %cst = arith.constant dense<0.000000e+00> : vector<256x8xf32>
    %2 = tpu.matmul %0, %1, %cst {dimension_numbers = #tpu.dot_dimension_numbers<[1], [0], [0], [1], [0, 0, 1, 1], [], []>} : vector<256x72xbf16>, vector<72x8xbf16>, vector<256x8xf32> -> vector<256x8xf32>
    %c0_3 = arith.constant 0 : index
    %c0_4 = arith.constant 0 : index
    %3 = vector.load %arg3[%c0_3, %c0_4] : memref<1x8xf32, #tpu.memory_space<vmem>>, vector<1x8xf32>
    %4 = vector.broadcast %3 : vector<1x8xf32> to vector<256x8xf32>
    %5 = arith.addf %2, %4 : vector<256x8xf32>
    %cst_5 = arith.constant 0.000000e+00 : f32
    %6 = vector.broadcast %cst_5 : f32 to vector<256x8xf32>
    %7 = arith.maximumf %5, %6 : vector<256x8xf32>
    %c0_6 = arith.constant 0 : index
    %c0_7 = arith.constant 0 : index
    %8 = vector.load %arg4[%c0_6, %c0_7] : memref<1x8xf32, #tpu.memory_space<vmem>>, vector<1x8xf32>
    %9 = vector.broadcast %8 : vector<1x8xf32> to vector<256x8xf32>
    %10 = arith.mulf %7, %9 : vector<256x8xf32>
    %c0_8 = arith.constant 0 : index
    %c0_9 = arith.constant 0 : index
    %11 = vector.load %arg5[%c0_8, %c0_9] : memref<1x8xf32, #tpu.memory_space<vmem>>, vector<1x8xf32>
    %12 = vector.broadcast %11 : vector<1x8xf32> to vector<256x8xf32>
    %13 = arith.addf %10, %12 : vector<256x8xf32>
    %c0_10 = arith.constant 0 : index
    %c0_11 = arith.constant 0 : index
    %14 = vector.load %arg6[%c0_10, %c0_11] : memref<1x8xf32, #tpu.memory_space<vmem>>, vector<1x8xf32>
    %15 = vector.broadcast %14 : vector<1x8xf32> to vector<256x8xf32>
    %16 = arith.mulf %13, %15 : vector<256x8xf32>
    %cst_12 = arith.constant dense<0.000000e+00> : vector<256xf32>
    %17 = vector.multi_reduction <add>, %16, %cst_12 [1] : vector<256x8xf32> to vector<256xf32>
    %18 = vector.shape_cast %17 : vector<256xf32> to vector<256x1xf32>
    %c0_13 = arith.constant 0 : index
    %c0_14 = arith.constant 0 : index
    %19 = vector.load %arg7[%c0_13, %c0_14] : memref<1x1xf32, #tpu.memory_space<vmem>>, vector<1x1xf32>
    %20 = vector.broadcast %19 : vector<1x1xf32> to vector<256x1xf32>
    %21 = arith.addf %18, %20 : vector<256x1xf32>
    %c0_15 = arith.constant 0 : index
    %c0_16 = arith.constant 0 : index
    %22 = vector.load %arg8[%c0_15, %c0_16] : memref<256x1xf32, #tpu.memory_space<vmem>>, vector<256x1xf32>
    tpu.vector_store %arg8[%c0_15, %c0_16], %21 {strides = array<i32>} : memref<256x1xf32, #tpu.memory_space<vmem>>, vector<256x1xf32>,
    return
  }
  func.func @transform_0(%arg0: i32) -> (i32, i32) {
    %c0_i32 = arith.constant 0 : i32
    %c0_i32_0 = arith.constant 0 : i32
    return %arg0, %c0_i32 : i32, i32
  }
  func.func @transform_1(%arg0: i32) -> (i32, i32) {
    %c0_i32 = arith.constant 0 : i32
    %c0_i32_0 = arith.constant 0 : i32
    %c0_i32_1 = arith.constant 0 : i32
    return %c0_i32, %c0_i32_0 : i32, i32
  }
  func.func @transform_2(%arg0: i32) -> (i32, i32) {
    %c0_i32 = arith.constant 0 : i32
    %c0_i32_0 = arith.constant 0 : i32
    %c0_i32_1 = arith.constant 0 : i32
    return %c0_i32, %c0_i32_0 : i32, i32
  }
  func.func @transform_3(%arg0: i32) -> (i32, i32) {
    %c0_i32 = arith.constant 0 : i32
    %c0_i32_0 = arith.constant 0 : i32
    %c0_i32_1 = arith.constant 0 : i32
    return %c0_i32, %c0_i32_0 : i32, i32
  }
  func.func @transform_4(%arg0: i32) -> (i32, i32) {
    %c0_i32 = arith.constant 0 : i32
    %c0_i32_0 = arith.constant 0 : i32
    %c0_i32_1 = arith.constant 0 : i32
    return %c0_i32, %c0_i32_0 : i32, i32
  }
  func.func @transform_5(%arg0: i32) -> (i32, i32) {
    %c0_i32 = arith.constant 0 : i32
    %c0_i32_0 = arith.constant 0 : i32
    %c0_i32_1 = arith.constant 0 : i32
    return %c0_i32, %c0_i32_0 : i32, i32
  }
  func.func @transform_6(%arg0: i32) -> (i32, i32) {
    %c0_i32 = arith.constant 0 : i32
    %c0_i32_0 = arith.constant 0 : i32
    %c0_i32_1 = arith.constant 0 : i32
    return %c0_i32, %c0_i32_0 : i32, i32
  }
  func.func @transform_7(%arg0: i32) -> (i32, i32) {
    %c0_i32 = arith.constant 0 : i32
    %c0_i32_0 = arith.constant 0 : i32
    return %arg0, %c0_i32 : i32, i32
  }
}

module attributes {stable_mosaic.version = 11 : i64} {
  func.func @kernel(%arg0: i32, %arg1: memref<256x144xbf16, #tpu.memory_space<vmem>>, %arg2: memref<144x8xbf16, #tpu.memory_space<vmem>>, %arg3: memref<1x8xf32, #tpu.memory_space<vmem>>, %arg4: memref<1x8xf32, #tpu.memory_space<vmem>>, %arg5: memref<1x8xf32, #tpu.memory_space<vmem>>, %arg6: memref<256x8xbf16, #tpu.memory_space<vmem>>) attributes {dimension_semantics = [#tpu.dimension_semantics<parallel>], iteration_bounds = array<i64: 2>, scalar_prefetch = 0 : i64, scratch_operands = 0 : i64, tpu.core_type = #tpu.core_type<tc>, window_params = [{transform_indices = @transform_0, window_bounds = array<i64: 256, 144>}, {pipeline_mode = #tpu.pipeline_mode<synchronous>, transform_indices = @transform_1, window_bounds = array<i64: 144, 8>}, {pipeline_mode = #tpu.pipeline_mode<synchronous>, transform_indices = @transform_2, window_bounds = array<i64: 1, 8>}, {pipeline_mode = #tpu.pipeline_mode<synchronous>, transform_indices = @transform_3, window_bounds = array<i64: 1, 8>}, {pipeline_mode = #tpu.pipeline_mode<synchronous>, transform_indices = @transform_4, window_bounds = array<i64: 1, 8>}, {transform_indices = @transform_5, window_bounds = array<i64: 256, 8>}]} {
    %c0 = arith.constant 0 : index
    %c0_0 = arith.constant 0 : index
    %0 = vector.load %arg1[%c0, %c0_0] : memref<256x144xbf16, #tpu.memory_space<vmem>>, vector<256x144xbf16>
    %c0_1 = arith.constant 0 : index
    %c0_2 = arith.constant 0 : index
    %1 = vector.load %arg2[%c0_1, %c0_2] : memref<144x8xbf16, #tpu.memory_space<vmem>>, vector<144x8xbf16>
    %cst = arith.constant dense<0.000000e+00> : vector<256x8xf32>
    %2 = tpu.matmul %0, %1, %cst {dimension_numbers = #tpu.dot_dimension_numbers<[1], [0], [0], [1], [0, 0, 1, 1], [], []>} : vector<256x144xbf16>, vector<144x8xbf16>, vector<256x8xf32> -> vector<256x8xf32>
    %c0_3 = arith.constant 0 : index
    %c0_4 = arith.constant 0 : index
    %3 = vector.load %arg3[%c0_3, %c0_4] : memref<1x8xf32, #tpu.memory_space<vmem>>, vector<1x8xf32>
    %4 = vector.broadcast %3 : vector<1x8xf32> to vector<256x8xf32>
    %5 = arith.addf %2, %4 : vector<256x8xf32>
    %cst_5 = arith.constant 0.000000e+00 : f32
    %6 = vector.broadcast %cst_5 : f32 to vector<256x8xf32>
    %7 = arith.maximumf %5, %6 : vector<256x8xf32>
    %c0_6 = arith.constant 0 : index
    %c0_7 = arith.constant 0 : index
    %8 = vector.load %arg4[%c0_6, %c0_7] : memref<1x8xf32, #tpu.memory_space<vmem>>, vector<1x8xf32>
    %9 = vector.broadcast %8 : vector<1x8xf32> to vector<256x8xf32>
    %10 = arith.mulf %7, %9 : vector<256x8xf32>
    %c0_8 = arith.constant 0 : index
    %c0_9 = arith.constant 0 : index
    %11 = vector.load %arg5[%c0_8, %c0_9] : memref<1x8xf32, #tpu.memory_space<vmem>>, vector<1x8xf32>
    %12 = vector.broadcast %11 : vector<1x8xf32> to vector<256x8xf32>
    %13 = arith.addf %10, %12 : vector<256x8xf32>
    %14 = arith.truncf %13 : vector<256x8xf32> to vector<256x8xbf16>
    %c0_10 = arith.constant 0 : index
    %c0_11 = arith.constant 0 : index
    %15 = vector.load %arg6[%c0_10, %c0_11] : memref<256x8xbf16, #tpu.memory_space<vmem>>, vector<256x8xbf16>
    tpu.vector_store %arg6[%c0_10, %c0_11], %14 {strides = array<i32>} : memref<256x8xbf16, #tpu.memory_space<vmem>>, vector<256x8xbf16>,
    return
  }
  func.func @transform_0(%arg0: i32) -> (i32, i32) {
    %c0_i32 = arith.constant 0 : i32
    %c0_i32_0 = arith.constant 0 : i32
    return %arg0, %c0_i32 : i32, i32
  }
  func.func @transform_1(%arg0: i32) -> (i32, i32) {
    %c0_i32 = arith.constant 0 : i32
    %c0_i32_0 = arith.constant 0 : i32
    %c0_i32_1 = arith.constant 0 : i32
    return %c0_i32, %c0_i32_0 : i32, i32
  }
  func.func @transform_2(%arg0: i32) -> (i32, i32) {
    %c0_i32 = arith.constant 0 : i32
    %c0_i32_0 = arith.constant 0 : i32
    %c0_i32_1 = arith.constant 0 : i32
    return %c0_i32, %c0_i32_0 : i32, i32
  }
  func.func @transform_3(%arg0: i32) -> (i32, i32) {
    %c0_i32 = arith.constant 0 : i32
    %c0_i32_0 = arith.constant 0 : i32
    %c0_i32_1 = arith.constant 0 : i32
    return %c0_i32, %c0_i32_0 : i32, i32
  }
  func.func @transform_4(%arg0: i32) -> (i32, i32) {
    %c0_i32 = arith.constant 0 : i32
    %c0_i32_0 = arith.constant 0 : i32
    %c0_i32_1 = arith.constant 0 : i32
    return %c0_i32, %c0_i32_0 : i32, i32
  }
  func.func @transform_5(%arg0: i32) -> (i32, i32) {
    %c0_i32 = arith.constant 0 : i32
    %c0_i32_0 = arith.constant 0 : i32
    return %arg0, %c0_i32 : i32, i32
  }
}

</mosaic_0001>

<llo_original>
// kernel: unet_forward.18
$region0: #{unet_forward.18}
  #allocation0 [shape = 'u32[]', space=smem, size = 0x4, offset = 0x4, fixed_abs, tag = 'smem constant byte address 0x4 - core index']
  #allocation1 [shape = 'u32[144,128]{1,0:T(1,128)}', space=vmem, size = 0x12000, scoped, tag = 'internal scratch']
  %s0 = inlined_call_operand.hbm [shape: bf16[512,72], index: 0, kind: input, shape index: {}]
  %s1 = inlined_call_operand.hbm [shape: bf16[72,8], index: 1, kind: input, shape index: {}]
  %s2 = inlined_call_operand.hbm [shape: f32[1,8], index: 2, kind: input, shape index: {}]
  %s3 = inlined_call_operand.hbm [shape: f32[1,8], index: 3, kind: input, shape index: {}]
  %s4 = inlined_call_operand.hbm [shape: f32[1,8], index: 4, kind: input, shape index: {}]
  %s5 = inlined_call_operand.hbm [shape: bf16[512,8], index: 5, kind: output, shape index: {}]
  %s6 = sld [smem:[#allocation0]]
  $region73: #{unet_forward.18} parent=0
    _
  %s8 = ssub.s32 1, %s6
  %s9 = scalar_select 0, %s8, %s6
  $region1: #{unet_forward.18} parent=0
    #allocation2 [shape = 'u8[131072]{0}', space=vmem, size = 0x20000, scoped, tag = 'input window, operand 0']
    #allocation3 [shape = 's32[2]{0}', space=sflag, size = 0x8, scoped, tag = 'scoped memory for unet_forward.18']
    #allocation4 [shape = 's32[2]{0}', space=sflag, size = 0x8, scoped, tag = 'scoped memory for unet_forward.18']
    #allocation5 [shape = 'u8[18432]{0}', space=vmem, size = 0x4800, scoped, tag = 'input window, operand 1, single buffered']
    #allocation6 [shape = 's32[1]{0}', space=sflag, size = 0x4, scoped, tag = 'scoped memory for unet_forward.18']
    #allocation7 [shape = 'u8[512]{0}', space=vmem, size = 0x400, scoped, tag = 'input window, operand 2, single buffered']
    #allocation8 [shape = 'u8[512]{0}', space=vmem, size = 0x400, scoped, tag = 'input window, operand 3, single buffered']
    #allocation9 [shape = 's32[1]{0}', space=sflag, size = 0x4, scoped, tag = 'scoped memory for unet_forward.18']
    #allocation10 [shape = 'u8[512]{0}', space=vmem, size = 0x400, scoped, tag = 'input window, operand 4, single buffered']
    #allocation11 [shape = 'u8[131072]{0}', space=vmem, size = 0x20000, scoped, tag = 'output window, operand 0']
    %10 = vsyncpa [#allocation3], 0
    %s11 = scalar_lea.sflag [#allocation3], 1
    %12 = vsyncpa %s11, 0
    %13 = vsyncpa [#allocation6], 0
    %14 = vsyncpa [#allocation9], 0
    %15 = vsyncpa [#allocation4], 0
    %s16 = scalar_lea.sflag [#allocation4], 1
    %17 = vsyncpa %s16, 0
    loop: start=0, step=1, limit=4
    $region2: #{unet_forward.18} parent=1 // loop_pre_header
      _
    $region3: #{unet_forward.18} parent=1 // loop_header
      %s19 = sphi 0, %s23
      %p20 = scmp.ge.s32.totalorder %s19, 4
      %s29 = sphi 0, %s31
      %s32 = sphi 0, %s29
      %s33 = sphi 0, %s32
      %s49 = sphi 0, %s33
      %s53 = sphi 0, %s53
      %s55 = sphi 0, %s53
      %s56 = sphi 0, %s55
      %s70 = sphi 0, %s56
      %s74 = sphi 0, %s74
      %s76 = sphi 0, %s74
      %s77 = sphi 0, %s76
      %s91 = sphi 0, %s77
      %s95 = sphi 0, %s95
      %s97 = sphi 0, %s95
      %s98 = sphi 0, %s97
      %s112 = sphi 0, %s98
      %s116 = sphi 0, %s116
      %s118 = sphi 0, %s116
      %s119 = sphi 0, %s118
      %s133 = sphi 0, %s119
      %s139 = sphi 0, %s141
      %s142 = sphi 0, %s139
      %s143 = sphi 0, %s142
      %s159 = sphi 0, %s143
    $region4: #{unet_forward.18} parent=1 // loop_header_branch
      %22 = sbr.rel (%p20) target = $region8
    $region5: #{unet_forward.18} parent=1 // loop_body
      %s24 = ssub.s32 %s19, 1
      %s25 = ssub.s32 %s19, 2
      %s26 = sadd.s32 %s19, 1
      %s27 = ssub.s32 %s19, %s26
      %p28 = scmp.eq.s32.totalorder %s27, 0
      %s30 = sadd.s32 %s29, 1
      %s31 = scalar_select %p28, %s29, %s30
      %p34 = pneg %p28
      %p35 = scmp.eq.s32.totalorder %s19, 1
      %p36 = por %p34, %p35
      %p37 = scmp.ne.s32.totalorder %s29, %s32
      %p38 = scmp.eq.s32.totalorder %s19, 0
      %p39 = por %p37, %p38
      %p40 = scmp.ne.s32.totalorder %s29, %s32
      %p41 = scmp.eq.s32.totalorder %s24, 1
      %p42 = por %p40, %p41
      %p43 = scmp.ne.s32.totalorder %s32, %s33
      %p44 = scmp.eq.s32.totalorder %s24, 0
      %p45 = por %p43, %p44
      %p46 = scmp.ne.s32.totalorder %s32, %s33
      %p47 = scmp.eq.s32.totalorder %s25, 1
      %p48 = por %p46, %p47
      %p50 = scmp.ne.s32.totalorder %s33, %s49
      %p51 = scmp.eq.s32.totalorder %s25, 0
      %p52 = por %p50, %p51
      %s54 = sadd.s32 %s53, 1
      %p57 = scmp.eq.s32.totalorder %s19, 1
      %p58 = scmp.ne.s32.totalorder %s53, %s55
      %p59 = scmp.eq.s32.totalorder %s19, 0
      %p60 = por %p58, %p59
      %p61 = scmp.ne.s32.totalorder %s53, %s55
      %p62 = scmp.eq.s32.totalorder %s24, 1
      %p63 = por %p61, %p62
      %p64 = scmp.ne.s32.totalorder %s55, %s56
      %p65 = scmp.eq.s32.totalorder %s24, 0
      %p66 = por %p64, %p65
      %p67 = scmp.ne.s32.totalorder %s55, %s56
      %p68 = scmp.eq.s32.totalorder %s25, 1
      %p69 = por %p67, %p68
      %p71 = scmp.ne.s32.totalorder %s56, %s70
      %p72 = scmp.eq.s32.totalorder %s25, 0
      %p73 = por %p71, %p72
      %s75 = sadd.s32 %s74, 1
      %p78 = scmp.eq.s32.totalorder %s19, 1
      %p79 = scmp.ne.s32.totalorder %s74, %s76
      %p80 = scmp.eq.s32.totalorder %s19, 0
      %p81 = por %p79, %p80
      %p82 = scmp.ne.s32.totalorder %s74, %s76
      %p83 = scmp.eq.s32.totalorder %s24, 1
      %p84 = por %p82, %p83
      %p85 = scmp.ne.s32.totalorder %s76, %s77
      %p86 = scmp.eq.s32.totalorder %s24, 0
      %p87 = por %p85, %p86
      %p88 = scmp.ne.s32.totalorder %s76, %s77
      %p89 = scmp.eq.s32.totalorder %s25, 1
      %p90 = por %p88, %p89
      %p92 = scmp.ne.s32.totalorder %s77, %s91
      %p93 = scmp.eq.s32.totalorder %s25, 0
      %p94 = por %p92, %p93
      %s96 = sadd.s32 %s95, 1
      %p99 = scmp.eq.s32.totalorder %s19, 1
      %p100 = scmp.ne.s32.totalorder %s95, %s97
      %p101 = scmp.eq.s32.totalorder %s19, 0
      %p102 = por %p100, %p101
      %p103 = scmp.ne.s32.totalorder %s95, %s97
      %p104 = scmp.eq.s32.totalorder %s24, 1
      %p105 = por %p103, %p104
      %p106 = scmp.ne.s32.totalorder %s97, %s98
      %p107 = scmp.eq.s32.totalorder %s24, 0
      %p108 = por %p106, %p107
      %p109 = scmp.ne.s32.totalorder %s97, %s98
      %p110 = scmp.eq.s32.totalorder %s25, 1
      %p111 = por %p109, %p110
      %p113 = scmp.ne.s32.totalorder %s98, %s112
      %p114 = scmp.eq.s32.totalorder %s25, 0
      %p115 = por %p113, %p114
      %s117 = sadd.s32 %s116, 1
      %p120 = scmp.eq.s32.totalorder %s19, 1
      %p121 = scmp.ne.s32.totalorder %s116, %s118
      %p122 = scmp.eq.s32.totalorder %s19, 0
      %p123 = por %p121, %p122
      %p124 = scmp.ne.s32.totalorder %s116, %s118
      %p125 = scmp.eq.s32.totalorder %s24, 1
      %p126 = por %p124, %p125
      %p127 = scmp.ne.s32.totalorder %s118, %s119
      %p128 = scmp.eq.s32.totalorder %s24, 0
      %p129 = por %p127, %p128
      %p130 = scmp.ne.s32.totalorder %s118, %s119
      %p131 = scmp.eq.s32.totalorder %s25, 1
      %p132 = por %p130, %p131
      %p134 = scmp.ne.s32.totalorder %s119, %s133
      %p135 = scmp.eq.s32.totalorder %s25, 0
      %p136 = por %p134, %p135
      %s137 = ssub.s32 %s19, %s26
      %p138 = scmp.eq.s32.totalorder %s137, 0
      %s140 = sadd.s32 %s139, 1
      %s141 = scalar_select %p138, %s139, %s140
      %p144 = pneg %p138
      %p145 = scmp.eq.s32.totalorder %s19, 1
      %p146 = por %p144, %p145
      %p147 = scmp.ne.s32.totalorder %s139, %s142
      %p148 = scmp.eq.s32.totalorder %s19, 0
      %p149 = por %p147, %p148
      %p150 = scmp.ne.s32.totalorder %s139, %s142
      %p151 = scmp.eq.s32.totalorder %s24, 1
      %p152 = por %p150, %p151
      %p153 = scmp.ne.s32.totalorder %s142, %s143
      %p154 = scmp.eq.s32.totalorder %s24, 0
      %p155 = por %p153, %p154
      %p156 = scmp.ne.s32.totalorder %s142, %s143
      %p157 = scmp.eq.s32.totalorder %s25, 1
      %p158 = por %p156, %p157
      %p160 = scmp.ne.s32.totalorder %s143, %s159
      %p161 = scmp.eq.s32.totalorder %s25, 0
      %p162 = por %p160, %p161
      %p163 = scmp.le.s32.totalorder 1, %s19
      %p164 = scmp.lt.s32.totalorder %s19, 3
      %p165 = pnand %p163, %p164
      %p166 = pneg %p165
      // Predicated region
      $region9: #{unet_forward.18} parent=5 // pred_check
        _
      $region10: #{unet_forward.18} parent=5 // pred_check_branch
        %168 = sbr.rel (%p165) target = $region12
      $region11: #{unet_forward.18} parent=5 // pred_region
        %s169 = ssub.s32 %s19, 1
        // Predicated region
        $region13: #{unet_forward.18} parent=11 // pred_check
          %p170 = pneg %p66
        $region14: #{unet_forward.18} parent=11 // pred_check_branch
          %172 = sbr.rel (%p170) target = $region16
        $region15: #{unet_forward.18} parent=11 // pred_region
          %s174 = ssub.s32 576, 576
          %175 = vsyncadd [#allocation6], %s174
          %s176 = sshll.u32 [#allocation5], 4
          %s177 = int_to_ptr.vmem [resolvable:$true] %s176
          %182 = dma.hbm_to_vmem [thread:$0]  %s1, 576, %s177, [#allocation6], 64, 64, 4
        $region16: #{unet_forward.18} parent=11 // pred_fallthru
          _
        // Predicated region
        $region17: #{unet_forward.18} parent=11 // pred_check
          %p183 = pneg %p87
        $region18: #{unet_forward.18} parent=11 // pred_check_branch
          %185 = sbr.rel (%p183) target = $region20
        $region19: #{unet_forward.18} parent=11 // pred_region
          %s187 = ssub.s32 16, 16
          %188 = vsyncadd [#allocation6], %s187
          %s190 = sshll.u32 [#allocation7], 4
          %s191 = int_to_ptr.vmem [resolvable:$true] %s190
          %193 = dma.hbm_to_vmem [thread:$0]  %s2, 16, %s191, [#allocation6]
        $region20: #{unet_forward.18} parent=11 // pred_fallthru
          _
        // Predicated region
        $region21: #{unet_forward.18} parent=11 // pred_check
          %p194 = pneg %p108
        $region22: #{unet_forward.18} parent=11 // pred_check_branch
          %196 = sbr.rel (%p194) target = $region24
        $region23: #{unet_forward.18} parent=11 // pred_region
          %s198 = ssub.s32 16, 16
          %199 = vsyncadd [#allocation9], %s198
          %s201 = sshll.u32 [#allocation8], 4
          %s202 = int_to_ptr.vmem [resolvable:$true] %s201
          %204 = dma.hbm_to_vmem [thread:$0]  %s3, 16, %s202, [#allocation9]
        $region24: #{unet_forward.18} parent=11 // pred_fallthru
          _
        // Predicated region
        $region25: #{unet_forward.18} parent=11 // pred_check
          %p205 = pneg %p129
        $region26: #{unet_forward.18} parent=11 // pred_check_branch
          %207 = sbr.rel (%p205) target = $region28
        $region27: #{unet_forward.18} parent=11 // pred_region
          %s209 = ssub.s32 16, 16
          %210 = vsyncadd [#allocation9], %s209
          %s212 = sshll.u32 [#allocation10], 4
          %s213 = int_to_ptr.vmem [resolvable:$true] %s212
          %215 = dma.hbm_to_vmem [thread:$0]  %s4, 16, %s213, [#allocation9]
        $region28: #{unet_forward.18} parent=11 // pred_fallthru
          _
      $region12: #{unet_forward.18} parent=5 // pred_fallthru
        _
      %p216 = scmp.lt.s32.totalorder %s19, 2
      // Predicated region
      $region29: #{unet_forward.18} parent=5 // pred_check
        %p217 = pneg %p216
      $region30: #{unet_forward.18} parent=5 // pred_check_branch
        %219 = sbr.rel (%p217) target = $region32
      $region31: #{unet_forward.18} parent=5 // pred_region
        // Predicated region
        $region33: #{unet_forward.18} parent=31 // pred_check
          %p220 = pneg %p39
        $region34: #{unet_forward.18} parent=31 // pred_check_branch
          %222 = sbr.rel (%p220) target = $region36
        $region35: #{unet_forward.18} parent=31 // pred_region
          %s223 = sand.u32 %s29, 1
          %s224 = scalar_lea.sflag [#allocation3], %s223
          %s225 = sand.u32 %s29, 1
          %s226 = smul.addr %s225, 128
          %s227 = scalar_lea.vmem [#allocation2], %s226
          %s228 = smul.u32 32, %s19
          %s230 = ssub.s32 2048, 2048
          %231 = vsyncadd %s224, %s230
          %s232 = smul.addr %s228, 64
          %s233 = scalar_lea.hbm %s0, %s232
          %s234 = sshll.u32 %s227, 4
          %s235 = int_to_ptr.vmem [resolvable:$true] %s234
          %240 = dma.hbm_to_vmem [thread:$0]  %s233, 2048, %s235, %s224, 64, 64, 4
        $region36: #{unet_forward.18} parent=31 // pred_fallthru
          _
      $region32: #{unet_forward.18} parent=5 // pred_fallthru
        _
      %p241 = scmp.le.s32.totalorder 1, %s19
      %p242 = scmp.lt.s32.totalorder %s19, 3
      %p243 = pnand %p241, %p242
      %p244 = pneg %p243
      // Predicated region
      $region37: #{unet_forward.18} parent=5 // pred_check
        _
      $region38: #{unet_forward.18} parent=5 // pred_check_branch
        %246 = sbr.rel (%p243) target = $region40
      $region39: #{unet_forward.18} parent=5 // pred_region
        %s247 = ssub.s32 %s19, 1
        %s248 = sand.u32 %s32, 1
        %s249 = scalar_lea.sflag [#allocation3], %s248
        %s250 = sand.u32 %s32, 1
        %s251 = smul.addr %s250, 128
        %s252 = scalar_lea.vmem [#allocation2], %s251
        // Predicated region
        $region41: #{unet_forward.18} parent=39 // pred_check
          %p253 = pneg %p45
        $region42: #{unet_forward.18} parent=39 // pred_check_branch
          %255 = sbr.rel (%p253) target = $region44
        $region43: #{unet_forward.18} parent=39 // pred_region
          %256 = dma.done %s249, 2048
        $region44: #{unet_forward.18} parent=39 // pred_fallthru
          _
        // Predicated region
        $region45: #{unet_forward.18} parent=39 // pred_check
          %p257 = pneg %p66
        $region46: #{unet_forward.18} parent=39 // pred_check_branch
          %259 = sbr.rel (%p257) target = $region48
        $region47: #{unet_forward.18} parent=39 // pred_region
          %260 = dma.done [#allocation6], 576
        $region48: #{unet_forward.18} parent=39 // pred_fallthru
          _
        // Predicated region
        $region49: #{unet_forward.18} parent=39 // pred_check
          %p261 = pneg %p87
        $region50: #{unet_forward.18} parent=39 // pred_check_branch
          %263 = sbr.rel (%p261) target = $region52
        $region51: #{unet_forward.18} parent=39 // pred_region
          %264 = dma.done [#allocation6], 16
        $region52: #{unet_forward.18} parent=39 // pred_fallthru
          _
        // Predicated region
        $region53: #{unet_forward.18} parent=39 // pred_check
          %p265 = pneg %p108
        $region54: #{unet_forward.18} parent=39 // pred_check_branch
          %267 = sbr.rel (%p265) target = $region56
        $region55: #{unet_forward.18} parent=39 // pred_region
          %268 = dma.done [#allocation9], 16
        $region56: #{unet_forward.18} parent=39 // pred_fallthru
          _
        // Predicated region
        $region57: #{unet_forward.18} parent=39 // pred_check
          %p269 = pneg %p129
        $region58: #{unet_forward.18} parent=39 // pred_check_branch
          %271 = sbr.rel (%p269) target = $region60
        $region59: #{unet_forward.18} parent=39 // pred_region
          %272 = dma.done [#allocation9], 16
        $region60: #{unet_forward.18} parent=39 // pred_fallthru
          _
        %s273 = sand.u32 %s32, 1
        %s274 = scalar_lea.sflag [#allocation3], %s273
        %s275 = sand.u32 %s32, 1
        %s276 = smul.addr %s275, 128
        %s277 = scalar_lea.vmem [#allocation2], %s276
        %p278 = pneg %p45
        %p279 = pneg %p42
        %p280 = pneg %p66
        %p281 = pneg %p63
        %p282 = pneg %p87
        %p283 = pneg %p84
        %p284 = pneg %p108
        %p285 = pneg %p105
        %p286 = pneg %p129
        %p287 = pneg %p126
        %p288 = pneg %p155
        %p289 = pneg %p152
        %s290 = sand.u32 %s142, 1
        %s291 = scalar_lea.sflag [#allocation4], %s290
        %s292 = sand.u32 %s142, 1
        %s293 = smul.addr %s292, 128
        %s294 = scalar_lea.vmem [#allocation11], %s293
        %s295 = smul.u32 32, %s24
        %s296 = smul.u32 32, %s24
        %v298 = vld [vmem:[%s252] sm:$0xf]
        %v299 = vld [vmem:[%s252 + $0x4] sm:$0xf]
        %v300 = vld [vmem:[%s252 + $0x8] sm:$0xf]
        %v301 = vld [vmem:[%s252 + $0xc] sm:$0xf]
        %v302 = vld [vmem:[%s252 + $0x10] sm:$0xf]
        %v303 = vld [vmem:[%s252 + $0x14] sm:$0xf]
        %v304 = vld [vmem:[%s252 + $0x18] sm:$0xf]
        %v305 = vld [vmem:[%s252 + $0x1c] sm:$0xf]
        %v306 = vld [vmem:[%s252 + $0x20] sm:$0xf]
        %v307 = vld [vmem:[%s252 + $0x24] sm:$0xf]
        %v308 = vld [vmem:[%s252 + $0x28] sm:$0xf]
        %v309 = vld [vmem:[%s252 + $0x2c] sm:$0xf]
        %v310 = vld [vmem:[%s252 + $0x30] sm:$0xf]
        %v311 = vld [vmem:[%s252 + $0x34] sm:$0xf]
        %v312 = vld [vmem:[%s252 + $0x38] sm:$0xf]
        %v313 = vld [vmem:[%s252 + $0x3c] sm:$0xf]
        %v314 = vld [vmem:[%s252 + $0x40] sm:$0xf]
        %v315 = vld [vmem:[%s252 + $0x44] sm:$0xf]
        %v316 = vld [vmem:[%s252 + $0x48] sm:$0xf]
        %v317 = vld [vmem:[%s252 + $0x4c] sm:$0xf]
        %v318 = vld [vmem:[%s252 + $0x50] sm:$0xf]
        %v319 = vld [vmem:[%s252 + $0x54] sm:$0xf]
        %v320 = vld [vmem:[%s252 + $0x58] sm:$0xf]
        %v321 = vld [vmem:[%s252 + $0x5c] sm:$0xf]
        %v322 = vld [vmem:[%s252 + $0x60] sm:$0xf]
        %v323 = vld [vmem:[%s252 + $0x64] sm:$0xf]
        %v324 = vld [vmem:[%s252 + $0x68] sm:$0xf]
        %v325 = vld [vmem:[%s252 + $0x6c] sm:$0xf]
        %v326 = vld [vmem:[%s252 + $0x70] sm:$0xf]
        %v327 = vld [vmem:[%s252 + $0x74] sm:$0xf]
        %v328 = vld [vmem:[%s252 + $0x78] sm:$0xf]
        %v329 = vld [vmem:[%s252 + $0x7c] sm:$0xf]
        %v330 = vld [vmem:[#allocation5] sm:$0xf]
        %v331 = vld [vmem:[#allocation5 + $0x4] sm:$0xf]
        %v332 = vld [vmem:[#allocation5 + $0x8] sm:$0xf]
        %v333 = vld [vmem:[#allocation5 + $0xc] sm:$0xf]
        %v334 = vld [vmem:[#allocation5 + $0x10] sm:$0xf]
        %v335 = vld [vmem:[#allocation5 + $0x14] sm:$0xf]
        %v336 = vld [vmem:[#allocation5 + $0x18] sm:$0xf]
        %v337 = vld [vmem:[#allocation5 + $0x1c] sm:$0xf]
        %v338 = vld [vmem:[#allocation5 + $0x20] sm:$0xf]
        %v339 = vld [vmem:[#allocation7] sm:$0x1]
        %v341 = vlaneseq
        %v342 = vshrl.u32 %v341, 7
        %v343 = vsub.s32 0, %v342
        %v344 = vrot.slane %v339, %v343
        %v378 = vunpack.c.l.b16 %v298
        %v379 = vunpack.c.l.b16 %v299
        %v380 = vunpack.c.l.b16 %v300
        %v381 = vunpack.c.l.b16 %v301
        %v382 = vunpack.c.l.b16 %v302
        %v383 = vunpack.c.l.b16 %v303
        %v384 = vunpack.c.l.b16 %v304
        %v385 = vunpack.c.l.b16 %v305
        %v386 = vunpack.c.l.b16 %v306
        %v387 = vunpack.c.l.b16 %v307
        %v388 = vunpack.c.l.b16 %v308
        %v389 = vunpack.c.l.b16 %v309
        %v390 = vunpack.c.l.b16 %v310
        %v391 = vunpack.c.l.b16 %v311
        %v392 = vunpack.c.l.b16 %v312
        %v393 = vunpack.c.l.b16 %v313
        %v394 = vunpack.c.l.b16 %v314
        %v395 = vunpack.c.l.b16 %v315
        %v396 = vunpack.c.l.b16 %v316
        %v397 = vunpack.c.l.b16 %v317
        %v398 = vunpack.c.l.b16 %v318
        %v399 = vunpack.c.l.b16 %v319
        %v400 = vunpack.c.l.b16 %v320
        %v401 = vunpack.c.l.b16 %v321
        %v402 = vunpack.c.l.b16 %v322
        %v403 = vunpack.c.l.b16 %v323
        %v404 = vunpack.c.l.b16 %v324
        %v405 = vunpack.c.l.b16 %v325
        %v406 = vunpack.c.l.b16 %v326
        %v407 = vunpack.c.l.b16 %v327
        %v408 = vunpack.c.l.b16 %v328
        %v409 = vunpack.c.l.b16 %v329
        %v410 = vpack.c.b16 %v379, %v378
        %v411 = vpack.c.b16 %v381, %v380
        %v412 = vpack.c.b16 %v383, %v382
        %v413 = vpack.c.b16 %v385, %v384
        %v414 = vpack.c.b16 %v387, %v386
        %v415 = vpack.c.b16 %v389, %v388
        %v416 = vpack.c.b16 %v391, %v390
        %v417 = vpack.c.b16 %v393, %v392
        %v418 = vpack.c.b16 %v395, %v394
        %v419 = vpack.c.b16 %v397, %v396
        %v420 = vpack.c.b16 %v399, %v398
        %v421 = vpack.c.b16 %v401, %v400
        %v422 = vpack.c.b16 %v403, %v402
        %v423 = vpack.c.b16 %v405, %v404
        %v424 = vpack.c.b16 %v407, %v406
        %v425 = vpack.c.b16 %v409, %v408
        %v435 = vunpack.c.l.b16 %v330
        %v436 = vunpack.c.l.b16 %v331
        %v437 = vunpack.c.l.b16 %v332
        %v438 = vunpack.c.l.b16 %v333
        %v439 = vunpack.c.l.b16 %v334
        %v440 = vunpack.c.l.b16 %v335
        %v441 = vunpack.c.l.b16 %v336
        %v442 = vunpack.c.l.b16 %v337
        %v443 = vunpack.c.l.b16 %v338
        %v444 = vpack.c.b16 %v436, %v435
        %v445 = vpack.c.b16 %v438, %v437
        %v446 = vpack.c.b16 %v440, %v439
        %v447 = vpack.c.b16 %v442, %v441
        %v448 = vpack.c.b16 %v443, %v443
        %vm453 = vcmask 588800
        %v455 = vsel %vm453, %v410, 0
        %v458 = vsel %vm453, %v411, 0
        %v461 = vsel %vm453, %v412, 0
        %v464 = vsel %vm453, %v413, 0
        %v467 = vsel %vm453, %v414, 0
        %v470 = vsel %vm453, %v415, 0
        %v473 = vsel %vm453, %v416, 0
        %v476 = vsel %vm453, %v417, 0
        %v479 = vsel %vm453, %v418, 0
        %v482 = vsel %vm453, %v419, 0
        %v485 = vsel %vm453, %v420, 0
        %v488 = vsel %vm453, %v421, 0
        %v491 = vsel %vm453, %v422, 0
        %v494 = vsel %vm453, %v423, 0
        %v497 = vsel %vm453, %v424, 0
        %v500 = vsel %vm453, %v425, 0
        %vm502 = vcmask 1043456
        %v504 = vsel %vm502, %v448, 0
        %506 = vmatprep.subr.bf16.mxu0 0
        %507 = vmatpush1.bf16.msra.mxu0 %v444
        %508 = vmatprep.subr.bf16.mxu0 0
        %509 = vmatpush1.bf16.msra.mxu0 %v445
        %510 = vmatprep.subr.bf16.mxu0 0
        %511 = vmatpush1.bf16.msra.mxu0 %v446
        %512 = vmatprep.subr.bf16.mxu0 0
        %513 = vmatpush1.bf16.msra.mxu0 %v447
        %514 = vmatprep.subr.bf16.mxu0 0
        %515 = vmatpush1.bf16.msra.mxu0 %v504
        %516 = vmatprep.subr.bf16.mxu0 0
        %517 = vmatpush1.bf16.msra.mxu0 0
        %518 = vmatprep.subr.bf16.mxu0 0
        %519 = vmatpush1.bf16.msra.mxu0 0
        %520 = vmatprep.subr.bf16.mxu0 0
        %521 = vmatpush1.bf16.msra.mxu0 0
        %522 = vmatprep.subr.bf16.mxu0 0
        %523 = vmatpush1.bf16.msra.mxu0 0
        %524 = vmatprep.subr.bf16.mxu0 0
        %525 = vmatpush1.bf16.msra.mxu0 0
        %526 = vmatprep.subr.bf16.mxu0 0
        %527 = vmatpush1.bf16.msra.mxu0 0
        %528 = vmatprep.subr.bf16.mxu0 0
        %529 = vmatpush1.bf16.msra.mxu0 0
        %530 = vmatprep.subr.bf16.mxu0 0
        %531 = vmatpush1.bf16.msra.mxu0 0
        %532 = vmatprep.subr.bf16.mxu0 0
        %533 = vmatpush1.bf16.msra.mxu0 0
        %534 = vmatprep.subr.bf16.mxu0 0
        %535 = vmatpush1.bf16.msra.mxu0 0
        %536 = vmatprep.subr.bf16.mxu0 0
        %537 = vmatpush1.bf16.msra.mxu0 0
        %538 = vmatprep.mubr.bf16.mxu0 0
        %539 = vmatmul.mubr.bf16.gmra.mrb[0].mxu0 %v455
        %v540 = vpop.f32.mrb[0].mxu0
        %v541 = vadd.f32 %v344, %v540
        %v542 = vpop.f32.mrb[0].mxu0
        %v543 = vpop.f32.mrb[0].mxu0
        %v544 = vadd.f32 %v344, %v543
        %v545 = vpop.f32.mrb[0].mxu0
        %546 = vmatprep.mubr.bf16.mxu0 0
        %547 = vmatmul.mubr.bf16.gmra.mrb[0].mxu0 %v458
        %v548 = vpop.f32.mrb[0].mxu0
        %v549 = vadd.f32 %v344, %v548
        %v550 = vpop.f32.mrb[0].mxu0
        %v551 = vpop.f32.mrb[0].mxu0
        %v552 = vadd.f32 %v344, %v551
        %v553 = vpop.f32.mrb[0].mxu0
        %554 = vmatprep.mubr.bf16.mxu0 0
        %555 = vmatmul.mubr.bf16.gmra.mrb[0].mxu0 %v461
        %v556 = vpop.f32.mrb[0].mxu0
        %v557 = vadd.f32 %v344, %v556
        %v558 = vpop.f32.mrb[0].mxu0
        %v559 = vpop.f32.mrb[0].mxu0
        %v560 = vadd.f32 %v344, %v559
        %v561 = vpop.f32.mrb[0].mxu0
        %562 = vmatprep.mubr.bf16.mxu0 0
        %563 = vmatmul.mubr.bf16.gmra.mrb[0].mxu0 %v464
        %v564 = vpop.f32.mrb[0].mxu0
        %v565 = vadd.f32 %v344, %v564
        %v566 = vpop.f32.mrb[0].mxu0
        %v567 = vpop.f32.mrb[0].mxu0
        %v568 = vadd.f32 %v344, %v567
        %v569 = vpop.f32.mrb[0].mxu0
        %570 = vmatprep.mubr.bf16.mxu0 0
        %571 = vmatmul.mubr.bf16.gmra.mrb[0].mxu0 %v467
        %v572 = vpop.f32.mrb[0].mxu0
        %v573 = vadd.f32 %v344, %v572
        %v574 = vpop.f32.mrb[0].mxu0
        %v575 = vpop.f32.mrb[0].mxu0
        %v576 = vadd.f32 %v344, %v575
        %v577 = vpop.f32.mrb[0].mxu0
        %578 = vmatprep.mubr.bf16.mxu0 0
        %579 = vmatmul.mubr.bf16.gmra.mrb[0].mxu0 %v470
        %v580 = vpop.f32.mrb[0].mxu0
        %v581 = vadd.f32 %v344, %v580
        %v582 = vpop.f32.mrb[0].mxu0
        %v583 = vpop.f32.mrb[0].mxu0
        %v584 = vadd.f32 %v344, %v583
        %v585 = vpop.f32.mrb[0].mxu0
        %586 = vmatprep.mubr.bf16.mxu0 0
        %587 = vmatmul.mubr.bf16.gmra.mrb[0].mxu0 %v473
        %v588 = vpop.f32.mrb[0].mxu0
        %v589 = vadd.f32 %v344, %v588
        %v590 = vpop.f32.mrb[0].mxu0
        %v591 = vpop.f32.mrb[0].mxu0
        %v592 = vadd.f32 %v344, %v591
        %v593 = vpop.f32.mrb[0].mxu0
        %594 = vmatprep.mubr.bf16.mxu0 0
        %595 = vmatmul.mubr.bf16.gmra.mrb[0].mxu0 %v476
        %v596 = vpop.f32.mrb[0].mxu0
        %v597 = vadd.f32 %v344, %v596
        %v598 = vpop.f32.mrb[0].mxu0
        %v599 = vpop.f32.mrb[0].mxu0
        %v600 = vadd.f32 %v344, %v599
        %v601 = vpop.f32.mrb[0].mxu0
        %602 = vmatprep.mubr.bf16.mxu0 0
        %603 = vmatmul.mubr.bf16.gmra.mrb[0].mxu0 %v479
        %v604 = vpop.f32.mrb[0].mxu0
        %v605 = vadd.f32 %v344, %v604
        %v606 = vpop.f32.mrb[0].mxu0
        %v607 = vpop.f32.mrb[0].mxu0
        %v608 = vadd.f32 %v344, %v607
        %v609 = vpop.f32.mrb[0].mxu0
        %610 = vmatprep.mubr.bf16.mxu0 0
        %611 = vmatmul.mubr.bf16.gmra.mrb[0].mxu0 %v482
        %v612 = vpop.f32.mrb[0].mxu0
        %v613 = vadd.f32 %v344, %v612
        %v614 = vpop.f32.mrb[0].mxu0
        %v615 = vpop.f32.mrb[0].mxu0
        %v616 = vadd.f32 %v344, %v615
        %v617 = vpop.f32.mrb[0].mxu0
        %618 = vmatprep.mubr.bf16.mxu0 0
        %619 = vmatmul.mubr.bf16.gmra.mrb[0].mxu0 %v485
        %v620 = vpop.f32.mrb[0].mxu0
        %v621 = vadd.f32 %v344, %v620
        %v622 = vpop.f32.mrb[0].mxu0
        %v623 = vpop.f32.mrb[0].mxu0
        %v624 = vadd.f32 %v344, %v623
        %v625 = vpop.f32.mrb[0].mxu0
        %626 = vmatprep.mubr.bf16.mxu0 0
        %627 = vmatmul.mubr.bf16.gmra.mrb[0].mxu0 %v488
        %v628 = vpop.f32.mrb[0].mxu0
        %v629 = vadd.f32 %v344, %v628
        %v630 = vpop.f32.mrb[0].mxu0
        %v631 = vpop.f32.mrb[0].mxu0
        %v632 = vadd.f32 %v344, %v631
        %v633 = vpop.f32.mrb[0].mxu0
        %634 = vmatprep.mubr.bf16.mxu0 0
        %635 = vmatmul.mubr.bf16.gmra.mrb[0].mxu0 %v491
        %v636 = vpop.f32.mrb[0].mxu0
        %v637 = vadd.f32 %v344, %v636
        %v638 = vpop.f32.mrb[0].mxu0
        %v639 = vpop.f32.mrb[0].mxu0
        %v640 = vadd.f32 %v344, %v639
        %v641 = vpop.f32.mrb[0].mxu0
        %642 = vmatprep.mubr.bf16.mxu0 0
        %643 = vmatmul.mubr.bf16.gmra.mrb[0].mxu0 %v494
        %v644 = vpop.f32.mrb[0].mxu0
        %v645 = vadd.f32 %v344, %v644
        %v646 = vpop.f32.mrb[0].mxu0
        %v647 = vpop.f32.mrb[0].mxu0
        %v648 = vadd.f32 %v344, %v647
        %v649 = vpop.f32.mrb[0].mxu0
        %650 = vmatprep.mubr.bf16.mxu0 0
        %651 = vmatmul.mubr.bf16.gmra.mrb[0].mxu0 %v497
        %v652 = vpop.f32.mrb[0].mxu0
        %v653 = vadd.f32 %v344, %v652
        %v654 = vpop.f32.mrb[0].mxu0
        %v655 = vpop.f32.mrb[0].mxu0
        %v656 = vadd.f32 %v344, %v655
        %v657 = vpop.f32.mrb[0].mxu0
        %658 = vmatprep.mubr.bf16.mxu0 0
        %659 = vmatmul.mubr.bf16.gmra.mrb[0].mxu0 %v500
        %v660 = vpop.f32.mrb[0].mxu0
        %v661 = vadd.f32 %v344, %v660
        %v662 = vpop.f32.mrb[0].mxu0
        %v663 = vpop.f32.mrb[0].mxu0
        %v664 = vadd.f32 %v344, %v663
        %v665 = vpop.f32.mrb[0].mxu0
        %666 = vdwg.mxu0
        %v667 = vmax.f32 %v541, 0.0
        %v668 = vmax.f32 %v544, 0.0
        %v669 = vmax.f32 %v549, 0.0
        %v670 = vmax.f32 %v552, 0.0
        %v671 = vmax.f32 %v557, 0.0
        %v672 = vmax.f32 %v560, 0.0
        %v673 = vmax.f32 %v565, 0.0
        %v674 = vmax.f32 %v568, 0.0
        %v675 = vmax.f32 %v573, 0.0
        %v676 = vmax.f32 %v576, 0.0
        %v677 = vmax.f32 %v581, 0.0
        %v678 = vmax.f32 %v584, 0.0
        %v679 = vmax.f32 %v589, 0.0
        %v680 = vmax.f32 %v592, 0.0
        %v681 = vmax.f32 %v597, 0.0
        %v682 = vmax.f32 %v600, 0.0
        %v683 = vmax.f32 %v605, 0.0
        %v684 = vmax.f32 %v608, 0.0
        %v685 = vmax.f32 %v613, 0.0
        %v686 = vmax.f32 %v616, 0.0
        %v687 = vmax.f32 %v621, 0.0
        %v688 = vmax.f32 %v624, 0.0
        %v689 = vmax.f32 %v629, 0.0
        %v690 = vmax.f32 %v632, 0.0
        %v691 = vmax.f32 %v637, 0.0
        %v692 = vmax.f32 %v640, 0.0
        %v693 = vmax.f32 %v645, 0.0
        %v694 = vmax.f32 %v648, 0.0
        %v695 = vmax.f32 %v653, 0.0
        %v696 = vmax.f32 %v656, 0.0
        %v697 = vmax.f32 %v661, 0.0
        %v698 = vmax.f32 %v664, 0.0
        %v699 = vld [vmem:[#allocation8] sm:$0x1]
        %v701 = vlaneseq
        %v702 = vshrl.u32 %v701, 7
        %v703 = vsub.s32 0, %v702
        %v704 = vrot.slane %v699, %v703
        %v706 = vmul.f32 %v667, %v704
        %v707 = vmul.f32 %v668, %v704
        %v708 = vmul.f32 %v669, %v704
        %v709 = vmul.f32 %v670, %v704
        %v710 = vmul.f32 %v671, %v704
        %v711 = vmul.f32 %v672, %v704
        %v712 = vmul.f32 %v673, %v704
        %v713 = vmul.f32 %v674, %v704
        %v714 = vmul.f32 %v675, %v704
        %v715 = vmul.f32 %v676, %v704
        %v716 = vmul.f32 %v677, %v704
        %v717 = vmul.f32 %v678, %v704
        %v718 = vmul.f32 %v679, %v704
        %v719 = vmul.f32 %v680, %v704
        %v720 = vmul.f32 %v681, %v704
        %v721 = vmul.f32 %v682, %v704
        %v722 = vmul.f32 %v683, %v704
        %v723 = vmul.f32 %v684, %v704
        %v724 = vmul.f32 %v685, %v704
        %v725 = vmul.f32 %v686, %v704
        %v726 = vmul.f32 %v687, %v704
        %v727 = vmul.f32 %v688, %v704
        %v728 = vmul.f32 %v689, %v704
        %v729 = vmul.f32 %v690, %v704
        %v730 = vmul.f32 %v691, %v704
        %v731 = vmul.f32 %v692, %v704
        %v732 = vmul.f32 %v693, %v704
        %v733 = vmul.f32 %v694, %v704
        %v734 = vmul.f32 %v695, %v704
        %v735 = vmul.f32 %v696, %v704
        %v736 = vmul.f32 %v697, %v704
        %v737 = vmul.f32 %v698, %v704
        %v738 = vld [vmem:[#allocation10] sm:$0x1]
        %v740 = vlaneseq
        %v741 = vshrl.u32 %v740, 7
        %v742 = vsub.s32 0, %v741
        %v743 = vrot.slane %v738, %v742
        %v745 = vadd.f32 %v706, %v743
        %v746 = vadd.f32 %v707, %v743
        %v747 = vadd.f32 %v708, %v743
        %v748 = vadd.f32 %v709, %v743
        %v749 = vadd.f32 %v710, %v743
        %v750 = vadd.f32 %v711, %v743
        %v751 = vadd.f32 %v712, %v743
        %v752 = vadd.f32 %v713, %v743
        %v753 = vadd.f32 %v714, %v743
        %v754 = vadd.f32 %v715, %v743
        %v755 = vadd.f32 %v716, %v743
        %v756 = vadd.f32 %v717, %v743
        %v757 = vadd.f32 %v718, %v743
        %v758 = vadd.f32 %v719, %v743
        %v759 = vadd.f32 %v720, %v743
        %v760 = vadd.f32 %v721, %v743
        %v761 = vadd.f32 %v722, %v743
        %v762 = vadd.f32 %v723, %v743
        %v763 = vadd.f32 %v724, %v743
        %v764 = vadd.f32 %v725, %v743
        %v765 = vadd.f32 %v726, %v743
        %v766 = vadd.f32 %v727, %v743
        %v767 = vadd.f32 %v728, %v743
        %v768 = vadd.f32 %v729, %v743
        %v769 = vadd.f32 %v730, %v743
        %v770 = vadd.f32 %v731, %v743
        %v771 = vadd.f32 %v732, %v743
        %v772 = vadd.f32 %v733, %v743
        %v773 = vadd.f32 %v734, %v743
        %v774 = vadd.f32 %v735, %v743
        %v775 = vadd.f32 %v736, %v743
        %v776 = vadd.f32 %v737, %v743
        %v777 = vpack.c.bf16 %v746, %v745
        %v778 = vpack.c.bf16 %v748, %v747
        %v779 = vpack.c.bf16 %v750, %v749
        %v780 = vpack.c.bf16 %v752, %v751
        %v781 = vpack.c.bf16 %v754, %v753
        %v782 = vpack.c.bf16 %v756, %v755
        %v783 = vpack.c.bf16 %v758, %v757
        %v784 = vpack.c.bf16 %v760, %v759
        %v785 = vpack.c.bf16 %v762, %v761
        %v786 = vpack.c.bf16 %v764, %v763
        %v787 = vpack.c.bf16 %v766, %v765
        %v788 = vpack.c.bf16 %v768, %v767
        %v789 = vpack.c.bf16 %v770, %v769
        %v790 = vpack.c.bf16 %v772, %v771
        %v791 = vpack.c.bf16 %v774, %v773
        %v792 = vpack.c.bf16 %v776, %v775
        %v809 = vunpack.c.l.b16 %v777
        %v810 = vunpack.c.h.b16 %v777
        %v811 = vunpack.c.l.b16 %v778
        %v812 = vunpack.c.h.b16 %v778
        %v813 = vunpack.c.l.b16 %v779
        %v814 = vunpack.c.h.b16 %v779
        %v815 = vunpack.c.l.b16 %v780
        %v816 = vunpack.c.h.b16 %v780
        %v817 = vunpack.c.l.b16 %v781
        %v818 = vunpack.c.h.b16 %v781
        %v819 = vunpack.c.l.b16 %v782
        %v820 = vunpack.c.h.b16 %v782
        %v821 = vunpack.c.l.b16 %v783
        %v822 = vunpack.c.h.b16 %v783
        %v823 = vunpack.c.l.b16 %v784
        %v824 = vunpack.c.h.b16 %v784
        %v825 = vunpack.c.l.b16 %v785
        %v826 = vunpack.c.h.b16 %v785
        %v827 = vunpack.c.l.b16 %v786
        %v828 = vunpack.c.h.b16 %v786
        %v829 = vunpack.c.l.b16 %v787
        %v830 = vunpack.c.h.b16 %v787
        %v831 = vunpack.c.l.b16 %v788
        %v832 = vunpack.c.h.b16 %v788
        %v833 = vunpack.c.l.b16 %v789
        %v834 = vunpack.c.h.b16 %v789
        %v835 = vunpack.c.l.b16 %v790
        %v836 = vunpack.c.h.b16 %v790
        %v837 = vunpack.c.l.b16 %v791
        %v838 = vunpack.c.h.b16 %v791
        %v839 = vunpack.c.l.b16 %v792
        %v840 = vunpack.c.h.b16 %v792
        %v841 = vpack.c.b16 %v809, %v809
        %v842 = vpack.c.b16 %v810, %v810
        %v843 = vpack.c.b16 %v811, %v811
        %v844 = vpack.c.b16 %v812, %v812
        %v845 = vpack.c.b16 %v813, %v813
        %v846 = vpack.c.b16 %v814, %v814
        %v847 = vpack.c.b16 %v815, %v815
        %v848 = vpack.c.b16 %v816, %v816
        %v849 = vpack.c.b16 %v817, %v817
        %v850 = vpack.c.b16 %v818, %v818
        %v851 = vpack.c.b16 %v819, %v819
        %v852 = vpack.c.b16 %v820, %v820
        %v853 = vpack.c.b16 %v821, %v821
        %v854 = vpack.c.b16 %v822, %v822
        %v855 = vpack.c.b16 %v823, %v823
        %v856 = vpack.c.b16 %v824, %v824
        %v857 = vpack.c.b16 %v825, %v825
        %v858 = vpack.c.b16 %v826, %v826
        %v859 = vpack.c.b16 %v827, %v827
        %v860 = vpack.c.b16 %v828, %v828
        %v861 = vpack.c.b16 %v829, %v829
        %v862 = vpack.c.b16 %v830, %v830
        %v863 = vpack.c.b16 %v831, %v831
        %v864 = vpack.c.b16 %v832, %v832
        %v865 = vpack.c.b16 %v833, %v833
        %v866 = vpack.c.b16 %v834, %v834
        %v867 = vpack.c.b16 %v835, %v835
        %v868 = vpack.c.b16 %v836, %v836
        %v869 = vpack.c.b16 %v837, %v837
        %v870 = vpack.c.b16 %v838, %v838
        %v871 = vpack.c.b16 %v839, %v839
        %v872 = vpack.c.b16 %v840, %v840
        %vm905 = vcmask 60416
        %906 = vst.msk [vmem:[%s294] sm:$0xf] %vm905, %v841
        %907 = vst.msk [vmem:[%s294 + $0x4] sm:$0xf] %vm905, %v842
        %908 = vst.msk [vmem:[%s294 + $0x8] sm:$0xf] %vm905, %v843
        %909 = vst.msk [vmem:[%s294 + $0xc] sm:$0xf] %vm905, %v844
        %910 = vst.msk [vmem:[%s294 + $0x10] sm:$0xf] %vm905, %v845
        %911 = vst.msk [vmem:[%s294 + $0x14] sm:$0xf] %vm905, %v846
        %912 = vst.msk [vmem:[%s294 + $0x18] sm:$0xf] %vm905, %v847
        %913 = vst.msk [vmem:[%s294 + $0x1c] sm:$0xf] %vm905, %v848
        %914 = vst.msk [vmem:[%s294 + $0x20] sm:$0xf] %vm905, %v849
        %915 = vst.msk [vmem:[%s294 + $0x24] sm:$0xf] %vm905, %v850
        %916 = vst.msk [vmem:[%s294 + $0x28] sm:$0xf] %vm905, %v851
        %917 = vst.msk [vmem:[%s294 + $0x2c] sm:$0xf] %vm905, %v852
        %918 = vst.msk [vmem:[%s294 + $0x30] sm:$0xf] %vm905, %v853
        %919 = vst.msk [vmem:[%s294 + $0x34] sm:$0xf] %vm905, %v854
        %920 = vst.msk [vmem:[%s294 + $0x38] sm:$0xf] %vm905, %v855
        %921 = vst.msk [vmem:[%s294 + $0x3c] sm:$0xf] %vm905, %v856
        %922 = vst.msk [vmem:[%s294 + $0x40] sm:$0xf] %vm905, %v857
        %923 = vst.msk [vmem:[%s294 + $0x44] sm:$0xf] %vm905, %v858
        %924 = vst.msk [vmem:[%s294 + $0x48] sm:$0xf] %vm905, %v859
        %925 = vst.msk [vmem:[%s294 + $0x4c] sm:$0xf] %vm905, %v860
        %926 = vst.msk [vmem:[%s294 + $0x50] sm:$0xf] %vm905, %v861
        %927 = vst.msk [vmem:[%s294 + $0x54] sm:$0xf] %vm905, %v862
        %928 = vst.msk [vmem:[%s294 + $0x58] sm:$0xf] %vm905, %v863
        %929 = vst.msk [vmem:[%s294 + $0x5c] sm:$0xf] %vm905, %v864
        %930 = vst.msk [vmem:[%s294 + $0x60] sm:$0xf] %vm905, %v865
        %931 = vst.msk [vmem:[%s294 + $0x64] sm:$0xf] %vm905, %v866
        %932 = vst.msk [vmem:[%s294 + $0x68] sm:$0xf] %vm905, %v867
        %933 = vst.msk [vmem:[%s294 + $0x6c] sm:$0xf] %vm905, %v868
        %934 = vst.msk [vmem:[%s294 + $0x70] sm:$0xf] %vm905, %v869
        %935 = vst.msk [vmem:[%s294 + $0x74] sm:$0xf] %vm905, %v870
        %936 = vst.msk [vmem:[%s294 + $0x78] sm:$0xf] %vm905, %v871
        %937 = vst.msk [vmem:[%s294 + $0x7c] sm:$0xf] %vm905, %v872
        %s938 = sand.u32 %s142, 1
        %s939 = scalar_lea.sflag [#allocation4], %s938
        %s940 = sand.u32 %s142, 1
        %s941 = smul.addr %s940, 128
        %s942 = scalar_lea.vmem [#allocation11], %s941
        // Predicated region
        $region61: #{unet_forward.18} parent=39 // pred_check
          %p943 = pneg %p152
        $region62: #{unet_forward.18} parent=39 // pred_check_branch
          %945 = sbr.rel (%p943) target = $region64
        $region63: #{unet_forward.18} parent=39 // pred_region
          %s946 = smul.u32 32, %s24
          %s948 = ssub.s32 2048, 2048
          %949 = vsyncadd %s939, %s948
          %s950 = smul.addr %s946, 64
          %s951 = scalar_lea.hbm %s5, %s950
          %s952 = sshll.u32 %s942, 4
          %s953 = int_to_ptr.vmem [resolvable:$true] %s952
          %958 = dma.vmem_to_hbm [thread:$0]  %s953, 2048, %s951, %s939, 64, 64, 4
        $region64: #{unet_forward.18} parent=39 // pred_fallthru
          _
      $region40: #{unet_forward.18} parent=5 // pred_fallthru
        _
      %p959 = scmp.le.s32.totalorder 2, %s19
      // Predicated region
      $region65: #{unet_forward.18} parent=5 // pred_check
        %p960 = pneg %p959
      $region66: #{unet_forward.18} parent=5 // pred_check_branch
        %962 = sbr.rel (%p960) target = $region68
      $region67: #{unet_forward.18} parent=5 // pred_region
        %s963 = ssub.s32 %s19, 2
        // Predicated region
        $region69: #{unet_forward.18} parent=67 // pred_check
          %p964 = pneg %p158
        $region70: #{unet_forward.18} parent=67 // pred_check_branch
          %966 = sbr.rel (%p964) target = $region72
        $region71: #{unet_forward.18} parent=67 // pred_region
          %s967 = sand.u32 %s143, 1
          %s968 = scalar_lea.sflag [#allocation4], %s967
          %s969 = sand.u32 %s143, 1
          %s970 = smul.addr %s969, 128
          %s971 = scalar_lea.vmem [#allocation11], %s970
          %972 = dma.done %s968, 2048
        $region72: #{unet_forward.18} parent=67 // pred_fallthru
          _
      $region68: #{unet_forward.18} parent=5 // pred_fallthru
        _
    $region6: #{unet_forward.18} parent=1 // loop_footer
      %s23 = sadd.s32 1, %s19
    $region7: #{unet_forward.18} parent=1 // loop_footer_branch
      %18 = sbr.rel target = $region3
    $region8: #{unet_forward.18} parent=1 // loop_exit
      _
    %973 = vsyncpa [#allocation3], 1
    %s974 = scalar_lea.sflag [#allocation3], 1
    %975 = vsyncpa %s974, 1
    %976 = vsyncpa [#allocation6], 1
    %977 = vsyncpa [#allocation9], 1
    %978 = vsyncpa [#allocation4], 1
    %s979 = scalar_lea.sflag [#allocation4], 1
    %980 = vsyncpa %s979, 1

// kernel: unet_forward.17
$region0: #{unet_forward.17}
  #allocation0 [shape = 'u32[]', space=smem, size = 0x4, offset = 0x4, fixed_abs, tag = 'smem constant byte address 0x4 - core index']
  #allocation1 [shape = 'u32[144,128]{1,0:T(1,128)}', space=vmem, size = 0x12000, scoped, tag = 'internal scratch']
  %s0 = inlined_call_operand.hbm [shape: bf16[512,45], index: 0, kind: input, shape index: {}]
  %s1 = inlined_call_operand.hbm [shape: bf16[45,8], index: 1, kind: input, shape index: {}]
  %s2 = inlined_call_operand.hbm [shape: f32[1,8], index: 2, kind: input, shape index: {}]
  %s3 = inlined_call_operand.hbm [shape: f32[1,8], index: 3, kind: input, shape index: {}]
  %s4 = inlined_call_operand.hbm [shape: f32[1,8], index: 4, kind: input, shape index: {}]
  %s5 = inlined_call_operand.hbm [shape: bf16[512,8], index: 5, kind: output, shape index: {}]
  %s6 = sld [smem:[#allocation0]]
  $region73: #{unet_forward.17} parent=0
    _
  %s8 = ssub.s32 1, %s6
  %s9 = scalar_select 0, %s8, %s6
  $region1: #{unet_forward.17} parent=0
    #allocation2 [shape = 'u8[131072]{0}', space=vmem, size = 0x20000, scoped, tag = 'input window, operand 0']
    #allocation3 [shape = 's32[2]{0}', space=sflag, size = 0x8, scoped, tag = 'scoped memory for unet_forward.17']
    #allocation4 [shape = 's32[2]{0}', space=sflag, size = 0x8, scoped, tag = 'scoped memory for unet_forward.17']
    #allocation5 [shape = 'u8[12288]{0}', space=vmem, size = 0x3000, scoped, tag = 'input window, operand 1, single buffered']
    #allocation6 [shape = 's32[1]{0}', space=sflag, size = 0x4, scoped, tag = 'scoped memory for unet_forward.17']
    #allocation7 [shape = 'u8[512]{0}', space=vmem, size = 0x400, scoped, tag = 'input window, operand 2, single buffered']
    #allocation8 [shape = 'u8[512]{0}', space=vmem, size = 0x400, scoped, tag = 'input window, operand 3, single buffered']
    #allocation9 [shape = 's32[1]{0}', space=sflag, size = 0x4, scoped, tag = 'scoped memory for unet_forward.17']
    #allocation10 [shape = 'u8[512]{0}', space=vmem, size = 0x400, scoped, tag = 'input window, operand 4, single buffered']
    #allocation11 [shape = 'u8[131072]{0}', space=vmem, size = 0x20000, scoped, tag = 'output window, operand 0']
    %10 = vsyncpa [#allocation3], 0
    %s11 = scalar_lea.sflag [#allocation3], 1
    %12 = vsyncpa %s11, 0
    %13 = vsyncpa [#allocation6], 0
    %14 = vsyncpa [#allocation9], 0
    %15 = vsyncpa [#allocation4], 0
    %s16 = scalar_lea.sflag [#allocation4], 1
    %17 = vsyncpa %s16, 0
    loop: start=0, step=1, limit=4
    $region2: #{unet_forward.17} parent=1 // loop_pre_header
      _
    $region3: #{unet_forward.17} parent=1 // loop_header
      %s19 = sphi 0, %s23
      %p20 = scmp.ge.s32.totalorder %s19, 4
      %s29 = sphi 0, %s31
      %s32 = sphi 0, %s29
      %s33 = sphi 0, %s32
      %s49 = sphi 0, %s33
      %s53 = sphi 0, %s53
      %s55 = sphi 0, %s53
      %s56 = sphi 0, %s55
      %s70 = sphi 0, %s56
      %s74 = sphi 0, %s74
      %s76 = sphi 0, %s74
      %s77 = sphi 0, %s76
      %s91 = sphi 0, %s77
      %s95 = sphi 0, %s95
      %s97 = sphi 0, %s95
      %s98 = sphi 0, %s97
      %s112 = sphi 0, %s98
      %s116 = sphi 0, %s116
      %s118 = sphi 0, %s116
      %s119 = sphi 0, %s118
      %s133 = sphi 0, %s119
      %s139 = sphi 0, %s141
      %s142 = sphi 0, %s139
      %s143 = sphi 0, %s142
      %s159 = sphi 0, %s143
    $region4: #{unet_forward.17} parent=1 // loop_header_branch
      %22 = sbr.rel (%p20) target = $region8
    $region5: #{unet_forward.17} parent=1 // loop_body
      %s24 = ssub.s32 %s19, 1
      %s25 = ssub.s32 %s19, 2
      %s26 = sadd.s32 %s19, 1
      %s27 = ssub.s32 %s19, %s26
      %p28 = scmp.eq.s32.totalorder %s27, 0
      %s30 = sadd.s32 %s29, 1
      %s31 = scalar_select %p28, %s29, %s30
      %p34 = pneg %p28
      %p35 = scmp.eq.s32.totalorder %s19, 1
      %p36 = por %p34, %p35
      %p37 = scmp.ne.s32.totalorder %s29, %s32
      %p38 = scmp.eq.s32.totalorder %s19, 0
      %p39 = por %p37, %p38
      %p40 = scmp.ne.s32.totalorder %s29, %s32
      %p41 = scmp.eq.s32.totalorder %s24, 1
      %p42 = por %p40, %p41
      %p43 = scmp.ne.s32.totalorder %s32, %s33
      %p44 = scmp.eq.s32.totalorder %s24, 0
      %p45 = por %p43, %p44
      %p46 = scmp.ne.s32.totalorder %s32, %s33
      %p47 = scmp.eq.s32.totalorder %s25, 1
      %p48 = por %p46, %p47
      %p50 = scmp.ne.s32.totalorder %s33, %s49
      %p51 = scmp.eq.s32.totalorder %s25, 0
      %p52 = por %p50, %p51
      %s54 = sadd.s32 %s53, 1
      %p57 = scmp.eq.s32.totalorder %s19, 1
      %p58 = scmp.ne.s32.totalorder %s53, %s55
      %p59 = scmp.eq.s32.totalorder %s19, 0
      %p60 = por %p58, %p59
      %p61 = scmp.ne.s32.totalorder %s53, %s55
      %p62 = scmp.eq.s32.totalorder %s24, 1
      %p63 = por %p61, %p62
      %p64 = scmp.ne.s32.totalorder %s55, %s56
      %p65 = scmp.eq.s32.totalorder %s24, 0
      %p66 = por %p64, %p65
      %p67 = scmp.ne.s32.totalorder %s55, %s56
      %p68 = scmp.eq.s32.totalorder %s25, 1
      %p69 = por %p67, %p68
      %p71 = scmp.ne.s32.totalorder %s56, %s70
      %p72 = scmp.eq.s32.totalorder %s25, 0
      %p73 = por %p71, %p72
      %s75 = sadd.s32 %s74, 1
      %p78 = scmp.eq.s32.totalorder %s19, 1
      %p79 = scmp.ne.s32.totalorder %s74, %s76
      %p80 = scmp.eq.s32.totalorder %s19, 0
      %p81 = por %p79, %p80
      %p82 = scmp.ne.s32.totalorder %s74, %s76
      %p83 = scmp.eq.s32.totalorder %s24, 1
      %p84 = por %p82, %p83
      %p85 = scmp.ne.s32.totalorder %s76, %s77
      %p86 = scmp.eq.s32.totalorder %s24, 0
      %p87 = por %p85, %p86
      %p88 = scmp.ne.s32.totalorder %s76, %s77
      %p89 = scmp.eq.s32.totalorder %s25, 1
      %p90 = por %p88, %p89
      %p92 = scmp.ne.s32.totalorder %s77, %s91
      %p93 = scmp.eq.s32.totalorder %s25, 0
      %p94 = por %p92, %p93
      %s96 = sadd.s32 %s95, 1
      %p99 = scmp.eq.s32.totalorder %s19, 1
      %p100 = scmp.ne.s32.totalorder %s95, %s97
      %p101 = scmp.eq.s32.totalorder %s19, 0
      %p102 = por %p100, %p101
      %p103 = scmp.ne.s32.totalorder %s95, %s97
      %p104 = scmp.eq.s32.totalorder %s24, 1
      %p105 = por %p103, %p104
      %p106 = scmp.ne.s32.totalorder %s97, %s98
      %p107 = scmp.eq.s32.totalorder %s24, 0
      %p108 = por %p106, %p107
      %p109 = scmp.ne.s32.totalorder %s97, %s98
      %p110 = scmp.eq.s32.totalorder %s25, 1
      %p111 = por %p109, %p110
      %p113 = scmp.ne.s32.totalorder %s98, %s112
      %p114 = scmp.eq.s32.totalorder %s25, 0
      %p115 = por %p113, %p114
      %s117 = sadd.s32 %s116, 1
      %p120 = scmp.eq.s32.totalorder %s19, 1
      %p121 = scmp.ne.s32.totalorder %s116, %s118
      %p122 = scmp.eq.s32.totalorder %s19, 0
      %p123 = por %p121, %p122
      %p124 = scmp.ne.s32.totalorder %s116, %s118
      %p125 = scmp.eq.s32.totalorder %s24, 1
      %p126 = por %p124, %p125
      %p127 = scmp.ne.s32.totalorder %s118, %s119
      %p128 = scmp.eq.s32.totalorder %s24, 0
      %p129 = por %p127, %p128
      %p130 = scmp.ne.s32.totalorder %s118, %s119
      %p131 = scmp.eq.s32.totalorder %s25, 1
      %p132 = por %p130, %p131
      %p134 = scmp.ne.s32.totalorder %s119, %s133
      %p135 = scmp.eq.s32.totalorder %s25, 0
      %p136 = por %p134, %p135
      %s137 = ssub.s32 %s19, %s26
      %p138 = scmp.eq.s32.totalorder %s137, 0
      %s140 = sadd.s32 %s139, 1
      %s141 = scalar_select %p138, %s139, %s140
      %p144 = pneg %p138
      %p145 = scmp.eq.s32.totalorder %s19, 1
      %p146 = por %p144, %p145
      %p147 = scmp.ne.s32.totalorder %s139, %s142
      %p148 = scmp.eq.s32.totalorder %s19, 0
      %p149 = por %p147, %p148
      %p150 = scmp.ne.s32.totalorder %s139, %s142
      %p151 = scmp.eq.s32.totalorder %s24, 1
      %p152 = por %p150, %p151
      %p153 = scmp.ne.s32.totalorder %s142, %s143
      %p154 = scmp.eq.s32.totalorder %s24, 0
      %p155 = por %p153, %p154
      %p156 = scmp.ne.s32.totalorder %s142, %s143
      %p157 = scmp.eq.s32.totalorder %s25, 1
      %p158 = por %p156, %p157
      %p160 = scmp.ne.s32.totalorder %s143, %s159
      %p161 = scmp.eq.s32.totalorder %s25, 0
      %p162 = por %p160, %p161
      %p163 = scmp.le.s32.totalorder 1, %s19
      %p164 = scmp.lt.s32.totalorder %s19, 3
      %p165 = pnand %p163, %p164
      %p166 = pneg %p165
      // Predicated region
      $region9: #{unet_forward.17} parent=5 // pred_check
        _
      $region10: #{unet_forward.17} parent=5 // pred_check_branch
        %168 = sbr.rel (%p165) target = $region12
      $region11: #{unet_forward.17} parent=5 // pred_region
        %s169 = ssub.s32 %s19, 1
        // Predicated region
        $region13: #{unet_forward.17} parent=11 // pred_check
          %p170 = pneg %p66
        $region14: #{unet_forward.17} parent=11 // pred_check_branch
          %172 = sbr.rel (%p170) target = $region16
        $region15: #{unet_forward.17} parent=11 // pred_region
          %s174 = ssub.s32 384, 384
          %175 = vsyncadd [#allocation6], %s174
          %s176 = sshll.u32 [#allocation5], 4
          %s177 = int_to_ptr.vmem [resolvable:$true] %s176
          %182 = dma.hbm_to_vmem [thread:$0]  %s1, 384, %s177, [#allocation6], 64, 64, 4
        $region16: #{unet_forward.17} parent=11 // pred_fallthru
          _
        // Predicated region
        $region17: #{unet_forward.17} parent=11 // pred_check
          %p183 = pneg %p87
        $region18: #{unet_forward.17} parent=11 // pred_check_branch
          %185 = sbr.rel (%p183) target = $region20
        $region19: #{unet_forward.17} parent=11 // pred_region
          %s187 = ssub.s32 16, 16
          %188 = vsyncadd [#allocation6], %s187
          %s190 = sshll.u32 [#allocation7], 4
          %s191 = int_to_ptr.vmem [resolvable:$true] %s190
          %193 = dma.hbm_to_vmem [thread:$0]  %s2, 16, %s191, [#allocation6]
        $region20: #{unet_forward.17} parent=11 // pred_fallthru
          _
        // Predicated region
        $region21: #{unet_forward.17} parent=11 // pred_check
          %p194 = pneg %p108
        $region22: #{unet_forward.17} parent=11 // pred_check_branch
          %196 = sbr.rel (%p194) target = $region24
        $region23: #{unet_forward.17} parent=11 // pred_region
          %s198 = ssub.s32 16, 16
          %199 = vsyncadd [#allocation9], %s198
          %s201 = sshll.u32 [#allocation8], 4
          %s202 = int_to_ptr.vmem [resolvable:$true] %s201
          %204 = dma.hbm_to_vmem [thread:$0]  %s3, 16, %s202, [#allocation9]
        $region24: #{unet_forward.17} parent=11 // pred_fallthru
          _
        // Predicated region
        $region25: #{unet_forward.17} parent=11 // pred_check
          %p205 = pneg %p129
        $region26: #{unet_forward.17} parent=11 // pred_check_branch
          %207 = sbr.rel (%p205) target = $region28
        $region27: #{unet_forward.17} parent=11 // pred_region
          %s209 = ssub.s32 16, 16
          %210 = vsyncadd [#allocation9], %s209
          %s212 = sshll.u32 [#allocation10], 4
          %s213 = int_to_ptr.vmem [resolvable:$true] %s212
          %215 = dma.hbm_to_vmem [thread:$0]  %s4, 16, %s213, [#allocation9]
        $region28: #{unet_forward.17} parent=11 // pred_fallthru
          _
      $region12: #{unet_forward.17} parent=5 // pred_fallthru
        _
      %p216 = scmp.lt.s32.totalorder %s19, 2
      // Predicated region
      $region29: #{unet_forward.17} parent=5 // pred_check
        %p217 = pneg %p216
      $region30: #{unet_forward.17} parent=5 // pred_check_branch
        %219 = sbr.rel (%p217) target = $region32
      $region31: #{unet_forward.17} parent=5 // pred_region
        // Predicated region
        $region33: #{unet_forward.17} parent=31 // pred_check
          %p220 = pneg %p39
        $region34: #{unet_forward.17} parent=31 // pred_check_branch
          %222 = sbr.rel (%p220) target = $region36
        $region35: #{unet_forward.17} parent=31 // pred_region
          %s223 = sand.u32 %s29, 1
          %s224 = scalar_lea.sflag [#allocation3], %s223
          %s225 = sand.u32 %s29, 1
          %s226 = smul.addr %s225, 128
          %s227 = scalar_lea.vmem [#allocation2], %s226
          %s228 = smul.u32 32, %s19
          %s230 = ssub.s32 2048, 2048
          %231 = vsyncadd %s224, %s230
          %s232 = smul.addr %s228, 64
          %s233 = scalar_lea.hbm %s0, %s232
          %s234 = sshll.u32 %s227, 4
          %s235 = int_to_ptr.vmem [resolvable:$true] %s234
          %240 = dma.hbm_to_vmem [thread:$0]  %s233, 2048, %s235, %s224, 64, 64, 4
        $region36: #{unet_forward.17} parent=31 // pred_fallthru
          _
      $region32: #{unet_forward.17} parent=5 // pred_fallthru
        _
      %p241 = scmp.le.s32.totalorder 1, %s19
      %p242 = scmp.lt.s32.totalorder %s19, 3
      %p243 = pnand %p241, %p242
      %p244 = pneg %p243
      // Predicated region
      $region37: #{unet_forward.17} parent=5 // pred_check
        _
      $region38: #{unet_forward.17} parent=5 // pred_check_branch
        %246 = sbr.rel (%p243) target = $region40
      $region39: #{unet_forward.17} parent=5 // pred_region
        %s247 = ssub.s32 %s19, 1
        %s248 = sand.u32 %s32, 1
        %s249 = scalar_lea.sflag [#allocation3], %s248
        %s250 = sand.u32 %s32, 1
        %s251 = smul.addr %s250, 128
        %s252 = scalar_lea.vmem [#allocation2], %s251
        // Predicated region
        $region41: #{unet_forward.17} parent=39 // pred_check
          %p253 = pneg %p45
        $region42: #{unet_forward.17} parent=39 // pred_check_branch
          %255 = sbr.rel (%p253) target = $region44
        $region43: #{unet_forward.17} parent=39 // pred_region
          %256 = dma.done %s249, 2048
        $region44: #{unet_forward.17} parent=39 // pred_fallthru
          _
        // Predicated region
        $region45: #{unet_forward.17} parent=39 // pred_check
          %p257 = pneg %p66
        $region46: #{unet_forward.17} parent=39 // pred_check_branch
          %259 = sbr.rel (%p257) target = $region48
        $region47: #{unet_forward.17} parent=39 // pred_region
          %260 = dma.done [#allocation6], 384
        $region48: #{unet_forward.17} parent=39 // pred_fallthru
          _
        // Predicated region
        $region49: #{unet_forward.17} parent=39 // pred_check
          %p261 = pneg %p87
        $region50: #{unet_forward.17} parent=39 // pred_check_branch
          %263 = sbr.rel (%p261) target = $region52
        $region51: #{unet_forward.17} parent=39 // pred_region
          %264 = dma.done [#allocation6], 16
        $region52: #{unet_forward.17} parent=39 // pred_fallthru
          _
        // Predicated region
        $region53: #{unet_forward.17} parent=39 // pred_check
          %p265 = pneg %p108
        $region54: #{unet_forward.17} parent=39 // pred_check_branch
          %267 = sbr.rel (%p265) target = $region56
        $region55: #{unet_forward.17} parent=39 // pred_region
          %268 = dma.done [#allocation9], 16
        $region56: #{unet_forward.17} parent=39 // pred_fallthru
          _
        // Predicated region
        $region57: #{unet_forward.17} parent=39 // pred_check
          %p269 = pneg %p129
        $region58: #{unet_forward.17} parent=39 // pred_check_branch
          %271 = sbr.rel (%p269) target = $region60
        $region59: #{unet_forward.17} parent=39 // pred_region
          %272 = dma.done [#allocation9], 16
        $region60: #{unet_forward.17} parent=39 // pred_fallthru
          _
        %s273 = sand.u32 %s32, 1
        %s274 = scalar_lea.sflag [#allocation3], %s273
        %s275 = sand.u32 %s32, 1
        %s276 = smul.addr %s275, 128
        %s277 = scalar_lea.vmem [#allocation2], %s276
        %p278 = pneg %p45
        %p279 = pneg %p42
        %p280 = pneg %p66
        %p281 = pneg %p63
        %p282 = pneg %p87
        %p283 = pneg %p84
        %p284 = pneg %p108
        %p285 = pneg %p105
        %p286 = pneg %p129
        %p287 = pneg %p126
        %p288 = pneg %p155
        %p289 = pneg %p152
        %s290 = sand.u32 %s142, 1
        %s291 = scalar_lea.sflag [#allocation4], %s290
        %s292 = sand.u32 %s142, 1
        %s293 = smul.addr %s292, 128
        %s294 = scalar_lea.vmem [#allocation11], %s293
        %s295 = smul.u32 32, %s24
        %s296 = smul.u32 32, %s24
        %v298 = vld [vmem:[%s252] sm:$0xf]
        %v299 = vld [vmem:[%s252 + $0x4] sm:$0xf]
        %v300 = vld [vmem:[%s252 + $0x8] sm:$0xf]
        %v301 = vld [vmem:[%s252 + $0xc] sm:$0xf]
        %v302 = vld [vmem:[%s252 + $0x10] sm:$0xf]
        %v303 = vld [vmem:[%s252 + $0x14] sm:$0xf]
        %v304 = vld [vmem:[%s252 + $0x18] sm:$0xf]
        %v305 = vld [vmem:[%s252 + $0x1c] sm:$0xf]
        %v306 = vld [vmem:[%s252 + $0x20] sm:$0xf]
        %v307 = vld [vmem:[%s252 + $0x24] sm:$0xf]
        %v308 = vld [vmem:[%s252 + $0x28] sm:$0xf]
        %v309 = vld [vmem:[%s252 + $0x2c] sm:$0xf]
        %v310 = vld [vmem:[%s252 + $0x30] sm:$0xf]
        %v311 = vld [vmem:[%s252 + $0x34] sm:$0xf]
        %v312 = vld [vmem:[%s252 + $0x38] sm:$0xf]
        %v313 = vld [vmem:[%s252 + $0x3c] sm:$0xf]
        %v314 = vld [vmem:[%s252 + $0x40] sm:$0xf]
        %v315 = vld [vmem:[%s252 + $0x44] sm:$0xf]
        %v316 = vld [vmem:[%s252 + $0x48] sm:$0xf]
        %v317 = vld [vmem:[%s252 + $0x4c] sm:$0xf]
        %v318 = vld [vmem:[%s252 + $0x50] sm:$0xf]
        %v319 = vld [vmem:[%s252 + $0x54] sm:$0xf]
        %v320 = vld [vmem:[%s252 + $0x58] sm:$0xf]
        %v321 = vld [vmem:[%s252 + $0x5c] sm:$0xf]
        %v322 = vld [vmem:[%s252 + $0x60] sm:$0xf]
        %v323 = vld [vmem:[%s252 + $0x64] sm:$0xf]
        %v324 = vld [vmem:[%s252 + $0x68] sm:$0xf]
        %v325 = vld [vmem:[%s252 + $0x6c] sm:$0xf]
        %v326 = vld [vmem:[%s252 + $0x70] sm:$0xf]
        %v327 = vld [vmem:[%s252 + $0x74] sm:$0xf]
        %v328 = vld [vmem:[%s252 + $0x78] sm:$0xf]
        %v329 = vld [vmem:[%s252 + $0x7c] sm:$0xf]
        %v330 = vld [vmem:[#allocation5] sm:$0xf]
        %v331 = vld [vmem:[#allocation5 + $0x4] sm:$0xf]
        %v332 = vld [vmem:[#allocation5 + $0x8] sm:$0xf]
        %v333 = vld [vmem:[#allocation5 + $0xc] sm:$0xf]
        %v334 = vld [vmem:[#allocation5 + $0x10] sm:$0xf]
        %v335 = vld [vmem:[#allocation5 + $0x14] sm:$0x7]
        %v336 = vld [vmem:[#allocation7] sm:$0x1]
        %v338 = vlaneseq
        %v339 = vshrl.u32 %v338, 7
        %v340 = vsub.s32 0, %v339
        %v341 = vrot.slane %v336, %v340
        %v375 = vunpack.c.l.b16 %v298
        %v376 = vunpack.c.l.b16 %v299
        %v377 = vunpack.c.l.b16 %v300
        %v378 = vunpack.c.l.b16 %v301
        %v379 = vunpack.c.l.b16 %v302
        %v380 = vunpack.c.l.b16 %v303
        %v381 = vunpack.c.l.b16 %v304
        %v382 = vunpack.c.l.b16 %v305
        %v383 = vunpack.c.l.b16 %v306
        %v384 = vunpack.c.l.b16 %v307
        %v385 = vunpack.c.l.b16 %v308
        %v386 = vunpack.c.l.b16 %v309
        %v387 = vunpack.c.l.b16 %v310
        %v388 = vunpack.c.l.b16 %v311
        %v389 = vunpack.c.l.b16 %v312
        %v390 = vunpack.c.l.b16 %v313
        %v391 = vunpack.c.l.b16 %v314
        %v392 = vunpack.c.l.b16 %v315
        %v393 = vunpack.c.l.b16 %v316
        %v394 = vunpack.c.l.b16 %v317
        %v395 = vunpack.c.l.b16 %v318
        %v396 = vunpack.c.l.b16 %v319
        %v397 = vunpack.c.l.b16 %v320
        %v398 = vunpack.c.l.b16 %v321
        %v399 = vunpack.c.l.b16 %v322
        %v400 = vunpack.c.l.b16 %v323
        %v401 = vunpack.c.l.b16 %v324
        %v402 = vunpack.c.l.b16 %v325
        %v403 = vunpack.c.l.b16 %v326
        %v404 = vunpack.c.l.b16 %v327
        %v405 = vunpack.c.l.b16 %v328
        %v406 = vunpack.c.l.b16 %v329
        %v407 = vpack.c.b16 %v376, %v375
        %v408 = vpack.c.b16 %v378, %v377
        %v409 = vpack.c.b16 %v380, %v379
        %v410 = vpack.c.b16 %v382, %v381
        %v411 = vpack.c.b16 %v384, %v383
        %v412 = vpack.c.b16 %v386, %v385
        %v413 = vpack.c.b16 %v388, %v387
        %v414 = vpack.c.b16 %v390, %v389
        %v415 = vpack.c.b16 %v392, %v391
        %v416 = vpack.c.b16 %v394, %v393
        %v417 = vpack.c.b16 %v396, %v395
        %v418 = vpack.c.b16 %v398, %v397
        %v419 = vpack.c.b16 %v400, %v399
        %v420 = vpack.c.b16 %v402, %v401
        %v421 = vpack.c.b16 %v404, %v403
        %v422 = vpack.c.b16 %v406, %v405
        %v429 = vunpack.c.l.b16 %v330
        %v430 = vunpack.c.l.b16 %v331
        %v431 = vunpack.c.l.b16 %v332
        %v432 = vunpack.c.l.b16 %v333
        %v433 = vunpack.c.l.b16 %v334
        %v434 = vunpack.c.l.b16 %v335
        %v435 = vpack.c.b16 %v430, %v429
        %v436 = vpack.c.b16 %v432, %v431
        %v437 = vpack.c.b16 %v434, %v433
        %vm440 = vcmask 367616
        %v442 = vsel %vm440, %v407, 0
        %v445 = vsel %vm440, %v408, 0
        %v448 = vsel %vm440, %v409, 0
        %v451 = vsel %vm440, %v410, 0
        %v454 = vsel %vm440, %v411, 0
        %v457 = vsel %vm440, %v412, 0
        %v460 = vsel %vm440, %v413, 0
        %v463 = vsel %vm440, %v414, 0
        %v466 = vsel %vm440, %v415, 0
        %v469 = vsel %vm440, %v416, 0
        %v472 = vsel %vm440, %v417, 0
        %v475 = vsel %vm440, %v418, 0
        %v478 = vsel %vm440, %v419, 0
        %v481 = vsel %vm440, %v420, 0
        %v484 = vsel %vm440, %v421, 0
        %v487 = vsel %vm440, %v422, 0
        %vm489 = vcmask 1045504
        %vm490 = vcmask 1046528
        %v491 = vsel %vm489, 4294967295, 65535
        %v492 = vsel %vm490, %v491, 0
        %v494 = vand.u32 %v437, %v492
        %496 = vmatprep.subr.bf16.mxu0 0
        %497 = vmatpush1.bf16.msra.mxu0 %v435
        %498 = vmatprep.subr.bf16.mxu0 0
        %499 = vmatpush1.bf16.msra.mxu0 %v436
        %500 = vmatprep.subr.bf16.mxu0 0
        %501 = vmatpush1.bf16.msra.mxu0 %v494
        %502 = vmatprep.subr.bf16.mxu0 0
        %503 = vmatpush1.bf16.msra.mxu0 0
        %504 = vmatprep.subr.bf16.mxu0 0
        %505 = vmatpush1.bf16.msra.mxu0 0
        %506 = vmatprep.subr.bf16.mxu0 0
        %507 = vmatpush1.bf16.msra.mxu0 0
        %508 = vmatprep.subr.bf16.mxu0 0
        %509 = vmatpush1.bf16.msra.mxu0 0
        %510 = vmatprep.subr.bf16.mxu0 0
        %511 = vmatpush1.bf16.msra.mxu0 0
        %512 = vmatprep.subr.bf16.mxu0 0
        %513 = vmatpush1.bf16.msra.mxu0 0
        %514 = vmatprep.subr.bf16.mxu0 0
        %515 = vmatpush1.bf16.msra.mxu0 0
        %516 = vmatprep.subr.bf16.mxu0 0
        %517 = vmatpush1.bf16.msra.mxu0 0
        %518 = vmatprep.subr.bf16.mxu0 0
        %519 = vmatpush1.bf16.msra.mxu0 0
        %520 = vmatprep.subr.bf16.mxu0 0
        %521 = vmatpush1.bf16.msra.mxu0 0
        %522 = vmatprep.subr.bf16.mxu0 0
        %523 = vmatpush1.bf16.msra.mxu0 0
        %524 = vmatprep.subr.bf16.mxu0 0
        %525 = vmatpush1.bf16.msra.mxu0 0
        %526 = vmatprep.subr.bf16.mxu0 0
        %527 = vmatpush1.bf16.msra.mxu0 0
        %528 = vmatprep.mubr.bf16.mxu0 0
        %529 = vmatmul.mubr.bf16.gmra.mrb[0].mxu0 %v442
        %v530 = vpop.f32.mrb[0].mxu0
        %v531 = vadd.f32 %v341, %v530
        %v532 = vpop.f32.mrb[0].mxu0
        %v533 = vpop.f32.mrb[0].mxu0
        %v534 = vadd.f32 %v341, %v533
        %v535 = vpop.f32.mrb[0].mxu0
        %536 = vmatprep.mubr.bf16.mxu0 0
        %537 = vmatmul.mubr.bf16.gmra.mrb[0].mxu0 %v445
        %v538 = vpop.f32.mrb[0].mxu0
        %v539 = vadd.f32 %v341, %v538
        %v540 = vpop.f32.mrb[0].mxu0
        %v541 = vpop.f32.mrb[0].mxu0
        %v542 = vadd.f32 %v341, %v541
        %v543 = vpop.f32.mrb[0].mxu0
        %544 = vmatprep.mubr.bf16.mxu0 0
        %545 = vmatmul.mubr.bf16.gmra.mrb[0].mxu0 %v448
        %v546 = vpop.f32.mrb[0].mxu0
        %v547 = vadd.f32 %v341, %v546
        %v548 = vpop.f32.mrb[0].mxu0
        %v549 = vpop.f32.mrb[0].mxu0
        %v550 = vadd.f32 %v341, %v549
        %v551 = vpop.f32.mrb[0].mxu0
        %552 = vmatprep.mubr.bf16.mxu0 0
        %553 = vmatmul.mubr.bf16.gmra.mrb[0].mxu0 %v451
        %v554 = vpop.f32.mrb[0].mxu0
        %v555 = vadd.f32 %v341, %v554
        %v556 = vpop.f32.mrb[0].mxu0
        %v557 = vpop.f32.mrb[0].mxu0
        %v558 = vadd.f32 %v341, %v557
        %v559 = vpop.f32.mrb[0].mxu0
        %560 = vmatprep.mubr.bf16.mxu0 0
        %561 = vmatmul.mubr.bf16.gmra.mrb[0].mxu0 %v454
        %v562 = vpop.f32.mrb[0].mxu0
        %v563 = vadd.f32 %v341, %v562
        %v564 = vpop.f32.mrb[0].mxu0
        %v565 = vpop.f32.mrb[0].mxu0
        %v566 = vadd.f32 %v341, %v565
        %v567 = vpop.f32.mrb[0].mxu0
        %568 = vmatprep.mubr.bf16.mxu0 0
        %569 = vmatmul.mubr.bf16.gmra.mrb[0].mxu0 %v457
        %v570 = vpop.f32.mrb[0].mxu0
        %v571 = vadd.f32 %v341, %v570
        %v572 = vpop.f32.mrb[0].mxu0
        %v573 = vpop.f32.mrb[0].mxu0
        %v574 = vadd.f32 %v341, %v573
        %v575 = vpop.f32.mrb[0].mxu0
        %576 = vmatprep.mubr.bf16.mxu0 0
        %577 = vmatmul.mubr.bf16.gmra.mrb[0].mxu0 %v460
        %v578 = vpop.f32.mrb[0].mxu0
        %v579 = vadd.f32 %v341, %v578
        %v580 = vpop.f32.mrb[0].mxu0
        %v581 = vpop.f32.mrb[0].mxu0
        %v582 = vadd.f32 %v341, %v581
        %v583 = vpop.f32.mrb[0].mxu0
        %584 = vmatprep.mubr.bf16.mxu0 0
        %585 = vmatmul.mubr.bf16.gmra.mrb[0].mxu0 %v463
        %v586 = vpop.f32.mrb[0].mxu0
        %v587 = vadd.f32 %v341, %v586
        %v588 = vpop.f32.mrb[0].mxu0
        %v589 = vpop.f32.mrb[0].mxu0
        %v590 = vadd.f32 %v341, %v589
        %v591 = vpop.f32.mrb[0].mxu0
        %592 = vmatprep.mubr.bf16.mxu0 0
        %593 = vmatmul.mubr.bf16.gmra.mrb[0].mxu0 %v466
        %v594 = vpop.f32.mrb[0].mxu0
        %v595 = vadd.f32 %v341, %v594
        %v596 = vpop.f32.mrb[0].mxu0
        %v597 = vpop.f32.mrb[0].mxu0
        %v598 = vadd.f32 %v341, %v597
        %v599 = vpop.f32.mrb[0].mxu0
        %600 = vmatprep.mubr.bf16.mxu0 0
        %601 = vmatmul.mubr.bf16.gmra.mrb[0].mxu0 %v469
        %v602 = vpop.f32.mrb[0].mxu0
        %v603 = vadd.f32 %v341, %v602
        %v604 = vpop.f32.mrb[0].mxu0
        %v605 = vpop.f32.mrb[0].mxu0
        %v606 = vadd.f32 %v341, %v605
        %v607 = vpop.f32.mrb[0].mxu0
        %608 = vmatprep.mubr.bf16.mxu0 0
        %609 = vmatmul.mubr.bf16.gmra.mrb[0].mxu0 %v472
        %v610 = vpop.f32.mrb[0].mxu0
        %v611 = vadd.f32 %v341, %v610
        %v612 = vpop.f32.mrb[0].mxu0
        %v613 = vpop.f32.mrb[0].mxu0
        %v614 = vadd.f32 %v341, %v613
        %v615 = vpop.f32.mrb[0].mxu0
        %616 = vmatprep.mubr.bf16.mxu0 0
        %617 = vmatmul.mubr.bf16.gmra.mrb[0].mxu0 %v475
        %v618 = vpop.f32.mrb[0].mxu0
        %v619 = vadd.f32 %v341, %v618
        %v620 = vpop.f32.mrb[0].mxu0
        %v621 = vpop.f32.mrb[0].mxu0
        %v622 = vadd.f32 %v341, %v621
        %v623 = vpop.f32.mrb[0].mxu0
        %624 = vmatprep.mubr.bf16.mxu0 0
        %625 = vmatmul.mubr.bf16.gmra.mrb[0].mxu0 %v478
        %v626 = vpop.f32.mrb[0].mxu0
        %v627 = vadd.f32 %v341, %v626
        %v628 = vpop.f32.mrb[0].mxu0
        %v629 = vpop.f32.mrb[0].mxu0
        %v630 = vadd.f32 %v341, %v629
        %v631 = vpop.f32.mrb[0].mxu0
        %632 = vmatprep.mubr.bf16.mxu0 0
        %633 = vmatmul.mubr.bf16.gmra.mrb[0].mxu0 %v481
        %v634 = vpop.f32.mrb[0].mxu0
        %v635 = vadd.f32 %v341, %v634
        %v636 = vpop.f32.mrb[0].mxu0
        %v637 = vpop.f32.mrb[0].mxu0
        %v638 = vadd.f32 %v341, %v637
        %v639 = vpop.f32.mrb[0].mxu0
        %640 = vmatprep.mubr.bf16.mxu0 0
        %641 = vmatmul.mubr.bf16.gmra.mrb[0].mxu0 %v484
        %v642 = vpop.f32.mrb[0].mxu0
        %v643 = vadd.f32 %v341, %v642
        %v644 = vpop.f32.mrb[0].mxu0
        %v645 = vpop.f32.mrb[0].mxu0
        %v646 = vadd.f32 %v341, %v645
        %v647 = vpop.f32.mrb[0].mxu0
        %648 = vmatprep.mubr.bf16.mxu0 0
        %649 = vmatmul.mubr.bf16.gmra.mrb[0].mxu0 %v487
        %v650 = vpop.f32.mrb[0].mxu0
        %v651 = vadd.f32 %v341, %v650
        %v652 = vpop.f32.mrb[0].mxu0
        %v653 = vpop.f32.mrb[0].mxu0
        %v654 = vadd.f32 %v341, %v653
        %v655 = vpop.f32.mrb[0].mxu0
        %656 = vdwg.mxu0
        %v657 = vmax.f32 %v531, 0.0
        %v658 = vmax.f32 %v534, 0.0
        %v659 = vmax.f32 %v539, 0.0
        %v660 = vmax.f32 %v542, 0.0
        %v661 = vmax.f32 %v547, 0.0
        %v662 = vmax.f32 %v550, 0.0
        %v663 = vmax.f32 %v555, 0.0
        %v664 = vmax.f32 %v558, 0.0
        %v665 = vmax.f32 %v563, 0.0
        %v666 = vmax.f32 %v566, 0.0
        %v667 = vmax.f32 %v571, 0.0
        %v668 = vmax.f32 %v574, 0.0
        %v669 = vmax.f32 %v579, 0.0
        %v670 = vmax.f32 %v582, 0.0
        %v671 = vmax.f32 %v587, 0.0
        %v672 = vmax.f32 %v590, 0.0
        %v673 = vmax.f32 %v595, 0.0
        %v674 = vmax.f32 %v598, 0.0
        %v675 = vmax.f32 %v603, 0.0
        %v676 = vmax.f32 %v606, 0.0
        %v677 = vmax.f32 %v611, 0.0
        %v678 = vmax.f32 %v614, 0.0
        %v679 = vmax.f32 %v619, 0.0
        %v680 = vmax.f32 %v622, 0.0
        %v681 = vmax.f32 %v627, 0.0
        %v682 = vmax.f32 %v630, 0.0
        %v683 = vmax.f32 %v635, 0.0
        %v684 = vmax.f32 %v638, 0.0
        %v685 = vmax.f32 %v643, 0.0
        %v686 = vmax.f32 %v646, 0.0
        %v687 = vmax.f32 %v651, 0.0
        %v688 = vmax.f32 %v654, 0.0
        %v689 = vld [vmem:[#allocation8] sm:$0x1]
        %v691 = vlaneseq
        %v692 = vshrl.u32 %v691, 7
        %v693 = vsub.s32 0, %v692
        %v694 = vrot.slane %v689, %v693
        %v696 = vmul.f32 %v657, %v694
        %v697 = vmul.f32 %v658, %v694
        %v698 = vmul.f32 %v659, %v694
        %v699 = vmul.f32 %v660, %v694
        %v700 = vmul.f32 %v661, %v694
        %v701 = vmul.f32 %v662, %v694
        %v702 = vmul.f32 %v663, %v694
        %v703 = vmul.f32 %v664, %v694
        %v704 = vmul.f32 %v665, %v694
        %v705 = vmul.f32 %v666, %v694
        %v706 = vmul.f32 %v667, %v694
        %v707 = vmul.f32 %v668, %v694
        %v708 = vmul.f32 %v669, %v694
        %v709 = vmul.f32 %v670, %v694
        %v710 = vmul.f32 %v671, %v694
        %v711 = vmul.f32 %v672, %v694
        %v712 = vmul.f32 %v673, %v694
        %v713 = vmul.f32 %v674, %v694
        %v714 = vmul.f32 %v675, %v694
        %v715 = vmul.f32 %v676, %v694
        %v716 = vmul.f32 %v677, %v694
        %v717 = vmul.f32 %v678, %v694
        %v718 = vmul.f32 %v679, %v694
        %v719 = vmul.f32 %v680, %v694
        %v720 = vmul.f32 %v681, %v694
        %v721 = vmul.f32 %v682, %v694
        %v722 = vmul.f32 %v683, %v694
        %v723 = vmul.f32 %v684, %v694
        %v724 = vmul.f32 %v685, %v694
        %v725 = vmul.f32 %v686, %v694
        %v726 = vmul.f32 %v687, %v694
        %v727 = vmul.f32 %v688, %v694
        %v728 = vld [vmem:[#allocation10] sm:$0x1]
        %v730 = vlaneseq
        %v731 = vshrl.u32 %v730, 7
        %v732 = vsub.s32 0, %v731
        %v733 = vrot.slane %v728, %v732
        %v735 = vadd.f32 %v696, %v733
        %v736 = vadd.f32 %v697, %v733
        %v737 = vadd.f32 %v698, %v733
        %v738 = vadd.f32 %v699, %v733
        %v739 = vadd.f32 %v700, %v733
        %v740 = vadd.f32 %v701, %v733
        %v741 = vadd.f32 %v702, %v733
        %v742 = vadd.f32 %v703, %v733
        %v743 = vadd.f32 %v704, %v733
        %v744 = vadd.f32 %v705, %v733
        %v745 = vadd.f32 %v706, %v733
        %v746 = vadd.f32 %v707, %v733
        %v747 = vadd.f32 %v708, %v733
        %v748 = vadd.f32 %v709, %v733
        %v749 = vadd.f32 %v710, %v733
        %v750 = vadd.f32 %v711, %v733
        %v751 = vadd.f32 %v712, %v733
        %v752 = vadd.f32 %v713, %v733
        %v753 = vadd.f32 %v714, %v733
        %v754 = vadd.f32 %v715, %v733
        %v755 = vadd.f32 %v716, %v733
        %v756 = vadd.f32 %v717, %v733
        %v757 = vadd.f32 %v718, %v733
        %v758 = vadd.f32 %v719, %v733
        %v759 = vadd.f32 %v720, %v733
        %v760 = vadd.f32 %v721, %v733
        %v761 = vadd.f32 %v722, %v733
        %v762 = vadd.f32 %v723, %v733
        %v763 = vadd.f32 %v724, %v733
        %v764 = vadd.f32 %v725, %v733
        %v765 = vadd.f32 %v726, %v733
        %v766 = vadd.f32 %v727, %v733
        %v767 = vpack.c.bf16 %v736, %v735
        %v768 = vpack.c.bf16 %v738, %v737
        %v769 = vpack.c.bf16 %v740, %v739
        %v770 = vpack.c.bf16 %v742, %v741
        %v771 = vpack.c.bf16 %v744, %v743
        %v772 = vpack.c.bf16 %v746, %v745
        %v773 = vpack.c.bf16 %v748, %v747
        %v774 = vpack.c.bf16 %v750, %v749
        %v775 = vpack.c.bf16 %v752, %v751
        %v776 = vpack.c.bf16 %v754, %v753
        %v777 = vpack.c.bf16 %v756, %v755
        %v778 = vpack.c.bf16 %v758, %v757
        %v779 = vpack.c.bf16 %v760, %v759
        %v780 = vpack.c.bf16 %v762, %v761
        %v781 = vpack.c.bf16 %v764, %v763
        %v782 = vpack.c.bf16 %v766, %v765
        %v799 = vunpack.c.l.b16 %v767
        %v800 = vunpack.c.h.b16 %v767
        %v801 = vunpack.c.l.b16 %v768
        %v802 = vunpack.c.h.b16 %v768
        %v803 = vunpack.c.l.b16 %v769
        %v804 = vunpack.c.h.b16 %v769
        %v805 = vunpack.c.l.b16 %v770
        %v806 = vunpack.c.h.b16 %v770
        %v807 = vunpack.c.l.b16 %v771
        %v808 = vunpack.c.h.b16 %v771
        %v809 = vunpack.c.l.b16 %v772
        %v810 = vunpack.c.h.b16 %v772
        %v811 = vunpack.c.l.b16 %v773
        %v812 = vunpack.c.h.b16 %v773
        %v813 = vunpack.c.l.b16 %v774
        %v814 = vunpack.c.h.b16 %v774
        %v815 = vunpack.c.l.b16 %v775
        %v816 = vunpack.c.h.b16 %v775
        %v817 = vunpack.c.l.b16 %v776
        %v818 = vunpack.c.h.b16 %v776
        %v819 = vunpack.c.l.b16 %v777
        %v820 = vunpack.c.h.b16 %v777
        %v821 = vunpack.c.l.b16 %v778
        %v822 = vunpack.c.h.b16 %v778
        %v823 = vunpack.c.l.b16 %v779
        %v824 = vunpack.c.h.b16 %v779
        %v825 = vunpack.c.l.b16 %v780
        %v826 = vunpack.c.h.b16 %v780
        %v827 = vunpack.c.l.b16 %v781
        %v828 = vunpack.c.h.b16 %v781
        %v829 = vunpack.c.l.b16 %v782
        %v830 = vunpack.c.h.b16 %v782
        %v831 = vpack.c.b16 %v799, %v799
        %v832 = vpack.c.b16 %v800, %v800
        %v833 = vpack.c.b16 %v801, %v801
        %v834 = vpack.c.b16 %v802, %v802
        %v835 = vpack.c.b16 %v803, %v803
        %v836 = vpack.c.b16 %v804, %v804
        %v837 = vpack.c.b16 %v805, %v805
        %v838 = vpack.c.b16 %v806, %v806
        %v839 = vpack.c.b16 %v807, %v807
        %v840 = vpack.c.b16 %v808, %v808
        %v841 = vpack.c.b16 %v809, %v809
        %v842 = vpack.c.b16 %v810, %v810
        %v843 = vpack.c.b16 %v811, %v811
        %v844 = vpack.c.b16 %v812, %v812
        %v845 = vpack.c.b16 %v813, %v813
        %v846 = vpack.c.b16 %v814, %v814
        %v847 = vpack.c.b16 %v815, %v815
        %v848 = vpack.c.b16 %v816, %v816
        %v849 = vpack.c.b16 %v817, %v817
        %v850 = vpack.c.b16 %v818, %v818
        %v851 = vpack.c.b16 %v819, %v819
        %v852 = vpack.c.b16 %v820, %v820
        %v853 = vpack.c.b16 %v821, %v821
        %v854 = vpack.c.b16 %v822, %v822
        %v855 = vpack.c.b16 %v823, %v823
        %v856 = vpack.c.b16 %v824, %v824
        %v857 = vpack.c.b16 %v825, %v825
        %v858 = vpack.c.b16 %v826, %v826
        %v859 = vpack.c.b16 %v827, %v827
        %v860 = vpack.c.b16 %v828, %v828
        %v861 = vpack.c.b16 %v829, %v829
        %v862 = vpack.c.b16 %v830, %v830
        %vm895 = vcmask 60416
        %896 = vst.msk [vmem:[%s294] sm:$0xf] %vm895, %v831
        %897 = vst.msk [vmem:[%s294 + $0x4] sm:$0xf] %vm895, %v832
        %898 = vst.msk [vmem:[%s294 + $0x8] sm:$0xf] %vm895, %v833
        %899 = vst.msk [vmem:[%s294 + $0xc] sm:$0xf] %vm895, %v834
        %900 = vst.msk [vmem:[%s294 + $0x10] sm:$0xf] %vm895, %v835
        %901 = vst.msk [vmem:[%s294 + $0x14] sm:$0xf] %vm895, %v836
        %902 = vst.msk [vmem:[%s294 + $0x18] sm:$0xf] %vm895, %v837
        %903 = vst.msk [vmem:[%s294 + $0x1c] sm:$0xf] %vm895, %v838
        %904 = vst.msk [vmem:[%s294 + $0x20] sm:$0xf] %vm895, %v839
        %905 = vst.msk [vmem:[%s294 + $0x24] sm:$0xf] %vm895, %v840
        %906 = vst.msk [vmem:[%s294 + $0x28] sm:$0xf] %vm895, %v841
        %907 = vst.msk [vmem:[%s294 + $0x2c] sm:$0xf] %vm895, %v842
        %908 = vst.msk [vmem:[%s294 + $0x30] sm:$0xf] %vm895, %v843
        %909 = vst.msk [vmem:[%s294 + $0x34] sm:$0xf] %vm895, %v844
        %910 = vst.msk [vmem:[%s294 + $0x38] sm:$0xf] %vm895, %v845
        %911 = vst.msk [vmem:[%s294 + $0x3c] sm:$0xf] %vm895, %v846
        %912 = vst.msk [vmem:[%s294 + $0x40] sm:$0xf] %vm895, %v847
        %913 = vst.msk [vmem:[%s294 + $0x44] sm:$0xf] %vm895, %v848
        %914 = vst.msk [vmem:[%s294 + $0x48] sm:$0xf] %vm895, %v849
        %915 = vst.msk [vmem:[%s294 + $0x4c] sm:$0xf] %vm895, %v850
        %916 = vst.msk [vmem:[%s294 + $0x50] sm:$0xf] %vm895, %v851
        %917 = vst.msk [vmem:[%s294 + $0x54] sm:$0xf] %vm895, %v852
        %918 = vst.msk [vmem:[%s294 + $0x58] sm:$0xf] %vm895, %v853
        %919 = vst.msk [vmem:[%s294 + $0x5c] sm:$0xf] %vm895, %v854
        %920 = vst.msk [vmem:[%s294 + $0x60] sm:$0xf] %vm895, %v855
        %921 = vst.msk [vmem:[%s294 + $0x64] sm:$0xf] %vm895, %v856
        %922 = vst.msk [vmem:[%s294 + $0x68] sm:$0xf] %vm895, %v857
        %923 = vst.msk [vmem:[%s294 + $0x6c] sm:$0xf] %vm895, %v858
        %924 = vst.msk [vmem:[%s294 + $0x70] sm:$0xf] %vm895, %v859
        %925 = vst.msk [vmem:[%s294 + $0x74] sm:$0xf] %vm895, %v860
        %926 = vst.msk [vmem:[%s294 + $0x78] sm:$0xf] %vm895, %v861
        %927 = vst.msk [vmem:[%s294 + $0x7c] sm:$0xf] %vm895, %v862
        %s928 = sand.u32 %s142, 1
        %s929 = scalar_lea.sflag [#allocation4], %s928
        %s930 = sand.u32 %s142, 1
        %s931 = smul.addr %s930, 128
        %s932 = scalar_lea.vmem [#allocation11], %s931
        // Predicated region
        $region61: #{unet_forward.17} parent=39 // pred_check
          %p933 = pneg %p152
        $region62: #{unet_forward.17} parent=39 // pred_check_branch
          %935 = sbr.rel (%p933) target = $region64
        $region63: #{unet_forward.17} parent=39 // pred_region
          %s936 = smul.u32 32, %s24
          %s938 = ssub.s32 2048, 2048
          %939 = vsyncadd %s929, %s938
          %s940 = smul.addr %s936, 64
          %s941 = scalar_lea.hbm %s5, %s940
          %s942 = sshll.u32 %s932, 4
          %s943 = int_to_ptr.vmem [resolvable:$true] %s942
          %948 = dma.vmem_to_hbm [thread:$0]  %s943, 2048, %s941, %s929, 64, 64, 4
        $region64: #{unet_forward.17} parent=39 // pred_fallthru
          _
      $region40: #{unet_forward.17} parent=5 // pred_fallthru
        _
      %p949 = scmp.le.s32.totalorder 2, %s19
      // Predicated region
      $region65: #{unet_forward.17} parent=5 // pred_check
        %p950 = pneg %p949
      $region66: #{unet_forward.17} parent=5 // pred_check_branch
        %952 = sbr.rel (%p950) target = $region68
      $region67: #{unet_forward.17} parent=5 // pred_region
        %s953 = ssub.s32 %s19, 2
        // Predicated region
        $region69: #{unet_forward.17} parent=67 // pred_check
          %p954 = pneg %p158
        $region70: #{unet_forward.17} parent=67 // pred_check_branch
          %956 = sbr.rel (%p954) target = $region72
        $region71: #{unet_forward.17} parent=67 // pred_region
          %s957 = sand.u32 %s143, 1
          %s958 = scalar_lea.sflag [#allocation4], %s957
          %s959 = sand.u32 %s143, 1
          %s960 = smul.addr %s959, 128
          %s961 = scalar_lea.vmem [#allocation11], %s960
          %962 = dma.done %s958, 2048
        $region72: #{unet_forward.17} parent=67 // pred_fallthru
          _
      $region68: #{unet_forward.17} parent=5 // pred_fallthru
        _
    $region6: #{unet_forward.17} parent=1 // loop_footer
      %s23 = sadd.s32 1, %s19
    $region7: #{unet_forward.17} parent=1 // loop_footer_branch
      %18 = sbr.rel target = $region3
    $region8: #{unet_forward.17} parent=1 // loop_exit
      _
    %963 = vsyncpa [#allocation3], 1
    %s964 = scalar_lea.sflag [#allocation3], 1
    %965 = vsyncpa %s964, 1
    %966 = vsyncpa [#allocation6], 1
    %967 = vsyncpa [#allocation9], 1
    %968 = vsyncpa [#allocation4], 1
    %s969 = scalar_lea.sflag [#allocation4], 1
    %970 = vsyncpa %s969, 1

// kernel: unet_forward.19
$region0: #{unet_forward.19}
  #allocation0 [shape = 'u32[]', space=smem, size = 0x4, offset = 0x4, fixed_abs, tag = 'smem constant byte address 0x4 - core index']
  #allocation1 [shape = 'u32[144,128]{1,0:T(1,128)}', space=vmem, size = 0x12000, scoped, tag = 'internal scratch']
  %s0 = inlined_call_operand.hbm [shape: bf16[128,72], index: 0, kind: input, shape index: {}]
  %s1 = inlined_call_operand.hbm [shape: bf16[72,16], index: 1, kind: input, shape index: {}]
  %s2 = inlined_call_operand.hbm [shape: f32[1,16], index: 2, kind: input, shape index: {}]
  %s3 = inlined_call_operand.hbm [shape: f32[1,16], index: 3, kind: input, shape index: {}]
  %s4 = inlined_call_operand.hbm [shape: f32[1,16], index: 4, kind: input, shape index: {}]
  %s5 = inlined_call_operand.hbm [shape: bf16[128,16], index: 5, kind: output, shape index: {}]
  %s6 = sld [smem:[#allocation0]]
  $region50: #{unet_forward.19} parent=0
    _
  %s8 = ssub.s32 1, %s6
  %s9 = scalar_select 0, %s8, %s6
  $region1: #{unet_forward.19} parent=0
    #allocation2 [shape = 'u8[32768]{0}', space=vmem, size = 0x8000, scoped, tag = 'input window, operand 0, single buffered']
    #allocation3 [shape = 's32[1]{0}', space=sflag, size = 0x4, scoped, tag = 'scoped memory for unet_forward.19']
    #allocation4 [shape = 's32[1]{0}', space=sflag, size = 0x4, scoped, tag = 'scoped memory for unet_forward.19']
    #allocation5 [shape = 'u8[18432]{0}', space=vmem, size = 0x4800, scoped, tag = 'input window, operand 1, single buffered']
    #allocation6 [shape = 's32[1]{0}', space=sflag, size = 0x4, scoped, tag = 'scoped memory for unet_forward.19']
    #allocation7 [shape = 'u8[512]{0}', space=vmem, size = 0x400, scoped, tag = 'input window, operand 2, single buffered']
    #allocation8 [shape = 'u8[512]{0}', space=vmem, size = 0x400, scoped, tag = 'input window, operand 3, single buffered']
    #allocation9 [shape = 's32[1]{0}', space=sflag, size = 0x4, scoped, tag = 'scoped memory for unet_forward.19']
    #allocation10 [shape = 'u8[512]{0}', space=vmem, size = 0x400, scoped, tag = 'input window, operand 4, single buffered']
    #allocation11 [shape = 'u8[32768]{0}', space=vmem, size = 0x8000, scoped, tag = 'output window, operand 0, single buffered']
    %10 = vsyncpa [#allocation3], 0
    %11 = vsyncpa [#allocation6], 0
    %12 = vsyncpa [#allocation9], 0
    %13 = vsyncpa [#allocation4], 0
    // Predicated region
    $region2: #{unet_forward.19} parent=1 // pred_check
      _
    $region3: #{unet_forward.19} parent=1 // pred_check_branch
      %15 = sbr.rel (0) target = $region5
    $region4: #{unet_forward.19} parent=1 // pred_region
      %s17 = ssub.s32 1024, 1024
      %18 = vsyncadd [#allocation3], %s17
      %s19 = sshll.u32 [#allocation2], 4
      %s20 = int_to_ptr.vmem [resolvable:$true] %s19
      %25 = dma.hbm_to_vmem [thread:$0]  %s0, 1024, %s20, [#allocation3], 64, 64, 4
    $region5: #{unet_forward.19} parent=1 // pred_fallthru
      _
    // Predicated region
    $region6: #{unet_forward.19} parent=1 // pred_check
      _
    $region7: #{unet_forward.19} parent=1 // pred_check_branch
      %27 = sbr.rel (0) target = $region9
    $region8: #{unet_forward.19} parent=1 // pred_region
      %s29 = ssub.s32 576, 576
      %30 = vsyncadd [#allocation6], %s29
      %s31 = sshll.u32 [#allocation5], 4
      %s32 = int_to_ptr.vmem [resolvable:$true] %s31
      %37 = dma.hbm_to_vmem [thread:$0]  %s1, 576, %s32, [#allocation6], 64, 64, 4
    $region9: #{unet_forward.19} parent=1 // pred_fallthru
      _
    // Predicated region
    $region10: #{unet_forward.19} parent=1 // pred_check
      _
    $region11: #{unet_forward.19} parent=1 // pred_check_branch
      %39 = sbr.rel (0) target = $region13
    $region12: #{unet_forward.19} parent=1 // pred_region
      %s41 = ssub.s32 16, 16
      %42 = vsyncadd [#allocation6], %s41
      %s44 = sshll.u32 [#allocation7], 4
      %s45 = int_to_ptr.vmem [resolvable:$true] %s44
      %47 = dma.hbm_to_vmem [thread:$0]  %s2, 16, %s45, [#allocation6]
    $region13: #{unet_forward.19} parent=1 // pred_fallthru
      _
    // Predicated region
    $region14: #{unet_forward.19} parent=1 // pred_check
      _
    $region15: #{unet_forward.19} parent=1 // pred_check_branch
      %49 = sbr.rel (0) target = $region17
    $region16: #{unet_forward.19} parent=1 // pred_region
      %s51 = ssub.s32 16, 16
      %52 = vsyncadd [#allocation9], %s51
      %s54 = sshll.u32 [#allocation8], 4
      %s55 = int_to_ptr.vmem [resolvable:$true] %s54
      %57 = dma.hbm_to_vmem [thread:$0]  %s3, 16, %s55, [#allocation9]
    $region17: #{unet_forward.19} parent=1 // pred_fallthru
      _
    // Predicated region
    $region18: #{unet_forward.19} parent=1 // pred_check
      _
    $region19: #{unet_forward.19} parent=1 // pred_check_branch
      %59 = sbr.rel (0) target = $region21
    $region20: #{unet_forward.19} parent=1 // pred_region
      %s61 = ssub.s32 16, 16
      %62 = vsyncadd [#allocation9], %s61
      %s64 = sshll.u32 [#allocation10], 4
      %s65 = int_to_ptr.vmem [resolvable:$true] %s64
      %67 = dma.hbm_to_vmem [thread:$0]  %s4, 16, %s65, [#allocation9]
    $region21: #{unet_forward.19} parent=1 // pred_fallthru
      _
    // Predicated region
    $region22: #{unet_forward.19} parent=1 // pred_check
      _
    $region23: #{unet_forward.19} parent=1 // pred_check_branch
      %69 = sbr.rel (0) target = $region25
    $region24: #{unet_forward.19} parent=1 // pred_region
      %70 = dma.done [#allocation3], 1024
    $region25: #{unet_forward.19} parent=1 // pred_fallthru
      _
    // Predicated region
    $region26: #{unet_forward.19} parent=1 // pred_check
      _
    $region27: #{unet_forward.19} parent=1 // pred_check_branch
      %72 = sbr.rel (0) target = $region29
    $region28: #{unet_forward.19} parent=1 // pred_region
      %73 = dma.done [#allocation6], 576
    $region29: #{unet_forward.19} parent=1 // pred_fallthru
      _
    // Predicated region
    $region30: #{unet_forward.19} parent=1 // pred_check
      _
    $region31: #{unet_forward.19} parent=1 // pred_check_branch
      %75 = sbr.rel (0) target = $region33
    $region32: #{unet_forward.19} parent=1 // pred_region
      %76 = dma.done [#allocation6], 16
    $region33: #{unet_forward.19} parent=1 // pred_fallthru
      _
    // Predicated region
    $region34: #{unet_forward.19} parent=1 // pred_check
      _
    $region35: #{unet_forward.19} parent=1 // pred_check_branch
      %78 = sbr.rel (0) target = $region37
    $region36: #{unet_forward.19} parent=1 // pred_region
      %79 = dma.done [#allocation9], 16
    $region37: #{unet_forward.19} parent=1 // pred_fallthru
      _
    // Predicated region
    $region38: #{unet_forward.19} parent=1 // pred_check
      _
    $region39: #{unet_forward.19} parent=1 // pred_check_branch
      %81 = sbr.rel (0) target = $region41
    $region40: #{unet_forward.19} parent=1 // pred_region
      %82 = dma.done [#allocation9], 16
    $region41: #{unet_forward.19} parent=1 // pred_fallthru
      _
    %v84 = vld [vmem:[#allocation2] sm:$0xf]
    %v85 = vld [vmem:[#allocation2 + $0x4] sm:$0xf]
    %v86 = vld [vmem:[#allocation2 + $0x8] sm:$0xf]
    %v87 = vld [vmem:[#allocation2 + $0xc] sm:$0xf]
    %v88 = vld [vmem:[#allocation2 + $0x10] sm:$0xf]
    %v89 = vld [vmem:[#allocation2 + $0x14] sm:$0xf]
    %v90 = vld [vmem:[#allocation2 + $0x18] sm:$0xf]
    %v91 = vld [vmem:[#allocation2 + $0x1c] sm:$0xf]
    %v92 = vld [vmem:[#allocation2 + $0x20] sm:$0xf]
    %v93 = vld [vmem:[#allocation2 + $0x24] sm:$0xf]
    %v94 = vld [vmem:[#allocation2 + $0x28] sm:$0xf]
    %v95 = vld [vmem:[#allocation2 + $0x2c] sm:$0xf]
    %v96 = vld [vmem:[#allocation2 + $0x30] sm:$0xf]
    %v97 = vld [vmem:[#allocation2 + $0x34] sm:$0xf]
    %v98 = vld [vmem:[#allocation2 + $0x38] sm:$0xf]
    %v99 = vld [vmem:[#allocation2 + $0x3c] sm:$0xf]
    %v100 = vld [vmem:[#allocation5] sm:$0xf]
    %v101 = vld [vmem:[#allocation5 + $0x4] sm:$0xf]
    %v102 = vld [vmem:[#allocation5 + $0x8] sm:$0xf]
    %v103 = vld [vmem:[#allocation5 + $0xc] sm:$0xf]
    %v104 = vld [vmem:[#allocation5 + $0x10] sm:$0xf]
    %v105 = vld [vmem:[#allocation5 + $0x14] sm:$0xf]
    %v106 = vld [vmem:[#allocation5 + $0x18] sm:$0xf]
    %v107 = vld [vmem:[#allocation5 + $0x1c] sm:$0xf]
    %v108 = vld [vmem:[#allocation5 + $0x20] sm:$0xf]
    %v109 = vld [vmem:[#allocation7] sm:$0x1]
    %v111 = vlaneseq
    %v112 = vshrl.u32 %v111, 7
    %v113 = vsub.s32 0, %v112
    %v114 = vrot.slane %v109, %v113
    %v132 = vunpack.c.l.b16 %v84
    %v133 = vunpack.c.l.b16 %v85
    %v134 = vunpack.c.l.b16 %v86
    %v135 = vunpack.c.l.b16 %v87
    %v136 = vunpack.c.l.b16 %v88
    %v137 = vunpack.c.l.b16 %v89
    %v138 = vunpack.c.l.b16 %v90
    %v139 = vunpack.c.l.b16 %v91
    %v140 = vunpack.c.l.b16 %v92
    %v141 = vunpack.c.l.b16 %v93
    %v142 = vunpack.c.l.b16 %v94
    %v143 = vunpack.c.l.b16 %v95
    %v144 = vunpack.c.l.b16 %v96
    %v145 = vunpack.c.l.b16 %v97
    %v146 = vunpack.c.l.b16 %v98
    %v147 = vunpack.c.l.b16 %v99
    %v148 = vpack.c.b16 %v133, %v132
    %v149 = vpack.c.b16 %v135, %v134
    %v150 = vpack.c.b16 %v137, %v136
    %v151 = vpack.c.b16 %v139, %v138
    %v152 = vpack.c.b16 %v141, %v140
    %v153 = vpack.c.b16 %v143, %v142
    %v154 = vpack.c.b16 %v145, %v144
    %v155 = vpack.c.b16 %v147, %v146
    %v165 = vunpack.c.l.b16 %v100
    %v166 = vunpack.c.l.b16 %v101
    %v167 = vunpack.c.l.b16 %v102
    %v168 = vunpack.c.l.b16 %v103
    %v169 = vunpack.c.l.b16 %v104
    %v170 = vunpack.c.l.b16 %v105
    %v171 = vunpack.c.l.b16 %v106
    %v172 = vunpack.c.l.b16 %v107
    %v173 = vunpack.c.l.b16 %v108
    %v174 = vpack.c.b16 %v166, %v165
    %v175 = vpack.c.b16 %v168, %v167
    %v176 = vpack.c.b16 %v170, %v169
    %v177 = vpack.c.b16 %v172, %v171
    %v178 = vpack.c.b16 %v173, %v173
    %vm183 = vcmask 588800
    %v185 = vsel %vm183, %v148, 0
    %v188 = vsel %vm183, %v149, 0
    %v191 = vsel %vm183, %v150, 0
    %v194 = vsel %vm183, %v151, 0
    %v197 = vsel %vm183, %v152, 0
    %v200 = vsel %vm183, %v153, 0
    %v203 = vsel %vm183, %v154, 0
    %v206 = vsel %vm183, %v155, 0
    %vm208 = vcmask 1043456
    %v210 = vsel %vm208, %v178, 0
    %212 = vmatprep.subr.bf16.mxu0 0
    %213 = vmatpush1.bf16.msra.mxu0 %v174
    %214 = vmatprep.subr.bf16.mxu0 0
    %215 = vmatpush1.bf16.msra.mxu0 %v175
    %216 = vmatprep.subr.bf16.mxu0 0
    %217 = vmatpush1.bf16.msra.mxu0 %v176
    %218 = vmatprep.subr.bf16.mxu0 0
    %219 = vmatpush1.bf16.msra.mxu0 %v177
    %220 = vmatprep.subr.bf16.mxu0 0
    %221 = vmatpush1.bf16.msra.mxu0 %v210
    %222 = vmatprep.subr.bf16.mxu0 0
    %223 = vmatpush1.bf16.msra.mxu0 0
    %224 = vmatprep.subr.bf16.mxu0 0
    %225 = vmatpush1.bf16.msra.mxu0 0
    %226 = vmatprep.subr.bf16.mxu0 0
    %227 = vmatpush1.bf16.msra.mxu0 0
    %228 = vmatprep.subr.bf16.mxu0 0
    %229 = vmatpush1.bf16.msra.mxu0 0
    %230 = vmatprep.subr.bf16.mxu0 0
    %231 = vmatpush1.bf16.msra.mxu0 0
    %232 = vmatprep.subr.bf16.mxu0 0
    %233 = vmatpush1.bf16.msra.mxu0 0
    %234 = vmatprep.subr.bf16.mxu0 0
    %235 = vmatpush1.bf16.msra.mxu0 0
    %236 = vmatprep.subr.bf16.mxu0 0
    %237 = vmatpush1.bf16.msra.mxu0 0
    %238 = vmatprep.subr.bf16.mxu0 0
    %239 = vmatpush1.bf16.msra.mxu0 0
    %240 = vmatprep.subr.bf16.mxu0 0
    %241 = vmatpush1.bf16.msra.mxu0 0
    %242 = vmatprep.subr.bf16.mxu0 0
    %243 = vmatpush1.bf16.msra.mxu0 0
    %244 = vmatprep.mubr.bf16.mxu0 0
    %245 = vmatmul.mubr.bf16.gmra.mrb[0].mxu0 %v185
    %v246 = vpop.f32.mrb[0].mxu0
    %v247 = vadd.f32 %v114, %v246
    %v248 = vpop.f32.mrb[0].mxu0
    %v249 = vpop.f32.mrb[0].mxu0
    %v250 = vadd.f32 %v114, %v249
    %v251 = vpop.f32.mrb[0].mxu0
    %252 = vmatprep.mubr.bf16.mxu0 0
    %253 = vmatmul.mubr.bf16.gmra.mrb[0].mxu0 %v188
    %v254 = vpop.f32.mrb[0].mxu0
    %v255 = vadd.f32 %v114, %v254
    %v256 = vpop.f32.mrb[0].mxu0
    %v257 = vpop.f32.mrb[0].mxu0
    %v258 = vadd.f32 %v114, %v257
    %v259 = vpop.f32.mrb[0].mxu0
    %260 = vmatprep.mubr.bf16.mxu0 0
    %261 = vmatmul.mubr.bf16.gmra.mrb[0].mxu0 %v191
    %v262 = vpop.f32.mrb[0].mxu0
    %v263 = vadd.f32 %v114, %v262
    %v264 = vpop.f32.mrb[0].mxu0
    %v265 = vpop.f32.mrb[0].mxu0
    %v266 = vadd.f32 %v114, %v265
    %v267 = vpop.f32.mrb[0].mxu0
    %268 = vmatprep.mubr.bf16.mxu0 0
    %269 = vmatmul.mubr.bf16.gmra.mrb[0].mxu0 %v194
    %v270 = vpop.f32.mrb[0].mxu0
    %v271 = vadd.f32 %v114, %v270
    %v272 = vpop.f32.mrb[0].mxu0
    %v273 = vpop.f32.mrb[0].mxu0
    %v274 = vadd.f32 %v114, %v273
    %v275 = vpop.f32.mrb[0].mxu0
    %276 = vmatprep.mubr.bf16.mxu0 0
    %277 = vmatmul.mubr.bf16.gmra.mrb[0].mxu0 %v197
    %v278 = vpop.f32.mrb[0].mxu0
    %v279 = vadd.f32 %v114, %v278
    %v280 = vpop.f32.mrb[0].mxu0
    %v281 = vpop.f32.mrb[0].mxu0
    %v282 = vadd.f32 %v114, %v281
    %v283 = vpop.f32.mrb[0].mxu0
    %284 = vmatprep.mubr.bf16.mxu0 0
    %285 = vmatmul.mubr.bf16.gmra.mrb[0].mxu0 %v200
    %v286 = vpop.f32.mrb[0].mxu0
    %v287 = vadd.f32 %v114, %v286
    %v288 = vpop.f32.mrb[0].mxu0
    %v289 = vpop.f32.mrb[0].mxu0
    %v290 = vadd.f32 %v114, %v289
    %v291 = vpop.f32.mrb[0].mxu0
    %292 = vmatprep.mubr.bf16.mxu0 0
    %293 = vmatmul.mubr.bf16.gmra.mrb[0].mxu0 %v203
    %v294 = vpop.f32.mrb[0].mxu0
    %v295 = vadd.f32 %v114, %v294
    %v296 = vpop.f32.mrb[0].mxu0
    %v297 = vpop.f32.mrb[0].mxu0
    %v298 = vadd.f32 %v114, %v297
    %v299 = vpop.f32.mrb[0].mxu0
    %300 = vmatprep.mubr.bf16.mxu0 0
    %301 = vmatmul.mubr.bf16.gmra.mrb[0].mxu0 %v206
    %v302 = vpop.f32.mrb[0].mxu0
    %v303 = vadd.f32 %v114, %v302
    %v304 = vpop.f32.mrb[0].mxu0
    %v305 = vpop.f32.mrb[0].mxu0
    %v306 = vadd.f32 %v114, %v305
    %v307 = vpop.f32.mrb[0].mxu0
    %308 = vdwg.mxu0
    %v309 = vmax.f32 %v247, 0.0
    %v310 = vmax.f32 %v250, 0.0
    %v311 = vmax.f32 %v255, 0.0
    %v312 = vmax.f32 %v258, 0.0
    %v313 = vmax.f32 %v263, 0.0
    %v314 = vmax.f32 %v266, 0.0
    %v315 = vmax.f32 %v271, 0.0
    %v316 = vmax.f32 %v274, 0.0
    %v317 = vmax.f32 %v279, 0.0
    %v318 = vmax.f32 %v282, 0.0
    %v319 = vmax.f32 %v287, 0.0
    %v320 = vmax.f32 %v290, 0.0
    %v321 = vmax.f32 %v295, 0.0
    %v322 = vmax.f32 %v298, 0.0
    %v323 = vmax.f32 %v303, 0.0
    %v324 = vmax.f32 %v306, 0.0
    %v325 = vld [vmem:[#allocation8] sm:$0x1]
    %v327 = vlaneseq
    %v328 = vshrl.u32 %v327, 7
    %v329 = vsub.s32 0, %v328
    %v330 = vrot.slane %v325, %v329
    %v332 = vmul.f32 %v309, %v330
    %v333 = vmul.f32 %v310, %v330
    %v334 = vmul.f32 %v311, %v330
    %v335 = vmul.f32 %v312, %v330
    %v336 = vmul.f32 %v313, %v330
    %v337 = vmul.f32 %v314, %v330
    %v338 = vmul.f32 %v315, %v330
    %v339 = vmul.f32 %v316, %v330
    %v340 = vmul.f32 %v317, %v330
    %v341 = vmul.f32 %v318, %v330
    %v342 = vmul.f32 %v319, %v330
    %v343 = vmul.f32 %v320, %v330
    %v344 = vmul.f32 %v321, %v330
    %v345 = vmul.f32 %v322, %v330
    %v346 = vmul.f32 %v323, %v330
    %v347 = vmul.f32 %v324, %v330
    %v348 = vld [vmem:[#allocation10] sm:$0x1]
    %v350 = vlaneseq
    %v351 = vshrl.u32 %v350, 7
    %v352 = vsub.s32 0, %v351
    %v353 = vrot.slane %v348, %v352
    %v355 = vadd.f32 %v332, %v353
    %v356 = vadd.f32 %v333, %v353
    %v357 = vadd.f32 %v334, %v353
    %v358 = vadd.f32 %v335, %v353
    %v359 = vadd.f32 %v336, %v353
    %v360 = vadd.f32 %v337, %v353
    %v361 = vadd.f32 %v338, %v353
    %v362 = vadd.f32 %v339, %v353
    %v363 = vadd.f32 %v340, %v353
    %v364 = vadd.f32 %v341, %v353
    %v365 = vadd.f32 %v342, %v353
    %v366 = vadd.f32 %v343, %v353
    %v367 = vadd.f32 %v344, %v353
    %v368 = vadd.f32 %v345, %v353
    %v369 = vadd.f32 %v346, %v353
    %v370 = vadd.f32 %v347, %v353
    %v371 = vpack.c.bf16 %v356, %v355
    %v372 = vpack.c.bf16 %v358, %v357
    %v373 = vpack.c.bf16 %v360, %v359
    %v374 = vpack.c.bf16 %v362, %v361
    %v375 = vpack.c.bf16 %v364, %v363
    %v376 = vpack.c.bf16 %v366, %v365
    %v377 = vpack.c.bf16 %v368, %v367
    %v378 = vpack.c.bf16 %v370, %v369
    %v387 = vunpack.c.l.b16 %v371
    %v388 = vunpack.c.h.b16 %v371
    %v389 = vunpack.c.l.b16 %v372
    %v390 = vunpack.c.h.b16 %v372
    %v391 = vunpack.c.l.b16 %v373
    %v392 = vunpack.c.h.b16 %v373
    %v393 = vunpack.c.l.b16 %v374
    %v394 = vunpack.c.h.b16 %v374
    %v395 = vunpack.c.l.b16 %v375
    %v396 = vunpack.c.h.b16 %v375
    %v397 = vunpack.c.l.b16 %v376
    %v398 = vunpack.c.h.b16 %v376
    %v399 = vunpack.c.l.b16 %v377
    %v400 = vunpack.c.h.b16 %v377
    %v401 = vunpack.c.l.b16 %v378
    %v402 = vunpack.c.h.b16 %v378
    %v403 = vpack.c.b16 %v387, %v387
    %v404 = vpack.c.b16 %v388, %v388
    %v405 = vpack.c.b16 %v389, %v389
    %v406 = vpack.c.b16 %v390, %v390
    %v407 = vpack.c.b16 %v391, %v391
    %v408 = vpack.c.b16 %v392, %v392
    %v409 = vpack.c.b16 %v393, %v393
    %v410 = vpack.c.b16 %v394, %v394
    %v411 = vpack.c.b16 %v395, %v395
    %v412 = vpack.c.b16 %v396, %v396
    %v413 = vpack.c.b16 %v397, %v397
    %v414 = vpack.c.b16 %v398, %v398
    %v415 = vpack.c.b16 %v399, %v399
    %v416 = vpack.c.b16 %v400, %v400
    %v417 = vpack.c.b16 %v401, %v401
    %v418 = vpack.c.b16 %v402, %v402
    %vm435 = vcmask 125952
    %436 = vst.msk [vmem:[#allocation11] sm:$0xf] %vm435, %v403
    %437 = vst.msk [vmem:[#allocation11 + $0x4] sm:$0xf] %vm435, %v404
    %438 = vst.msk [vmem:[#allocation11 + $0x8] sm:$0xf] %vm435, %v405
    %439 = vst.msk [vmem:[#allocation11 + $0xc] sm:$0xf] %vm435, %v406
    %440 = vst.msk [vmem:[#allocation11 + $0x10] sm:$0xf] %vm435, %v407
    %441 = vst.msk [vmem:[#allocation11 + $0x14] sm:$0xf] %vm435, %v408
    %442 = vst.msk [vmem:[#allocation11 + $0x18] sm:$0xf] %vm435, %v409
    %443 = vst.msk [vmem:[#allocation11 + $0x1c] sm:$0xf] %vm435, %v410
    %444 = vst.msk [vmem:[#allocation11 + $0x20] sm:$0xf] %vm435, %v411
    %445 = vst.msk [vmem:[#allocation11 + $0x24] sm:$0xf] %vm435, %v412
    %446 = vst.msk [vmem:[#allocation11 + $0x28] sm:$0xf] %vm435, %v413
    %447 = vst.msk [vmem:[#allocation11 + $0x2c] sm:$0xf] %vm435, %v414
    %448 = vst.msk [vmem:[#allocation11 + $0x30] sm:$0xf] %vm435, %v415
    %449 = vst.msk [vmem:[#allocation11 + $0x34] sm:$0xf] %vm435, %v416
    %450 = vst.msk [vmem:[#allocation11 + $0x38] sm:$0xf] %vm435, %v417
    %451 = vst.msk [vmem:[#allocation11 + $0x3c] sm:$0xf] %vm435, %v418
    // Predicated region
    $region42: #{unet_forward.19} parent=1 // pred_check
      _
    $region43: #{unet_forward.19} parent=1 // pred_check_branch
      %453 = sbr.rel (0) target = $region45
    $region44: #{unet_forward.19} parent=1 // pred_region
      %s455 = ssub.s32 1024, 1024
      %456 = vsyncadd [#allocation4], %s455
      %s457 = sshll.u32 [#allocation11], 4
      %s458 = int_to_ptr.vmem [resolvable:$true] %s457
      %463 = dma.vmem_to_hbm [thread:$0]  %s458, 1024, %s5, [#allocation4], 64, 64, 4
    $region45: #{unet_forward.19} parent=1 // pred_fallthru
      _
    // Predicated region
    $region46: #{unet_forward.19} parent=1 // pred_check
      _
    $region47: #{unet_forward.19} parent=1 // pred_check_branch
      %465 = sbr.rel (0) target = $region49
    $region48: #{unet_forward.19} parent=1 // pred_region
      %466 = dma.done [#allocation4], 1024
    $region49: #{unet_forward.19} parent=1 // pred_fallthru
      _
    %467 = vsyncpa [#allocation3], 1
    %468 = vsyncpa [#allocation6], 1
    %469 = vsyncpa [#allocation9], 1
    %470 = vsyncpa [#allocation4], 1

// kernel: unet_forward.20
$region0: #{unet_forward.20}
  #allocation0 [shape = 'u32[]', space=smem, size = 0x4, offset = 0x4, fixed_abs, tag = 'smem constant byte address 0x4 - core index']
  #allocation1 [shape = 'u32[144,128]{1,0:T(1,128)}', space=vmem, size = 0x12000, scoped, tag = 'internal scratch']
  %s0 = inlined_call_operand.hbm [shape: bf16[128,144], index: 0, kind: input, shape index: {}]
  %s1 = inlined_call_operand.hbm [shape: bf16[144,16], index: 1, kind: input, shape index: {}]
  %s2 = inlined_call_operand.hbm [shape: f32[1,16], index: 2, kind: input, shape index: {}]
  %s3 = inlined_call_operand.hbm [shape: f32[1,16], index: 3, kind: input, shape index: {}]
  %s4 = inlined_call_operand.hbm [shape: f32[1,16], index: 4, kind: input, shape index: {}]
  %s5 = inlined_call_operand.hbm [shape: bf16[128,16], index: 5, kind: output, shape index: {}]
  %s6 = sld [smem:[#allocation0]]
  $region50: #{unet_forward.20} parent=0
    _
  %s8 = ssub.s32 1, %s6
  %s9 = scalar_select 0, %s8, %s6
  $region1: #{unet_forward.20} parent=0
    #allocation2 [shape = 'u8[65536]{0}', space=vmem, size = 0x10000, scoped, tag = 'input window, operand 0, single buffered']
    #allocation3 [shape = 's32[1]{0}', space=sflag, size = 0x4, scoped, tag = 'scoped memory for unet_forward.20']
    #allocation4 [shape = 's32[1]{0}', space=sflag, size = 0x4, scoped, tag = 'scoped memory for unet_forward.20']
    #allocation5 [shape = 'u8[36864]{0}', space=vmem, size = 0x9000, scoped, tag = 'input window, operand 1, single buffered']
    #allocation6 [shape = 's32[1]{0}', space=sflag, size = 0x4, scoped, tag = 'scoped memory for unet_forward.20']
    #allocation7 [shape = 'u8[512]{0}', space=vmem, size = 0x400, scoped, tag = 'input window, operand 2, single buffered']
    #allocation8 [shape = 'u8[512]{0}', space=vmem, size = 0x400, scoped, tag = 'input window, operand 3, single buffered']
    #allocation9 [shape = 's32[1]{0}', space=sflag, size = 0x4, scoped, tag = 'scoped memory for unet_forward.20']
    #allocation10 [shape = 'u8[512]{0}', space=vmem, size = 0x400, scoped, tag = 'input window, operand 4, single buffered']
    #allocation11 [shape = 'u8[32768]{0}', space=vmem, size = 0x8000, scoped, tag = 'output window, operand 0, single buffered']
    %10 = vsyncpa [#allocation3], 0
    %11 = vsyncpa [#allocation6], 0
    %12 = vsyncpa [#allocation9], 0
    %13 = vsyncpa [#allocation4], 0
    // Predicated region
    $region2: #{unet_forward.20} parent=1 // pred_check
      _
    $region3: #{unet_forward.20} parent=1 // pred_check_branch
      %15 = sbr.rel (0) target = $region5
    $region4: #{unet_forward.20} parent=1 // pred_region
      %s17 = ssub.s32 2048, 2048
      %18 = vsyncadd [#allocation3], %s17
      %s19 = sshll.u32 [#allocation2], 4
      %s20 = int_to_ptr.vmem [resolvable:$true] %s19
      %25 = dma.hbm_to_vmem [thread:$0]  %s0, 2048, %s20, [#allocation3], 128, 128, 8
    $region5: #{unet_forward.20} parent=1 // pred_fallthru
      _
    // Predicated region
    $region6: #{unet_forward.20} parent=1 // pred_check
      _
    $region7: #{unet_forward.20} parent=1 // pred_check_branch
      %27 = sbr.rel (0) target = $region9
    $region8: #{unet_forward.20} parent=1 // pred_region
      %s29 = ssub.s32 1152, 1152
      %30 = vsyncadd [#allocation6], %s29
      %s31 = sshll.u32 [#allocation5], 4
      %s32 = int_to_ptr.vmem [resolvable:$true] %s31
      %37 = dma.hbm_to_vmem [thread:$0]  %s1, 1152, %s32, [#allocation6], 64, 64, 4
    $region9: #{unet_forward.20} parent=1 // pred_fallthru
      _
    // Predicated region
    $region10: #{unet_forward.20} parent=1 // pred_check
      _
    $region11: #{unet_forward.20} parent=1 // pred_check_branch
      %39 = sbr.rel (0) target = $region13
    $region12: #{unet_forward.20} parent=1 // pred_region
      %s41 = ssub.s32 16, 16
      %42 = vsyncadd [#allocation6], %s41
      %s44 = sshll.u32 [#allocation7], 4
      %s45 = int_to_ptr.vmem [resolvable:$true] %s44
      %47 = dma.hbm_to_vmem [thread:$0]  %s2, 16, %s45, [#allocation6]
    $region13: #{unet_forward.20} parent=1 // pred_fallthru
      _
    // Predicated region
    $region14: #{unet_forward.20} parent=1 // pred_check
      _
    $region15: #{unet_forward.20} parent=1 // pred_check_branch
      %49 = sbr.rel (0) target = $region17
    $region16: #{unet_forward.20} parent=1 // pred_region
      %s51 = ssub.s32 16, 16
      %52 = vsyncadd [#allocation9], %s51
      %s54 = sshll.u32 [#allocation8], 4
      %s55 = int_to_ptr.vmem [resolvable:$true] %s54
      %57 = dma.hbm_to_vmem [thread:$0]  %s3, 16, %s55, [#allocation9]
    $region17: #{unet_forward.20} parent=1 // pred_fallthru
      _
    // Predicated region
    $region18: #{unet_forward.20} parent=1 // pred_check
      _
    $region19: #{unet_forward.20} parent=1 // pred_check_branch
      %59 = sbr.rel (0) target = $region21
    $region20: #{unet_forward.20} parent=1 // pred_region
      %s61 = ssub.s32 16, 16
      %62 = vsyncadd [#allocation9], %s61
      %s64 = sshll.u32 [#allocation10], 4
      %s65 = int_to_ptr.vmem [resolvable:$true] %s64
      %67 = dma.hbm_to_vmem [thread:$0]  %s4, 16, %s65, [#allocation9]
    $region21: #{unet_forward.20} parent=1 // pred_fallthru
      _
    // Predicated region
    $region22: #{unet_forward.20} parent=1 // pred_check
      _
    $region23: #{unet_forward.20} parent=1 // pred_check_branch
      %69 = sbr.rel (0) target = $region25
    $region24: #{unet_forward.20} parent=1 // pred_region
      %70 = dma.done [#allocation3], 2048
    $region25: #{unet_forward.20} parent=1 // pred_fallthru
      _
    // Predicated region
    $region26: #{unet_forward.20} parent=1 // pred_check
      _
    $region27: #{unet_forward.20} parent=1 // pred_check_branch
      %72 = sbr.rel (0) target = $region29
    $region28: #{unet_forward.20} parent=1 // pred_region
      %73 = dma.done [#allocation6], 1152
    $region29: #{unet_forward.20} parent=1 // pred_fallthru
      _
    // Predicated region
    $region30: #{unet_forward.20} parent=1 // pred_check
      _
    $region31: #{unet_forward.20} parent=1 // pred_check_branch
      %75 = sbr.rel (0) target = $region33
    $region32: #{unet_forward.20} parent=1 // pred_region
      %76 = dma.done [#allocation6], 16
    $region33: #{unet_forward.20} parent=1 // pred_fallthru
      _
    // Predicated region
    $region34: #{unet_forward.20} parent=1 // pred_check
      _
    $region35: #{unet_forward.20} parent=1 // pred_check_branch
      %78 = sbr.rel (0) target = $region37
    $region36: #{unet_forward.20} parent=1 // pred_region
      %79 = dma.done [#allocation9], 16
    $region37: #{unet_forward.20} parent=1 // pred_fallthru
      _
    // Predicated region
    $region38: #{unet_forward.20} parent=1 // pred_check
      _
    $region39: #{unet_forward.20} parent=1 // pred_check_branch
      %81 = sbr.rel (0) target = $region41
    $region40: #{unet_forward.20} parent=1 // pred_region
      %82 = dma.done [#allocation9], 16
    $region41: #{unet_forward.20} parent=1 // pred_fallthru
      _
    %v84 = vld [vmem:[#allocation2] sm:$0xff]
    %v85 = vld [vmem:[#allocation2 + $0x8] sm:$0xff]
    %v86 = vld [vmem:[#allocation2 + $0x10] sm:$0xff]
    %v87 = vld [vmem:[#allocation2 + $0x18] sm:$0xff]
    %v88 = vld [vmem:[#allocation2 + $0x20] sm:$0xff]
    %v89 = vld [vmem:[#allocation2 + $0x28] sm:$0xff]
    %v90 = vld [vmem:[#allocation2 + $0x30] sm:$0xff]
    %v91 = vld [vmem:[#allocation2 + $0x38] sm:$0xff]
    %v92 = vld [vmem:[#allocation2 + $0x40] sm:$0xff]
    %v93 = vld [vmem:[#allocation2 + $0x48] sm:$0xff]
    %v94 = vld [vmem:[#allocation2 + $0x50] sm:$0xff]
    %v95 = vld [vmem:[#allocation2 + $0x58] sm:$0xff]
    %v96 = vld [vmem:[#allocation2 + $0x60] sm:$0xff]
    %v97 = vld [vmem:[#allocation2 + $0x68] sm:$0xff]
    %v98 = vld [vmem:[#allocation2 + $0x70] sm:$0xff]
    %v99 = vld [vmem:[#allocation2 + $0x78] sm:$0xff]
    %v100 = vld [vmem:[#allocation5] sm:$0xf]
    %v101 = vld [vmem:[#allocation5 + $0x4] sm:$0xf]
    %v102 = vld [vmem:[#allocation5 + $0x8] sm:$0xf]
    %v103 = vld [vmem:[#allocation5 + $0xc] sm:$0xf]
    %v104 = vld [vmem:[#allocation5 + $0x10] sm:$0xf]
    %v105 = vld [vmem:[#allocation5 + $0x14] sm:$0xf]
    %v106 = vld [vmem:[#allocation5 + $0x18] sm:$0xf]
    %v107 = vld [vmem:[#allocation5 + $0x1c] sm:$0xf]
    %v108 = vld [vmem:[#allocation5 + $0x20] sm:$0xf]
    %v109 = vld [vmem:[#allocation5 + $0x24] sm:$0xf]
    %v110 = vld [vmem:[#allocation5 + $0x28] sm:$0xf]
    %v111 = vld [vmem:[#allocation5 + $0x2c] sm:$0xf]
    %v112 = vld [vmem:[#allocation5 + $0x30] sm:$0xf]
    %v113 = vld [vmem:[#allocation5 + $0x34] sm:$0xf]
    %v114 = vld [vmem:[#allocation5 + $0x38] sm:$0xf]
    %v115 = vld [vmem:[#allocation5 + $0x3c] sm:$0xf]
    %v116 = vld [vmem:[#allocation5 + $0x40] sm:$0xf]
    %v117 = vld [vmem:[#allocation5 + $0x44] sm:$0xf]
    %v118 = vld [vmem:[#allocation7] sm:$0x1]
    %v120 = vlaneseq
    %v121 = vshrl.u32 %v120, 7
    %v122 = vsub.s32 0, %v121
    %v123 = vrot.slane %v118, %v122
    %v141 = vunpack.c.l.b16 %v84
    %v142 = vunpack.c.h.b16 %v84
    %v143 = vunpack.c.l.b16 %v85
    %v144 = vunpack.c.h.b16 %v85
    %v145 = vunpack.c.l.b16 %v86
    %v146 = vunpack.c.h.b16 %v86
    %v147 = vunpack.c.l.b16 %v87
    %v148 = vunpack.c.h.b16 %v87
    %v149 = vunpack.c.l.b16 %v88
    %v150 = vunpack.c.h.b16 %v88
    %v151 = vunpack.c.l.b16 %v89
    %v152 = vunpack.c.h.b16 %v89
    %v153 = vunpack.c.l.b16 %v90
    %v154 = vunpack.c.h.b16 %v90
    %v155 = vunpack.c.l.b16 %v91
    %v156 = vunpack.c.h.b16 %v91
    %v157 = vunpack.c.l.b16 %v92
    %v158 = vunpack.c.h.b16 %v92
    %v159 = vunpack.c.l.b16 %v93
    %v160 = vunpack.c.h.b16 %v93
    %v161 = vunpack.c.l.b16 %v94
    %v162 = vunpack.c.h.b16 %v94
    %v163 = vunpack.c.l.b16 %v95
    %v164 = vunpack.c.h.b16 %v95
    %v165 = vunpack.c.l.b16 %v96
    %v166 = vunpack.c.h.b16 %v96
    %v167 = vunpack.c.l.b16 %v97
    %v168 = vunpack.c.h.b16 %v97
    %v169 = vunpack.c.l.b16 %v98
    %v170 = vunpack.c.h.b16 %v98
    %v171 = vunpack.c.l.b16 %v99
    %v172 = vunpack.c.h.b16 %v99
    %v173 = vpack.c.b16 %v143, %v141
    %v174 = vpack.c.b16 %v144, %v142
    %v175 = vpack.c.b16 %v147, %v145
    %v176 = vpack.c.b16 %v148, %v146
    %v177 = vpack.c.b16 %v151, %v149
    %v178 = vpack.c.b16 %v152, %v150
    %v179 = vpack.c.b16 %v155, %v153
    %v180 = vpack.c.b16 %v156, %v154
    %v181 = vpack.c.b16 %v159, %v157
    %v182 = vpack.c.b16 %v160, %v158
    %v183 = vpack.c.b16 %v163, %v161
    %v184 = vpack.c.b16 %v164, %v162
    %v185 = vpack.c.b16 %v167, %v165
    %v186 = vpack.c.b16 %v168, %v166
    %v187 = vpack.c.b16 %v171, %v169
    %v188 = vpack.c.b16 %v172, %v170
    %v215 = vunpack.c.l.b16 %v100
    %v216 = vunpack.c.l.b16 %v101
    %v217 = vunpack.c.l.b16 %v102
    %v218 = vunpack.c.l.b16 %v103
    %v219 = vunpack.c.l.b16 %v104
    %v220 = vunpack.c.l.b16 %v105
    %v221 = vunpack.c.l.b16 %v106
    %v222 = vunpack.c.l.b16 %v107
    %v223 = vunpack.c.l.b16 %v108
    %v224 = vunpack.c.l.b16 %v109
    %v225 = vunpack.c.l.b16 %v110
    %v226 = vunpack.c.l.b16 %v111
    %v227 = vunpack.c.l.b16 %v112
    %v228 = vunpack.c.l.b16 %v113
    %v229 = vunpack.c.l.b16 %v114
    %v230 = vunpack.c.l.b16 %v115
    %v231 = vunpack.c.l.b16 %v116
    %v232 = vunpack.c.l.b16 %v117
    %v233 = vpack.c.b16 %v216, %v215
    %v234 = vpack.c.b16 %v218, %v217
    %v235 = vpack.c.b16 %v220, %v219
    %v236 = vpack.c.b16 %v222, %v221
    %v237 = vpack.c.b16 %v224, %v223
    %v238 = vpack.c.b16 %v226, %v225
    %v239 = vpack.c.b16 %v228, %v227
    %v240 = vpack.c.b16 %v230, %v229
    %v241 = vpack.c.b16 %v232, %v231
    %vm251 = vcmask 130048
    %v253 = vsel %vm251, %v174, 0
    %v256 = vsel %vm251, %v176, 0
    %v259 = vsel %vm251, %v178, 0
    %v262 = vsel %vm251, %v180, 0
    %v265 = vsel %vm251, %v182, 0
    %v268 = vsel %vm251, %v184, 0
    %v271 = vsel %vm251, %v186, 0
    %v274 = vsel %vm251, %v188, 0
    %276 = vmatprep.subr.bf16.mxu0 0
    %277 = vmatpush1.bf16.msra.mxu0 %v233
    %278 = vmatprep.subr.bf16.mxu0 0
    %279 = vmatpush1.bf16.msra.mxu0 %v234
    %280 = vmatprep.subr.bf16.mxu0 0
    %281 = vmatpush1.bf16.msra.mxu0 %v235
    %282 = vmatprep.subr.bf16.mxu0 0
    %283 = vmatpush1.bf16.msra.mxu0 %v236
    %284 = vmatprep.subr.bf16.mxu0 0
    %285 = vmatpush1.bf16.msra.mxu0 %v237
    %286 = vmatprep.subr.bf16.mxu0 0
    %287 = vmatpush1.bf16.msra.mxu0 %v238
    %288 = vmatprep.subr.bf16.mxu0 0
    %289 = vmatpush1.bf16.msra.mxu0 %v239
    %290 = vmatprep.subr.bf16.mxu0 0
    %291 = vmatpush1.bf16.msra.mxu0 %v240
    %292 = vmatprep.subr.bf16.mxu0 0
    %293 = vmatpush1.bf16.msra.mxu0 %v241
    %294 = vmatprep.subr.bf16.mxu0 0
    %295 = vmatpush1.bf16.msra.mxu0 0
    %296 = vmatprep.subr.bf16.mxu0 0
    %297 = vmatpush1.bf16.msra.mxu0 0
    %298 = vmatprep.subr.bf16.mxu0 0
    %299 = vmatpush1.bf16.msra.mxu0 0
    %300 = vmatprep.subr.bf16.mxu0 0
    %301 = vmatpush1.bf16.msra.mxu0 0
    %302 = vmatprep.subr.bf16.mxu0 0
    %303 = vmatpush1.bf16.msra.mxu0 0
    %304 = vmatprep.subr.bf16.mxu0 0
    %305 = vmatpush1.bf16.msra.mxu0 0
    %306 = vmatprep.subr.bf16.mxu0 0
    %307 = vmatpush1.bf16.msra.mxu0 0
    %308 = vmatprep.mubr.bf16.mxu0 %v253
    %309 = vmatmul.mubr.bf16.gmra.mrb[0].mxu0 %v173
    %v310 = vpop.f32.mrb[0].mxu0
    %v311 = vadd.f32 %v123, %v310
    %v312 = vpop.f32.mrb[0].mxu0
    %v313 = vpop.f32.mrb[0].mxu0
    %v314 = vadd.f32 %v123, %v313
    %v315 = vpop.f32.mrb[0].mxu0
    %316 = vmatprep.mubr.bf16.mxu0 %v256
    %317 = vmatmul.mubr.bf16.gmra.mrb[0].mxu0 %v175
    %v318 = vpop.f32.mrb[0].mxu0
    %v319 = vadd.f32 %v123, %v318
    %v320 = vpop.f32.mrb[0].mxu0
    %v321 = vpop.f32.mrb[0].mxu0
    %v322 = vadd.f32 %v123, %v321
    %v323 = vpop.f32.mrb[0].mxu0
    %324 = vmatprep.mubr.bf16.mxu0 %v259
    %325 = vmatmul.mubr.bf16.gmra.mrb[0].mxu0 %v177
    %v326 = vpop.f32.mrb[0].mxu0
    %v327 = vadd.f32 %v123, %v326
    %v328 = vpop.f32.mrb[0].mxu0
    %v329 = vpop.f32.mrb[0].mxu0
    %v330 = vadd.f32 %v123, %v329
    %v331 = vpop.f32.mrb[0].mxu0
    %332 = vmatprep.mubr.bf16.mxu0 %v262
    %333 = vmatmul.mubr.bf16.gmra.mrb[0].mxu0 %v179
    %v334 = vpop.f32.mrb[0].mxu0
    %v335 = vadd.f32 %v123, %v334
    %v336 = vpop.f32.mrb[0].mxu0
    %v337 = vpop.f32.mrb[0].mxu0
    %v338 = vadd.f32 %v123, %v337
    %v339 = vpop.f32.mrb[0].mxu0
    %340 = vmatprep.mubr.bf16.mxu0 %v265
    %341 = vmatmul.mubr.bf16.gmra.mrb[0].mxu0 %v181
    %v342 = vpop.f32.mrb[0].mxu0
    %v343 = vadd.f32 %v123, %v342
    %v344 = vpop.f32.mrb[0].mxu0
    %v345 = vpop.f32.mrb[0].mxu0
    %v346 = vadd.f32 %v123, %v345
    %v347 = vpop.f32.mrb[0].mxu0
    %348 = vmatprep.mubr.bf16.mxu0 %v268
    %349 = vmatmul.mubr.bf16.gmra.mrb[0].mxu0 %v183
    %v350 = vpop.f32.mrb[0].mxu0
    %v351 = vadd.f32 %v123, %v350
    %v352 = vpop.f32.mrb[0].mxu0
    %v353 = vpop.f32.mrb[0].mxu0
    %v354 = vadd.f32 %v123, %v353
    %v355 = vpop.f32.mrb[0].mxu0
    %356 = vmatprep.mubr.bf16.mxu0 %v271
    %357 = vmatmul.mubr.bf16.gmra.mrb[0].mxu0 %v185
    %v358 = vpop.f32.mrb[0].mxu0
    %v359 = vadd.f32 %v123, %v358
    %v360 = vpop.f32.mrb[0].mxu0
    %v361 = vpop.f32.mrb[0].mxu0
    %v362 = vadd.f32 %v123, %v361
    %v363 = vpop.f32.mrb[0].mxu0
    %364 = vmatprep.mubr.bf16.mxu0 %v274
    %365 = vmatmul.mubr.bf16.gmra.mrb[0].mxu0 %v187
    %v366 = vpop.f32.mrb[0].mxu0
    %v367 = vadd.f32 %v123, %v366
    %v368 = vpop.f32.mrb[0].mxu0
    %v369 = vpop.f32.mrb[0].mxu0
    %v370 = vadd.f32 %v123, %v369
    %v371 = vpop.f32.mrb[0].mxu0
    %372 = vdwg.mxu0
    %v373 = vmax.f32 %v311, 0.0
    %v374 = vmax.f32 %v314, 0.0
    %v375 = vmax.f32 %v319, 0.0
    %v376 = vmax.f32 %v322, 0.0
    %v377 = vmax.f32 %v327, 0.0
    %v378 = vmax.f32 %v330, 0.0
    %v379 = vmax.f32 %v335, 0.0
    %v380 = vmax.f32 %v338, 0.0
    %v381 = vmax.f32 %v343, 0.0
    %v382 = vmax.f32 %v346, 0.0
    %v383 = vmax.f32 %v351, 0.0
    %v384 = vmax.f32 %v354, 0.0
    %v385 = vmax.f32 %v359, 0.0
    %v386 = vmax.f32 %v362, 0.0
    %v387 = vmax.f32 %v367, 0.0
    %v388 = vmax.f32 %v370, 0.0
    %v389 = vld [vmem:[#allocation8] sm:$0x1]
    %v391 = vlaneseq
    %v392 = vshrl.u32 %v391, 7
    %v393 = vsub.s32 0, %v392
    %v394 = vrot.slane %v389, %v393
    %v396 = vmul.f32 %v373, %v394
    %v397 = vmul.f32 %v374, %v394
    %v398 = vmul.f32 %v375, %v394
    %v399 = vmul.f32 %v376, %v394
    %v400 = vmul.f32 %v377, %v394
    %v401 = vmul.f32 %v378, %v394
    %v402 = vmul.f32 %v379, %v394
    %v403 = vmul.f32 %v380, %v394
    %v404 = vmul.f32 %v381, %v394
    %v405 = vmul.f32 %v382, %v394
    %v406 = vmul.f32 %v383, %v394
    %v407 = vmul.f32 %v384, %v394
    %v408 = vmul.f32 %v385, %v394
    %v409 = vmul.f32 %v386, %v394
    %v410 = vmul.f32 %v387, %v394
    %v411 = vmul.f32 %v388, %v394
    %v412 = vld [vmem:[#allocation10] sm:$0x1]
    %v414 = vlaneseq
    %v415 = vshrl.u32 %v414, 7
    %v416 = vsub.s32 0, %v415
    %v417 = vrot.slane %v412, %v416
    %v419 = vadd.f32 %v396, %v417
    %v420 = vadd.f32 %v397, %v417
    %v421 = vadd.f32 %v398, %v417
    %v422 = vadd.f32 %v399, %v417
    %v423 = vadd.f32 %v400, %v417
    %v424 = vadd.f32 %v401, %v417
    %v425 = vadd.f32 %v402, %v417
    %v426 = vadd.f32 %v403, %v417
    %v427 = vadd.f32 %v404, %v417
    %v428 = vadd.f32 %v405, %v417
    %v429 = vadd.f32 %v406, %v417
    %v430 = vadd.f32 %v407, %v417
    %v431 = vadd.f32 %v408, %v417
    %v432 = vadd.f32 %v409, %v417
    %v433 = vadd.f32 %v410, %v417
    %v434 = vadd.f32 %v411, %v417
    %v435 = vpack.c.bf16 %v420, %v419
    %v436 = vpack.c.bf16 %v422, %v421
    %v437 = vpack.c.bf16 %v424, %v423
    %v438 = vpack.c.bf16 %v426, %v425
    %v439 = vpack.c.bf16 %v428, %v427
    %v440 = vpack.c.bf16 %v430, %v429
    %v441 = vpack.c.bf16 %v432, %v431
    %v442 = vpack.c.bf16 %v434, %v433
    %v451 = vunpack.c.l.b16 %v435
    %v452 = vunpack.c.h.b16 %v435
    %v453 = vunpack.c.l.b16 %v436
    %v454 = vunpack.c.h.b16 %v436
    %v455 = vunpack.c.l.b16 %v437
    %v456 = vunpack.c.h.b16 %v437
    %v457 = vunpack.c.l.b16 %v438
    %v458 = vunpack.c.h.b16 %v438
    %v459 = vunpack.c.l.b16 %v439
    %v460 = vunpack.c.h.b16 %v439
    %v461 = vunpack.c.l.b16 %v440
    %v462 = vunpack.c.h.b16 %v440
    %v463 = vunpack.c.l.b16 %v441
    %v464 = vunpack.c.h.b16 %v441
    %v465 = vunpack.c.l.b16 %v442
    %v466 = vunpack.c.h.b16 %v442
    %v467 = vpack.c.b16 %v451, %v451
    %v468 = vpack.c.b16 %v452, %v452
    %v469 = vpack.c.b16 %v453, %v453
    %v470 = vpack.c.b16 %v454, %v454
    %v471 = vpack.c.b16 %v455, %v455
    %v472 = vpack.c.b16 %v456, %v456
    %v473 = vpack.c.b16 %v457, %v457
    %v474 = vpack.c.b16 %v458, %v458
    %v475 = vpack.c.b16 %v459, %v459
    %v476 = vpack.c.b16 %v460, %v460
    %v477 = vpack.c.b16 %v461, %v461
    %v478 = vpack.c.b16 %v462, %v462
    %v479 = vpack.c.b16 %v463, %v463
    %v480 = vpack.c.b16 %v464, %v464
    %v481 = vpack.c.b16 %v465, %v465
    %v482 = vpack.c.b16 %v466, %v466
    %vm499 = vcmask 125952
    %500 = vst.msk [vmem:[#allocation11] sm:$0xf] %vm499, %v467
    %501 = vst.msk [vmem:[#allocation11 + $0x4] sm:$0xf] %vm499, %v468
    %502 = vst.msk [vmem:[#allocation11 + $0x8] sm:$0xf] %vm499, %v469
    %503 = vst.msk [vmem:[#allocation11 + $0xc] sm:$0xf] %vm499, %v470
    %504 = vst.msk [vmem:[#allocation11 + $0x10] sm:$0xf] %vm499, %v471
    %505 = vst.msk [vmem:[#allocation11 + $0x14] sm:$0xf] %vm499, %v472
    %506 = vst.msk [vmem:[#allocation11 + $0x18] sm:$0xf] %vm499, %v473
    %507 = vst.msk [vmem:[#allocation11 + $0x1c] sm:$0xf] %vm499, %v474
    %508 = vst.msk [vmem:[#allocation11 + $0x20] sm:$0xf] %vm499, %v475
    %509 = vst.msk [vmem:[#allocation11 + $0x24] sm:$0xf] %vm499, %v476
    %510 = vst.msk [vmem:[#allocation11 + $0x28] sm:$0xf] %vm499, %v477
    %511 = vst.msk [vmem:[#allocation11 + $0x2c] sm:$0xf] %vm499, %v478
    %512 = vst.msk [vmem:[#allocation11 + $0x30] sm:$0xf] %vm499, %v479
    %513 = vst.msk [vmem:[#allocation11 + $0x34] sm:$0xf] %vm499, %v480
    %514 = vst.msk [vmem:[#allocation11 + $0x38] sm:$0xf] %vm499, %v481
    %515 = vst.msk [vmem:[#allocation11 + $0x3c] sm:$0xf] %vm499, %v482
    // Predicated region
    $region42: #{unet_forward.20} parent=1 // pred_check
      _
    $region43: #{unet_forward.20} parent=1 // pred_check_branch
      %517 = sbr.rel (0) target = $region45
    $region44: #{unet_forward.20} parent=1 // pred_region
      %s519 = ssub.s32 1024, 1024
      %520 = vsyncadd [#allocation4], %s519
      %s521 = sshll.u32 [#allocation11], 4
      %s522 = int_to_ptr.vmem [resolvable:$true] %s521
      %527 = dma.vmem_to_hbm [thread:$0]  %s522, 1024, %s5, [#allocation4], 64, 64, 4
    $region45: #{unet_forward.20} parent=1 // pred_fallthru
      _
    // Predicated region
    $region46: #{unet_forward.20} parent=1 // pred_check
      _
    $region47: #{unet_forward.20} parent=1 // pred_check_branch
      %529 = sbr.rel (0) target = $region49
    $region48: #{unet_forward.20} parent=1 // pred_region
      %530 = dma.done [#allocation4], 1024
    $region49: #{unet_forward.20} parent=1 // pred_fallthru
      _
    %531 = vsyncpa [#allocation3], 1
    %532 = vsyncpa [#allocation6], 1
    %533 = vsyncpa [#allocation9], 1
    %534 = vsyncpa [#allocation4], 1

// kernel: unet_forward.21
$region0: #{unet_forward.21}
  #allocation0 [shape = 'u32[]', space=smem, size = 0x4, offset = 0x4, fixed_abs, tag = 'smem constant byte address 0x4 - core index']
  #allocation1 [shape = 'u32[144,128]{1,0:T(1,128)}', space=vmem, size = 0x12000, scoped, tag = 'internal scratch']
  %s0 = inlined_call_operand.hbm [shape: bf16[32,144], index: 0, kind: input, shape index: {}]
  %s1 = inlined_call_operand.hbm [shape: bf16[144,32], index: 1, kind: input, shape index: {}]
  %s2 = inlined_call_operand.hbm [shape: f32[1,32], index: 2, kind: input, shape index: {}]
  %s3 = inlined_call_operand.hbm [shape: f32[1,32], index: 3, kind: input, shape index: {}]
  %s4 = inlined_call_operand.hbm [shape: f32[1,32], index: 4, kind: input, shape index: {}]
  %s5 = inlined_call_operand.hbm [shape: bf16[32,32], index: 5, kind: output, shape index: {}]
  %s6 = sld [smem:[#allocation0]]
  $region50: #{unet_forward.21} parent=0
    _
  %s8 = ssub.s32 1, %s6
  %s9 = scalar_select 0, %s8, %s6
  $region1: #{unet_forward.21} parent=0
    #allocation2 [shape = 'u8[16384]{0}', space=vmem, size = 0x4000, scoped, tag = 'input window, operand 0, single buffered']
    #allocation3 [shape = 's32[1]{0}', space=sflag, size = 0x4, scoped, tag = 'scoped memory for unet_forward.21']
    #allocation4 [shape = 's32[1]{0}', space=sflag, size = 0x4, scoped, tag = 'scoped memory for unet_forward.21']
    #allocation5 [shape = 'u8[36864]{0}', space=vmem, size = 0x9000, scoped, tag = 'input window, operand 1, single buffered']
    #allocation6 [shape = 's32[1]{0}', space=sflag, size = 0x4, scoped, tag = 'scoped memory for unet_forward.21']
    #allocation7 [shape = 'u8[512]{0}', space=vmem, size = 0x400, scoped, tag = 'input window, operand 2, single buffered']
    #allocation8 [shape = 'u8[512]{0}', space=vmem, size = 0x400, scoped, tag = 'input window, operand 3, single buffered']
    #allocation9 [shape = 's32[1]{0}', space=sflag, size = 0x4, scoped, tag = 'scoped memory for unet_forward.21']
    #allocation10 [shape = 'u8[512]{0}', space=vmem, size = 0x400, scoped, tag = 'input window, operand 4, single buffered']
    #allocation11 [shape = 'u8[8192]{0}', space=vmem, size = 0x2000, scoped, tag = 'output window, operand 0, single buffered']
    %10 = vsyncpa [#allocation3], 0
    %11 = vsyncpa [#allocation6], 0
    %12 = vsyncpa [#allocation9], 0
    %13 = vsyncpa [#allocation4], 0
    // Predicated region
    $region2: #{unet_forward.21} parent=1 // pred_check
      _
    $region3: #{unet_forward.21} parent=1 // pred_check_branch
      %15 = sbr.rel (0) target = $region5
    $region4: #{unet_forward.21} parent=1 // pred_region
      %s17 = ssub.s32 512, 512
      %18 = vsyncadd [#allocation3], %s17
      %s19 = sshll.u32 [#allocation2], 4
      %s20 = int_to_ptr.vmem [resolvable:$true] %s19
      %25 = dma.hbm_to_vmem [thread:$0]  %s0, 512, %s20, [#allocation3], 128, 128, 8
    $region5: #{unet_forward.21} parent=1 // pred_fallthru
      _
    // Predicated region
    $region6: #{unet_forward.21} parent=1 // pred_check
      _
    $region7: #{unet_forward.21} parent=1 // pred_check_branch
      %27 = sbr.rel (0) target = $region9
    $region8: #{unet_forward.21} parent=1 // pred_region
      %s29 = ssub.s32 1152, 1152
      %30 = vsyncadd [#allocation6], %s29
      %s31 = sshll.u32 [#allocation5], 4
      %s32 = int_to_ptr.vmem [resolvable:$true] %s31
      %37 = dma.hbm_to_vmem [thread:$0]  %s1, 1152, %s32, [#allocation6], 64, 64, 4
    $region9: #{unet_forward.21} parent=1 // pred_fallthru
      _
    // Predicated region
    $region10: #{unet_forward.21} parent=1 // pred_check
      _
    $region11: #{unet_forward.21} parent=1 // pred_check_branch
      %39 = sbr.rel (0) target = $region13
    $region12: #{unet_forward.21} parent=1 // pred_region
      %s41 = ssub.s32 16, 16
      %42 = vsyncadd [#allocation6], %s41
      %s44 = sshll.u32 [#allocation7], 4
      %s45 = int_to_ptr.vmem [resolvable:$true] %s44
      %47 = dma.hbm_to_vmem [thread:$0]  %s2, 16, %s45, [#allocation6]
    $region13: #{unet_forward.21} parent=1 // pred_fallthru
      _
    // Predicated region
    $region14: #{unet_forward.21} parent=1 // pred_check
      _
    $region15: #{unet_forward.21} parent=1 // pred_check_branch
      %49 = sbr.rel (0) target = $region17
    $region16: #{unet_forward.21} parent=1 // pred_region
      %s51 = ssub.s32 16, 16
      %52 = vsyncadd [#allocation9], %s51
      %s54 = sshll.u32 [#allocation8], 4
      %s55 = int_to_ptr.vmem [resolvable:$true] %s54
      %57 = dma.hbm_to_vmem [thread:$0]  %s3, 16, %s55, [#allocation9]
    $region17: #{unet_forward.21} parent=1 // pred_fallthru
      _
    // Predicated region
    $region18: #{unet_forward.21} parent=1 // pred_check
      _
    $region19: #{unet_forward.21} parent=1 // pred_check_branch
      %59 = sbr.rel (0) target = $region21
    $region20: #{unet_forward.21} parent=1 // pred_region
      %s61 = ssub.s32 16, 16
      %62 = vsyncadd [#allocation9], %s61
      %s64 = sshll.u32 [#allocation10], 4
      %s65 = int_to_ptr.vmem [resolvable:$true] %s64
      %67 = dma.hbm_to_vmem [thread:$0]  %s4, 16, %s65, [#allocation9]
    $region21: #{unet_forward.21} parent=1 // pred_fallthru
      _
    // Predicated region
    $region22: #{unet_forward.21} parent=1 // pred_check
      _
    $region23: #{unet_forward.21} parent=1 // pred_check_branch
      %69 = sbr.rel (0) target = $region25
    $region24: #{unet_forward.21} parent=1 // pred_region
      %70 = dma.done [#allocation3], 512
    $region25: #{unet_forward.21} parent=1 // pred_fallthru
      _
    // Predicated region
    $region26: #{unet_forward.21} parent=1 // pred_check
      _
    $region27: #{unet_forward.21} parent=1 // pred_check_branch
      %72 = sbr.rel (0) target = $region29
    $region28: #{unet_forward.21} parent=1 // pred_region
      %73 = dma.done [#allocation6], 1152
    $region29: #{unet_forward.21} parent=1 // pred_fallthru
      _
    // Predicated region
    $region30: #{unet_forward.21} parent=1 // pred_check
      _
    $region31: #{unet_forward.21} parent=1 // pred_check_branch
      %75 = sbr.rel (0) target = $region33
    $region32: #{unet_forward.21} parent=1 // pred_region
      %76 = dma.done [#allocation6], 16
    $region33: #{unet_forward.21} parent=1 // pred_fallthru
      _
    // Predicated region
    $region34: #{unet_forward.21} parent=1 // pred_check
      _
    $region35: #{unet_forward.21} parent=1 // pred_check_branch
      %78 = sbr.rel (0) target = $region37
    $region36: #{unet_forward.21} parent=1 // pred_region
      %79 = dma.done [#allocation9], 16
    $region37: #{unet_forward.21} parent=1 // pred_fallthru
      _
    // Predicated region
    $region38: #{unet_forward.21} parent=1 // pred_check
      _
    $region39: #{unet_forward.21} parent=1 // pred_check_branch
      %81 = sbr.rel (0) target = $region41
    $region40: #{unet_forward.21} parent=1 // pred_region
      %82 = dma.done [#allocation9], 16
    $region41: #{unet_forward.21} parent=1 // pred_fallthru
      _
    %v84 = vld [vmem:[#allocation2] sm:$0xff]
    %v85 = vld [vmem:[#allocation2 + $0x8] sm:$0xff]
    %v86 = vld [vmem:[#allocation2 + $0x10] sm:$0xff]
    %v87 = vld [vmem:[#allocation2 + $0x18] sm:$0xff]
    %v88 = vld [vmem:[#allocation5] sm:$0xf]
    %v89 = vld [vmem:[#allocation5 + $0x4] sm:$0xf]
    %v90 = vld [vmem:[#allocation5 + $0x8] sm:$0xf]
    %v91 = vld [vmem:[#allocation5 + $0xc] sm:$0xf]
    %v92 = vld [vmem:[#allocation5 + $0x10] sm:$0xf]
    %v93 = vld [vmem:[#allocation5 + $0x14] sm:$0xf]
    %v94 = vld [vmem:[#allocation5 + $0x18] sm:$0xf]
    %v95 = vld [vmem:[#allocation5 + $0x1c] sm:$0xf]
    %v96 = vld [vmem:[#allocation5 + $0x20] sm:$0xf]
    %v97 = vld [vmem:[#allocation5 + $0x24] sm:$0xf]
    %v98 = vld [vmem:[#allocation5 + $0x28] sm:$0xf]
    %v99 = vld [vmem:[#allocation5 + $0x2c] sm:$0xf]
    %v100 = vld [vmem:[#allocation5 + $0x30] sm:$0xf]
    %v101 = vld [vmem:[#allocation5 + $0x34] sm:$0xf]
    %v102 = vld [vmem:[#allocation5 + $0x38] sm:$0xf]
    %v103 = vld [vmem:[#allocation5 + $0x3c] sm:$0xf]
    %v104 = vld [vmem:[#allocation5 + $0x40] sm:$0xf]
    %v105 = vld [vmem:[#allocation5 + $0x44] sm:$0xf]
    %v106 = vld [vmem:[#allocation7] sm:$0x1]
    %v108 = vlaneseq
    %v109 = vshrl.u32 %v108, 7
    %v110 = vsub.s32 0, %v109
    %v111 = vrot.slane %v106, %v110
    %v117 = vunpack.c.l.b16 %v84
    %v118 = vunpack.c.h.b16 %v84
    %v119 = vunpack.c.l.b16 %v85
    %v120 = vunpack.c.h.b16 %v85
    %v121 = vunpack.c.l.b16 %v86
    %v122 = vunpack.c.h.b16 %v86
    %v123 = vunpack.c.l.b16 %v87
    %v124 = vunpack.c.h.b16 %v87
    %v125 = vpack.c.b16 %v119, %v117
    %v126 = vpack.c.b16 %v120, %v118
    %v127 = vpack.c.b16 %v123, %v121
    %v128 = vpack.c.b16 %v124, %v122
    %v149 = vunpack.c.l.b16 %v88
    %v150 = vunpack.c.l.b16 %v89
    %v151 = vunpack.c.l.b16 %v90
    %v152 = vunpack.c.l.b16 %v91
    %v153 = vunpack.c.l.b16 %v92
    %v154 = vunpack.c.l.b16 %v93
    %v155 = vunpack.c.l.b16 %v94
    %v156 = vunpack.c.l.b16 %v95
    %v157 = vunpack.c.l.b16 %v96
    %v158 = vunpack.c.l.b16 %v97
    %v159 = vunpack.c.l.b16 %v98
    %v160 = vunpack.c.l.b16 %v99
    %v161 = vunpack.c.l.b16 %v100
    %v162 = vunpack.c.l.b16 %v101
    %v163 = vunpack.c.l.b16 %v102
    %v164 = vunpack.c.l.b16 %v103
    %v165 = vunpack.c.l.b16 %v104
    %v166 = vunpack.c.l.b16 %v105
    %v167 = vpack.c.b16 %v150, %v149
    %v168 = vpack.c.b16 %v152, %v151
    %v169 = vpack.c.b16 %v154, %v153
    %v170 = vpack.c.b16 %v156, %v155
    %v171 = vpack.c.b16 %v158, %v157
    %v172 = vpack.c.b16 %v160, %v159
    %v173 = vpack.c.b16 %v162, %v161
    %v174 = vpack.c.b16 %v164, %v163
    %v175 = vpack.c.b16 %v166, %v165
    %vm185 = vcmask 130048
    %v187 = vsel %vm185, %v126, 0
    %v190 = vsel %vm185, %v128, 0
    %192 = vmatprep.subr.bf16.mxu0 0
    %193 = vmatpush1.bf16.msra.mxu0 %v167
    %194 = vmatprep.subr.bf16.mxu0 0
    %195 = vmatpush1.bf16.msra.mxu0 %v168
    %196 = vmatprep.subr.bf16.mxu0 0
    %197 = vmatpush1.bf16.msra.mxu0 %v169
    %198 = vmatprep.subr.bf16.mxu0 0
    %199 = vmatpush1.bf16.msra.mxu0 %v170
    %200 = vmatprep.subr.bf16.mxu0 0
    %201 = vmatpush1.bf16.msra.mxu0 %v171
    %202 = vmatprep.subr.bf16.mxu0 0
    %203 = vmatpush1.bf16.msra.mxu0 %v172
    %204 = vmatprep.subr.bf16.mxu0 0
    %205 = vmatpush1.bf16.msra.mxu0 %v173
    %206 = vmatprep.subr.bf16.mxu0 0
    %207 = vmatpush1.bf16.msra.mxu0 %v174
    %208 = vmatprep.subr.bf16.mxu0 0
    %209 = vmatpush1.bf16.msra.mxu0 %v175
    %210 = vmatprep.subr.bf16.mxu0 0
    %211 = vmatpush1.bf16.msra.mxu0 0
    %212 = vmatprep.subr.bf16.mxu0 0
    %213 = vmatpush1.bf16.msra.mxu0 0
    %214 = vmatprep.subr.bf16.mxu0 0
    %215 = vmatpush1.bf16.msra.mxu0 0
    %216 = vmatprep.subr.bf16.mxu0 0
    %217 = vmatpush1.bf16.msra.mxu0 0
    %218 = vmatprep.subr.bf16.mxu0 0
    %219 = vmatpush1.bf16.msra.mxu0 0
    %220 = vmatprep.subr.bf16.mxu0 0
    %221 = vmatpush1.bf16.msra.mxu0 0
    %222 = vmatprep.subr.bf16.mxu0 0
    %223 = vmatpush1.bf16.msra.mxu0 0
    %224 = vmatprep.mubr.bf16.mxu0 %v187
    %225 = vmatmul.mubr.bf16.gmra.mrb[0].mxu0 %v125
    %v226 = vpop.f32.mrb[0].mxu0
    %v227 = vadd.f32 %v111, %v226
    %v228 = vpop.f32.mrb[0].mxu0
    %v229 = vpop.f32.mrb[0].mxu0
    %v230 = vadd.f32 %v111, %v229
    %v231 = vpop.f32.mrb[0].mxu0
    %232 = vmatprep.mubr.bf16.mxu0 %v190
    %233 = vmatmul.mubr.bf16.gmra.mrb[0].mxu0 %v127
    %v234 = vpop.f32.mrb[0].mxu0
    %v235 = vadd.f32 %v111, %v234
    %v236 = vpop.f32.mrb[0].mxu0
    %v237 = vpop.f32.mrb[0].mxu0
    %v238 = vadd.f32 %v111, %v237
    %v239 = vpop.f32.mrb[0].mxu0
    %240 = vdwg.mxu0
    %v241 = vmax.f32 %v227, 0.0
    %v242 = vmax.f32 %v230, 0.0
    %v243 = vmax.f32 %v235, 0.0
    %v244 = vmax.f32 %v238, 0.0
    %v245 = vld [vmem:[#allocation8] sm:$0x1]
    %v247 = vlaneseq
    %v248 = vshrl.u32 %v247, 7
    %v249 = vsub.s32 0, %v248
    %v250 = vrot.slane %v245, %v249
    %v252 = vmul.f32 %v241, %v250
    %v253 = vmul.f32 %v242, %v250
    %v254 = vmul.f32 %v243, %v250
    %v255 = vmul.f32 %v244, %v250
    %v256 = vld [vmem:[#allocation10] sm:$0x1]
    %v258 = vlaneseq
    %v259 = vshrl.u32 %v258, 7
    %v260 = vsub.s32 0, %v259
    %v261 = vrot.slane %v256, %v260
    %v263 = vadd.f32 %v252, %v261
    %v264 = vadd.f32 %v253, %v261
    %v265 = vadd.f32 %v254, %v261
    %v266 = vadd.f32 %v255, %v261
    %v267 = vpack.c.bf16 %v264, %v263
    %v268 = vpack.c.bf16 %v266, %v265
    %v271 = vunpack.c.l.b16 %v267
    %v272 = vunpack.c.h.b16 %v267
    %v273 = vunpack.c.l.b16 %v268
    %v274 = vunpack.c.h.b16 %v268
    %v275 = vpack.c.b16 %v271, %v271
    %v276 = vpack.c.b16 %v272, %v272
    %v277 = vpack.c.b16 %v273, %v273
    %v278 = vpack.c.b16 %v274, %v274
    %vm283 = vcmask 257024
    %284 = vst.msk [vmem:[#allocation11] sm:$0xf] %vm283, %v275
    %285 = vst.msk [vmem:[#allocation11 + $0x4] sm:$0xf] %vm283, %v276
    %286 = vst.msk [vmem:[#allocation11 + $0x8] sm:$0xf] %vm283, %v277
    %287 = vst.msk [vmem:[#allocation11 + $0xc] sm:$0xf] %vm283, %v278
    // Predicated region
    $region42: #{unet_forward.21} parent=1 // pred_check
      _
    $region43: #{unet_forward.21} parent=1 // pred_check_branch
      %289 = sbr.rel (0) target = $region45
    $region44: #{unet_forward.21} parent=1 // pred_region
      %s291 = ssub.s32 256, 256
      %292 = vsyncadd [#allocation4], %s291
      %s293 = sshll.u32 [#allocation11], 4
      %s294 = int_to_ptr.vmem [resolvable:$true] %s293
      %299 = dma.vmem_to_hbm [thread:$0]  %s294, 256, %s5, [#allocation4], 64, 64, 4
    $region45: #{unet_forward.21} parent=1 // pred_fallthru
      _
    // Predicated region
    $region46: #{unet_forward.21} parent=1 // pred_check
      _
    $region47: #{unet_forward.21} parent=1 // pred_check_branch
      %301 = sbr.rel (0) target = $region49
    $region48: #{unet_forward.21} parent=1 // pred_region
      %302 = dma.done [#allocation4], 256
    $region49: #{unet_forward.21} parent=1 // pred_fallthru
      _
    %303 = vsyncpa [#allocation3], 1
    %304 = vsyncpa [#allocation6], 1
    %305 = vsyncpa [#allocation9], 1
    %306 = vsyncpa [#allocation4], 1

// kernel: tile.18
$region0: #{tile.18}
  #allocation0 [shape = 's32[1]{0}', space=sflag, size = 0x4, scoped, tag = 'scoped memory for tile.18']
  %s0 = inlined_call_operand.vmem [shape: f32[32], index: 0, kind: input, shape index: {}]
  %s1 = inlined_call_operand.vmem [shape: f32[4,32], index: 1, kind: output, shape index: {}]
  // Predicated region
  $region2: #{tile.18} parent=0 // pred_check
    _
  $region3: #{tile.18} parent=0 // pred_check_branch
    %3 = sbr.rel (0) target = $region5
  $region4: #{tile.18} parent=0 // pred_region
    _
  $region5: #{tile.18} parent=0 // pred_fallthru
    _
  %v4 = vld [vmem:[%s0] ss:$0 sm:$0xff]
  %5 = vst [vmem:[%s1] sm:$0xf] %v4

// kernel: tile.19
$region0: #{tile.19}
  %s0 = inlined_call_operand.vmem [shape: f32[4,32], index: 0, kind: input, shape index: {}]
  %s1 = inlined_call_operand.hbm [shape: f32[1,128], index: 1, kind: output, shape index: {}]
  $region1: #{tile.19} parent=0
    #allocation0 [shape = 'u8[512]{0}', space=vmem, size = 0x400, scoped, tag = 'operand span for operand 1']
    #allocation1 [shape = 's32[1]{0}', space=sflag, size = 0x4, scoped, tag = 'scoped memory for tile.19']
    #allocation2 [shape = 'u8[4096]{0}', space=vmem, size = 0x1000, scoped, tag = 'scoped mem for output reshape']
    #allocation3 [shape = 'u8[4096]{0}', space=vmem, size = 0x1000, scoped, tag = 'scoped mem for input reshape']
    %2 = vsyncpa [#allocation1], 0
    %s4 = sshllo.u32 0, 4
    %v5 = vld [vmem:[%s0] sm:%s4]
    %6 = vst [vmem:[#allocation3] sm:%s4] %v5
    %v7 = vld [vmem:[#allocation3] sm:$0x1]
    %vm8 = vcmask 261120
    %9 = vst.msk [vmem:[#allocation2] sm:$0x1] %vm8, %v7
    %s10 = scalar_lea.vmem [#allocation3], 3
    %v11 = vld [vmem:[%s10] sm:$0x1]
    %12 = vrot.lane.b32.xlu0 %v11, 96
    %v13 = vpop.permute.xlu0 %12
    %vm14 = vcmask 1048320
    %15 = vst.msk [vmem:[#allocation2] sm:$0x1] %vm14, %v13
    %s16 = scalar_lea.vmem [#allocation3], 2
    %v17 = vld [vmem:[%s16] sm:$0x1]
    %18 = vrot.lane.b32.xlu0 %v17, 64
    %v19 = vpop.permute.xlu0 %18
    %vm20 = vcmask 785920
    %21 = vst.msk [vmem:[#allocation2] sm:$0x1] %vm20, %v19
    %s22 = scalar_lea.vmem [#allocation3], 1
    %v23 = vld [vmem:[%s22] sm:$0x1]
    %24 = vrot.lane.b32.xlu0 %v23, 32
    %v25 = vpop.permute.xlu0 %24
    %vm26 = vcmask 523520
    %27 = vst.msk [vmem:[#allocation2] sm:$0x1] %vm26, %v25
    %s29 = sshllo.u32 0, 1
    %v31 = vld [vmem:[#allocation2] sm:%s29]
    %s32 = sshllo.u32 0, 1
    %33 = vst [vmem:[#allocation0] sm:%s32] %v31
    %s35 = ssub.s32 16, 16
    %36 = vsyncadd [#allocation1], %s35
    %s38 = sshll.u32 [#allocation0], 4
    %s39 = int_to_ptr.vmem [resolvable:$true] %s38
    %41 = dma.vmem_to_hbm [thread:$0]  %s39, 16, %s1, [#allocation1]
    %42 = dma.done [#allocation1], 16
    %43 = vsyncpa [#allocation1], 1

// kernel: unet_forward.22
$region0: #{unet_forward.22}
  #allocation0 [shape = 'u32[]', space=smem, size = 0x4, offset = 0x4, fixed_abs, tag = 'smem constant byte address 0x4 - core index']
  #allocation1 [shape = 'u32[144,128]{1,0:T(1,128)}', space=vmem, size = 0x12000, scoped, tag = 'internal scratch']
  %s0 = inlined_call_operand.hbm [shape: bf16[32,288], index: 0, kind: input, shape index: {}]
  %s1 = inlined_call_operand.hbm [shape: bf16[288,32], index: 1, kind: input, shape index: {}]
  %s2 = inlined_call_operand.hbm [shape: f32[1,32], index: 2, kind: input, shape index: {}]
  %s3 = inlined_call_operand.hbm [shape: f32[1,32], index: 3, kind: input, shape index: {}]
  %s4 = inlined_call_operand.hbm [shape: f32[1,32], index: 4, kind: input, shape index: {}]
  %s5 = inlined_call_operand.hbm [shape: bf16[32,32], index: 5, kind: output, shape index: {}]
  %s6 = sld [smem:[#allocation0]]
  $region50: #{unet_forward.22} parent=0
    _
  %s8 = ssub.s32 1, %s6
  %s9 = scalar_select 0, %s8, %s6
  $region1: #{unet_forward.22} parent=0
    #allocation2 [shape = 'u8[24576]{0}', space=vmem, size = 0x6000, scoped, tag = 'input window, operand 0, single buffered']
    #allocation3 [shape = 's32[1]{0}', space=sflag, size = 0x4, scoped, tag = 'scoped memory for unet_forward.22']
    #allocation4 [shape = 's32[1]{0}', space=sflag, size = 0x4, scoped, tag = 'scoped memory for unet_forward.22']
    #allocation5 [shape = 'u8[73728]{0}', space=vmem, size = 0x12000, scoped, tag = 'input window, operand 1, single buffered']
    #allocation6 [shape = 's32[1]{0}', space=sflag, size = 0x4, scoped, tag = 'scoped memory for unet_forward.22']
    #allocation7 [shape = 'u8[512]{0}', space=vmem, size = 0x400, scoped, tag = 'input window, operand 2, single buffered']
    #allocation8 [shape = 'u8[512]{0}', space=vmem, size = 0x400, scoped, tag = 'input window, operand 3, single buffered']
    #allocation9 [shape = 's32[1]{0}', space=sflag, size = 0x4, scoped, tag = 'scoped memory for unet_forward.22']
    #allocation10 [shape = 'u8[512]{0}', space=vmem, size = 0x400, scoped, tag = 'input window, operand 4, single buffered']
    #allocation11 [shape = 'u8[8192]{0}', space=vmem, size = 0x2000, scoped, tag = 'output window, operand 0, single buffered']
    %10 = vsyncpa [#allocation3], 0
    %11 = vsyncpa [#allocation6], 0
    %12 = vsyncpa [#allocation9], 0
    %13 = vsyncpa [#allocation4], 0
    // Predicated region
    $region2: #{unet_forward.22} parent=1 // pred_check
      _
    $region3: #{unet_forward.22} parent=1 // pred_check_branch
      %15 = sbr.rel (0) target = $region5
    $region4: #{unet_forward.22} parent=1 // pred_region
      %s17 = ssub.s32 768, 768
      %18 = vsyncadd [#allocation3], %s17
      %s19 = sshll.u32 [#allocation2], 4
      %s20 = int_to_ptr.vmem [resolvable:$true] %s19
      %25 = dma.hbm_to_vmem [thread:$0]  %s0, 768, %s20, [#allocation3], 192, 192, 12
    $region5: #{unet_forward.22} parent=1 // pred_fallthru
      _
    // Predicated region
    $region6: #{unet_forward.22} parent=1 // pred_check
      _
    $region7: #{unet_forward.22} parent=1 // pred_check_branch
      %27 = sbr.rel (0) target = $region9
    $region8: #{unet_forward.22} parent=1 // pred_region
      %s29 = ssub.s32 2304, 2304
      %30 = vsyncadd [#allocation6], %s29
      %s31 = sshll.u32 [#allocation5], 4
      %s32 = int_to_ptr.vmem [resolvable:$true] %s31
      %37 = dma.hbm_to_vmem [thread:$0]  %s1, 2304, %s32, [#allocation6], 64, 64, 4
    $region9: #{unet_forward.22} parent=1 // pred_fallthru
      _
    // Predicated region
    $region10: #{unet_forward.22} parent=1 // pred_check
      _
    $region11: #{unet_forward.22} parent=1 // pred_check_branch
      %39 = sbr.rel (0) target = $region13
    $region12: #{unet_forward.22} parent=1 // pred_region
      %s41 = ssub.s32 16, 16
      %42 = vsyncadd [#allocation6], %s41
      %s44 = sshll.u32 [#allocation7], 4
      %s45 = int_to_ptr.vmem [resolvable:$true] %s44
      %47 = dma.hbm_to_vmem [thread:$0]  %s2, 16, %s45, [#allocation6]
    $region13: #{unet_forward.22} parent=1 // pred_fallthru
      _
    // Predicated region
    $region14: #{unet_forward.22} parent=1 // pred_check
      _
    $region15: #{unet_forward.22} parent=1 // pred_check_branch
      %49 = sbr.rel (0) target = $region17
    $region16: #{unet_forward.22} parent=1 // pred_region
      %s51 = ssub.s32 16, 16
      %52 = vsyncadd [#allocation9], %s51
      %s54 = sshll.u32 [#allocation8], 4
      %s55 = int_to_ptr.vmem [resolvable:$true] %s54
      %57 = dma.hbm_to_vmem [thread:$0]  %s3, 16, %s55, [#allocation9]
    $region17: #{unet_forward.22} parent=1 // pred_fallthru
      _
    // Predicated region
    $region18: #{unet_forward.22} parent=1 // pred_check
      _
    $region19: #{unet_forward.22} parent=1 // pred_check_branch
      %59 = sbr.rel (0) target = $region21
    $region20: #{unet_forward.22} parent=1 // pred_region
      %s61 = ssub.s32 16, 16
      %62 = vsyncadd [#allocation9], %s61
      %s64 = sshll.u32 [#allocation10], 4
      %s65 = int_to_ptr.vmem [resolvable:$true] %s64
      %67 = dma.hbm_to_vmem [thread:$0]  %s4, 16, %s65, [#allocation9]
    $region21: #{unet_forward.22} parent=1 // pred_fallthru
      _
    // Predicated region
    $region22: #{unet_forward.22} parent=1 // pred_check
      _
    $region23: #{unet_forward.22} parent=1 // pred_check_branch
      %69 = sbr.rel (0) target = $region25
    $region24: #{unet_forward.22} parent=1 // pred_region
      %70 = dma.done [#allocation3], 768
    $region25: #{unet_forward.22} parent=1 // pred_fallthru
      _
    // Predicated region
    $region26: #{unet_forward.22} parent=1 // pred_check
      _
    $region27: #{unet_forward.22} parent=1 // pred_check_branch
      %72 = sbr.rel (0) target = $region29
    $region28: #{unet_forward.22} parent=1 // pred_region
      %73 = dma.done [#allocation6], 2304
    $region29: #{unet_forward.22} parent=1 // pred_fallthru
      _
    // Predicated region
    $region30: #{unet_forward.22} parent=1 // pred_check
      _
    $region31: #{unet_forward.22} parent=1 // pred_check_branch
      %75 = sbr.rel (0) target = $region33
    $region32: #{unet_forward.22} parent=1 // pred_region
      %76 = dma.done [#allocation6], 16
    $region33: #{unet_forward.22} parent=1 // pred_fallthru
      _
    // Predicated region
    $region34: #{unet_forward.22} parent=1 // pred_check
      _
    $region35: #{unet_forward.22} parent=1 // pred_check_branch
      %78 = sbr.rel (0) target = $region37
    $region36: #{unet_forward.22} parent=1 // pred_region
      %79 = dma.done [#allocation9], 16
    $region37: #{unet_forward.22} parent=1 // pred_fallthru
      _
    // Predicated region
    $region38: #{unet_forward.22} parent=1 // pred_check
      _
    $region39: #{unet_forward.22} parent=1 // pred_check_branch
      %81 = sbr.rel (0) target = $region41
    $region40: #{unet_forward.22} parent=1 // pred_region
      %82 = dma.done [#allocation9], 16
    $region41: #{unet_forward.22} parent=1 // pred_fallthru
      _
    %v84 = vld [vmem:[#allocation2] sm:$0xff]
    %v85 = vld [vmem:[#allocation2 + $0x8] sm:$0xf]
    %v86 = vld [vmem:[#allocation2 + $0xc] sm:$0xff]
    %v87 = vld [vmem:[#allocation2 + $0x14] sm:$0xf]
    %v88 = vld [vmem:[#allocation2 + $0x18] sm:$0xff]
    %v89 = vld [vmem:[#allocation2 + $0x20] sm:$0xf]
    %v90 = vld [vmem:[#allocation2 + $0x24] sm:$0xff]
    %v91 = vld [vmem:[#allocation2 + $0x2c] sm:$0xf]
    %v92 = vld [vmem:[#allocation5] sm:$0xf]
    %v93 = vld [vmem:[#allocation5 + $0x4] sm:$0xf]
    %v94 = vld [vmem:[#allocation5 + $0x8] sm:$0xf]
    %v95 = vld [vmem:[#allocation5 + $0xc] sm:$0xf]
    %v96 = vld [vmem:[#allocation5 + $0x10] sm:$0xf]
    %v97 = vld [vmem:[#allocation5 + $0x14] sm:$0xf]
    %v98 = vld [vmem:[#allocation5 + $0x18] sm:$0xf]
    %v99 = vld [vmem:[#allocation5 + $0x1c] sm:$0xf]
    %v100 = vld [vmem:[#allocation5 + $0x20] sm:$0xf]
    %v101 = vld [vmem:[#allocation5 + $0x24] sm:$0xf]
    %v102 = vld [vmem:[#allocation5 + $0x28] sm:$0xf]
    %v103 = vld [vmem:[#allocation5 + $0x2c] sm:$0xf]
    %v104 = vld [vmem:[#allocation5 + $0x30] sm:$0xf]
    %v105 = vld [vmem:[#allocation5 + $0x34] sm:$0xf]
    %v106 = vld [vmem:[#allocation5 + $0x38] sm:$0xf]
    %v107 = vld [vmem:[#allocation5 + $0x3c] sm:$0xf]
    %v108 = vld [vmem:[#allocation5 + $0x40] sm:$0xf]
    %v109 = vld [vmem:[#allocation5 + $0x44] sm:$0xf]
    %v110 = vld [vmem:[#allocation5 + $0x48] sm:$0xf]
    %v111 = vld [vmem:[#allocation5 + $0x4c] sm:$0xf]
    %v112 = vld [vmem:[#allocation5 + $0x50] sm:$0xf]
    %v113 = vld [vmem:[#allocation5 + $0x54] sm:$0xf]
    %v114 = vld [vmem:[#allocation5 + $0x58] sm:$0xf]
    %v115 = vld [vmem:[#allocation5 + $0x5c] sm:$0xf]
    %v116 = vld [vmem:[#allocation5 + $0x60] sm:$0xf]
    %v117 = vld [vmem:[#allocation5 + $0x64] sm:$0xf]
    %v118 = vld [vmem:[#allocation5 + $0x68] sm:$0xf]
    %v119 = vld [vmem:[#allocation5 + $0x6c] sm:$0xf]
    %v120 = vld [vmem:[#allocation5 + $0x70] sm:$0xf]
    %v121 = vld [vmem:[#allocation5 + $0x74] sm:$0xf]
    %v122 = vld [vmem:[#allocation5 + $0x78] sm:$0xf]
    %v123 = vld [vmem:[#allocation5 + $0x7c] sm:$0xf]
    %v124 = vld [vmem:[#allocation5 + $0x80] sm:$0xf]
    %v125 = vld [vmem:[#allocation5 + $0x84] sm:$0xf]
    %v126 = vld [vmem:[#allocation5 + $0x88] sm:$0xf]
    %v127 = vld [vmem:[#allocation5 + $0x8c] sm:$0xf]
    %v128 = vld [vmem:[#allocation7] sm:$0x1]
    %v130 = vlaneseq
    %v131 = vshrl.u32 %v130, 7
    %v132 = vsub.s32 0, %v131
    %v133 = vrot.slane %v128, %v132
    %v143 = vunpack.c.l.b16 %v84
    %v144 = vunpack.c.h.b16 %v84
    %v145 = vunpack.c.l.b16 %v85
    %v146 = vunpack.c.l.b16 %v86
    %v147 = vunpack.c.h.b16 %v86
    %v148 = vunpack.c.l.b16 %v87
    %v149 = vunpack.c.l.b16 %v88
    %v150 = vunpack.c.h.b16 %v88
    %v151 = vunpack.c.l.b16 %v89
    %v152 = vunpack.c.l.b16 %v90
    %v153 = vunpack.c.h.b16 %v90
    %v154 = vunpack.c.l.b16 %v91
    %v155 = vpack.c.b16 %v146, %v143
    %v156 = vpack.c.b16 %v147, %v144
    %v157 = vpack.c.b16 %v148, %v145
    %v158 = vpack.c.b16 %v152, %v149
    %v159 = vpack.c.b16 %v153, %v150
    %v160 = vpack.c.b16 %v154, %v151
    %v201 = vunpack.c.l.b16 %v92
    %v202 = vunpack.c.l.b16 %v93
    %v203 = vunpack.c.l.b16 %v94
    %v204 = vunpack.c.l.b16 %v95
    %v205 = vunpack.c.l.b16 %v96
    %v206 = vunpack.c.l.b16 %v97
    %v207 = vunpack.c.l.b16 %v98
    %v208 = vunpack.c.l.b16 %v99
    %v209 = vunpack.c.l.b16 %v100
    %v210 = vunpack.c.l.b16 %v101
    %v211 = vunpack.c.l.b16 %v102
    %v212 = vunpack.c.l.b16 %v103
    %v213 = vunpack.c.l.b16 %v104
    %v214 = vunpack.c.l.b16 %v105
    %v215 = vunpack.c.l.b16 %v106
    %v216 = vunpack.c.l.b16 %v107
    %v217 = vunpack.c.l.b16 %v108
    %v218 = vunpack.c.l.b16 %v109
    %v219 = vunpack.c.l.b16 %v110
    %v220 = vunpack.c.l.b16 %v111
    %v221 = vunpack.c.l.b16 %v112
    %v222 = vunpack.c.l.b16 %v113
    %v223 = vunpack.c.l.b16 %v114
    %v224 = vunpack.c.l.b16 %v115
    %v225 = vunpack.c.l.b16 %v116
    %v226 = vunpack.c.l.b16 %v117
    %v227 = vunpack.c.l.b16 %v118
    %v228 = vunpack.c.l.b16 %v119
    %v229 = vunpack.c.l.b16 %v120
    %v230 = vunpack.c.l.b16 %v121
    %v231 = vunpack.c.l.b16 %v122
    %v232 = vunpack.c.l.b16 %v123
    %v233 = vunpack.c.l.b16 %v124
    %v234 = vunpack.c.l.b16 %v125
    %v235 = vunpack.c.l.b16 %v126
    %v236 = vunpack.c.l.b16 %v127
    %v237 = vpack.c.b16 %v202, %v201
    %v238 = vpack.c.b16 %v204, %v203
    %v239 = vpack.c.b16 %v206, %v205
    %v240 = vpack.c.b16 %v208, %v207
    %v241 = vpack.c.b16 %v210, %v209
    %v242 = vpack.c.b16 %v212, %v211
    %v243 = vpack.c.b16 %v214, %v213
    %v244 = vpack.c.b16 %v216, %v215
    %v245 = vpack.c.b16 %v218, %v217
    %v246 = vpack.c.b16 %v220, %v219
    %v247 = vpack.c.b16 %v222, %v221
    %v248 = vpack.c.b16 %v224, %v223
    %v249 = vpack.c.b16 %v226, %v225
    %v250 = vpack.c.b16 %v228, %v227
    %v251 = vpack.c.b16 %v230, %v229
    %v252 = vpack.c.b16 %v232, %v231
    %v253 = vpack.c.b16 %v234, %v233
    %v254 = vpack.c.b16 %v236, %v235
    %vm273 = vcmask 261120
    %v275 = vsel %vm273, %v157, 0
    %v278 = vsel %vm273, %v160, 0
    %280 = vmatprep.subr.bf16.mxu0 0
    %281 = vmatpush1.bf16.msra.mxu0 %v237
    %282 = vmatprep.subr.bf16.mxu0 0
    %283 = vmatpush1.bf16.msra.mxu0 %v238
    %284 = vmatprep.subr.bf16.mxu0 0
    %285 = vmatpush1.bf16.msra.mxu0 %v239
    %286 = vmatprep.subr.bf16.mxu0 0
    %287 = vmatpush1.bf16.msra.mxu0 %v240
    %288 = vmatprep.subr.bf16.mxu0 0
    %289 = vmatpush1.bf16.msra.mxu0 %v241
    %290 = vmatprep.subr.bf16.mxu0 0
    %291 = vmatpush1.bf16.msra.mxu0 %v242
    %292 = vmatprep.subr.bf16.mxu0 0
    %293 = vmatpush1.bf16.msra.mxu0 %v243
    %294 = vmatprep.subr.bf16.mxu0 0
    %295 = vmatpush1.bf16.msra.mxu0 %v244
    %296 = vmatprep.subr.bf16.mxu0 0
    %297 = vmatpush1.bf16.msra.mxu0 %v245
    %298 = vmatprep.subr.bf16.mxu0 0
    %299 = vmatpush1.bf16.msra.mxu0 %v246
    %300 = vmatprep.subr.bf16.mxu0 0
    %301 = vmatpush1.bf16.msra.mxu0 %v247
    %302 = vmatprep.subr.bf16.mxu0 0
    %303 = vmatpush1.bf16.msra.mxu0 %v248
    %304 = vmatprep.subr.bf16.mxu0 0
    %305 = vmatpush1.bf16.msra.mxu0 %v249
    %306 = vmatprep.subr.bf16.mxu0 0
    %307 = vmatpush1.bf16.msra.mxu0 %v250
    %308 = vmatprep.subr.bf16.mxu0 0
    %309 = vmatpush1.bf16.msra.mxu0 %v251
    %310 = vmatprep.subr.bf16.mxu0 0
    %311 = vmatpush1.bf16.msra.mxu0 %v252
    %312 = vmatprep.mubr.bf16.mxu0 %v156
    %313 = vmatmul.mubr.bf16.gmra.mrb[0].mxu0 %v155
    %v314 = vpop.f32.mrb[0].mxu0
    %v315 = vadd.f32 %v133, %v314
    %v316 = vpop.f32.mrb[0].mxu0
    %v317 = vpop.f32.mrb[0].mxu0
    %v318 = vadd.f32 %v133, %v317
    %v319 = vpop.f32.mrb[0].mxu0
    %320 = vmatprep.mubr.bf16.mxu0 %v159
    %321 = vmatmul.mubr.bf16.gmra.mrb[0].mxu0 %v158
    %v322 = vpop.f32.mrb[0].mxu0
    %v323 = vadd.f32 %v133, %v322
    %v324 = vpop.f32.mrb[0].mxu0
    %v325 = vpop.f32.mrb[0].mxu0
    %v326 = vadd.f32 %v133, %v325
    %v327 = vpop.f32.mrb[0].mxu0
    %328 = vdwg.mxu0
    %329 = vmatprep.subr.bf16.mxu0 0
    %330 = vmatpush1.bf16.msra.mxu0 %v253
    %331 = vmatprep.subr.bf16.mxu0 0
    %332 = vmatpush1.bf16.msra.mxu0 %v254
    %333 = vmatprep.subr.bf16.mxu0 0
    %334 = vmatpush1.bf16.msra.mxu0 0
    %335 = vmatprep.subr.bf16.mxu0 0
    %336 = vmatpush1.bf16.msra.mxu0 0
    %337 = vmatprep.subr.bf16.mxu0 0
    %338 = vmatpush1.bf16.msra.mxu0 0
    %339 = vmatprep.subr.bf16.mxu0 0
    %340 = vmatpush1.bf16.msra.mxu0 0
    %341 = vmatprep.subr.bf16.mxu0 0
    %342 = vmatpush1.bf16.msra.mxu0 0
    %343 = vmatprep.subr.bf16.mxu0 0
    %344 = vmatpush1.bf16.msra.mxu0 0
    %345 = vmatprep.subr.bf16.mxu0 0
    %346 = vmatpush1.bf16.msra.mxu0 0
    %347 = vmatprep.subr.bf16.mxu0 0
    %348 = vmatpush1.bf16.msra.mxu0 0
    %349 = vmatprep.subr.bf16.mxu0 0
    %350 = vmatpush1.bf16.msra.mxu0 0
    %351 = vmatprep.subr.bf16.mxu0 0
    %352 = vmatpush1.bf16.msra.mxu0 0
    %353 = vmatprep.subr.bf16.mxu0 0
    %354 = vmatpush1.bf16.msra.mxu0 0
    %355 = vmatprep.subr.bf16.mxu0 0
    %356 = vmatpush1.bf16.msra.mxu0 0
    %357 = vmatprep.subr.bf16.mxu0 0
    %358 = vmatpush1.bf16.msra.mxu0 0
    %359 = vmatprep.subr.bf16.mxu0 0
    %360 = vmatpush1.bf16.msra.mxu0 0
    %361 = vmatprep.mubr.bf16.mxu0 0
    %362 = vmatmul.mubr.bf16.gmra.mrb[0].mxu0 %v275
    %v363 = vpop.f32.mrb[0].mxu0
    %v364 = vadd.f32 %v315, %v363
    %v365 = vpop.f32.mrb[0].mxu0
    %v366 = vpop.f32.mrb[0].mxu0
    %v367 = vadd.f32 %v318, %v366
    %v368 = vpop.f32.mrb[0].mxu0
    %369 = vmatprep.mubr.bf16.mxu0 0
    %370 = vmatmul.mubr.bf16.gmra.mrb[0].mxu0 %v278
    %v371 = vpop.f32.mrb[0].mxu0
    %v372 = vadd.f32 %v323, %v371
    %v373 = vpop.f32.mrb[0].mxu0
    %v374 = vpop.f32.mrb[0].mxu0
    %v375 = vadd.f32 %v326, %v374
    %v376 = vpop.f32.mrb[0].mxu0
    %377 = vdwg.mxu0
    %v378 = vmax.f32 %v364, 0.0
    %v379 = vmax.f32 %v367, 0.0
    %v380 = vmax.f32 %v372, 0.0
    %v381 = vmax.f32 %v375, 0.0
    %v382 = vld [vmem:[#allocation8] sm:$0x1]
    %v384 = vlaneseq
    %v385 = vshrl.u32 %v384, 7
    %v386 = vsub.s32 0, %v385
    %v387 = vrot.slane %v382, %v386
    %v389 = vmul.f32 %v378, %v387
    %v390 = vmul.f32 %v379, %v387
    %v391 = vmul.f32 %v380, %v387
    %v392 = vmul.f32 %v381, %v387
    %v393 = vld [vmem:[#allocation10] sm:$0x1]
    %v395 = vlaneseq
    %v396 = vshrl.u32 %v395, 7
    %v397 = vsub.s32 0, %v396
    %v398 = vrot.slane %v393, %v397
    %v400 = vadd.f32 %v389, %v398
    %v401 = vadd.f32 %v390, %v398
    %v402 = vadd.f32 %v391, %v398
    %v403 = vadd.f32 %v392, %v398
    %v404 = vpack.c.bf16 %v401, %v400
    %v405 = vpack.c.bf16 %v403, %v402
    %v408 = vunpack.c.l.b16 %v404
    %v409 = vunpack.c.h.b16 %v404
    %v410 = vunpack.c.l.b16 %v405
    %v411 = vunpack.c.h.b16 %v405
    %v412 = vpack.c.b16 %v408, %v408
    %v413 = vpack.c.b16 %v409, %v409
    %v414 = vpack.c.b16 %v410, %v410
    %v415 = vpack.c.b16 %v411, %v411
    %vm420 = vcmask 257024
    %421 = vst.msk [vmem:[#allocation11] sm:$0xf] %vm420, %v412
    %422 = vst.msk [vmem:[#allocation11 + $0x4] sm:$0xf] %vm420, %v413
    %423 = vst.msk [vmem:[#allocation11 + $0x8] sm:$0xf] %vm420, %v414
    %424 = vst.msk [vmem:[#allocation11 + $0xc] sm:$0xf] %vm420, %v415
    // Predicated region
    $region42: #{unet_forward.22} parent=1 // pred_check
      _
    $region43: #{unet_forward.22} parent=1 // pred_check_branch
      %426 = sbr.rel (0) target = $region45
    $region44: #{unet_forward.22} parent=1 // pred_region
      %s428 = ssub.s32 256, 256
      %429 = vsyncadd [#allocation4], %s428
      %s430 = sshll.u32 [#allocation11], 4
      %s431 = int_to_ptr.vmem [resolvable:$true] %s430
      %436 = dma.vmem_to_hbm [thread:$0]  %s431, 256, %s5, [#allocation4], 64, 64, 4
    $region45: #{unet_forward.22} parent=1 // pred_fallthru
      _
    // Predicated region
    $region46: #{unet_forward.22} parent=1 // pred_check
      _
    $region47: #{unet_forward.22} parent=1 // pred_check_branch
      %438 = sbr.rel (0) target = $region49
    $region48: #{unet_forward.22} parent=1 // pred_region
      %439 = dma.done [#allocation4], 256
    $region49: #{unet_forward.22} parent=1 // pred_fallthru
      _
    %440 = vsyncpa [#allocation3], 1
    %441 = vsyncpa [#allocation6], 1
    %442 = vsyncpa [#allocation9], 1
    %443 = vsyncpa [#allocation4], 1

// kernel: unet_forward.23
$region0: #{unet_forward.23}
  #allocation0 [shape = 'u32[]', space=smem, size = 0x4, offset = 0x4, fixed_abs, tag = 'smem constant byte address 0x4 - core index']
  #allocation1 [shape = 'u32[144,128]{1,0:T(1,128)}', space=vmem, size = 0x12000, scoped, tag = 'internal scratch']
  %s0 = inlined_call_operand.hbm [shape: bf16[8,288], index: 0, kind: input, shape index: {}]
  %s1 = inlined_call_operand.hbm [shape: bf16[288,64], index: 1, kind: input, shape index: {}]
  %s2 = inlined_call_operand.hbm [shape: f32[1,64], index: 2, kind: input, shape index: {}]
  %s3 = inlined_call_operand.hbm [shape: f32[1,64], index: 3, kind: input, shape index: {}]
  %s4 = inlined_call_operand.hbm [shape: f32[1,64], index: 4, kind: input, shape index: {}]
  %s5 = inlined_call_operand.hbm [shape: bf16[8,64], index: 5, kind: output, shape index: {}]
  %s6 = sld [smem:[#allocation0]]
  $region50: #{unet_forward.23} parent=0
    _
  %s8 = ssub.s32 1, %s6
  %s9 = scalar_select 0, %s8, %s6
  $region1: #{unet_forward.23} parent=0
    #allocation2 [shape = 'u8[6144]{0}', space=vmem, size = 0x1800, scoped, tag = 'input window, operand 0, single buffered']
    #allocation3 [shape = 's32[1]{0}', space=sflag, size = 0x4, scoped, tag = 'scoped memory for unet_forward.23']
    #allocation4 [shape = 's32[1]{0}', space=sflag, size = 0x4, scoped, tag = 'scoped memory for unet_forward.23']
    #allocation5 [shape = 'u8[73728]{0}', space=vmem, size = 0x12000, scoped, tag = 'input window, operand 1, single buffered']
    #allocation6 [shape = 's32[1]{0}', space=sflag, size = 0x4, scoped, tag = 'scoped memory for unet_forward.23']
    #allocation7 [shape = 'u8[512]{0}', space=vmem, size = 0x400, scoped, tag = 'input window, operand 2, single buffered']
    #allocation8 [shape = 'u8[512]{0}', space=vmem, size = 0x400, scoped, tag = 'input window, operand 3, single buffered']
    #allocation9 [shape = 's32[1]{0}', space=sflag, size = 0x4, scoped, tag = 'scoped memory for unet_forward.23']
    #allocation10 [shape = 'u8[512]{0}', space=vmem, size = 0x400, scoped, tag = 'input window, operand 4, single buffered']
    #allocation11 [shape = 'u8[2048]{0}', space=vmem, size = 0x800, scoped, tag = 'output window, operand 0, single buffered']
    %10 = vsyncpa [#allocation3], 0
    %11 = vsyncpa [#allocation6], 0
    %12 = vsyncpa [#allocation9], 0
    %13 = vsyncpa [#allocation4], 0
    // Predicated region
    $region2: #{unet_forward.23} parent=1 // pred_check
      _
    $region3: #{unet_forward.23} parent=1 // pred_check_branch
      %15 = sbr.rel (0) target = $region5
    $region4: #{unet_forward.23} parent=1 // pred_region
      %s17 = ssub.s32 192, 192
      %18 = vsyncadd [#allocation3], %s17
      %s20 = sshll.u32 [#allocation2], 4
      %s21 = int_to_ptr.vmem [resolvable:$true] %s20
      %23 = dma.hbm_to_vmem [thread:$0]  %s0, 192, %s21, [#allocation3]
    $region5: #{unet_forward.23} parent=1 // pred_fallthru
      _
    // Predicated region
    $region6: #{unet_forward.23} parent=1 // pred_check
      _
    $region7: #{unet_forward.23} parent=1 // pred_check_branch
      %25 = sbr.rel (0) target = $region9
    $region8: #{unet_forward.23} parent=1 // pred_region
      %s27 = ssub.s32 2304, 2304
      %28 = vsyncadd [#allocation6], %s27
      %s29 = sshll.u32 [#allocation5], 4
      %s30 = int_to_ptr.vmem [resolvable:$true] %s29
      %35 = dma.hbm_to_vmem [thread:$0]  %s1, 2304, %s30, [#allocation6], 64, 64, 4
    $region9: #{unet_forward.23} parent=1 // pred_fallthru
      _
    // Predicated region
    $region10: #{unet_forward.23} parent=1 // pred_check
      _
    $region11: #{unet_forward.23} parent=1 // pred_check_branch
      %37 = sbr.rel (0) target = $region13
    $region12: #{unet_forward.23} parent=1 // pred_region
      %s39 = ssub.s32 16, 16
      %40 = vsyncadd [#allocation6], %s39
      %s42 = sshll.u32 [#allocation7], 4
      %s43 = int_to_ptr.vmem [resolvable:$true] %s42
      %45 = dma.hbm_to_vmem [thread:$0]  %s2, 16, %s43, [#allocation6]
    $region13: #{unet_forward.23} parent=1 // pred_fallthru
      _
    // Predicated region
    $region14: #{unet_forward.23} parent=1 // pred_check
      _
    $region15: #{unet_forward.23} parent=1 // pred_check_branch
      %47 = sbr.rel (0) target = $region17
    $region16: #{unet_forward.23} parent=1 // pred_region
      %s49 = ssub.s32 16, 16
      %50 = vsyncadd [#allocation9], %s49
      %s52 = sshll.u32 [#allocation8], 4
      %s53 = int_to_ptr.vmem [resolvable:$true] %s52
      %55 = dma.hbm_to_vmem [thread:$0]  %s3, 16, %s53, [#allocation9]
    $region17: #{unet_forward.23} parent=1 // pred_fallthru
      _
    // Predicated region
    $region18: #{unet_forward.23} parent=1 // pred_check
      _
    $region19: #{unet_forward.23} parent=1 // pred_check_branch
      %57 = sbr.rel (0) target = $region21
    $region20: #{unet_forward.23} parent=1 // pred_region
      %s59 = ssub.s32 16, 16
      %60 = vsyncadd [#allocation9], %s59
      %s62 = sshll.u32 [#allocation10], 4
      %s63 = int_to_ptr.vmem [resolvable:$true] %s62
      %65 = dma.hbm_to_vmem [thread:$0]  %s4, 16, %s63, [#allocation9]
    $region21: #{unet_forward.23} parent=1 // pred_fallthru
      _
    // Predicated region
    $region22: #{unet_forward.23} parent=1 // pred_check
      _
    $region23: #{unet_forward.23} parent=1 // pred_check_branch
      %67 = sbr.rel (0) target = $region25
    $region24: #{unet_forward.23} parent=1 // pred_region
      %68 = dma.done [#allocation3], 192
    $region25: #{unet_forward.23} parent=1 // pred_fallthru
      _
    // Predicated region
    $region26: #{unet_forward.23} parent=1 // pred_check
      _
    $region27: #{unet_forward.23} parent=1 // pred_check_branch
      %70 = sbr.rel (0) target = $region29
    $region28: #{unet_forward.23} parent=1 // pred_region
      %71 = dma.done [#allocation6], 2304
    $region29: #{unet_forward.23} parent=1 // pred_fallthru
      _
    // Predicated region
    $region30: #{unet_forward.23} parent=1 // pred_check
      _
    $region31: #{unet_forward.23} parent=1 // pred_check_branch
      %73 = sbr.rel (0) target = $region33
    $region32: #{unet_forward.23} parent=1 // pred_region
      %74 = dma.done [#allocation6], 16
    $region33: #{unet_forward.23} parent=1 // pred_fallthru
      _
    // Predicated region
    $region34: #{unet_forward.23} parent=1 // pred_check
      _
    $region35: #{unet_forward.23} parent=1 // pred_check_branch
      %76 = sbr.rel (0) target = $region37
    $region36: #{unet_forward.23} parent=1 // pred_region
      %77 = dma.done [#allocation9], 16
    $region37: #{unet_forward.23} parent=1 // pred_fallthru
      _
    // Predicated region
    $region38: #{unet_forward.23} parent=1 // pred_check
      _
    $region39: #{unet_forward.23} parent=1 // pred_check_branch
      %79 = sbr.rel (0) target = $region41
    $region40: #{unet_forward.23} parent=1 // pred_region
      %80 = dma.done [#allocation9], 16
    $region41: #{unet_forward.23} parent=1 // pred_fallthru
      _
    %v82 = vld [vmem:[#allocation2] sm:$0xff]
    %v83 = vld [vmem:[#allocation2 + $0x8] sm:$0xf]
    %v84 = vld [vmem:[#allocation5] sm:$0xf]
    %v85 = vld [vmem:[#allocation5 + $0x4] sm:$0xf]
    %v86 = vld [vmem:[#allocation5 + $0x8] sm:$0xf]
    %v87 = vld [vmem:[#allocation5 + $0xc] sm:$0xf]
    %v88 = vld [vmem:[#allocation5 + $0x10] sm:$0xf]
    %v89 = vld [vmem:[#allocation5 + $0x14] sm:$0xf]
    %v90 = vld [vmem:[#allocation5 + $0x18] sm:$0xf]
    %v91 = vld [vmem:[#allocation5 + $0x1c] sm:$0xf]
    %v92 = vld [vmem:[#allocation5 + $0x20] sm:$0xf]
    %v93 = vld [vmem:[#allocation5 + $0x24] sm:$0xf]
    %v94 = vld [vmem:[#allocation5 + $0x28] sm:$0xf]
    %v95 = vld [vmem:[#allocation5 + $0x2c] sm:$0xf]
    %v96 = vld [vmem:[#allocation5 + $0x30] sm:$0xf]
    %v97 = vld [vmem:[#allocation5 + $0x34] sm:$0xf]
    %v98 = vld [vmem:[#allocation5 + $0x38] sm:$0xf]
    %v99 = vld [vmem:[#allocation5 + $0x3c] sm:$0xf]
    %v100 = vld [vmem:[#allocation5 + $0x40] sm:$0xf]
    %v101 = vld [vmem:[#allocation5 + $0x44] sm:$0xf]
    %v102 = vld [vmem:[#allocation5 + $0x48] sm:$0xf]
    %v103 = vld [vmem:[#allocation5 + $0x4c] sm:$0xf]
    %v104 = vld [vmem:[#allocation5 + $0x50] sm:$0xf]
    %v105 = vld [vmem:[#allocation5 + $0x54] sm:$0xf]
    %v106 = vld [vmem:[#allocation5 + $0x58] sm:$0xf]
    %v107 = vld [vmem:[#allocation5 + $0x5c] sm:$0xf]
    %v108 = vld [vmem:[#allocation5 + $0x60] sm:$0xf]
    %v109 = vld [vmem:[#allocation5 + $0x64] sm:$0xf]
    %v110 = vld [vmem:[#allocation5 + $0x68] sm:$0xf]
    %v111 = vld [vmem:[#allocation5 + $0x6c] sm:$0xf]
    %v112 = vld [vmem:[#allocation5 + $0x70] sm:$0xf]
    %v113 = vld [vmem:[#allocation5 + $0x74] sm:$0xf]
    %v114 = vld [vmem:[#allocation5 + $0x78] sm:$0xf]
    %v115 = vld [vmem:[#allocation5 + $0x7c] sm:$0xf]
    %v116 = vld [vmem:[#allocation5 + $0x80] sm:$0xf]
    %v117 = vld [vmem:[#allocation5 + $0x84] sm:$0xf]
    %v118 = vld [vmem:[#allocation5 + $0x88] sm:$0xf]
    %v119 = vld [vmem:[#allocation5 + $0x8c] sm:$0xf]
    %v120 = vld [vmem:[#allocation7] sm:$0x1]
    %v122 = vlaneseq
    %v123 = vshrl.u32 %v122, 7
    %v124 = vsub.s32 0, %v123
    %v125 = vrot.slane %v120, %v124
    %v129 = vunpack.c.l.b16 %v82
    %v130 = vunpack.c.h.b16 %v82
    %v131 = vunpack.c.l.b16 %v83
    %v132 = vpack.c.b16 %v129, %v129
    %v133 = vpack.c.b16 %v130, %v130
    %v134 = vpack.c.b16 %v131, %v131
    %v173 = vunpack.c.l.b16 %v84
    %v174 = vunpack.c.l.b16 %v85
    %v175 = vunpack.c.l.b16 %v86
    %v176 = vunpack.c.l.b16 %v87
    %v177 = vunpack.c.l.b16 %v88
    %v178 = vunpack.c.l.b16 %v89
    %v179 = vunpack.c.l.b16 %v90
    %v180 = vunpack.c.l.b16 %v91
    %v181 = vunpack.c.l.b16 %v92
    %v182 = vunpack.c.l.b16 %v93
    %v183 = vunpack.c.l.b16 %v94
    %v184 = vunpack.c.l.b16 %v95
    %v185 = vunpack.c.l.b16 %v96
    %v186 = vunpack.c.l.b16 %v97
    %v187 = vunpack.c.l.b16 %v98
    %v188 = vunpack.c.l.b16 %v99
    %v189 = vunpack.c.l.b16 %v100
    %v190 = vunpack.c.l.b16 %v101
    %v191 = vunpack.c.l.b16 %v102
    %v192 = vunpack.c.l.b16 %v103
    %v193 = vunpack.c.l.b16 %v104
    %v194 = vunpack.c.l.b16 %v105
    %v195 = vunpack.c.l.b16 %v106
    %v196 = vunpack.c.l.b16 %v107
    %v197 = vunpack.c.l.b16 %v108
    %v198 = vunpack.c.l.b16 %v109
    %v199 = vunpack.c.l.b16 %v110
    %v200 = vunpack.c.l.b16 %v111
    %v201 = vunpack.c.l.b16 %v112
    %v202 = vunpack.c.l.b16 %v113
    %v203 = vunpack.c.l.b16 %v114
    %v204 = vunpack.c.l.b16 %v115
    %v205 = vunpack.c.l.b16 %v116
    %v206 = vunpack.c.l.b16 %v117
    %v207 = vunpack.c.l.b16 %v118
    %v208 = vunpack.c.l.b16 %v119
    %v209 = vpack.c.b16 %v174, %v173
    %v210 = vpack.c.b16 %v176, %v175
    %v211 = vpack.c.b16 %v178, %v177
    %v212 = vpack.c.b16 %v180, %v179
    %v213 = vpack.c.b16 %v182, %v181
    %v214 = vpack.c.b16 %v184, %v183
    %v215 = vpack.c.b16 %v186, %v185
    %v216 = vpack.c.b16 %v188, %v187
    %v217 = vpack.c.b16 %v190, %v189
    %v218 = vpack.c.b16 %v192, %v191
    %v219 = vpack.c.b16 %v194, %v193
    %v220 = vpack.c.b16 %v196, %v195
    %v221 = vpack.c.b16 %v198, %v197
    %v222 = vpack.c.b16 %v200, %v199
    %v223 = vpack.c.b16 %v202, %v201
    %v224 = vpack.c.b16 %v204, %v203
    %v225 = vpack.c.b16 %v206, %v205
    %v226 = vpack.c.b16 %v208, %v207
    %vm245 = vcmask 261120
    %v247 = vsel %vm245, %v134, 0
    %249 = vmatprep.subr.bf16.mxu0 0
    %250 = vmatpush1.bf16.msra.mxu0 %v209
    %251 = vmatprep.subr.bf16.mxu0 0
    %252 = vmatpush1.bf16.msra.mxu0 %v210
    %253 = vmatprep.subr.bf16.mxu0 0
    %254 = vmatpush1.bf16.msra.mxu0 %v211
    %255 = vmatprep.subr.bf16.mxu0 0
    %256 = vmatpush1.bf16.msra.mxu0 %v212
    %257 = vmatprep.subr.bf16.mxu0 0
    %258 = vmatpush1.bf16.msra.mxu0 %v213
    %259 = vmatprep.subr.bf16.mxu0 0
    %260 = vmatpush1.bf16.msra.mxu0 %v214
    %261 = vmatprep.subr.bf16.mxu0 0
    %262 = vmatpush1.bf16.msra.mxu0 %v215
    %263 = vmatprep.subr.bf16.mxu0 0
    %264 = vmatpush1.bf16.msra.mxu0 %v216
    %265 = vmatprep.subr.bf16.mxu0 0
    %266 = vmatpush1.bf16.msra.mxu0 %v217
    %267 = vmatprep.subr.bf16.mxu0 0
    %268 = vmatpush1.bf16.msra.mxu0 %v218
    %269 = vmatprep.subr.bf16.mxu0 0
    %270 = vmatpush1.bf16.msra.mxu0 %v219
    %271 = vmatprep.subr.bf16.mxu0 0
    %272 = vmatpush1.bf16.msra.mxu0 %v220
    %273 = vmatprep.subr.bf16.mxu0 0
    %274 = vmatpush1.bf16.msra.mxu0 %v221
    %275 = vmatprep.subr.bf16.mxu0 0
    %276 = vmatpush1.bf16.msra.mxu0 %v222
    %277 = vmatprep.subr.bf16.mxu0 0
    %278 = vmatpush1.bf16.msra.mxu0 %v223
    %279 = vmatprep.subr.bf16.mxu0 0
    %280 = vmatpush1.bf16.msra.mxu0 %v224
    %281 = vmatprep.mubr.bf16.mxu0 %v133
    %282 = vmatmul.mubr.bf16.gmra.mrb[0].mxu0 %v132
    %v283 = vpop.f32.mrb[0].mxu0
    %v284 = vadd.f32 %v125, %v283
    %v285 = vpop.f32.mrb[0].mxu0
    %v286 = vpop.f32.mrb[0].mxu0
    %v287 = vpop.f32.mrb[0].mxu0
    %288 = vdwg.mxu0
    %289 = vmatprep.subr.bf16.mxu0 0
    %290 = vmatpush1.bf16.msra.mxu0 %v225
    %291 = vmatprep.subr.bf16.mxu0 0
    %292 = vmatpush1.bf16.msra.mxu0 %v226
    %293 = vmatprep.subr.bf16.mxu0 0
    %294 = vmatpush1.bf16.msra.mxu0 0
    %295 = vmatprep.subr.bf16.mxu0 0
    %296 = vmatpush1.bf16.msra.mxu0 0
    %297 = vmatprep.subr.bf16.mxu0 0
    %298 = vmatpush1.bf16.msra.mxu0 0
    %299 = vmatprep.subr.bf16.mxu0 0
    %300 = vmatpush1.bf16.msra.mxu0 0
    %301 = vmatprep.subr.bf16.mxu0 0
    %302 = vmatpush1.bf16.msra.mxu0 0
    %303 = vmatprep.subr.bf16.mxu0 0
    %304 = vmatpush1.bf16.msra.mxu0 0
    %305 = vmatprep.subr.bf16.mxu0 0
    %306 = vmatpush1.bf16.msra.mxu0 0
    %307 = vmatprep.subr.bf16.mxu0 0
    %308 = vmatpush1.bf16.msra.mxu0 0
    %309 = vmatprep.subr.bf16.mxu0 0
    %310 = vmatpush1.bf16.msra.mxu0 0
    %311 = vmatprep.subr.bf16.mxu0 0
    %312 = vmatpush1.bf16.msra.mxu0 0
    %313 = vmatprep.subr.bf16.mxu0 0
    %314 = vmatpush1.bf16.msra.mxu0 0
    %315 = vmatprep.subr.bf16.mxu0 0
    %316 = vmatpush1.bf16.msra.mxu0 0
    %317 = vmatprep.subr.bf16.mxu0 0
    %318 = vmatpush1.bf16.msra.mxu0 0
    %319 = vmatprep.subr.bf16.mxu0 0
    %320 = vmatpush1.bf16.msra.mxu0 0
    %321 = vmatprep.mubr.bf16.mxu0 0
    %322 = vmatmul.mubr.bf16.gmra.mrb[0].mxu0 %v247
    %v323 = vpop.f32.mrb[0].mxu0
    %v324 = vadd.f32 %v284, %v323
    %v325 = vpop.f32.mrb[0].mxu0
    %v326 = vpop.f32.mrb[0].mxu0
    %v327 = vpop.f32.mrb[0].mxu0
    %328 = vdwg.mxu0
    %v329 = vmax.f32 %v324, 0.0
    %v330 = vld [vmem:[#allocation8] sm:$0x1]
    %v332 = vlaneseq
    %v333 = vshrl.u32 %v332, 7
    %v334 = vsub.s32 0, %v333
    %v335 = vrot.slane %v330, %v334
    %v337 = vmul.f32 %v329, %v335
    %v338 = vld [vmem:[#allocation10] sm:$0x1]
    %v340 = vlaneseq
    %v341 = vshrl.u32 %v340, 7
    %v342 = vsub.s32 0, %v341
    %v343 = vrot.slane %v338, %v342
    %v345 = vadd.f32 %v337, %v343
    %v346 = vpack.c.bf16 %v345, %v345
    %vm347 = vcmask 519168
    %348 = vst.msk [vmem:[#allocation11] sm:$0xf] %vm347, %v346
    // Predicated region
    $region42: #{unet_forward.23} parent=1 // pred_check
      _
    $region43: #{unet_forward.23} parent=1 // pred_check_branch
      %350 = sbr.rel (0) target = $region45
    $region44: #{unet_forward.23} parent=1 // pred_region
      %s352 = ssub.s32 64, 64
      %353 = vsyncadd [#allocation4], %s352
      %s355 = sshll.u32 [#allocation11], 4
      %s356 = int_to_ptr.vmem [resolvable:$true] %s355
      %358 = dma.vmem_to_hbm [thread:$0]  %s356, 64, %s5, [#allocation4]
    $region45: #{unet_forward.23} parent=1 // pred_fallthru
      _
    // Predicated region
    $region46: #{unet_forward.23} parent=1 // pred_check
      _
    $region47: #{unet_forward.23} parent=1 // pred_check_branch
      %360 = sbr.rel (0) target = $region49
    $region48: #{unet_forward.23} parent=1 // pred_region
      %361 = dma.done [#allocation4], 64
    $region49: #{unet_forward.23} parent=1 // pred_fallthru
      _
    %362 = vsyncpa [#allocation3], 1
    %363 = vsyncpa [#allocation6], 1
    %364 = vsyncpa [#allocation9], 1
    %365 = vsyncpa [#allocation4], 1

// kernel: unet_forward.24
$region0: #{unet_forward.24}
  #allocation0 [shape = 'u32[]', space=smem, size = 0x4, offset = 0x4, fixed_abs, tag = 'smem constant byte address 0x4 - core index']
  #allocation1 [shape = 'u32[144,128]{1,0:T(1,128)}', space=vmem, size = 0x12000, scoped, tag = 'internal scratch']
  %s0 = inlined_call_operand.hbm [shape: bf16[8,576], index: 0, kind: input, shape index: {}]
  %s1 = inlined_call_operand.hbm [shape: bf16[576,64], index: 1, kind: input, shape index: {}]
  %s2 = inlined_call_operand.hbm [shape: f32[1,64], index: 2, kind: input, shape index: {}]
  %s3 = inlined_call_operand.hbm [shape: f32[1,64], index: 3, kind: input, shape index: {}]
  %s4 = inlined_call_operand.hbm [shape: f32[1,64], index: 4, kind: input, shape index: {}]
  %s5 = inlined_call_operand.hbm [shape: bf16[8,64], index: 5, kind: output, shape index: {}]
  %s6 = sld [smem:[#allocation0]]
  $region50: #{unet_forward.24} parent=0
    _
  %s8 = ssub.s32 1, %s6
  %s9 = scalar_select 0, %s8, %s6
  $region1: #{unet_forward.24} parent=0
    #allocation2 [shape = 'u8[10240]{0}', space=vmem, size = 0x2800, scoped, tag = 'input window, operand 0, single buffered']
    #allocation3 [shape = 's32[1]{0}', space=sflag, size = 0x4, scoped, tag = 'scoped memory for unet_forward.24']
    #allocation4 [shape = 's32[1]{0}', space=sflag, size = 0x4, scoped, tag = 'scoped memory for unet_forward.24']
    #allocation5 [shape = 'u8[147456]{0}', space=vmem, size = 0x24000, scoped, tag = 'input window, operand 1, single buffered']
    #allocation6 [shape = 's32[1]{0}', space=sflag, size = 0x4, scoped, tag = 'scoped memory for unet_forward.24']
    #allocation7 [shape = 'u8[512]{0}', space=vmem, size = 0x400, scoped, tag = 'input window, operand 2, single buffered']
    #allocation8 [shape = 'u8[512]{0}', space=vmem, size = 0x400, scoped, tag = 'input window, operand 3, single buffered']
    #allocation9 [shape = 's32[1]{0}', space=sflag, size = 0x4, scoped, tag = 'scoped memory for unet_forward.24']
    #allocation10 [shape = 'u8[512]{0}', space=vmem, size = 0x400, scoped, tag = 'input window, operand 4, single buffered']
    #allocation11 [shape = 'u8[2048]{0}', space=vmem, size = 0x800, scoped, tag = 'output window, operand 0, single buffered']
    %10 = vsyncpa [#allocation3], 0
    %11 = vsyncpa [#allocation6], 0
    %12 = vsyncpa [#allocation9], 0
    %13 = vsyncpa [#allocation4], 0
    // Predicated region
    $region2: #{unet_forward.24} parent=1 // pred_check
      _
    $region3: #{unet_forward.24} parent=1 // pred_check_branch
      %15 = sbr.rel (0) target = $region5
    $region4: #{unet_forward.24} parent=1 // pred_region
      %s17 = ssub.s32 320, 320
      %18 = vsyncadd [#allocation3], %s17
      %s20 = sshll.u32 [#allocation2], 4
      %s21 = int_to_ptr.vmem [resolvable:$true] %s20
      %23 = dma.hbm_to_vmem [thread:$0]  %s0, 320, %s21, [#allocation3]
    $region5: #{unet_forward.24} parent=1 // pred_fallthru
      _
    // Predicated region
    $region6: #{unet_forward.24} parent=1 // pred_check
      _
    $region7: #{unet_forward.24} parent=1 // pred_check_branch
      %25 = sbr.rel (0) target = $region9
    $region8: #{unet_forward.24} parent=1 // pred_region
      %s27 = ssub.s32 4608, 4608
      %28 = vsyncadd [#allocation6], %s27
      %s29 = sshll.u32 [#allocation5], 4
      %s30 = int_to_ptr.vmem [resolvable:$true] %s29
      %35 = dma.hbm_to_vmem [thread:$0]  %s1, 4608, %s30, [#allocation6], 64, 64, 4
    $region9: #{unet_forward.24} parent=1 // pred_fallthru
      _
    // Predicated region
    $region10: #{unet_forward.24} parent=1 // pred_check
      _
    $region11: #{unet_forward.24} parent=1 // pred_check_branch
      %37 = sbr.rel (0) target = $region13
    $region12: #{unet_forward.24} parent=1 // pred_region
      %s39 = ssub.s32 16, 16
      %40 = vsyncadd [#allocation6], %s39
      %s42 = sshll.u32 [#allocation7], 4
      %s43 = int_to_ptr.vmem [resolvable:$true] %s42
      %45 = dma.hbm_to_vmem [thread:$0]  %s2, 16, %s43, [#allocation6]
    $region13: #{unet_forward.24} parent=1 // pred_fallthru
      _
    // Predicated region
    $region14: #{unet_forward.24} parent=1 // pred_check
      _
    $region15: #{unet_forward.24} parent=1 // pred_check_branch
      %47 = sbr.rel (0) target = $region17
    $region16: #{unet_forward.24} parent=1 // pred_region
      %s49 = ssub.s32 16, 16
      %50 = vsyncadd [#allocation9], %s49
      %s52 = sshll.u32 [#allocation8], 4
      %s53 = int_to_ptr.vmem [resolvable:$true] %s52
      %55 = dma.hbm_to_vmem [thread:$0]  %s3, 16, %s53, [#allocation9]
    $region17: #{unet_forward.24} parent=1 // pred_fallthru
      _
    // Predicated region
    $region18: #{unet_forward.24} parent=1 // pred_check
      _
    $region19: #{unet_forward.24} parent=1 // pred_check_branch
      %57 = sbr.rel (0) target = $region21
    $region20: #{unet_forward.24} parent=1 // pred_region
      %s59 = ssub.s32 16, 16
      %60 = vsyncadd [#allocation9], %s59
      %s62 = sshll.u32 [#allocation10], 4
      %s63 = int_to_ptr.vmem [resolvable:$true] %s62
      %65 = dma.hbm_to_vmem [thread:$0]  %s4, 16, %s63, [#allocation9]
    $region21: #{unet_forward.24} parent=1 // pred_fallthru
      _
    // Predicated region
    $region22: #{unet_forward.24} parent=1 // pred_check
      _
    $region23: #{unet_forward.24} parent=1 // pred_check_branch
      %67 = sbr.rel (0) target = $region25
    $region24: #{unet_forward.24} parent=1 // pred_region
      %68 = dma.done [#allocation3], 320
    $region25: #{unet_forward.24} parent=1 // pred_fallthru
      _
    // Predicated region
    $region26: #{unet_forward.24} parent=1 // pred_check
      _
    $region27: #{unet_forward.24} parent=1 // pred_check_branch
      %70 = sbr.rel (0) target = $region29
    $region28: #{unet_forward.24} parent=1 // pred_region
      %71 = dma.done [#allocation6], 4608
    $region29: #{unet_forward.24} parent=1 // pred_fallthru
      _
    // Predicated region
    $region30: #{unet_forward.24} parent=1 // pred_check
      _
    $region31: #{unet_forward.24} parent=1 // pred_check_branch
      %73 = sbr.rel (0) target = $region33
    $region32: #{unet_forward.24} parent=1 // pred_region
      %74 = dma.done [#allocation6], 16
    $region33: #{unet_forward.24} parent=1 // pred_fallthru
      _
    // Predicated region
    $region34: #{unet_forward.24} parent=1 // pred_check
      _
    $region35: #{unet_forward.24} parent=1 // pred_check_branch
      %76 = sbr.rel (0) target = $region37
    $region36: #{unet_forward.24} parent=1 // pred_region
      %77 = dma.done [#allocation9], 16
    $region37: #{unet_forward.24} parent=1 // pred_fallthru
      _
    // Predicated region
    $region38: #{unet_forward.24} parent=1 // pred_check
      _
    $region39: #{unet_forward.24} parent=1 // pred_check_branch
      %79 = sbr.rel (0) target = $region41
    $region40: #{unet_forward.24} parent=1 // pred_region
      %80 = dma.done [#allocation9], 16
    $region41: #{unet_forward.24} parent=1 // pred_fallthru
      _
    %v82 = vld [vmem:[#allocation2] sm:$0xff]
    %v83 = vld [vmem:[#allocation2 + $0x8] sm:$0xff]
    %v84 = vld [vmem:[#allocation2 + $0x10] sm:$0xf]
    %v85 = vld [vmem:[#allocation5] sm:$0xf]
    %v86 = vld [vmem:[#allocation5 + $0x4] sm:$0xf]
    %v87 = vld [vmem:[#allocation5 + $0x8] sm:$0xf]
    %v88 = vld [vmem:[#allocation5 + $0xc] sm:$0xf]
    %v89 = vld [vmem:[#allocation5 + $0x10] sm:$0xf]
    %v90 = vld [vmem:[#allocation5 + $0x14] sm:$0xf]
    %v91 = vld [vmem:[#allocation5 + $0x18] sm:$0xf]
    %v92 = vld [vmem:[#allocation5 + $0x1c] sm:$0xf]
    %v93 = vld [vmem:[#allocation5 + $0x20] sm:$0xf]
    %v94 = vld [vmem:[#allocation5 + $0x24] sm:$0xf]
    %v95 = vld [vmem:[#allocation5 + $0x28] sm:$0xf]
    %v96 = vld [vmem:[#allocation5 + $0x2c] sm:$0xf]
    %v97 = vld [vmem:[#allocation5 + $0x30] sm:$0xf]
    %v98 = vld [vmem:[#allocation5 + $0x34] sm:$0xf]
    %v99 = vld [vmem:[#allocation5 + $0x38] sm:$0xf]
    %v100 = vld [vmem:[#allocation5 + $0x3c] sm:$0xf]
    %v101 = vld [vmem:[#allocation5 + $0x40] sm:$0xf]
    %v102 = vld [vmem:[#allocation5 + $0x44] sm:$0xf]
    %v103 = vld [vmem:[#allocation5 + $0x48] sm:$0xf]
    %v104 = vld [vmem:[#allocation5 + $0x4c] sm:$0xf]
    %v105 = vld [vmem:[#allocation5 + $0x50] sm:$0xf]
    %v106 = vld [vmem:[#allocation5 + $0x54] sm:$0xf]
    %v107 = vld [vmem:[#allocation5 + $0x58] sm:$0xf]
    %v108 = vld [vmem:[#allocation5 + $0x5c] sm:$0xf]
    %v109 = vld [vmem:[#allocation5 + $0x60] sm:$0xf]
    %v110 = vld [vmem:[#allocation5 + $0x64] sm:$0xf]
    %v111 = vld [vmem:[#allocation5 + $0x68] sm:$0xf]
    %v112 = vld [vmem:[#allocation5 + $0x6c] sm:$0xf]
    %v113 = vld [vmem:[#allocation5 + $0x70] sm:$0xf]
    %v114 = vld [vmem:[#allocation5 + $0x74] sm:$0xf]
    %v115 = vld [vmem:[#allocation5 + $0x78] sm:$0xf]
    %v116 = vld [vmem:[#allocation5 + $0x7c] sm:$0xf]
    %v117 = vld [vmem:[#allocation5 + $0x80] sm:$0xf]
    %v118 = vld [vmem:[#allocation5 + $0x84] sm:$0xf]
    %v119 = vld [vmem:[#allocation5 + $0x88] sm:$0xf]
    %v120 = vld [vmem:[#allocation5 + $0x8c] sm:$0xf]
    %v121 = vld [vmem:[#allocation5 + $0x90] sm:$0xf]
    %v122 = vld [vmem:[#allocation5 + $0x94] sm:$0xf]
    %v123 = vld [vmem:[#allocation5 + $0x98] sm:$0xf]
    %v124 = vld [vmem:[#allocation5 + $0x9c] sm:$0xf]
    %v125 = vld [vmem:[#allocation5 + $0xa0] sm:$0xf]
    %v126 = vld [vmem:[#allocation5 + $0xa4] sm:$0xf]
    %v127 = vld [vmem:[#allocation5 + $0xa8] sm:$0xf]
    %v128 = vld [vmem:[#allocation5 + $0xac] sm:$0xf]
    %v129 = vld [vmem:[#allocation5 + $0xb0] sm:$0xf]
    %v130 = vld [vmem:[#allocation5 + $0xb4] sm:$0xf]
    %v131 = vld [vmem:[#allocation5 + $0xb8] sm:$0xf]
    %v132 = vld [vmem:[#allocation5 + $0xbc] sm:$0xf]
    %v133 = vld [vmem:[#allocation5 + $0xc0] sm:$0xf]
    %v134 = vld [vmem:[#allocation5 + $0xc4] sm:$0xf]
    %v135 = vld [vmem:[#allocation5 + $0xc8] sm:$0xf]
    %v136 = vld [vmem:[#allocation5 + $0xcc] sm:$0xf]
    %v137 = vld [vmem:[#allocation5 + $0xd0] sm:$0xf]
    %v138 = vld [vmem:[#allocation5 + $0xd4] sm:$0xf]
    %v139 = vld [vmem:[#allocation5 + $0xd8] sm:$0xf]
    %v140 = vld [vmem:[#allocation5 + $0xdc] sm:$0xf]
    %v141 = vld [vmem:[#allocation5 + $0xe0] sm:$0xf]
    %v142 = vld [vmem:[#allocation5 + $0xe4] sm:$0xf]
    %v143 = vld [vmem:[#allocation5 + $0xe8] sm:$0xf]
    %v144 = vld [vmem:[#allocation5 + $0xec] sm:$0xf]
    %v145 = vld [vmem:[#allocation5 + $0xf0] sm:$0xf]
    %v146 = vld [vmem:[#allocation5 + $0xf4] sm:$0xf]
    %v147 = vld [vmem:[#allocation5 + $0xf8] sm:$0xf]
    %v148 = vld [vmem:[#allocation5 + $0xfc] sm:$0xf]
    %v149 = vld [vmem:[#allocation5 + $0x100] sm:$0xf]
    %v150 = vld [vmem:[#allocation5 + $0x104] sm:$0xf]
    %v151 = vld [vmem:[#allocation5 + $0x108] sm:$0xf]
    %v152 = vld [vmem:[#allocation5 + $0x10c] sm:$0xf]
    %v153 = vld [vmem:[#allocation5 + $0x110] sm:$0xf]
    %v154 = vld [vmem:[#allocation5 + $0x114] sm:$0xf]
    %v155 = vld [vmem:[#allocation5 + $0x118] sm:$0xf]
    %v156 = vld [vmem:[#allocation5 + $0x11c] sm:$0xf]
    %v157 = vld [vmem:[#allocation7] sm:$0x1]
    %v159 = vlaneseq
    %v160 = vshrl.u32 %v159, 7
    %v161 = vsub.s32 0, %v160
    %v162 = vrot.slane %v157, %v161
    %v167 = vunpack.c.l.b16 %v82
    %v168 = vunpack.c.h.b16 %v82
    %v169 = vunpack.c.l.b16 %v83
    %v170 = vunpack.c.h.b16 %v83
    %v171 = vunpack.c.l.b16 %v84
    %v172 = vpack.c.b16 %v167, %v167
    %v173 = vpack.c.b16 %v168, %v168
    %v174 = vpack.c.b16 %v169, %v169
    %v175 = vpack.c.b16 %v170, %v170
    %v176 = vpack.c.b16 %v171, %v171
    %v253 = vunpack.c.l.b16 %v85
    %v254 = vunpack.c.l.b16 %v86
    %v255 = vunpack.c.l.b16 %v87
    %v256 = vunpack.c.l.b16 %v88
    %v257 = vunpack.c.l.b16 %v89
    %v258 = vunpack.c.l.b16 %v90
    %v259 = vunpack.c.l.b16 %v91
    %v260 = vunpack.c.l.b16 %v92
    %v261 = vunpack.c.l.b16 %v93
    %v262 = vunpack.c.l.b16 %v94
    %v263 = vunpack.c.l.b16 %v95
    %v264 = vunpack.c.l.b16 %v96
    %v265 = vunpack.c.l.b16 %v97
    %v266 = vunpack.c.l.b16 %v98
    %v267 = vunpack.c.l.b16 %v99
    %v268 = vunpack.c.l.b16 %v100
    %v269 = vunpack.c.l.b16 %v101
    %v270 = vunpack.c.l.b16 %v102
    %v271 = vunpack.c.l.b16 %v103
    %v272 = vunpack.c.l.b16 %v104
    %v273 = vunpack.c.l.b16 %v105
    %v274 = vunpack.c.l.b16 %v106
    %v275 = vunpack.c.l.b16 %v107
    %v276 = vunpack.c.l.b16 %v108
    %v277 = vunpack.c.l.b16 %v109
    %v278 = vunpack.c.l.b16 %v110
    %v279 = vunpack.c.l.b16 %v111
    %v280 = vunpack.c.l.b16 %v112
    %v281 = vunpack.c.l.b16 %v113
    %v282 = vunpack.c.l.b16 %v114
    %v283 = vunpack.c.l.b16 %v115
    %v284 = vunpack.c.l.b16 %v116
    %v285 = vunpack.c.l.b16 %v117
    %v286 = vunpack.c.l.b16 %v118
    %v287 = vunpack.c.l.b16 %v119
    %v288 = vunpack.c.l.b16 %v120
    %v289 = vunpack.c.l.b16 %v121
    %v290 = vunpack.c.l.b16 %v122
    %v291 = vunpack.c.l.b16 %v123
    %v292 = vunpack.c.l.b16 %v124
    %v293 = vunpack.c.l.b16 %v125
    %v294 = vunpack.c.l.b16 %v126
    %v295 = vunpack.c.l.b16 %v127
    %v296 = vunpack.c.l.b16 %v128
    %v297 = vunpack.c.l.b16 %v129
    %v298 = vunpack.c.l.b16 %v130
    %v299 = vunpack.c.l.b16 %v131
    %v300 = vunpack.c.l.b16 %v132
    %v301 = vunpack.c.l.b16 %v133
    %v302 = vunpack.c.l.b16 %v134
    %v303 = vunpack.c.l.b16 %v135
    %v304 = vunpack.c.l.b16 %v136
    %v305 = vunpack.c.l.b16 %v137
    %v306 = vunpack.c.l.b16 %v138
    %v307 = vunpack.c.l.b16 %v139
    %v308 = vunpack.c.l.b16 %v140
    %v309 = vunpack.c.l.b16 %v141
    %v310 = vunpack.c.l.b16 %v142
    %v311 = vunpack.c.l.b16 %v143
    %v312 = vunpack.c.l.b16 %v144
    %v313 = vunpack.c.l.b16 %v145
    %v314 = vunpack.c.l.b16 %v146
    %v315 = vunpack.c.l.b16 %v147
    %v316 = vunpack.c.l.b16 %v148
    %v317 = vunpack.c.l.b16 %v149
    %v318 = vunpack.c.l.b16 %v150
    %v319 = vunpack.c.l.b16 %v151
    %v320 = vunpack.c.l.b16 %v152
    %v321 = vunpack.c.l.b16 %v153
    %v322 = vunpack.c.l.b16 %v154
    %v323 = vunpack.c.l.b16 %v155
    %v324 = vunpack.c.l.b16 %v156
    %v325 = vpack.c.b16 %v254, %v253
    %v326 = vpack.c.b16 %v256, %v255
    %v327 = vpack.c.b16 %v258, %v257
    %v328 = vpack.c.b16 %v260, %v259
    %v329 = vpack.c.b16 %v262, %v261
    %v330 = vpack.c.b16 %v264, %v263
    %v331 = vpack.c.b16 %v266, %v265
    %v332 = vpack.c.b16 %v268, %v267
    %v333 = vpack.c.b16 %v270, %v269
    %v334 = vpack.c.b16 %v272, %v271
    %v335 = vpack.c.b16 %v274, %v273
    %v336 = vpack.c.b16 %v276, %v275
    %v337 = vpack.c.b16 %v278, %v277
    %v338 = vpack.c.b16 %v280, %v279
    %v339 = vpack.c.b16 %v282, %v281
    %v340 = vpack.c.b16 %v284, %v283
    %v341 = vpack.c.b16 %v286, %v285
    %v342 = vpack.c.b16 %v288, %v287
    %v343 = vpack.c.b16 %v290, %v289
    %v344 = vpack.c.b16 %v292, %v291
    %v345 = vpack.c.b16 %v294, %v293
    %v346 = vpack.c.b16 %v296, %v295
    %v347 = vpack.c.b16 %v298, %v297
    %v348 = vpack.c.b16 %v300, %v299
    %v349 = vpack.c.b16 %v302, %v301
    %v350 = vpack.c.b16 %v304, %v303
    %v351 = vpack.c.b16 %v306, %v305
    %v352 = vpack.c.b16 %v308, %v307
    %v353 = vpack.c.b16 %v310, %v309
    %v354 = vpack.c.b16 %v312, %v311
    %v355 = vpack.c.b16 %v314, %v313
    %v356 = vpack.c.b16 %v316, %v315
    %v357 = vpack.c.b16 %v318, %v317
    %v358 = vpack.c.b16 %v320, %v319
    %v359 = vpack.c.b16 %v322, %v321
    %v360 = vpack.c.b16 %v324, %v323
    %vm397 = vcmask 523264
    %v399 = vsel %vm397, %v176, 0
    %401 = vmatprep.subr.bf16.mxu0 0
    %402 = vmatpush1.bf16.msra.mxu0 %v325
    %403 = vmatprep.subr.bf16.mxu0 0
    %404 = vmatpush1.bf16.msra.mxu0 %v326
    %405 = vmatprep.subr.bf16.mxu0 0
    %406 = vmatpush1.bf16.msra.mxu0 %v327
    %407 = vmatprep.subr.bf16.mxu0 0
    %408 = vmatpush1.bf16.msra.mxu0 %v328
    %409 = vmatprep.subr.bf16.mxu0 0
    %410 = vmatpush1.bf16.msra.mxu0 %v329
    %411 = vmatprep.subr.bf16.mxu0 0
    %412 = vmatpush1.bf16.msra.mxu0 %v330
    %413 = vmatprep.subr.bf16.mxu0 0
    %414 = vmatpush1.bf16.msra.mxu0 %v331
    %415 = vmatprep.subr.bf16.mxu0 0
    %416 = vmatpush1.bf16.msra.mxu0 %v332
    %417 = vmatprep.subr.bf16.mxu0 0
    %418 = vmatpush1.bf16.msra.mxu0 %v333
    %419 = vmatprep.subr.bf16.mxu0 0
    %420 = vmatpush1.bf16.msra.mxu0 %v334
    %421 = vmatprep.subr.bf16.mxu0 0
    %422 = vmatpush1.bf16.msra.mxu0 %v335
    %423 = vmatprep.subr.bf16.mxu0 0
    %424 = vmatpush1.bf16.msra.mxu0 %v336
    %425 = vmatprep.subr.bf16.mxu0 0
    %426 = vmatpush1.bf16.msra.mxu0 %v337
    %427 = vmatprep.subr.bf16.mxu0 0
    %428 = vmatpush1.bf16.msra.mxu0 %v338
    %429 = vmatprep.subr.bf16.mxu0 0
    %430 = vmatpush1.bf16.msra.mxu0 %v339
    %431 = vmatprep.subr.bf16.mxu0 0
    %432 = vmatpush1.bf16.msra.mxu0 %v340
    %433 = vmatprep.mubr.bf16.mxu0 %v173
    %434 = vmatmul.mubr.bf16.gmra.mrb[0].mxu0 %v172
    %v435 = vpop.f32.mrb[0].mxu0
    %v436 = vadd.f32 %v162, %v435
    %v437 = vpop.f32.mrb[0].mxu0
    %v438 = vpop.f32.mrb[0].mxu0
    %v439 = vpop.f32.mrb[0].mxu0
    %440 = vdwg.mxu0
    %441 = vmatprep.subr.bf16.mxu0 0
    %442 = vmatpush1.bf16.msra.mxu0 %v341
    %443 = vmatprep.subr.bf16.mxu0 0
    %444 = vmatpush1.bf16.msra.mxu0 %v342
    %445 = vmatprep.subr.bf16.mxu0 0
    %446 = vmatpush1.bf16.msra.mxu0 %v343
    %447 = vmatprep.subr.bf16.mxu0 0
    %448 = vmatpush1.bf16.msra.mxu0 %v344
    %449 = vmatprep.subr.bf16.mxu0 0
    %450 = vmatpush1.bf16.msra.mxu0 %v345
    %451 = vmatprep.subr.bf16.mxu0 0
    %452 = vmatpush1.bf16.msra.mxu0 %v346
    %453 = vmatprep.subr.bf16.mxu0 0
    %454 = vmatpush1.bf16.msra.mxu0 %v347
    %455 = vmatprep.subr.bf16.mxu0 0
    %456 = vmatpush1.bf16.msra.mxu0 %v348
    %457 = vmatprep.subr.bf16.mxu0 0
    %458 = vmatpush1.bf16.msra.mxu0 %v349
    %459 = vmatprep.subr.bf16.mxu0 0
    %460 = vmatpush1.bf16.msra.mxu0 %v350
    %461 = vmatprep.subr.bf16.mxu0 0
    %462 = vmatpush1.bf16.msra.mxu0 %v351
    %463 = vmatprep.subr.bf16.mxu0 0
    %464 = vmatpush1.bf16.msra.mxu0 %v352
    %465 = vmatprep.subr.bf16.mxu0 0
    %466 = vmatpush1.bf16.msra.mxu0 %v353
    %467 = vmatprep.subr.bf16.mxu0 0
    %468 = vmatpush1.bf16.msra.mxu0 %v354
    %469 = vmatprep.subr.bf16.mxu0 0
    %470 = vmatpush1.bf16.msra.mxu0 %v355
    %471 = vmatprep.subr.bf16.mxu0 0
    %472 = vmatpush1.bf16.msra.mxu0 %v356
    %473 = vmatprep.mubr.bf16.mxu0 %v175
    %474 = vmatmul.mubr.bf16.gmra.mrb[0].mxu0 %v174
    %v475 = vpop.f32.mrb[0].mxu0
    %v476 = vadd.f32 %v436, %v475
    %v477 = vpop.f32.mrb[0].mxu0
    %v478 = vpop.f32.mrb[0].mxu0
    %v479 = vpop.f32.mrb[0].mxu0
    %480 = vdwg.mxu0
    %481 = vmatprep.subr.bf16.mxu0 0
    %482 = vmatpush1.bf16.msra.mxu0 %v357
    %483 = vmatprep.subr.bf16.mxu0 0
    %484 = vmatpush1.bf16.msra.mxu0 %v358
    %485 = vmatprep.subr.bf16.mxu0 0
    %486 = vmatpush1.bf16.msra.mxu0 %v359
    %487 = vmatprep.subr.bf16.mxu0 0
    %488 = vmatpush1.bf16.msra.mxu0 %v360
    %489 = vmatprep.subr.bf16.mxu0 0
    %490 = vmatpush1.bf16.msra.mxu0 0
    %491 = vmatprep.subr.bf16.mxu0 0
    %492 = vmatpush1.bf16.msra.mxu0 0
    %493 = vmatprep.subr.bf16.mxu0 0
    %494 = vmatpush1.bf16.msra.mxu0 0
    %495 = vmatprep.subr.bf16.mxu0 0
    %496 = vmatpush1.bf16.msra.mxu0 0
    %497 = vmatprep.subr.bf16.mxu0 0
    %498 = vmatpush1.bf16.msra.mxu0 0
    %499 = vmatprep.subr.bf16.mxu0 0
    %500 = vmatpush1.bf16.msra.mxu0 0
    %501 = vmatprep.subr.bf16.mxu0 0
    %502 = vmatpush1.bf16.msra.mxu0 0
    %503 = vmatprep.subr.bf16.mxu0 0
    %504 = vmatpush1.bf16.msra.mxu0 0
    %505 = vmatprep.subr.bf16.mxu0 0
    %506 = vmatpush1.bf16.msra.mxu0 0
    %507 = vmatprep.subr.bf16.mxu0 0
    %508 = vmatpush1.bf16.msra.mxu0 0
    %509 = vmatprep.subr.bf16.mxu0 0
    %510 = vmatpush1.bf16.msra.mxu0 0
    %511 = vmatprep.subr.bf16.mxu0 0
    %512 = vmatpush1.bf16.msra.mxu0 0
    %513 = vmatprep.mubr.bf16.mxu0 0
    %514 = vmatmul.mubr.bf16.gmra.mrb[0].mxu0 %v399
    %v515 = vpop.f32.mrb[0].mxu0
    %v516 = vadd.f32 %v476, %v515
    %v517 = vpop.f32.mrb[0].mxu0
    %v518 = vpop.f32.mrb[0].mxu0
    %v519 = vpop.f32.mrb[0].mxu0
    %520 = vdwg.mxu0
    %v521 = vmax.f32 %v516, 0.0
    %v522 = vld [vmem:[#allocation8] sm:$0x1]
    %v524 = vlaneseq
    %v525 = vshrl.u32 %v524, 7
    %v526 = vsub.s32 0, %v525
    %v527 = vrot.slane %v522, %v526
    %v529 = vmul.f32 %v521, %v527
    %v530 = vld [vmem:[#allocation10] sm:$0x1]
    %v532 = vlaneseq
    %v533 = vshrl.u32 %v532, 7
    %v534 = vsub.s32 0, %v533
    %v535 = vrot.slane %v530, %v534
    %v537 = vadd.f32 %v529, %v535
    %v538 = vpack.c.bf16 %v537, %v537
    %vm539 = vcmask 519168
    %540 = vst.msk [vmem:[#allocation11] sm:$0xf] %vm539, %v538
    // Predicated region
    $region42: #{unet_forward.24} parent=1 // pred_check
      _
    $region43: #{unet_forward.24} parent=1 // pred_check_branch
      %542 = sbr.rel (0) target = $region45
    $region44: #{unet_forward.24} parent=1 // pred_region
      %s544 = ssub.s32 64, 64
      %545 = vsyncadd [#allocation4], %s544
      %s547 = sshll.u32 [#allocation11], 4
      %s548 = int_to_ptr.vmem [resolvable:$true] %s547
      %550 = dma.vmem_to_hbm [thread:$0]  %s548, 64, %s5, [#allocation4]
    $region45: #{unet_forward.24} parent=1 // pred_fallthru
      _
    // Predicated region
    $region46: #{unet_forward.24} parent=1 // pred_check
      _
    $region47: #{unet_forward.24} parent=1 // pred_check_branch
      %552 = sbr.rel (0) target = $region49
    $region48: #{unet_forward.24} parent=1 // pred_region
      %553 = dma.done [#allocation4], 64
    $region49: #{unet_forward.24} parent=1 // pred_fallthru
      _
    %554 = vsyncpa [#allocation3], 1
    %555 = vsyncpa [#allocation6], 1
    %556 = vsyncpa [#allocation9], 1
    %557 = vsyncpa [#allocation4], 1

// kernel: tile.23
$region0: #{tile.23}
  #allocation0 [shape = 's32[1]{0}', space=sflag, size = 0x4, scoped, tag = 'scoped memory for tile.23']
  %s0 = inlined_call_operand.vmem [shape: f32[16], index: 0, kind: input, shape index: {}]
  %s1 = inlined_call_operand.vmem [shape: f32[4,16], index: 1, kind: output, shape index: {}]
  // Predicated region
  $region2: #{tile.23} parent=0 // pred_check
    _
  $region3: #{tile.23} parent=0 // pred_check_branch
    %3 = sbr.rel (0) target = $region5
  $region4: #{tile.23} parent=0 // pred_region
    _
  $region5: #{tile.23} parent=0 // pred_fallthru
    _
  %v4 = vld [vmem:[%s0] ss:$0 sm:$0xff]
  %5 = vst [vmem:[%s1] sm:$0xf] %v4

// kernel: tile.24
$region0: #{tile.24}
  %s0 = inlined_call_operand.vmem [shape: f32[4,16], index: 0, kind: input, shape index: {}]
  %s1 = inlined_call_operand.hbm [shape: f32[1,64], index: 1, kind: output, shape index: {}]
  $region1: #{tile.24} parent=0
    #allocation0 [shape = 'u8[512]{0}', space=vmem, size = 0x400, scoped, tag = 'operand span for operand 1']
    #allocation1 [shape = 's32[1]{0}', space=sflag, size = 0x4, scoped, tag = 'scoped memory for tile.24']
    #allocation2 [shape = 'u8[4096]{0}', space=vmem, size = 0x1000, scoped, tag = 'scoped mem for output reshape']
    #allocation3 [shape = 'u8[4096]{0}', space=vmem, size = 0x1000, scoped, tag = 'scoped mem for input reshape']
    %2 = vsyncpa [#allocation1], 0
    %s4 = sshllo.u32 0, 4
    %v5 = vld [vmem:[%s0] sm:%s4]
    %6 = vst [vmem:[#allocation3] sm:%s4] %v5
    %v7 = vld [vmem:[#allocation3] sm:$0x1]
    %vm8 = vcmask 130048
    %9 = vst.msk [vmem:[#allocation2] sm:$0x1] %vm8, %v7
    %s10 = scalar_lea.vmem [#allocation3], 3
    %v11 = vld [vmem:[%s10] sm:$0x1]
    %12 = vrot.lane.b32.xlu0 %v11, 48
    %v13 = vpop.permute.xlu0 %12
    %vm14 = vcmask 523648
    %15 = vst.msk [vmem:[#allocation2] sm:$0x1] %vm14, %v13
    %s16 = scalar_lea.vmem [#allocation3], 2
    %v17 = vld [vmem:[%s16] sm:$0x1]
    %18 = vrot.lane.b32.xlu0 %v17, 32
    %v19 = vpop.permute.xlu0 %18
    %vm20 = vcmask 392448
    %21 = vst.msk [vmem:[#allocation2] sm:$0x1] %vm20, %v19
    %s22 = scalar_lea.vmem [#allocation3], 1
    %v23 = vld [vmem:[%s22] sm:$0x1]
    %24 = vrot.lane.b32.xlu0 %v23, 16
    %v25 = vpop.permute.xlu0 %24
    %vm26 = vcmask 261248
    %27 = vst.msk [vmem:[#allocation2] sm:$0x1] %vm26, %v25
    %s29 = sshllo.u32 0, 1
    %v31 = vld [vmem:[#allocation2] sm:%s29]
    %s32 = sshllo.u32 0, 1
    %33 = vst [vmem:[#allocation0] sm:%s32] %v31
    %s35 = ssub.s32 16, 16
    %36 = vsyncadd [#allocation1], %s35
    %s38 = sshll.u32 [#allocation0], 4
    %s39 = int_to_ptr.vmem [resolvable:$true] %s38
    %41 = dma.vmem_to_hbm [thread:$0]  %s39, 16, %s1, [#allocation1]
    %42 = dma.done [#allocation1], 16
    %43 = vsyncpa [#allocation1], 1

// kernel: unet_forward.25
$region0: #{unet_forward.25}
  #allocation0 [shape = 'u32[]', space=smem, size = 0x4, offset = 0x4, fixed_abs, tag = 'smem constant byte address 0x4 - core index']
  #allocation1 [shape = 'u32[144,128]{1,0:T(1,128)}', space=vmem, size = 0x12000, scoped, tag = 'internal scratch']
  %s0 = inlined_call_operand.hbm [shape: bf16[8,64], index: 0, kind: input, shape index: {}]
  %s1 = inlined_call_operand.hbm [shape: bf16[64,128], index: 1, kind: input, shape index: {}]
  %s2 = inlined_call_operand.hbm [shape: f32[1,128], index: 2, kind: input, shape index: {}]
  %s3 = inlined_call_operand.hbm [shape: bf16[8,128], index: 3, kind: output, shape index: {}]
  %s4 = sld [smem:[#allocation0]]
  $region34: #{unet_forward.25} parent=0
    _
  %s6 = ssub.s32 1, %s4
  %s7 = scalar_select 0, %s6, %s4
  $region1: #{unet_forward.25} parent=0
    #allocation2 [shape = 'u8[2048]{0}', space=vmem, size = 0x800, scoped, tag = 'input window, operand 0, single buffered']
    #allocation3 [shape = 's32[1]{0}', space=sflag, size = 0x4, scoped, tag = 'scoped memory for unet_forward.25']
    #allocation4 [shape = 's32[1]{0}', space=sflag, size = 0x4, scoped, tag = 'scoped memory for unet_forward.25']
    #allocation5 [shape = 'u8[16384]{0}', space=vmem, size = 0x4000, scoped, tag = 'input window, operand 1, single buffered']
    #allocation6 [shape = 's32[1]{0}', space=sflag, size = 0x4, scoped, tag = 'scoped memory for unet_forward.25']
    #allocation7 [shape = 'u8[512]{0}', space=vmem, size = 0x400, scoped, tag = 'input window, operand 2, single buffered']
    #allocation8 [shape = 'u8[2048]{0}', space=vmem, size = 0x800, scoped, tag = 'output window, operand 0, single buffered']
    %8 = vsyncpa [#allocation3], 0
    %9 = vsyncpa [#allocation6], 0
    %10 = vsyncpa [#allocation4], 0
    // Predicated region
    $region2: #{unet_forward.25} parent=1 // pred_check
      _
    $region3: #{unet_forward.25} parent=1 // pred_check_branch
      %12 = sbr.rel (0) target = $region5
    $region4: #{unet_forward.25} parent=1 // pred_region
      %s14 = ssub.s32 64, 64
      %15 = vsyncadd [#allocation3], %s14
      %s17 = sshll.u32 [#allocation2], 4
      %s18 = int_to_ptr.vmem [resolvable:$true] %s17
      %20 = dma.hbm_to_vmem [thread:$0]  %s0, 64, %s18, [#allocation3]
    $region5: #{unet_forward.25} parent=1 // pred_fallthru
      _
    // Predicated region
    $region6: #{unet_forward.25} parent=1 // pred_check
      _
    $region7: #{unet_forward.25} parent=1 // pred_check_branch
      %22 = sbr.rel (0) target = $region9
    $region8: #{unet_forward.25} parent=1 // pred_region
      %s24 = ssub.s32 512, 512
      %25 = vsyncadd [#allocation6], %s24
      %s26 = sshll.u32 [#allocation5], 4
      %s27 = int_to_ptr.vmem [resolvable:$true] %s26
      %32 = dma.hbm_to_vmem [thread:$0]  %s1, 512, %s27, [#allocation6], 64, 64, 4
    $region9: #{unet_forward.25} parent=1 // pred_fallthru
      _
    // Predicated region
    $region10: #{unet_forward.25} parent=1 // pred_check
      _
    $region11: #{unet_forward.25} parent=1 // pred_check_branch
      %34 = sbr.rel (0) target = $region13
    $region12: #{unet_forward.25} parent=1 // pred_region
      %s36 = ssub.s32 16, 16
      %37 = vsyncadd [#allocation6], %s36
      %s39 = sshll.u32 [#allocation7], 4
      %s40 = int_to_ptr.vmem [resolvable:$true] %s39
      %42 = dma.hbm_to_vmem [thread:$0]  %s2, 16, %s40, [#allocation6]
    $region13: #{unet_forward.25} parent=1 // pred_fallthru
      _
    // Predicated region
    $region14: #{unet_forward.25} parent=1 // pred_check
      _
    $region15: #{unet_forward.25} parent=1 // pred_check_branch
      %44 = sbr.rel (0) target = $region17
    $region16: #{unet_forward.25} parent=1 // pred_region
      %45 = dma.done [#allocation3], 64
    $region17: #{unet_forward.25} parent=1 // pred_fallthru
      _
    // Predicated region
    $region18: #{unet_forward.25} parent=1 // pred_check
      _
    $region19: #{unet_forward.25} parent=1 // pred_check_branch
      %47 = sbr.rel (0) target = $region21
    $region20: #{unet_forward.25} parent=1 // pred_region
      %48 = dma.done [#allocation6], 512
    $region21: #{unet_forward.25} parent=1 // pred_fallthru
      _
    // Predicated region
    $region22: #{unet_forward.25} parent=1 // pred_check
      _
    $region23: #{unet_forward.25} parent=1 // pred_check_branch
      %50 = sbr.rel (0) target = $region25
    $region24: #{unet_forward.25} parent=1 // pred_region
      %51 = dma.done [#allocation6], 16
    $region25: #{unet_forward.25} parent=1 // pred_fallthru
      _
    %v53 = vld [vmem:[#allocation2] sm:$0xf]
    %v54 = vld [vmem:[#allocation5] sm:$0xf]
    %v55 = vld [vmem:[#allocation5 + $0x4] sm:$0xf]
    %v56 = vld [vmem:[#allocation5 + $0x8] sm:$0xf]
    %v57 = vld [vmem:[#allocation5 + $0xc] sm:$0xf]
    %v58 = vld [vmem:[#allocation5 + $0x10] sm:$0xf]
    %v59 = vld [vmem:[#allocation5 + $0x14] sm:$0xf]
    %v60 = vld [vmem:[#allocation5 + $0x18] sm:$0xf]
    %v61 = vld [vmem:[#allocation5 + $0x1c] sm:$0xf]
    %v62 = vld [vmem:[#allocation7] sm:$0x1]
    %v64 = vlaneseq
    %v65 = vshrl.u32 %v64, 7
    %v66 = vsub.s32 0, %v65
    %v67 = vrot.slane %v62, %v66
    %v77 = vunpack.c.l.b16 %v54
    %v78 = vunpack.c.l.b16 %v55
    %v79 = vunpack.c.l.b16 %v56
    %v80 = vunpack.c.l.b16 %v57
    %v81 = vunpack.c.l.b16 %v58
    %v82 = vunpack.c.l.b16 %v59
    %v83 = vunpack.c.l.b16 %v60
    %v84 = vunpack.c.l.b16 %v61
    %v85 = vpack.c.b16 %v78, %v77
    %v86 = vpack.c.b16 %v80, %v79
    %v87 = vpack.c.b16 %v82, %v81
    %v88 = vpack.c.b16 %v84, %v83
    %vm93 = vcmask 523264
    %v95 = vsel %vm93, %v53, 0
    %97 = vmatprep.subr.bf16.mxu0 0
    %98 = vmatpush1.bf16.msra.mxu0 %v85
    %99 = vmatprep.subr.bf16.mxu0 0
    %100 = vmatpush1.bf16.msra.mxu0 %v86
    %101 = vmatprep.subr.bf16.mxu0 0
    %102 = vmatpush1.bf16.msra.mxu0 %v87
    %103 = vmatprep.subr.bf16.mxu0 0
    %104 = vmatpush1.bf16.msra.mxu0 %v88
    %105 = vmatprep.subr.bf16.mxu0 0
    %106 = vmatpush1.bf16.msra.mxu0 0
    %107 = vmatprep.subr.bf16.mxu0 0
    %108 = vmatpush1.bf16.msra.mxu0 0
    %109 = vmatprep.subr.bf16.mxu0 0
    %110 = vmatpush1.bf16.msra.mxu0 0
    %111 = vmatprep.subr.bf16.mxu0 0
    %112 = vmatpush1.bf16.msra.mxu0 0
    %113 = vmatprep.subr.bf16.mxu0 0
    %114 = vmatpush1.bf16.msra.mxu0 0
    %115 = vmatprep.subr.bf16.mxu0 0
    %116 = vmatpush1.bf16.msra.mxu0 0
    %117 = vmatprep.subr.bf16.mxu0 0
    %118 = vmatpush1.bf16.msra.mxu0 0
    %119 = vmatprep.subr.bf16.mxu0 0
    %120 = vmatpush1.bf16.msra.mxu0 0
    %121 = vmatprep.subr.bf16.mxu0 0
    %122 = vmatpush1.bf16.msra.mxu0 0
    %123 = vmatprep.subr.bf16.mxu0 0
    %124 = vmatpush1.bf16.msra.mxu0 0
    %125 = vmatprep.subr.bf16.mxu0 0
    %126 = vmatpush1.bf16.msra.mxu0 0
    %127 = vmatprep.subr.bf16.mxu0 0
    %128 = vmatpush1.bf16.msra.mxu0 0
    %129 = vmatprep.mubr.bf16.mxu0 0
    %130 = vmatmul.mubr.bf16.gmra.mrb[0].mxu0 %v95
    %v131 = vpop.f32.mrb[0].mxu0
    %v132 = vadd.f32 %v67, %v131
    %v133 = vpop.f32.mrb[0].mxu0
    %v134 = vpop.f32.mrb[0].mxu0
    %v135 = vpop.f32.mrb[0].mxu0
    %136 = vdwg.mxu0
    %v137 = vpack.c.bf16 %v132, %v132
    %138 = vst [vmem:[#allocation8] sm:$0xf] %v137
    // Predicated region
    $region26: #{unet_forward.25} parent=1 // pred_check
      _
    $region27: #{unet_forward.25} parent=1 // pred_check_branch
      %140 = sbr.rel (0) target = $region29
    $region28: #{unet_forward.25} parent=1 // pred_region
      %s142 = ssub.s32 64, 64
      %143 = vsyncadd [#allocation4], %s142
      %s145 = sshll.u32 [#allocation8], 4
      %s146 = int_to_ptr.vmem [resolvable:$true] %s145
      %148 = dma.vmem_to_hbm [thread:$0]  %s146, 64, %s3, [#allocation4]
    $region29: #{unet_forward.25} parent=1 // pred_fallthru
      _
    // Predicated region
    $region30: #{unet_forward.25} parent=1 // pred_check
      _
    $region31: #{unet_forward.25} parent=1 // pred_check_branch
      %150 = sbr.rel (0) target = $region33
    $region32: #{unet_forward.25} parent=1 // pred_region
      %151 = dma.done [#allocation4], 64
    $region33: #{unet_forward.25} parent=1 // pred_fallthru
      _
    %152 = vsyncpa [#allocation3], 1
    %153 = vsyncpa [#allocation6], 1
    %154 = vsyncpa [#allocation4], 1

// kernel: unet_forward.28
$region0: #{unet_forward.28}
  #allocation0 [shape = 'u32[]', space=smem, size = 0x4, offset = 0x4, fixed_abs, tag = 'smem constant byte address 0x4 - core index']
  #allocation1 [shape = 'u32[144,128]{1,0:T(1,128)}', space=vmem, size = 0x12000, scoped, tag = 'internal scratch']
  %s0 = inlined_call_operand.hbm [shape: bf16[32,32], index: 0, kind: input, shape index: {}]
  %s1 = inlined_call_operand.hbm [shape: bf16[32,64], index: 1, kind: input, shape index: {}]
  %s2 = inlined_call_operand.hbm [shape: f32[1,64], index: 2, kind: input, shape index: {}]
  %s3 = inlined_call_operand.hbm [shape: bf16[32,64], index: 3, kind: output, shape index: {}]
  %s4 = sld [smem:[#allocation0]]
  $region34: #{unet_forward.28} parent=0
    _
  %s6 = ssub.s32 1, %s4
  %s7 = scalar_select 0, %s6, %s4
  $region1: #{unet_forward.28} parent=0
    #allocation2 [shape = 'u8[8192]{0}', space=vmem, size = 0x2000, scoped, tag = 'input window, operand 0, single buffered']
    #allocation3 [shape = 's32[1]{0}', space=sflag, size = 0x4, scoped, tag = 'scoped memory for unet_forward.28']
    #allocation4 [shape = 's32[1]{0}', space=sflag, size = 0x4, scoped, tag = 'scoped memory for unet_forward.28']
    #allocation5 [shape = 'u8[8192]{0}', space=vmem, size = 0x2000, scoped, tag = 'input window, operand 1, single buffered']
    #allocation6 [shape = 's32[1]{0}', space=sflag, size = 0x4, scoped, tag = 'scoped memory for unet_forward.28']
    #allocation7 [shape = 'u8[512]{0}', space=vmem, size = 0x400, scoped, tag = 'input window, operand 2, single buffered']
    #allocation8 [shape = 'u8[8192]{0}', space=vmem, size = 0x2000, scoped, tag = 'output window, operand 0, single buffered']
    %8 = vsyncpa [#allocation3], 0
    %9 = vsyncpa [#allocation6], 0
    %10 = vsyncpa [#allocation4], 0
    // Predicated region
    $region2: #{unet_forward.28} parent=1 // pred_check
      _
    $region3: #{unet_forward.28} parent=1 // pred_check_branch
      %12 = sbr.rel (0) target = $region5
    $region4: #{unet_forward.28} parent=1 // pred_region
      %s14 = ssub.s32 256, 256
      %15 = vsyncadd [#allocation3], %s14
      %s16 = sshll.u32 [#allocation2], 4
      %s17 = int_to_ptr.vmem [resolvable:$true] %s16
      %22 = dma.hbm_to_vmem [thread:$0]  %s0, 256, %s17, [#allocation3], 64, 64, 4
    $region5: #{unet_forward.28} parent=1 // pred_fallthru
      _
    // Predicated region
    $region6: #{unet_forward.28} parent=1 // pred_check
      _
    $region7: #{unet_forward.28} parent=1 // pred_check_branch
      %24 = sbr.rel (0) target = $region9
    $region8: #{unet_forward.28} parent=1 // pred_region
      %s26 = ssub.s32 256, 256
      %27 = vsyncadd [#allocation6], %s26
      %s28 = sshll.u32 [#allocation5], 4
      %s29 = int_to_ptr.vmem [resolvable:$true] %s28
      %34 = dma.hbm_to_vmem [thread:$0]  %s1, 256, %s29, [#allocation6], 64, 64, 4
    $region9: #{unet_forward.28} parent=1 // pred_fallthru
      _
    // Predicated region
    $region10: #{unet_forward.28} parent=1 // pred_check
      _
    $region11: #{unet_forward.28} parent=1 // pred_check_branch
      %36 = sbr.rel (0) target = $region13
    $region12: #{unet_forward.28} parent=1 // pred_region
      %s38 = ssub.s32 16, 16
      %39 = vsyncadd [#allocation6], %s38
      %s41 = sshll.u32 [#allocation7], 4
      %s42 = int_to_ptr.vmem [resolvable:$true] %s41
      %44 = dma.hbm_to_vmem [thread:$0]  %s2, 16, %s42, [#allocation6]
    $region13: #{unet_forward.28} parent=1 // pred_fallthru
      _
    // Predicated region
    $region14: #{unet_forward.28} parent=1 // pred_check
      _
    $region15: #{unet_forward.28} parent=1 // pred_check_branch
      %46 = sbr.rel (0) target = $region17
    $region16: #{unet_forward.28} parent=1 // pred_region
      %47 = dma.done [#allocation3], 256
    $region17: #{unet_forward.28} parent=1 // pred_fallthru
      _
    // Predicated region
    $region18: #{unet_forward.28} parent=1 // pred_check
      _
    $region19: #{unet_forward.28} parent=1 // pred_check_branch
      %49 = sbr.rel (0) target = $region21
    $region20: #{unet_forward.28} parent=1 // pred_region
      %50 = dma.done [#allocation6], 256
    $region21: #{unet_forward.28} parent=1 // pred_fallthru
      _
    // Predicated region
    $region22: #{unet_forward.28} parent=1 // pred_check
      _
    $region23: #{unet_forward.28} parent=1 // pred_check_branch
      %52 = sbr.rel (0) target = $region25
    $region24: #{unet_forward.28} parent=1 // pred_region
      %53 = dma.done [#allocation6], 16
    $region25: #{unet_forward.28} parent=1 // pred_fallthru
      _
    %v55 = vld [vmem:[#allocation2] sm:$0xf]
    %v56 = vld [vmem:[#allocation2 + $0x4] sm:$0xf]
    %v57 = vld [vmem:[#allocation2 + $0x8] sm:$0xf]
    %v58 = vld [vmem:[#allocation2 + $0xc] sm:$0xf]
    %v59 = vld [vmem:[#allocation5] sm:$0xf]
    %v60 = vld [vmem:[#allocation5 + $0x4] sm:$0xf]
    %v61 = vld [vmem:[#allocation5 + $0x8] sm:$0xf]
    %v62 = vld [vmem:[#allocation5 + $0xc] sm:$0xf]
    %v63 = vld [vmem:[#allocation7] sm:$0x1]
    %v65 = vlaneseq
    %v66 = vshrl.u32 %v65, 7
    %v67 = vsub.s32 0, %v66
    %v68 = vrot.slane %v63, %v67
    %v74 = vunpack.c.l.b16 %v55
    %v75 = vunpack.c.l.b16 %v56
    %v76 = vunpack.c.l.b16 %v57
    %v77 = vunpack.c.l.b16 %v58
    %v78 = vpack.c.b16 %v75, %v74
    %v79 = vpack.c.b16 %v77, %v76
    %v84 = vunpack.c.l.b16 %v59
    %v85 = vunpack.c.l.b16 %v60
    %v86 = vunpack.c.l.b16 %v61
    %v87 = vunpack.c.l.b16 %v62
    %v88 = vpack.c.b16 %v85, %v84
    %v89 = vpack.c.b16 %v87, %v86
    %vm92 = vcmask 261120
    %v94 = vsel %vm92, %v78, 0
    %v97 = vsel %vm92, %v79, 0
    %99 = vmatprep.subr.bf16.mxu0 0
    %100 = vmatpush1.bf16.msra.mxu0 %v88
    %101 = vmatprep.subr.bf16.mxu0 0
    %102 = vmatpush1.bf16.msra.mxu0 %v89
    %103 = vmatprep.subr.bf16.mxu0 0
    %104 = vmatpush1.bf16.msra.mxu0 0
    %105 = vmatprep.subr.bf16.mxu0 0
    %106 = vmatpush1.bf16.msra.mxu0 0
    %107 = vmatprep.subr.bf16.mxu0 0
    %108 = vmatpush1.bf16.msra.mxu0 0
    %109 = vmatprep.subr.bf16.mxu0 0
    %110 = vmatpush1.bf16.msra.mxu0 0
    %111 = vmatprep.subr.bf16.mxu0 0
    %112 = vmatpush1.bf16.msra.mxu0 0
    %113 = vmatprep.subr.bf16.mxu0 0
    %114 = vmatpush1.bf16.msra.mxu0 0
    %115 = vmatprep.subr.bf16.mxu0 0
    %116 = vmatpush1.bf16.msra.mxu0 0
    %117 = vmatprep.subr.bf16.mxu0 0
    %118 = vmatpush1.bf16.msra.mxu0 0
    %119 = vmatprep.subr.bf16.mxu0 0
    %120 = vmatpush1.bf16.msra.mxu0 0
    %121 = vmatprep.subr.bf16.mxu0 0
    %122 = vmatpush1.bf16.msra.mxu0 0
    %123 = vmatprep.subr.bf16.mxu0 0
    %124 = vmatpush1.bf16.msra.mxu0 0
    %125 = vmatprep.subr.bf16.mxu0 0
    %126 = vmatpush1.bf16.msra.mxu0 0
    %127 = vmatprep.subr.bf16.mxu0 0
    %128 = vmatpush1.bf16.msra.mxu0 0
    %129 = vmatprep.subr.bf16.mxu0 0
    %130 = vmatpush1.bf16.msra.mxu0 0
    %131 = vmatprep.mubr.bf16.mxu0 0
    %132 = vmatmul.mubr.bf16.gmra.mrb[0].mxu0 %v94
    %v133 = vpop.f32.mrb[0].mxu0
    %v134 = vadd.f32 %v68, %v133
    %v135 = vpop.f32.mrb[0].mxu0
    %v136 = vpop.f32.mrb[0].mxu0
    %v137 = vadd.f32 %v68, %v136
    %v138 = vpop.f32.mrb[0].mxu0
    %139 = vmatprep.mubr.bf16.mxu0 0
    %140 = vmatmul.mubr.bf16.gmra.mrb[0].mxu0 %v97
    %v141 = vpop.f32.mrb[0].mxu0
    %v142 = vadd.f32 %v68, %v141
    %v143 = vpop.f32.mrb[0].mxu0
    %v144 = vpop.f32.mrb[0].mxu0
    %v145 = vadd.f32 %v68, %v144
    %v146 = vpop.f32.mrb[0].mxu0
    %147 = vdwg.mxu0
    %v148 = vpack.c.bf16 %v137, %v134
    %v149 = vpack.c.bf16 %v145, %v142
    %v152 = vunpack.c.l.b16 %v148
    %v153 = vunpack.c.h.b16 %v148
    %v154 = vunpack.c.l.b16 %v149
    %v155 = vunpack.c.h.b16 %v149
    %v156 = vpack.c.b16 %v152, %v152
    %v157 = vpack.c.b16 %v153, %v153
    %v158 = vpack.c.b16 %v154, %v154
    %v159 = vpack.c.b16 %v155, %v155
    %vm164 = vcmask 519168
    %165 = vst.msk [vmem:[#allocation8] sm:$0xf] %vm164, %v156
    %166 = vst.msk [vmem:[#allocation8 + $0x4] sm:$0xf] %vm164, %v157
    %167 = vst.msk [vmem:[#allocation8 + $0x8] sm:$0xf] %vm164, %v158
    %168 = vst.msk [vmem:[#allocation8 + $0xc] sm:$0xf] %vm164, %v159
    // Predicated region
    $region26: #{unet_forward.28} parent=1 // pred_check
      _
    $region27: #{unet_forward.28} parent=1 // pred_check_branch
      %170 = sbr.rel (0) target = $region29
    $region28: #{unet_forward.28} parent=1 // pred_region
      %s172 = ssub.s32 256, 256
      %173 = vsyncadd [#allocation4], %s172
      %s174 = sshll.u32 [#allocation8], 4
      %s175 = int_to_ptr.vmem [resolvable:$true] %s174
      %180 = dma.vmem_to_hbm [thread:$0]  %s175, 256, %s3, [#allocation4], 64, 64, 4
    $region29: #{unet_forward.28} parent=1 // pred_fallthru
      _
    // Predicated region
    $region30: #{unet_forward.28} parent=1 // pred_check
      _
    $region31: #{unet_forward.28} parent=1 // pred_check_branch
      %182 = sbr.rel (0) target = $region33
    $region32: #{unet_forward.28} parent=1 // pred_region
      %183 = dma.done [#allocation4], 256
    $region33: #{unet_forward.28} parent=1 // pred_fallthru
      _
    %184 = vsyncpa [#allocation3], 1
    %185 = vsyncpa [#allocation6], 1
    %186 = vsyncpa [#allocation4], 1

// kernel: unet_forward.26
$region0: #{unet_forward.26}
  #allocation0 [shape = 'u32[]', space=smem, size = 0x4, offset = 0x4, fixed_abs, tag = 'smem constant byte address 0x4 - core index']
  #allocation1 [shape = 'u32[144,128]{1,0:T(1,128)}', space=vmem, size = 0x12000, scoped, tag = 'internal scratch']
  %s0 = inlined_call_operand.hbm [shape: bf16[32,576], index: 0, kind: input, shape index: {}]
  %s1 = inlined_call_operand.hbm [shape: bf16[576,32], index: 1, kind: input, shape index: {}]
  %s2 = inlined_call_operand.hbm [shape: f32[1,32], index: 2, kind: input, shape index: {}]
  %s3 = inlined_call_operand.hbm [shape: f32[1,32], index: 3, kind: input, shape index: {}]
  %s4 = inlined_call_operand.hbm [shape: f32[1,32], index: 4, kind: input, shape index: {}]
  %s5 = inlined_call_operand.hbm [shape: bf16[32,32], index: 5, kind: output, shape index: {}]
  %s6 = sld [smem:[#allocation0]]
  $region50: #{unet_forward.26} parent=0
    _
  %s8 = ssub.s32 1, %s6
  %s9 = scalar_select 0, %s8, %s6
  $region1: #{unet_forward.26} parent=0
    #allocation2 [shape = 'u8[40960]{0}', space=vmem, size = 0xa000, scoped, tag = 'input window, operand 0, single buffered']
    #allocation3 [shape = 's32[1]{0}', space=sflag, size = 0x4, scoped, tag = 'scoped memory for unet_forward.26']
    #allocation4 [shape = 's32[1]{0}', space=sflag, size = 0x4, scoped, tag = 'scoped memory for unet_forward.26']
    #allocation5 [shape = 'u8[147456]{0}', space=vmem, size = 0x24000, scoped, tag = 'input window, operand 1, single buffered']
    #allocation6 [shape = 's32[1]{0}', space=sflag, size = 0x4, scoped, tag = 'scoped memory for unet_forward.26']
    #allocation7 [shape = 'u8[512]{0}', space=vmem, size = 0x400, scoped, tag = 'input window, operand 2, single buffered']
    #allocation8 [shape = 'u8[512]{0}', space=vmem, size = 0x400, scoped, tag = 'input window, operand 3, single buffered']
    #allocation9 [shape = 's32[1]{0}', space=sflag, size = 0x4, scoped, tag = 'scoped memory for unet_forward.26']
    #allocation10 [shape = 'u8[512]{0}', space=vmem, size = 0x400, scoped, tag = 'input window, operand 4, single buffered']
    #allocation11 [shape = 'u8[8192]{0}', space=vmem, size = 0x2000, scoped, tag = 'output window, operand 0, single buffered']
    %10 = vsyncpa [#allocation3], 0
    %11 = vsyncpa [#allocation6], 0
    %12 = vsyncpa [#allocation9], 0
    %13 = vsyncpa [#allocation4], 0
    // Predicated region
    $region2: #{unet_forward.26} parent=1 // pred_check
      _
    $region3: #{unet_forward.26} parent=1 // pred_check_branch
      %15 = sbr.rel (0) target = $region5
    $region4: #{unet_forward.26} parent=1 // pred_region
      %s17 = ssub.s32 1280, 1280
      %18 = vsyncadd [#allocation3], %s17
      %s19 = sshll.u32 [#allocation2], 4
      %s20 = int_to_ptr.vmem [resolvable:$true] %s19
      %25 = dma.hbm_to_vmem [thread:$0]  %s0, 1280, %s20, [#allocation3], 320, 320, 20
    $region5: #{unet_forward.26} parent=1 // pred_fallthru
      _
    // Predicated region
    $region6: #{unet_forward.26} parent=1 // pred_check
      _
    $region7: #{unet_forward.26} parent=1 // pred_check_branch
      %27 = sbr.rel (0) target = $region9
    $region8: #{unet_forward.26} parent=1 // pred_region
      %s29 = ssub.s32 4608, 4608
      %30 = vsyncadd [#allocation6], %s29
      %s31 = sshll.u32 [#allocation5], 4
      %s32 = int_to_ptr.vmem [resolvable:$true] %s31
      %37 = dma.hbm_to_vmem [thread:$0]  %s1, 4608, %s32, [#allocation6], 64, 64, 4
    $region9: #{unet_forward.26} parent=1 // pred_fallthru
      _
    // Predicated region
    $region10: #{unet_forward.26} parent=1 // pred_check
      _
    $region11: #{unet_forward.26} parent=1 // pred_check_branch
      %39 = sbr.rel (0) target = $region13
    $region12: #{unet_forward.26} parent=1 // pred_region
      %s41 = ssub.s32 16, 16
      %42 = vsyncadd [#allocation6], %s41
      %s44 = sshll.u32 [#allocation7], 4
      %s45 = int_to_ptr.vmem [resolvable:$true] %s44
      %47 = dma.hbm_to_vmem [thread:$0]  %s2, 16, %s45, [#allocation6]
    $region13: #{unet_forward.26} parent=1 // pred_fallthru
      _
    // Predicated region
    $region14: #{unet_forward.26} parent=1 // pred_check
      _
    $region15: #{unet_forward.26} parent=1 // pred_check_branch
      %49 = sbr.rel (0) target = $region17
    $region16: #{unet_forward.26} parent=1 // pred_region
      %s51 = ssub.s32 16, 16
      %52 = vsyncadd [#allocation9], %s51
      %s54 = sshll.u32 [#allocation8], 4
      %s55 = int_to_ptr.vmem [resolvable:$true] %s54
      %57 = dma.hbm_to_vmem [thread:$0]  %s3, 16, %s55, [#allocation9]
    $region17: #{unet_forward.26} parent=1 // pred_fallthru
      _
    // Predicated region
    $region18: #{unet_forward.26} parent=1 // pred_check
      _
    $region19: #{unet_forward.26} parent=1 // pred_check_branch
      %59 = sbr.rel (0) target = $region21
    $region20: #{unet_forward.26} parent=1 // pred_region
      %s61 = ssub.s32 16, 16
      %62 = vsyncadd [#allocation9], %s61
      %s64 = sshll.u32 [#allocation10], 4
      %s65 = int_to_ptr.vmem [resolvable:$true] %s64
      %67 = dma.hbm_to_vmem [thread:$0]  %s4, 16, %s65, [#allocation9]
    $region21: #{unet_forward.26} parent=1 // pred_fallthru
      _
    // Predicated region
    $region22: #{unet_forward.26} parent=1 // pred_check
      _
    $region23: #{unet_forward.26} parent=1 // pred_check_branch
      %69 = sbr.rel (0) target = $region25
    $region24: #{unet_forward.26} parent=1 // pred_region
      %70 = dma.done [#allocation3], 1280
    $region25: #{unet_forward.26} parent=1 // pred_fallthru
      _
    // Predicated region
    $region26: #{unet_forward.26} parent=1 // pred_check
      _
    $region27: #{unet_forward.26} parent=1 // pred_check_branch
      %72 = sbr.rel (0) target = $region29
    $region28: #{unet_forward.26} parent=1 // pred_region
      %73 = dma.done [#allocation6], 4608
    $region29: #{unet_forward.26} parent=1 // pred_fallthru
      _
    // Predicated region
    $region30: #{unet_forward.26} parent=1 // pred_check
      _
    $region31: #{unet_forward.26} parent=1 // pred_check_branch
      %75 = sbr.rel (0) target = $region33
    $region32: #{unet_forward.26} parent=1 // pred_region
      %76 = dma.done [#allocation6], 16
    $region33: #{unet_forward.26} parent=1 // pred_fallthru
      _
    // Predicated region
    $region34: #{unet_forward.26} parent=1 // pred_check
      _
    $region35: #{unet_forward.26} parent=1 // pred_check_branch
      %78 = sbr.rel (0) target = $region37
    $region36: #{unet_forward.26} parent=1 // pred_region
      %79 = dma.done [#allocation9], 16
    $region37: #{unet_forward.26} parent=1 // pred_fallthru
      _
    // Predicated region
    $region38: #{unet_forward.26} parent=1 // pred_check
      _
    $region39: #{unet_forward.26} parent=1 // pred_check_branch
      %81 = sbr.rel (0) target = $region41
    $region40: #{unet_forward.26} parent=1 // pred_region
      %82 = dma.done [#allocation9], 16
    $region41: #{unet_forward.26} parent=1 // pred_fallthru
      _
    %v84 = vld [vmem:[#allocation2] sm:$0xff]
    %v85 = vld [vmem:[#allocation2 + $0x8] sm:$0xff]
    %v86 = vld [vmem:[#allocation2 + $0x10] sm:$0xf]
    %v87 = vld [vmem:[#allocation2 + $0x14] sm:$0xff]
    %v88 = vld [vmem:[#allocation2 + $0x1c] sm:$0xff]
    %v89 = vld [vmem:[#allocation2 + $0x24] sm:$0xf]
    %v90 = vld [vmem:[#allocation2 + $0x28] sm:$0xff]
    %v91 = vld [vmem:[#allocation2 + $0x30] sm:$0xff]
    %v92 = vld [vmem:[#allocation2 + $0x38] sm:$0xf]
    %v93 = vld [vmem:[#allocation2 + $0x3c] sm:$0xff]
    %v94 = vld [vmem:[#allocation2 + $0x44] sm:$0xff]
    %v95 = vld [vmem:[#allocation2 + $0x4c] sm:$0xf]
    %v96 = vld [vmem:[#allocation5] sm:$0xf]
    %v97 = vld [vmem:[#allocation5 + $0x4] sm:$0xf]
    %v98 = vld [vmem:[#allocation5 + $0x8] sm:$0xf]
    %v99 = vld [vmem:[#allocation5 + $0xc] sm:$0xf]
    %v100 = vld [vmem:[#allocation5 + $0x10] sm:$0xf]
    %v101 = vld [vmem:[#allocation5 + $0x14] sm:$0xf]
    %v102 = vld [vmem:[#allocation5 + $0x18] sm:$0xf]
    %v103 = vld [vmem:[#allocation5 + $0x1c] sm:$0xf]
    %v104 = vld [vmem:[#allocation5 + $0x20] sm:$0xf]
    %v105 = vld [vmem:[#allocation5 + $0x24] sm:$0xf]
    %v106 = vld [vmem:[#allocation5 + $0x28] sm:$0xf]
    %v107 = vld [vmem:[#allocation5 + $0x2c] sm:$0xf]
    %v108 = vld [vmem:[#allocation5 + $0x30] sm:$0xf]
    %v109 = vld [vmem:[#allocation5 + $0x34] sm:$0xf]
    %v110 = vld [vmem:[#allocation5 + $0x38] sm:$0xf]
    %v111 = vld [vmem:[#allocation5 + $0x3c] sm:$0xf]
    %v112 = vld [vmem:[#allocation5 + $0x40] sm:$0xf]
    %v113 = vld [vmem:[#allocation5 + $0x44] sm:$0xf]
    %v114 = vld [vmem:[#allocation5 + $0x48] sm:$0xf]
    %v115 = vld [vmem:[#allocation5 + $0x4c] sm:$0xf]
    %v116 = vld [vmem:[#allocation5 + $0x50] sm:$0xf]
    %v117 = vld [vmem:[#allocation5 + $0x54] sm:$0xf]
    %v118 = vld [vmem:[#allocation5 + $0x58] sm:$0xf]
    %v119 = vld [vmem:[#allocation5 + $0x5c] sm:$0xf]
    %v120 = vld [vmem:[#allocation5 + $0x60] sm:$0xf]
    %v121 = vld [vmem:[#allocation5 + $0x64] sm:$0xf]
    %v122 = vld [vmem:[#allocation5 + $0x68] sm:$0xf]
    %v123 = vld [vmem:[#allocation5 + $0x6c] sm:$0xf]
    %v124 = vld [vmem:[#allocation5 + $0x70] sm:$0xf]
    %v125 = vld [vmem:[#allocation5 + $0x74] sm:$0xf]
    %v126 = vld [vmem:[#allocation5 + $0x78] sm:$0xf]
    %v127 = vld [vmem:[#allocation5 + $0x7c] sm:$0xf]
    %v128 = vld [vmem:[#allocation5 + $0x80] sm:$0xf]
    %v129 = vld [vmem:[#allocation5 + $0x84] sm:$0xf]
    %v130 = vld [vmem:[#allocation5 + $0x88] sm:$0xf]
    %v131 = vld [vmem:[#allocation5 + $0x8c] sm:$0xf]
    %v132 = vld [vmem:[#allocation5 + $0x90] sm:$0xf]
    %v133 = vld [vmem:[#allocation5 + $0x94] sm:$0xf]
    %v134 = vld [vmem:[#allocation5 + $0x98] sm:$0xf]
    %v135 = vld [vmem:[#allocation5 + $0x9c] sm:$0xf]
    %v136 = vld [vmem:[#allocation5 + $0xa0] sm:$0xf]
    %v137 = vld [vmem:[#allocation5 + $0xa4] sm:$0xf]
    %v138 = vld [vmem:[#allocation5 + $0xa8] sm:$0xf]
    %v139 = vld [vmem:[#allocation5 + $0xac] sm:$0xf]
    %v140 = vld [vmem:[#allocation5 + $0xb0] sm:$0xf]
    %v141 = vld [vmem:[#allocation5 + $0xb4] sm:$0xf]
    %v142 = vld [vmem:[#allocation5 + $0xb8] sm:$0xf]
    %v143 = vld [vmem:[#allocation5 + $0xbc] sm:$0xf]
    %v144 = vld [vmem:[#allocation5 + $0xc0] sm:$0xf]
    %v145 = vld [vmem:[#allocation5 + $0xc4] sm:$0xf]
    %v146 = vld [vmem:[#allocation5 + $0xc8] sm:$0xf]
    %v147 = vld [vmem:[#allocation5 + $0xcc] sm:$0xf]
    %v148 = vld [vmem:[#allocation5 + $0xd0] sm:$0xf]
    %v149 = vld [vmem:[#allocation5 + $0xd4] sm:$0xf]
    %v150 = vld [vmem:[#allocation5 + $0xd8] sm:$0xf]
    %v151 = vld [vmem:[#allocation5 + $0xdc] sm:$0xf]
    %v152 = vld [vmem:[#allocation5 + $0xe0] sm:$0xf]
    %v153 = vld [vmem:[#allocation5 + $0xe4] sm:$0xf]
    %v154 = vld [vmem:[#allocation5 + $0xe8] sm:$0xf]
    %v155 = vld [vmem:[#allocation5 + $0xec] sm:$0xf]
    %v156 = vld [vmem:[#allocation5 + $0xf0] sm:$0xf]
    %v157 = vld [vmem:[#allocation5 + $0xf4] sm:$0xf]
    %v158 = vld [vmem:[#allocation5 + $0xf8] sm:$0xf]
    %v159 = vld [vmem:[#allocation5 + $0xfc] sm:$0xf]
    %v160 = vld [vmem:[#allocation5 + $0x100] sm:$0xf]
    %v161 = vld [vmem:[#allocation5 + $0x104] sm:$0xf]
    %v162 = vld [vmem:[#allocation5 + $0x108] sm:$0xf]
    %v163 = vld [vmem:[#allocation5 + $0x10c] sm:$0xf]
    %v164 = vld [vmem:[#allocation5 + $0x110] sm:$0xf]
    %v165 = vld [vmem:[#allocation5 + $0x114] sm:$0xf]
    %v166 = vld [vmem:[#allocation5 + $0x118] sm:$0xf]
    %v167 = vld [vmem:[#allocation5 + $0x11c] sm:$0xf]
    %v168 = vld [vmem:[#allocation7] sm:$0x1]
    %v170 = vlaneseq
    %v171 = vshrl.u32 %v170, 7
    %v172 = vsub.s32 0, %v171
    %v173 = vrot.slane %v168, %v172
    %v187 = vunpack.c.l.b16 %v84
    %v188 = vunpack.c.h.b16 %v84
    %v189 = vunpack.c.l.b16 %v85
    %v190 = vunpack.c.h.b16 %v85
    %v191 = vunpack.c.l.b16 %v86
    %v192 = vunpack.c.l.b16 %v87
    %v193 = vunpack.c.h.b16 %v87
    %v194 = vunpack.c.l.b16 %v88
    %v195 = vunpack.c.h.b16 %v88
    %v196 = vunpack.c.l.b16 %v89
    %v197 = vunpack.c.l.b16 %v90
    %v198 = vunpack.c.h.b16 %v90
    %v199 = vunpack.c.l.b16 %v91
    %v200 = vunpack.c.h.b16 %v91
    %v201 = vunpack.c.l.b16 %v92
    %v202 = vunpack.c.l.b16 %v93
    %v203 = vunpack.c.h.b16 %v93
    %v204 = vunpack.c.l.b16 %v94
    %v205 = vunpack.c.h.b16 %v94
    %v206 = vunpack.c.l.b16 %v95
    %v207 = vpack.c.b16 %v192, %v187
    %v208 = vpack.c.b16 %v193, %v188
    %v209 = vpack.c.b16 %v194, %v189
    %v210 = vpack.c.b16 %v195, %v190
    %v211 = vpack.c.b16 %v196, %v191
    %v212 = vpack.c.b16 %v202, %v197
    %v213 = vpack.c.b16 %v203, %v198
    %v214 = vpack.c.b16 %v204, %v199
    %v215 = vpack.c.b16 %v205, %v200
    %v216 = vpack.c.b16 %v206, %v201
    %v297 = vunpack.c.l.b16 %v96
    %v298 = vunpack.c.l.b16 %v97
    %v299 = vunpack.c.l.b16 %v98
    %v300 = vunpack.c.l.b16 %v99
    %v301 = vunpack.c.l.b16 %v100
    %v302 = vunpack.c.l.b16 %v101
    %v303 = vunpack.c.l.b16 %v102
    %v304 = vunpack.c.l.b16 %v103
    %v305 = vunpack.c.l.b16 %v104
    %v306 = vunpack.c.l.b16 %v105
    %v307 = vunpack.c.l.b16 %v106
    %v308 = vunpack.c.l.b16 %v107
    %v309 = vunpack.c.l.b16 %v108
    %v310 = vunpack.c.l.b16 %v109
    %v311 = vunpack.c.l.b16 %v110
    %v312 = vunpack.c.l.b16 %v111
    %v313 = vunpack.c.l.b16 %v112
    %v314 = vunpack.c.l.b16 %v113
    %v315 = vunpack.c.l.b16 %v114
    %v316 = vunpack.c.l.b16 %v115
    %v317 = vunpack.c.l.b16 %v116
    %v318 = vunpack.c.l.b16 %v117
    %v319 = vunpack.c.l.b16 %v118
    %v320 = vunpack.c.l.b16 %v119
    %v321 = vunpack.c.l.b16 %v120
    %v322 = vunpack.c.l.b16 %v121
    %v323 = vunpack.c.l.b16 %v122
    %v324 = vunpack.c.l.b16 %v123
    %v325 = vunpack.c.l.b16 %v124
    %v326 = vunpack.c.l.b16 %v125
    %v327 = vunpack.c.l.b16 %v126
    %v328 = vunpack.c.l.b16 %v127
    %v329 = vunpack.c.l.b16 %v128
    %v330 = vunpack.c.l.b16 %v129
    %v331 = vunpack.c.l.b16 %v130
    %v332 = vunpack.c.l.b16 %v131
    %v333 = vunpack.c.l.b16 %v132
    %v334 = vunpack.c.l.b16 %v133
    %v335 = vunpack.c.l.b16 %v134
    %v336 = vunpack.c.l.b16 %v135
    %v337 = vunpack.c.l.b16 %v136
    %v338 = vunpack.c.l.b16 %v137
    %v339 = vunpack.c.l.b16 %v138
    %v340 = vunpack.c.l.b16 %v139
    %v341 = vunpack.c.l.b16 %v140
    %v342 = vunpack.c.l.b16 %v141
    %v343 = vunpack.c.l.b16 %v142
    %v344 = vunpack.c.l.b16 %v143
    %v345 = vunpack.c.l.b16 %v144
    %v346 = vunpack.c.l.b16 %v145
    %v347 = vunpack.c.l.b16 %v146
    %v348 = vunpack.c.l.b16 %v147
    %v349 = vunpack.c.l.b16 %v148
    %v350 = vunpack.c.l.b16 %v149
    %v351 = vunpack.c.l.b16 %v150
    %v352 = vunpack.c.l.b16 %v151
    %v353 = vunpack.c.l.b16 %v152
    %v354 = vunpack.c.l.b16 %v153
    %v355 = vunpack.c.l.b16 %v154
    %v356 = vunpack.c.l.b16 %v155
    %v357 = vunpack.c.l.b16 %v156
    %v358 = vunpack.c.l.b16 %v157
    %v359 = vunpack.c.l.b16 %v158
    %v360 = vunpack.c.l.b16 %v159
    %v361 = vunpack.c.l.b16 %v160
    %v362 = vunpack.c.l.b16 %v161
    %v363 = vunpack.c.l.b16 %v162
    %v364 = vunpack.c.l.b16 %v163
    %v365 = vunpack.c.l.b16 %v164
    %v366 = vunpack.c.l.b16 %v165
    %v367 = vunpack.c.l.b16 %v166
    %v368 = vunpack.c.l.b16 %v167
    %v369 = vpack.c.b16 %v298, %v297
    %v370 = vpack.c.b16 %v300, %v299
    %v371 = vpack.c.b16 %v302, %v301
    %v372 = vpack.c.b16 %v304, %v303
    %v373 = vpack.c.b16 %v306, %v305
    %v374 = vpack.c.b16 %v308, %v307
    %v375 = vpack.c.b16 %v310, %v309
    %v376 = vpack.c.b16 %v312, %v311
    %v377 = vpack.c.b16 %v314, %v313
    %v378 = vpack.c.b16 %v316, %v315
    %v379 = vpack.c.b16 %v318, %v317
    %v380 = vpack.c.b16 %v320, %v319
    %v381 = vpack.c.b16 %v322, %v321
    %v382 = vpack.c.b16 %v324, %v323
    %v383 = vpack.c.b16 %v326, %v325
    %v384 = vpack.c.b16 %v328, %v327
    %v385 = vpack.c.b16 %v330, %v329
    %v386 = vpack.c.b16 %v332, %v331
    %v387 = vpack.c.b16 %v334, %v333
    %v388 = vpack.c.b16 %v336, %v335
    %v389 = vpack.c.b16 %v338, %v337
    %v390 = vpack.c.b16 %v340, %v339
    %v391 = vpack.c.b16 %v342, %v341
    %v392 = vpack.c.b16 %v344, %v343
    %v393 = vpack.c.b16 %v346, %v345
    %v394 = vpack.c.b16 %v348, %v347
    %v395 = vpack.c.b16 %v350, %v349
    %v396 = vpack.c.b16 %v352, %v351
    %v397 = vpack.c.b16 %v354, %v353
    %v398 = vpack.c.b16 %v356, %v355
    %v399 = vpack.c.b16 %v358, %v357
    %v400 = vpack.c.b16 %v360, %v359
    %v401 = vpack.c.b16 %v362, %v361
    %v402 = vpack.c.b16 %v364, %v363
    %v403 = vpack.c.b16 %v366, %v365
    %v404 = vpack.c.b16 %v368, %v367
    %vm441 = vcmask 523264
    %v443 = vsel %vm441, %v211, 0
    %v446 = vsel %vm441, %v216, 0
    %448 = vmatprep.subr.bf16.mxu0 0
    %449 = vmatpush1.bf16.msra.mxu0 %v369
    %450 = vmatprep.subr.bf16.mxu0 0
    %451 = vmatpush1.bf16.msra.mxu0 %v370
    %452 = vmatprep.subr.bf16.mxu0 0
    %453 = vmatpush1.bf16.msra.mxu0 %v371
    %454 = vmatprep.subr.bf16.mxu0 0
    %455 = vmatpush1.bf16.msra.mxu0 %v372
    %456 = vmatprep.subr.bf16.mxu0 0
    %457 = vmatpush1.bf16.msra.mxu0 %v373
    %458 = vmatprep.subr.bf16.mxu0 0
    %459 = vmatpush1.bf16.msra.mxu0 %v374
    %460 = vmatprep.subr.bf16.mxu0 0
    %461 = vmatpush1.bf16.msra.mxu0 %v375
    %462 = vmatprep.subr.bf16.mxu0 0
    %463 = vmatpush1.bf16.msra.mxu0 %v376
    %464 = vmatprep.subr.bf16.mxu0 0
    %465 = vmatpush1.bf16.msra.mxu0 %v377
    %466 = vmatprep.subr.bf16.mxu0 0
    %467 = vmatpush1.bf16.msra.mxu0 %v378
    %468 = vmatprep.subr.bf16.mxu0 0
    %469 = vmatpush1.bf16.msra.mxu0 %v379
    %470 = vmatprep.subr.bf16.mxu0 0
    %471 = vmatpush1.bf16.msra.mxu0 %v380
    %472 = vmatprep.subr.bf16.mxu0 0
    %473 = vmatpush1.bf16.msra.mxu0 %v381
    %474 = vmatprep.subr.bf16.mxu0 0
    %475 = vmatpush1.bf16.msra.mxu0 %v382
    %476 = vmatprep.subr.bf16.mxu0 0
    %477 = vmatpush1.bf16.msra.mxu0 %v383
    %478 = vmatprep.subr.bf16.mxu0 0
    %479 = vmatpush1.bf16.msra.mxu0 %v384
    %480 = vmatprep.mubr.bf16.mxu0 %v208
    %481 = vmatmul.mubr.bf16.gmra.mrb[0].mxu0 %v207
    %v482 = vpop.f32.mrb[0].mxu0
    %v483 = vadd.f32 %v173, %v482
    %v484 = vpop.f32.mrb[0].mxu0
    %v485 = vpop.f32.mrb[0].mxu0
    %v486 = vadd.f32 %v173, %v485
    %v487 = vpop.f32.mrb[0].mxu0
    %488 = vmatprep.mubr.bf16.mxu0 %v213
    %489 = vmatmul.mubr.bf16.gmra.mrb[0].mxu0 %v212
    %v490 = vpop.f32.mrb[0].mxu0
    %v491 = vadd.f32 %v173, %v490
    %v492 = vpop.f32.mrb[0].mxu0
    %v493 = vpop.f32.mrb[0].mxu0
    %v494 = vadd.f32 %v173, %v493
    %v495 = vpop.f32.mrb[0].mxu0
    %496 = vdwg.mxu0
    %497 = vmatprep.subr.bf16.mxu0 0
    %498 = vmatpush1.bf16.msra.mxu0 %v385
    %499 = vmatprep.subr.bf16.mxu0 0
    %500 = vmatpush1.bf16.msra.mxu0 %v386
    %501 = vmatprep.subr.bf16.mxu0 0
    %502 = vmatpush1.bf16.msra.mxu0 %v387
    %503 = vmatprep.subr.bf16.mxu0 0
    %504 = vmatpush1.bf16.msra.mxu0 %v388
    %505 = vmatprep.subr.bf16.mxu0 0
    %506 = vmatpush1.bf16.msra.mxu0 %v389
    %507 = vmatprep.subr.bf16.mxu0 0
    %508 = vmatpush1.bf16.msra.mxu0 %v390
    %509 = vmatprep.subr.bf16.mxu0 0
    %510 = vmatpush1.bf16.msra.mxu0 %v391
    %511 = vmatprep.subr.bf16.mxu0 0
    %512 = vmatpush1.bf16.msra.mxu0 %v392
    %513 = vmatprep.subr.bf16.mxu0 0
    %514 = vmatpush1.bf16.msra.mxu0 %v393
    %515 = vmatprep.subr.bf16.mxu0 0
    %516 = vmatpush1.bf16.msra.mxu0 %v394
    %517 = vmatprep.subr.bf16.mxu0 0
    %518 = vmatpush1.bf16.msra.mxu0 %v395
    %519 = vmatprep.subr.bf16.mxu0 0
    %520 = vmatpush1.bf16.msra.mxu0 %v396
    %521 = vmatprep.subr.bf16.mxu0 0
    %522 = vmatpush1.bf16.msra.mxu0 %v397
    %523 = vmatprep.subr.bf16.mxu0 0
    %524 = vmatpush1.bf16.msra.mxu0 %v398
    %525 = vmatprep.subr.bf16.mxu0 0
    %526 = vmatpush1.bf16.msra.mxu0 %v399
    %527 = vmatprep.subr.bf16.mxu0 0
    %528 = vmatpush1.bf16.msra.mxu0 %v400
    %529 = vmatprep.mubr.bf16.mxu0 %v210
    %530 = vmatmul.mubr.bf16.gmra.mrb[0].mxu0 %v209
    %v531 = vpop.f32.mrb[0].mxu0
    %v532 = vadd.f32 %v483, %v531
    %v533 = vpop.f32.mrb[0].mxu0
    %v534 = vpop.f32.mrb[0].mxu0
    %v535 = vadd.f32 %v486, %v534
    %v536 = vpop.f32.mrb[0].mxu0
    %537 = vmatprep.mubr.bf16.mxu0 %v215
    %538 = vmatmul.mubr.bf16.gmra.mrb[0].mxu0 %v214
    %v539 = vpop.f32.mrb[0].mxu0
    %v540 = vadd.f32 %v491, %v539
    %v541 = vpop.f32.mrb[0].mxu0
    %v542 = vpop.f32.mrb[0].mxu0
    %v543 = vadd.f32 %v494, %v542
    %v544 = vpop.f32.mrb[0].mxu0
    %545 = vdwg.mxu0
    %546 = vmatprep.subr.bf16.mxu0 0
    %547 = vmatpush1.bf16.msra.mxu0 %v401
    %548 = vmatprep.subr.bf16.mxu0 0
    %549 = vmatpush1.bf16.msra.mxu0 %v402
    %550 = vmatprep.subr.bf16.mxu0 0
    %551 = vmatpush1.bf16.msra.mxu0 %v403
    %552 = vmatprep.subr.bf16.mxu0 0
    %553 = vmatpush1.bf16.msra.mxu0 %v404
    %554 = vmatprep.subr.bf16.mxu0 0
    %555 = vmatpush1.bf16.msra.mxu0 0
    %556 = vmatprep.subr.bf16.mxu0 0
    %557 = vmatpush1.bf16.msra.mxu0 0
    %558 = vmatprep.subr.bf16.mxu0 0
    %559 = vmatpush1.bf16.msra.mxu0 0
    %560 = vmatprep.subr.bf16.mxu0 0
    %561 = vmatpush1.bf16.msra.mxu0 0
    %562 = vmatprep.subr.bf16.mxu0 0
    %563 = vmatpush1.bf16.msra.mxu0 0
    %564 = vmatprep.subr.bf16.mxu0 0
    %565 = vmatpush1.bf16.msra.mxu0 0
    %566 = vmatprep.subr.bf16.mxu0 0
    %567 = vmatpush1.bf16.msra.mxu0 0
    %568 = vmatprep.subr.bf16.mxu0 0
    %569 = vmatpush1.bf16.msra.mxu0 0
    %570 = vmatprep.subr.bf16.mxu0 0
    %571 = vmatpush1.bf16.msra.mxu0 0
    %572 = vmatprep.subr.bf16.mxu0 0
    %573 = vmatpush1.bf16.msra.mxu0 0
    %574 = vmatprep.subr.bf16.mxu0 0
    %575 = vmatpush1.bf16.msra.mxu0 0
    %576 = vmatprep.subr.bf16.mxu0 0
    %577 = vmatpush1.bf16.msra.mxu0 0
    %578 = vmatprep.mubr.bf16.mxu0 0
    %579 = vmatmul.mubr.bf16.gmra.mrb[0].mxu0 %v443
    %v580 = vpop.f32.mrb[0].mxu0
    %v581 = vadd.f32 %v532, %v580
    %v582 = vpop.f32.mrb[0].mxu0
    %v583 = vpop.f32.mrb[0].mxu0
    %v584 = vadd.f32 %v535, %v583
    %v585 = vpop.f32.mrb[0].mxu0
    %586 = vmatprep.mubr.bf16.mxu0 0
    %587 = vmatmul.mubr.bf16.gmra.mrb[0].mxu0 %v446
    %v588 = vpop.f32.mrb[0].mxu0
    %v589 = vadd.f32 %v540, %v588
    %v590 = vpop.f32.mrb[0].mxu0
    %v591 = vpop.f32.mrb[0].mxu0
    %v592 = vadd.f32 %v543, %v591
    %v593 = vpop.f32.mrb[0].mxu0
    %594 = vdwg.mxu0
    %v595 = vmax.f32 %v581, 0.0
    %v596 = vmax.f32 %v584, 0.0
    %v597 = vmax.f32 %v589, 0.0
    %v598 = vmax.f32 %v592, 0.0
    %v599 = vld [vmem:[#allocation8] sm:$0x1]
    %v601 = vlaneseq
    %v602 = vshrl.u32 %v601, 7
    %v603 = vsub.s32 0, %v602
    %v604 = vrot.slane %v599, %v603
    %v606 = vmul.f32 %v595, %v604
    %v607 = vmul.f32 %v596, %v604
    %v608 = vmul.f32 %v597, %v604
    %v609 = vmul.f32 %v598, %v604
    %v610 = vld [vmem:[#allocation10] sm:$0x1]
    %v612 = vlaneseq
    %v613 = vshrl.u32 %v612, 7
    %v614 = vsub.s32 0, %v613
    %v615 = vrot.slane %v610, %v614
    %v617 = vadd.f32 %v606, %v615
    %v618 = vadd.f32 %v607, %v615
    %v619 = vadd.f32 %v608, %v615
    %v620 = vadd.f32 %v609, %v615
    %v621 = vpack.c.bf16 %v618, %v617
    %v622 = vpack.c.bf16 %v620, %v619
    %v625 = vunpack.c.l.b16 %v621
    %v626 = vunpack.c.h.b16 %v621
    %v627 = vunpack.c.l.b16 %v622
    %v628 = vunpack.c.h.b16 %v622
    %v629 = vpack.c.b16 %v625, %v625
    %v630 = vpack.c.b16 %v626, %v626
    %v631 = vpack.c.b16 %v627, %v627
    %v632 = vpack.c.b16 %v628, %v628
    %vm637 = vcmask 257024
    %638 = vst.msk [vmem:[#allocation11] sm:$0xf] %vm637, %v629
    %639 = vst.msk [vmem:[#allocation11 + $0x4] sm:$0xf] %vm637, %v630
    %640 = vst.msk [vmem:[#allocation11 + $0x8] sm:$0xf] %vm637, %v631
    %641 = vst.msk [vmem:[#allocation11 + $0xc] sm:$0xf] %vm637, %v632
    // Predicated region
    $region42: #{unet_forward.26} parent=1 // pred_check
      _
    $region43: #{unet_forward.26} parent=1 // pred_check_branch
      %643 = sbr.rel (0) target = $region45
    $region44: #{unet_forward.26} parent=1 // pred_region
      %s645 = ssub.s32 256, 256
      %646 = vsyncadd [#allocation4], %s645
      %s647 = sshll.u32 [#allocation11], 4
      %s648 = int_to_ptr.vmem [resolvable:$true] %s647
      %653 = dma.vmem_to_hbm [thread:$0]  %s648, 256, %s5, [#allocation4], 64, 64, 4
    $region45: #{unet_forward.26} parent=1 // pred_fallthru
      _
    // Predicated region
    $region46: #{unet_forward.26} parent=1 // pred_check
      _
    $region47: #{unet_forward.26} parent=1 // pred_check_branch
      %655 = sbr.rel (0) target = $region49
    $region48: #{unet_forward.26} parent=1 // pred_region
      %656 = dma.done [#allocation4], 256
    $region49: #{unet_forward.26} parent=1 // pred_fallthru
      _
    %657 = vsyncpa [#allocation3], 1
    %658 = vsyncpa [#allocation6], 1
    %659 = vsyncpa [#allocation9], 1
    %660 = vsyncpa [#allocation4], 1

// kernel: tile.28
$region0: #{tile.28}
  #allocation0 [shape = 's32[1]{0}', space=sflag, size = 0x4, scoped, tag = 'scoped memory for tile.28']
  %s0 = inlined_call_operand.vmem [shape: f32[8], index: 0, kind: input, shape index: {}]
  %s1 = inlined_call_operand.vmem [shape: f32[4,8], index: 1, kind: output, shape index: {}]
  // Predicated region
  $region2: #{tile.28} parent=0 // pred_check
    _
  $region3: #{tile.28} parent=0 // pred_check_branch
    %3 = sbr.rel (0) target = $region5
  $region4: #{tile.28} parent=0 // pred_region
    _
  $region5: #{tile.28} parent=0 // pred_fallthru
    _
  %v4 = vld [vmem:[%s0] ss:$0 sm:$0xff]
  %5 = vst [vmem:[%s1] sm:$0xf] %v4

// kernel: tile.29
$region0: #{tile.29}
  %s0 = inlined_call_operand.vmem [shape: f32[4,8], index: 0, kind: input, shape index: {}]
  %s1 = inlined_call_operand.hbm [shape: f32[1,32], index: 1, kind: output, shape index: {}]
  $region1: #{tile.29} parent=0
    #allocation0 [shape = 'u8[512]{0}', space=vmem, size = 0x400, scoped, tag = 'operand span for operand 1']
    #allocation1 [shape = 's32[1]{0}', space=sflag, size = 0x4, scoped, tag = 'scoped memory for tile.29']
    #allocation2 [shape = 'u8[4096]{0}', space=vmem, size = 0x1000, scoped, tag = 'scoped mem for output reshape']
    #allocation3 [shape = 'u8[4096]{0}', space=vmem, size = 0x1000, scoped, tag = 'scoped mem for input reshape']
    %2 = vsyncpa [#allocation1], 0
    %s4 = sshllo.u32 0, 4
    %v5 = vld [vmem:[%s0] sm:%s4]
    %6 = vst [vmem:[#allocation3] sm:%s4] %v5
    %v7 = vld [vmem:[#allocation3] sm:$0x1]
    %vm8 = vcmask 64512
    %9 = vst.msk [vmem:[#allocation2] sm:$0x1] %vm8, %v7
    %s10 = scalar_lea.vmem [#allocation3], 3
    %v11 = vld [vmem:[%s10] sm:$0x1]
    %12 = vrot.lane.b32.xlu0 %v11, 24
    %v13 = vpop.permute.xlu0 %12
    %vm14 = vcmask 261312
    %15 = vst.msk [vmem:[#allocation2] sm:$0x1] %vm14, %v13
    %s16 = scalar_lea.vmem [#allocation3], 2
    %v17 = vld [vmem:[%s16] sm:$0x1]
    %18 = vrot.lane.b32.xlu0 %v17, 16
    %v19 = vpop.permute.xlu0 %18
    %vm20 = vcmask 195712
    %21 = vst.msk [vmem:[#allocation2] sm:$0x1] %vm20, %v19
    %s22 = scalar_lea.vmem [#allocation3], 1
    %v23 = vld [vmem:[%s22] sm:$0x1]
    %24 = vrot.lane.b32.xlu0 %v23, 8
    %v25 = vpop.permute.xlu0 %24
    %vm26 = vcmask 130112
    %27 = vst.msk [vmem:[#allocation2] sm:$0x1] %vm26, %v25
    %s29 = sshllo.u32 0, 1
    %v31 = vld [vmem:[#allocation2] sm:%s29]
    %s32 = sshllo.u32 0, 1
    %33 = vst [vmem:[#allocation0] sm:%s32] %v31
    %s35 = ssub.s32 16, 16
    %36 = vsyncadd [#allocation1], %s35
    %s38 = sshll.u32 [#allocation0], 4
    %s39 = int_to_ptr.vmem [resolvable:$true] %s38
    %41 = dma.vmem_to_hbm [thread:$0]  %s39, 16, %s1, [#allocation1]
    %42 = dma.done [#allocation1], 16
    %43 = vsyncpa [#allocation1], 1

// kernel: unet_forward.29
$region0: #{unet_forward.29}
  #allocation0 [shape = 'u32[]', space=smem, size = 0x4, offset = 0x4, fixed_abs, tag = 'smem constant byte address 0x4 - core index']
  #allocation1 [shape = 'u32[144,128]{1,0:T(1,128)}', space=vmem, size = 0x12000, scoped, tag = 'internal scratch']
  %s0 = inlined_call_operand.hbm [shape: bf16[128,288], index: 0, kind: input, shape index: {}]
  %s1 = inlined_call_operand.hbm [shape: bf16[288,16], index: 1, kind: input, shape index: {}]
  %s2 = inlined_call_operand.hbm [shape: f32[1,16], index: 2, kind: input, shape index: {}]
  %s3 = inlined_call_operand.hbm [shape: f32[1,16], index: 3, kind: input, shape index: {}]
  %s4 = inlined_call_operand.hbm [shape: f32[1,16], index: 4, kind: input, shape index: {}]
  %s5 = inlined_call_operand.hbm [shape: bf16[128,16], index: 5, kind: output, shape index: {}]
  %s6 = sld [smem:[#allocation0]]
  $region50: #{unet_forward.29} parent=0
    _
  %s8 = ssub.s32 1, %s6
  %s9 = scalar_select 0, %s8, %s6
  $region1: #{unet_forward.29} parent=0
    #allocation2 [shape = 'u8[98304]{0}', space=vmem, size = 0x18000, scoped, tag = 'input window, operand 0, single buffered']
    #allocation3 [shape = 's32[1]{0}', space=sflag, size = 0x4, scoped, tag = 'scoped memory for unet_forward.29']
    #allocation4 [shape = 's32[1]{0}', space=sflag, size = 0x4, scoped, tag = 'scoped memory for unet_forward.29']
    #allocation5 [shape = 'u8[73728]{0}', space=vmem, size = 0x12000, scoped, tag = 'input window, operand 1, single buffered']
    #allocation6 [shape = 's32[1]{0}', space=sflag, size = 0x4, scoped, tag = 'scoped memory for unet_forward.29']
    #allocation7 [shape = 'u8[512]{0}', space=vmem, size = 0x400, scoped, tag = 'input window, operand 2, single buffered']
    #allocation8 [shape = 'u8[512]{0}', space=vmem, size = 0x400, scoped, tag = 'input window, operand 3, single buffered']
    #allocation9 [shape = 's32[1]{0}', space=sflag, size = 0x4, scoped, tag = 'scoped memory for unet_forward.29']
    #allocation10 [shape = 'u8[512]{0}', space=vmem, size = 0x400, scoped, tag = 'input window, operand 4, single buffered']
    #allocation11 [shape = 'u8[32768]{0}', space=vmem, size = 0x8000, scoped, tag = 'output window, operand 0, single buffered']
    %10 = vsyncpa [#allocation3], 0
    %11 = vsyncpa [#allocation6], 0
    %12 = vsyncpa [#allocation9], 0
    %13 = vsyncpa [#allocation4], 0
    // Predicated region
    $region2: #{unet_forward.29} parent=1 // pred_check
      _
    $region3: #{unet_forward.29} parent=1 // pred_check_branch
      %15 = sbr.rel (0) target = $region5
    $region4: #{unet_forward.29} parent=1 // pred_region
      %s17 = ssub.s32 3072, 3072
      %18 = vsyncadd [#allocation3], %s17
      %s19 = sshll.u32 [#allocation2], 4
      %s20 = int_to_ptr.vmem [resolvable:$true] %s19
      %25 = dma.hbm_to_vmem [thread:$0]  %s0, 3072, %s20, [#allocation3], 192, 192, 12
    $region5: #{unet_forward.29} parent=1 // pred_fallthru
      _
    // Predicated region
    $region6: #{unet_forward.29} parent=1 // pred_check
      _
    $region7: #{unet_forward.29} parent=1 // pred_check_branch
      %27 = sbr.rel (0) target = $region9
    $region8: #{unet_forward.29} parent=1 // pred_region
      %s29 = ssub.s32 2304, 2304
      %30 = vsyncadd [#allocation6], %s29
      %s31 = sshll.u32 [#allocation5], 4
      %s32 = int_to_ptr.vmem [resolvable:$true] %s31
      %37 = dma.hbm_to_vmem [thread:$0]  %s1, 2304, %s32, [#allocation6], 64, 64, 4
    $region9: #{unet_forward.29} parent=1 // pred_fallthru
      _
    // Predicated region
    $region10: #{unet_forward.29} parent=1 // pred_check
      _
    $region11: #{unet_forward.29} parent=1 // pred_check_branch
      %39 = sbr.rel (0) target = $region13
    $region12: #{unet_forward.29} parent=1 // pred_region
      %s41 = ssub.s32 16, 16
      %42 = vsyncadd [#allocation6], %s41
      %s44 = sshll.u32 [#allocation7], 4
      %s45 = int_to_ptr.vmem [resolvable:$true] %s44
      %47 = dma.hbm_to_vmem [thread:$0]  %s2, 16, %s45, [#allocation6]
    $region13: #{unet_forward.29} parent=1 // pred_fallthru
      _
    // Predicated region
    $region14: #{unet_forward.29} parent=1 // pred_check
      _
    $region15: #{unet_forward.29} parent=1 // pred_check_branch
      %49 = sbr.rel (0) target = $region17
    $region16: #{unet_forward.29} parent=1 // pred_region
      %s51 = ssub.s32 16, 16
      %52 = vsyncadd [#allocation9], %s51
      %s54 = sshll.u32 [#allocation8], 4
      %s55 = int_to_ptr.vmem [resolvable:$true] %s54
      %57 = dma.hbm_to_vmem [thread:$0]  %s3, 16, %s55, [#allocation9]
    $region17: #{unet_forward.29} parent=1 // pred_fallthru
      _
    // Predicated region
    $region18: #{unet_forward.29} parent=1 // pred_check
      _
    $region19: #{unet_forward.29} parent=1 // pred_check_branch
      %59 = sbr.rel (0) target = $region21
    $region20: #{unet_forward.29} parent=1 // pred_region
      %s61 = ssub.s32 16, 16
      %62 = vsyncadd [#allocation9], %s61
      %s64 = sshll.u32 [#allocation10], 4
      %s65 = int_to_ptr.vmem [resolvable:$true] %s64
      %67 = dma.hbm_to_vmem [thread:$0]  %s4, 16, %s65, [#allocation9]
    $region21: #{unet_forward.29} parent=1 // pred_fallthru
      _
    // Predicated region
    $region22: #{unet_forward.29} parent=1 // pred_check
      _
    $region23: #{unet_forward.29} parent=1 // pred_check_branch
      %69 = sbr.rel (0) target = $region25
    $region24: #{unet_forward.29} parent=1 // pred_region
      %70 = dma.done [#allocation3], 3072
    $region25: #{unet_forward.29} parent=1 // pred_fallthru
      _
    // Predicated region
    $region26: #{unet_forward.29} parent=1 // pred_check
      _
    $region27: #{unet_forward.29} parent=1 // pred_check_branch
      %72 = sbr.rel (0) target = $region29
    $region28: #{unet_forward.29} parent=1 // pred_region
      %73 = dma.done [#allocation6], 2304
    $region29: #{unet_forward.29} parent=1 // pred_fallthru
      _
    // Predicated region
    $region30: #{unet_forward.29} parent=1 // pred_check
      _
    $region31: #{unet_forward.29} parent=1 // pred_check_branch
      %75 = sbr.rel (0) target = $region33
    $region32: #{unet_forward.29} parent=1 // pred_region
      %76 = dma.done [#allocation6], 16
    $region33: #{unet_forward.29} parent=1 // pred_fallthru
      _
    // Predicated region
    $region34: #{unet_forward.29} parent=1 // pred_check
      _
    $region35: #{unet_forward.29} parent=1 // pred_check_branch
      %78 = sbr.rel (0) target = $region37
    $region36: #{unet_forward.29} parent=1 // pred_region
      %79 = dma.done [#allocation9], 16
    $region37: #{unet_forward.29} parent=1 // pred_fallthru
      _
    // Predicated region
    $region38: #{unet_forward.29} parent=1 // pred_check
      _
    $region39: #{unet_forward.29} parent=1 // pred_check_branch
      %81 = sbr.rel (0) target = $region41
    $region40: #{unet_forward.29} parent=1 // pred_region
      %82 = dma.done [#allocation9], 16
    $region41: #{unet_forward.29} parent=1 // pred_fallthru
      _
    %v84 = vld [vmem:[#allocation2] sm:$0xff]
    %v85 = vld [vmem:[#allocation2 + $0x8] sm:$0xf]
    %v86 = vld [vmem:[#allocation2 + $0xc] sm:$0xff]
    %v87 = vld [vmem:[#allocation2 + $0x14] sm:$0xf]
    %v88 = vld [vmem:[#allocation2 + $0x18] sm:$0xff]
    %v89 = vld [vmem:[#allocation2 + $0x20] sm:$0xf]
    %v90 = vld [vmem:[#allocation2 + $0x24] sm:$0xff]
    %v91 = vld [vmem:[#allocation2 + $0x2c] sm:$0xf]
    %v92 = vld [vmem:[#allocation2 + $0x30] sm:$0xff]
    %v93 = vld [vmem:[#allocation2 + $0x38] sm:$0xf]
    %v94 = vld [vmem:[#allocation2 + $0x3c] sm:$0xff]
    %v95 = vld [vmem:[#allocation2 + $0x44] sm:$0xf]
    %v96 = vld [vmem:[#allocation2 + $0x48] sm:$0xff]
    %v97 = vld [vmem:[#allocation2 + $0x50] sm:$0xf]
    %v98 = vld [vmem:[#allocation2 + $0x54] sm:$0xff]
    %v99 = vld [vmem:[#allocation2 + $0x5c] sm:$0xf]
    %v100 = vld [vmem:[#allocation2 + $0x60] sm:$0xff]
    %v101 = vld [vmem:[#allocation2 + $0x68] sm:$0xf]
    %v102 = vld [vmem:[#allocation2 + $0x6c] sm:$0xff]
    %v103 = vld [vmem:[#allocation2 + $0x74] sm:$0xf]
    %v104 = vld [vmem:[#allocation2 + $0x78] sm:$0xff]
    %v105 = vld [vmem:[#allocation2 + $0x80] sm:$0xf]
    %v106 = vld [vmem:[#allocation2 + $0x84] sm:$0xff]
    %v107 = vld [vmem:[#allocation2 + $0x8c] sm:$0xf]
    %v108 = vld [vmem:[#allocation2 + $0x90] sm:$0xff]
    %v109 = vld [vmem:[#allocation2 + $0x98] sm:$0xf]
    %v110 = vld [vmem:[#allocation2 + $0x9c] sm:$0xff]
    %v111 = vld [vmem:[#allocation2 + $0xa4] sm:$0xf]
    %v112 = vld [vmem:[#allocation2 + $0xa8] sm:$0xff]
    %v113 = vld [vmem:[#allocation2 + $0xb0] sm:$0xf]
    %v114 = vld [vmem:[#allocation2 + $0xb4] sm:$0xff]
    %v115 = vld [vmem:[#allocation2 + $0xbc] sm:$0xf]
    %v116 = vld [vmem:[#allocation5] sm:$0xf]
    %v117 = vld [vmem:[#allocation5 + $0x4] sm:$0xf]
    %v118 = vld [vmem:[#allocation5 + $0x8] sm:$0xf]
    %v119 = vld [vmem:[#allocation5 + $0xc] sm:$0xf]
    %v120 = vld [vmem:[#allocation5 + $0x10] sm:$0xf]
    %v121 = vld [vmem:[#allocation5 + $0x14] sm:$0xf]
    %v122 = vld [vmem:[#allocation5 + $0x18] sm:$0xf]
    %v123 = vld [vmem:[#allocation5 + $0x1c] sm:$0xf]
    %v124 = vld [vmem:[#allocation5 + $0x20] sm:$0xf]
    %v125 = vld [vmem:[#allocation5 + $0x24] sm:$0xf]
    %v126 = vld [vmem:[#allocation5 + $0x28] sm:$0xf]
    %v127 = vld [vmem:[#allocation5 + $0x2c] sm:$0xf]
    %v128 = vld [vmem:[#allocation5 + $0x30] sm:$0xf]
    %v129 = vld [vmem:[#allocation5 + $0x34] sm:$0xf]
    %v130 = vld [vmem:[#allocation5 + $0x38] sm:$0xf]
    %v131 = vld [vmem:[#allocation5 + $0x3c] sm:$0xf]
    %v132 = vld [vmem:[#allocation5 + $0x40] sm:$0xf]
    %v133 = vld [vmem:[#allocation5 + $0x44] sm:$0xf]
    %v134 = vld [vmem:[#allocation5 + $0x48] sm:$0xf]
    %v135 = vld [vmem:[#allocation5 + $0x4c] sm:$0xf]
    %v136 = vld [vmem:[#allocation5 + $0x50] sm:$0xf]
    %v137 = vld [vmem:[#allocation5 + $0x54] sm:$0xf]
    %v138 = vld [vmem:[#allocation5 + $0x58] sm:$0xf]
    %v139 = vld [vmem:[#allocation5 + $0x5c] sm:$0xf]
    %v140 = vld [vmem:[#allocation5 + $0x60] sm:$0xf]
    %v141 = vld [vmem:[#allocation5 + $0x64] sm:$0xf]
    %v142 = vld [vmem:[#allocation5 + $0x68] sm:$0xf]
    %v143 = vld [vmem:[#allocation5 + $0x6c] sm:$0xf]
    %v144 = vld [vmem:[#allocation5 + $0x70] sm:$0xf]
    %v145 = vld [vmem:[#allocation5 + $0x74] sm:$0xf]
    %v146 = vld [vmem:[#allocation5 + $0x78] sm:$0xf]
    %v147 = vld [vmem:[#allocation5 + $0x7c] sm:$0xf]
    %v148 = vld [vmem:[#allocation5 + $0x80] sm:$0xf]
    %v149 = vld [vmem:[#allocation5 + $0x84] sm:$0xf]
    %v150 = vld [vmem:[#allocation5 + $0x88] sm:$0xf]
    %v151 = vld [vmem:[#allocation5 + $0x8c] sm:$0xf]
    %v152 = vld [vmem:[#allocation7] sm:$0x1]
    %v154 = vlaneseq
    %v155 = vshrl.u32 %v154, 7
    %v156 = vsub.s32 0, %v155
    %v157 = vrot.slane %v152, %v156
    %v191 = vunpack.c.l.b16 %v84
    %v192 = vunpack.c.h.b16 %v84
    %v193 = vunpack.c.l.b16 %v85
    %v194 = vunpack.c.l.b16 %v86
    %v195 = vunpack.c.h.b16 %v86
    %v196 = vunpack.c.l.b16 %v87
    %v197 = vunpack.c.l.b16 %v88
    %v198 = vunpack.c.h.b16 %v88
    %v199 = vunpack.c.l.b16 %v89
    %v200 = vunpack.c.l.b16 %v90
    %v201 = vunpack.c.h.b16 %v90
    %v202 = vunpack.c.l.b16 %v91
    %v203 = vunpack.c.l.b16 %v92
    %v204 = vunpack.c.h.b16 %v92
    %v205 = vunpack.c.l.b16 %v93
    %v206 = vunpack.c.l.b16 %v94
    %v207 = vunpack.c.h.b16 %v94
    %v208 = vunpack.c.l.b16 %v95
    %v209 = vunpack.c.l.b16 %v96
    %v210 = vunpack.c.h.b16 %v96
    %v211 = vunpack.c.l.b16 %v97
    %v212 = vunpack.c.l.b16 %v98
    %v213 = vunpack.c.h.b16 %v98
    %v214 = vunpack.c.l.b16 %v99
    %v215 = vunpack.c.l.b16 %v100
    %v216 = vunpack.c.h.b16 %v100
    %v217 = vunpack.c.l.b16 %v101
    %v218 = vunpack.c.l.b16 %v102
    %v219 = vunpack.c.h.b16 %v102
    %v220 = vunpack.c.l.b16 %v103
    %v221 = vunpack.c.l.b16 %v104
    %v222 = vunpack.c.h.b16 %v104
    %v223 = vunpack.c.l.b16 %v105
    %v224 = vunpack.c.l.b16 %v106
    %v225 = vunpack.c.h.b16 %v106
    %v226 = vunpack.c.l.b16 %v107
    %v227 = vunpack.c.l.b16 %v108
    %v228 = vunpack.c.h.b16 %v108
    %v229 = vunpack.c.l.b16 %v109
    %v230 = vunpack.c.l.b16 %v110
    %v231 = vunpack.c.h.b16 %v110
    %v232 = vunpack.c.l.b16 %v111
    %v233 = vunpack.c.l.b16 %v112
    %v234 = vunpack.c.h.b16 %v112
    %v235 = vunpack.c.l.b16 %v113
    %v236 = vunpack.c.l.b16 %v114
    %v237 = vunpack.c.h.b16 %v114
    %v238 = vunpack.c.l.b16 %v115
    %v239 = vpack.c.b16 %v194, %v191
    %v240 = vpack.c.b16 %v195, %v192
    %v241 = vpack.c.b16 %v196, %v193
    %v242 = vpack.c.b16 %v200, %v197
    %v243 = vpack.c.b16 %v201, %v198
    %v244 = vpack.c.b16 %v202, %v199
    %v245 = vpack.c.b16 %v206, %v203
    %v246 = vpack.c.b16 %v207, %v204
    %v247 = vpack.c.b16 %v208, %v205
    %v248 = vpack.c.b16 %v212, %v209
    %v249 = vpack.c.b16 %v213, %v210
    %v250 = vpack.c.b16 %v214, %v211
    %v251 = vpack.c.b16 %v218, %v215
    %v252 = vpack.c.b16 %v219, %v216
    %v253 = vpack.c.b16 %v220, %v217
    %v254 = vpack.c.b16 %v224, %v221
    %v255 = vpack.c.b16 %v225, %v222
    %v256 = vpack.c.b16 %v226, %v223
    %v257 = vpack.c.b16 %v230, %v227
    %v258 = vpack.c.b16 %v231, %v228
    %v259 = vpack.c.b16 %v232, %v229
    %v260 = vpack.c.b16 %v236, %v233
    %v261 = vpack.c.b16 %v237, %v234
    %v262 = vpack.c.b16 %v238, %v235
    %v315 = vunpack.c.l.b16 %v116
    %v316 = vunpack.c.l.b16 %v117
    %v317 = vunpack.c.l.b16 %v118
    %v318 = vunpack.c.l.b16 %v119
    %v319 = vunpack.c.l.b16 %v120
    %v320 = vunpack.c.l.b16 %v121
    %v321 = vunpack.c.l.b16 %v122
    %v322 = vunpack.c.l.b16 %v123
    %v323 = vunpack.c.l.b16 %v124
    %v324 = vunpack.c.l.b16 %v125
    %v325 = vunpack.c.l.b16 %v126
    %v326 = vunpack.c.l.b16 %v127
    %v327 = vunpack.c.l.b16 %v128
    %v328 = vunpack.c.l.b16 %v129
    %v329 = vunpack.c.l.b16 %v130
    %v330 = vunpack.c.l.b16 %v131
    %v331 = vunpack.c.l.b16 %v132
    %v332 = vunpack.c.l.b16 %v133
    %v333 = vunpack.c.l.b16 %v134
    %v334 = vunpack.c.l.b16 %v135
    %v335 = vunpack.c.l.b16 %v136
    %v336 = vunpack.c.l.b16 %v137
    %v337 = vunpack.c.l.b16 %v138
    %v338 = vunpack.c.l.b16 %v139
    %v339 = vunpack.c.l.b16 %v140
    %v340 = vunpack.c.l.b16 %v141
    %v341 = vunpack.c.l.b16 %v142
    %v342 = vunpack.c.l.b16 %v143
    %v343 = vunpack.c.l.b16 %v144
    %v344 = vunpack.c.l.b16 %v145
    %v345 = vunpack.c.l.b16 %v146
    %v346 = vunpack.c.l.b16 %v147
    %v347 = vunpack.c.l.b16 %v148
    %v348 = vunpack.c.l.b16 %v149
    %v349 = vunpack.c.l.b16 %v150
    %v350 = vunpack.c.l.b16 %v151
    %v351 = vpack.c.b16 %v316, %v315
    %v352 = vpack.c.b16 %v318, %v317
    %v353 = vpack.c.b16 %v320, %v319
    %v354 = vpack.c.b16 %v322, %v321
    %v355 = vpack.c.b16 %v324, %v323
    %v356 = vpack.c.b16 %v326, %v325
    %v357 = vpack.c.b16 %v328, %v327
    %v358 = vpack.c.b16 %v330, %v329
    %v359 = vpack.c.b16 %v332, %v331
    %v360 = vpack.c.b16 %v334, %v333
    %v361 = vpack.c.b16 %v336, %v335
    %v362 = vpack.c.b16 %v338, %v337
    %v363 = vpack.c.b16 %v340, %v339
    %v364 = vpack.c.b16 %v342, %v341
    %v365 = vpack.c.b16 %v344, %v343
    %v366 = vpack.c.b16 %v346, %v345
    %v367 = vpack.c.b16 %v348, %v347
    %v368 = vpack.c.b16 %v350, %v349
    %vm387 = vcmask 261120
    %v389 = vsel %vm387, %v241, 0
    %v392 = vsel %vm387, %v244, 0
    %v395 = vsel %vm387, %v247, 0
    %v398 = vsel %vm387, %v250, 0
    %v401 = vsel %vm387, %v253, 0
    %v404 = vsel %vm387, %v256, 0
    %v407 = vsel %vm387, %v259, 0
    %v410 = vsel %vm387, %v262, 0
    %412 = vmatprep.subr.bf16.mxu0 0
    %413 = vmatpush1.bf16.msra.mxu0 %v351
    %414 = vmatprep.subr.bf16.mxu0 0
    %415 = vmatpush1.bf16.msra.mxu0 %v352
    %416 = vmatprep.subr.bf16.mxu0 0
    %417 = vmatpush1.bf16.msra.mxu0 %v353
    %418 = vmatprep.subr.bf16.mxu0 0
    %419 = vmatpush1.bf16.msra.mxu0 %v354
    %420 = vmatprep.subr.bf16.mxu0 0
    %421 = vmatpush1.bf16.msra.mxu0 %v355
    %422 = vmatprep.subr.bf16.mxu0 0
    %423 = vmatpush1.bf16.msra.mxu0 %v356
    %424 = vmatprep.subr.bf16.mxu0 0
    %425 = vmatpush1.bf16.msra.mxu0 %v357
    %426 = vmatprep.subr.bf16.mxu0 0
    %427 = vmatpush1.bf16.msra.mxu0 %v358
    %428 = vmatprep.subr.bf16.mxu0 0
    %429 = vmatpush1.bf16.msra.mxu0 %v359
    %430 = vmatprep.subr.bf16.mxu0 0
    %431 = vmatpush1.bf16.msra.mxu0 %v360
    %432 = vmatprep.subr.bf16.mxu0 0
    %433 = vmatpush1.bf16.msra.mxu0 %v361
    %434 = vmatprep.subr.bf16.mxu0 0
    %435 = vmatpush1.bf16.msra.mxu0 %v362
    %436 = vmatprep.subr.bf16.mxu0 0
    %437 = vmatpush1.bf16.msra.mxu0 %v363
    %438 = vmatprep.subr.bf16.mxu0 0
    %439 = vmatpush1.bf16.msra.mxu0 %v364
    %440 = vmatprep.subr.bf16.mxu0 0
    %441 = vmatpush1.bf16.msra.mxu0 %v365
    %442 = vmatprep.subr.bf16.mxu0 0
    %443 = vmatpush1.bf16.msra.mxu0 %v366
    %444 = vmatprep.mubr.bf16.mxu0 %v240
    %445 = vmatmul.mubr.bf16.gmra.mrb[0].mxu0 %v239
    %v446 = vpop.f32.mrb[0].mxu0
    %v447 = vadd.f32 %v157, %v446
    %v448 = vpop.f32.mrb[0].mxu0
    %v449 = vpop.f32.mrb[0].mxu0
    %v450 = vadd.f32 %v157, %v449
    %v451 = vpop.f32.mrb[0].mxu0
    %452 = vmatprep.mubr.bf16.mxu0 %v243
    %453 = vmatmul.mubr.bf16.gmra.mrb[0].mxu0 %v242
    %v454 = vpop.f32.mrb[0].mxu0
    %v455 = vadd.f32 %v157, %v454
    %v456 = vpop.f32.mrb[0].mxu0
    %v457 = vpop.f32.mrb[0].mxu0
    %v458 = vadd.f32 %v157, %v457
    %v459 = vpop.f32.mrb[0].mxu0
    %460 = vmatprep.mubr.bf16.mxu0 %v246
    %461 = vmatmul.mubr.bf16.gmra.mrb[0].mxu0 %v245
    %v462 = vpop.f32.mrb[0].mxu0
    %v463 = vadd.f32 %v157, %v462
    %v464 = vpop.f32.mrb[0].mxu0
    %v465 = vpop.f32.mrb[0].mxu0
    %v466 = vadd.f32 %v157, %v465
    %v467 = vpop.f32.mrb[0].mxu0
    %468 = vmatprep.mubr.bf16.mxu0 %v249
    %469 = vmatmul.mubr.bf16.gmra.mrb[0].mxu0 %v248
    %v470 = vpop.f32.mrb[0].mxu0
    %v471 = vadd.f32 %v157, %v470
    %v472 = vpop.f32.mrb[0].mxu0
    %v473 = vpop.f32.mrb[0].mxu0
    %v474 = vadd.f32 %v157, %v473
    %v475 = vpop.f32.mrb[0].mxu0
    %476 = vmatprep.mubr.bf16.mxu0 %v252
    %477 = vmatmul.mubr.bf16.gmra.mrb[0].mxu0 %v251
    %v478 = vpop.f32.mrb[0].mxu0
    %v479 = vadd.f32 %v157, %v478
    %v480 = vpop.f32.mrb[0].mxu0
    %v481 = vpop.f32.mrb[0].mxu0
    %v482 = vadd.f32 %v157, %v481
    %v483 = vpop.f32.mrb[0].mxu0
    %484 = vmatprep.mubr.bf16.mxu0 %v255
    %485 = vmatmul.mubr.bf16.gmra.mrb[0].mxu0 %v254
    %v486 = vpop.f32.mrb[0].mxu0
    %v487 = vadd.f32 %v157, %v486
    %v488 = vpop.f32.mrb[0].mxu0
    %v489 = vpop.f32.mrb[0].mxu0
    %v490 = vadd.f32 %v157, %v489
    %v491 = vpop.f32.mrb[0].mxu0
    %492 = vmatprep.mubr.bf16.mxu0 %v258
    %493 = vmatmul.mubr.bf16.gmra.mrb[0].mxu0 %v257
    %v494 = vpop.f32.mrb[0].mxu0
    %v495 = vadd.f32 %v157, %v494
    %v496 = vpop.f32.mrb[0].mxu0
    %v497 = vpop.f32.mrb[0].mxu0
    %v498 = vadd.f32 %v157, %v497
    %v499 = vpop.f32.mrb[0].mxu0
    %500 = vmatprep.mubr.bf16.mxu0 %v261
    %501 = vmatmul.mubr.bf16.gmra.mrb[0].mxu0 %v260
    %v502 = vpop.f32.mrb[0].mxu0
    %v503 = vadd.f32 %v157, %v502
    %v504 = vpop.f32.mrb[0].mxu0
    %v505 = vpop.f32.mrb[0].mxu0
    %v506 = vadd.f32 %v157, %v505
    %v507 = vpop.f32.mrb[0].mxu0
    %508 = vdwg.mxu0
    %509 = vmatprep.subr.bf16.mxu0 0
    %510 = vmatpush1.bf16.msra.mxu0 %v367
    %511 = vmatprep.subr.bf16.mxu0 0
    %512 = vmatpush1.bf16.msra.mxu0 %v368
    %513 = vmatprep.subr.bf16.mxu0 0
    %514 = vmatpush1.bf16.msra.mxu0 0
    %515 = vmatprep.subr.bf16.mxu0 0
    %516 = vmatpush1.bf16.msra.mxu0 0
    %517 = vmatprep.subr.bf16.mxu0 0
    %518 = vmatpush1.bf16.msra.mxu0 0
    %519 = vmatprep.subr.bf16.mxu0 0
    %520 = vmatpush1.bf16.msra.mxu0 0
    %521 = vmatprep.subr.bf16.mxu0 0
    %522 = vmatpush1.bf16.msra.mxu0 0
    %523 = vmatprep.subr.bf16.mxu0 0
    %524 = vmatpush1.bf16.msra.mxu0 0
    %525 = vmatprep.subr.bf16.mxu0 0
    %526 = vmatpush1.bf16.msra.mxu0 0
    %527 = vmatprep.subr.bf16.mxu0 0
    %528 = vmatpush1.bf16.msra.mxu0 0
    %529 = vmatprep.subr.bf16.mxu0 0
    %530 = vmatpush1.bf16.msra.mxu0 0
    %531 = vmatprep.subr.bf16.mxu0 0
    %532 = vmatpush1.bf16.msra.mxu0 0
    %533 = vmatprep.subr.bf16.mxu0 0
    %534 = vmatpush1.bf16.msra.mxu0 0
    %535 = vmatprep.subr.bf16.mxu0 0
    %536 = vmatpush1.bf16.msra.mxu0 0
    %537 = vmatprep.subr.bf16.mxu0 0
    %538 = vmatpush1.bf16.msra.mxu0 0
    %539 = vmatprep.subr.bf16.mxu0 0
    %540 = vmatpush1.bf16.msra.mxu0 0
    %541 = vmatprep.mubr.bf16.mxu0 0
    %542 = vmatmul.mubr.bf16.gmra.mrb[0].mxu0 %v389
    %v543 = vpop.f32.mrb[0].mxu0
    %v544 = vadd.f32 %v447, %v543
    %v545 = vpop.f32.mrb[0].mxu0
    %v546 = vpop.f32.mrb[0].mxu0
    %v547 = vadd.f32 %v450, %v546
    %v548 = vpop.f32.mrb[0].mxu0
    %549 = vmatprep.mubr.bf16.mxu0 0
    %550 = vmatmul.mubr.bf16.gmra.mrb[0].mxu0 %v392
    %v551 = vpop.f32.mrb[0].mxu0
    %v552 = vadd.f32 %v455, %v551
    %v553 = vpop.f32.mrb[0].mxu0
    %v554 = vpop.f32.mrb[0].mxu0
    %v555 = vadd.f32 %v458, %v554
    %v556 = vpop.f32.mrb[0].mxu0
    %557 = vmatprep.mubr.bf16.mxu0 0
    %558 = vmatmul.mubr.bf16.gmra.mrb[0].mxu0 %v395
    %v559 = vpop.f32.mrb[0].mxu0
    %v560 = vadd.f32 %v463, %v559
    %v561 = vpop.f32.mrb[0].mxu0
    %v562 = vpop.f32.mrb[0].mxu0
    %v563 = vadd.f32 %v466, %v562
    %v564 = vpop.f32.mrb[0].mxu0
    %565 = vmatprep.mubr.bf16.mxu0 0
    %566 = vmatmul.mubr.bf16.gmra.mrb[0].mxu0 %v398
    %v567 = vpop.f32.mrb[0].mxu0
    %v568 = vadd.f32 %v471, %v567
    %v569 = vpop.f32.mrb[0].mxu0
    %v570 = vpop.f32.mrb[0].mxu0
    %v571 = vadd.f32 %v474, %v570
    %v572 = vpop.f32.mrb[0].mxu0
    %573 = vmatprep.mubr.bf16.mxu0 0
    %574 = vmatmul.mubr.bf16.gmra.mrb[0].mxu0 %v401
    %v575 = vpop.f32.mrb[0].mxu0
    %v576 = vadd.f32 %v479, %v575
    %v577 = vpop.f32.mrb[0].mxu0
    %v578 = vpop.f32.mrb[0].mxu0
    %v579 = vadd.f32 %v482, %v578
    %v580 = vpop.f32.mrb[0].mxu0
    %581 = vmatprep.mubr.bf16.mxu0 0
    %582 = vmatmul.mubr.bf16.gmra.mrb[0].mxu0 %v404
    %v583 = vpop.f32.mrb[0].mxu0
    %v584 = vadd.f32 %v487, %v583
    %v585 = vpop.f32.mrb[0].mxu0
    %v586 = vpop.f32.mrb[0].mxu0
    %v587 = vadd.f32 %v490, %v586
    %v588 = vpop.f32.mrb[0].mxu0
    %589 = vmatprep.mubr.bf16.mxu0 0
    %590 = vmatmul.mubr.bf16.gmra.mrb[0].mxu0 %v407
    %v591 = vpop.f32.mrb[0].mxu0
    %v592 = vadd.f32 %v495, %v591
    %v593 = vpop.f32.mrb[0].mxu0
    %v594 = vpop.f32.mrb[0].mxu0
    %v595 = vadd.f32 %v498, %v594
    %v596 = vpop.f32.mrb[0].mxu0
    %597 = vmatprep.mubr.bf16.mxu0 0
    %598 = vmatmul.mubr.bf16.gmra.mrb[0].mxu0 %v410
    %v599 = vpop.f32.mrb[0].mxu0
    %v600 = vadd.f32 %v503, %v599
    %v601 = vpop.f32.mrb[0].mxu0
    %v602 = vpop.f32.mrb[0].mxu0
    %v603 = vadd.f32 %v506, %v602
    %v604 = vpop.f32.mrb[0].mxu0
    %605 = vdwg.mxu0
    %v606 = vmax.f32 %v544, 0.0
    %v607 = vmax.f32 %v547, 0.0
    %v608 = vmax.f32 %v552, 0.0
    %v609 = vmax.f32 %v555, 0.0
    %v610 = vmax.f32 %v560, 0.0
    %v611 = vmax.f32 %v563, 0.0
    %v612 = vmax.f32 %v568, 0.0
    %v613 = vmax.f32 %v571, 0.0
    %v614 = vmax.f32 %v576, 0.0
    %v615 = vmax.f32 %v579, 0.0
    %v616 = vmax.f32 %v584, 0.0
    %v617 = vmax.f32 %v587, 0.0
    %v618 = vmax.f32 %v592, 0.0
    %v619 = vmax.f32 %v595, 0.0
    %v620 = vmax.f32 %v600, 0.0
    %v621 = vmax.f32 %v603, 0.0
    %v622 = vld [vmem:[#allocation8] sm:$0x1]
    %v624 = vlaneseq
    %v625 = vshrl.u32 %v624, 7
    %v626 = vsub.s32 0, %v625
    %v627 = vrot.slane %v622, %v626
    %v629 = vmul.f32 %v606, %v627
    %v630 = vmul.f32 %v607, %v627
    %v631 = vmul.f32 %v608, %v627
    %v632 = vmul.f32 %v609, %v627
    %v633 = vmul.f32 %v610, %v627
    %v634 = vmul.f32 %v611, %v627
    %v635 = vmul.f32 %v612, %v627
    %v636 = vmul.f32 %v613, %v627
    %v637 = vmul.f32 %v614, %v627
    %v638 = vmul.f32 %v615, %v627
    %v639 = vmul.f32 %v616, %v627
    %v640 = vmul.f32 %v617, %v627
    %v641 = vmul.f32 %v618, %v627
    %v642 = vmul.f32 %v619, %v627
    %v643 = vmul.f32 %v620, %v627
    %v644 = vmul.f32 %v621, %v627
    %v645 = vld [vmem:[#allocation10] sm:$0x1]
    %v647 = vlaneseq
    %v648 = vshrl.u32 %v647, 7
    %v649 = vsub.s32 0, %v648
    %v650 = vrot.slane %v645, %v649
    %v652 = vadd.f32 %v629, %v650
    %v653 = vadd.f32 %v630, %v650
    %v654 = vadd.f32 %v631, %v650
    %v655 = vadd.f32 %v632, %v650
    %v656 = vadd.f32 %v633, %v650
    %v657 = vadd.f32 %v634, %v650
    %v658 = vadd.f32 %v635, %v650
    %v659 = vadd.f32 %v636, %v650
    %v660 = vadd.f32 %v637, %v650
    %v661 = vadd.f32 %v638, %v650
    %v662 = vadd.f32 %v639, %v650
    %v663 = vadd.f32 %v640, %v650
    %v664 = vadd.f32 %v641, %v650
    %v665 = vadd.f32 %v642, %v650
    %v666 = vadd.f32 %v643, %v650
    %v667 = vadd.f32 %v644, %v650
    %v668 = vpack.c.bf16 %v653, %v652
    %v669 = vpack.c.bf16 %v655, %v654
    %v670 = vpack.c.bf16 %v657, %v656
    %v671 = vpack.c.bf16 %v659, %v658
    %v672 = vpack.c.bf16 %v661, %v660
    %v673 = vpack.c.bf16 %v663, %v662
    %v674 = vpack.c.bf16 %v665, %v664
    %v675 = vpack.c.bf16 %v667, %v666
    %v684 = vunpack.c.l.b16 %v668
    %v685 = vunpack.c.h.b16 %v668
    %v686 = vunpack.c.l.b16 %v669
    %v687 = vunpack.c.h.b16 %v669
    %v688 = vunpack.c.l.b16 %v670
    %v689 = vunpack.c.h.b16 %v670
    %v690 = vunpack.c.l.b16 %v671
    %v691 = vunpack.c.h.b16 %v671
    %v692 = vunpack.c.l.b16 %v672
    %v693 = vunpack.c.h.b16 %v672
    %v694 = vunpack.c.l.b16 %v673
    %v695 = vunpack.c.h.b16 %v673
    %v696 = vunpack.c.l.b16 %v674
    %v697 = vunpack.c.h.b16 %v674
    %v698 = vunpack.c.l.b16 %v675
    %v699 = vunpack.c.h.b16 %v675
    %v700 = vpack.c.b16 %v684, %v684
    %v701 = vpack.c.b16 %v685, %v685
    %v702 = vpack.c.b16 %v686, %v686
    %v703 = vpack.c.b16 %v687, %v687
    %v704 = vpack.c.b16 %v688, %v688
    %v705 = vpack.c.b16 %v689, %v689
    %v706 = vpack.c.b16 %v690, %v690
    %v707 = vpack.c.b16 %v691, %v691
    %v708 = vpack.c.b16 %v692, %v692
    %v709 = vpack.c.b16 %v693, %v693
    %v710 = vpack.c.b16 %v694, %v694
    %v711 = vpack.c.b16 %v695, %v695
    %v712 = vpack.c.b16 %v696, %v696
    %v713 = vpack.c.b16 %v697, %v697
    %v714 = vpack.c.b16 %v698, %v698
    %v715 = vpack.c.b16 %v699, %v699
    %vm732 = vcmask 125952
    %733 = vst.msk [vmem:[#allocation11] sm:$0xf] %vm732, %v700
    %734 = vst.msk [vmem:[#allocation11 + $0x4] sm:$0xf] %vm732, %v701
    %735 = vst.msk [vmem:[#allocation11 + $0x8] sm:$0xf] %vm732, %v702
    %736 = vst.msk [vmem:[#allocation11 + $0xc] sm:$0xf] %vm732, %v703
    %737 = vst.msk [vmem:[#allocation11 + $0x10] sm:$0xf] %vm732, %v704
    %738 = vst.msk [vmem:[#allocation11 + $0x14] sm:$0xf] %vm732, %v705
    %739 = vst.msk [vmem:[#allocation11 + $0x18] sm:$0xf] %vm732, %v706
    %740 = vst.msk [vmem:[#allocation11 + $0x1c] sm:$0xf] %vm732, %v707
    %741 = vst.msk [vmem:[#allocation11 + $0x20] sm:$0xf] %vm732, %v708
    %742 = vst.msk [vmem:[#allocation11 + $0x24] sm:$0xf] %vm732, %v709
    %743 = vst.msk [vmem:[#allocation11 + $0x28] sm:$0xf] %vm732, %v710
    %744 = vst.msk [vmem:[#allocation11 + $0x2c] sm:$0xf] %vm732, %v711
    %745 = vst.msk [vmem:[#allocation11 + $0x30] sm:$0xf] %vm732, %v712
    %746 = vst.msk [vmem:[#allocation11 + $0x34] sm:$0xf] %vm732, %v713
    %747 = vst.msk [vmem:[#allocation11 + $0x38] sm:$0xf] %vm732, %v714
    %748 = vst.msk [vmem:[#allocation11 + $0x3c] sm:$0xf] %vm732, %v715
    // Predicated region
    $region42: #{unet_forward.29} parent=1 // pred_check
      _
    $region43: #{unet_forward.29} parent=1 // pred_check_branch
      %750 = sbr.rel (0) target = $region45
    $region44: #{unet_forward.29} parent=1 // pred_region
      %s752 = ssub.s32 1024, 1024
      %753 = vsyncadd [#allocation4], %s752
      %s754 = sshll.u32 [#allocation11], 4
      %s755 = int_to_ptr.vmem [resolvable:$true] %s754
      %760 = dma.vmem_to_hbm [thread:$0]  %s755, 1024, %s5, [#allocation4], 64, 64, 4
    $region45: #{unet_forward.29} parent=1 // pred_fallthru
      _
    // Predicated region
    $region46: #{unet_forward.29} parent=1 // pred_check
      _
    $region47: #{unet_forward.29} parent=1 // pred_check_branch
      %762 = sbr.rel (0) target = $region49
    $region48: #{unet_forward.29} parent=1 // pred_region
      %763 = dma.done [#allocation4], 1024
    $region49: #{unet_forward.29} parent=1 // pred_fallthru
      _
    %764 = vsyncpa [#allocation3], 1
    %765 = vsyncpa [#allocation6], 1
    %766 = vsyncpa [#allocation9], 1
    %767 = vsyncpa [#allocation4], 1

// kernel: unet_forward.31
$region0: #{unet_forward.31}
  #allocation0 [shape = 'u32[]', space=smem, size = 0x4, offset = 0x4, fixed_abs, tag = 'smem constant byte address 0x4 - core index']
  #allocation1 [shape = 'u32[144,128]{1,0:T(1,128)}', space=vmem, size = 0x12000, scoped, tag = 'internal scratch']
  %s0 = inlined_call_operand.hbm [shape: bf16[128,16], index: 0, kind: input, shape index: {}]
  %s1 = inlined_call_operand.hbm [shape: bf16[16,32], index: 1, kind: input, shape index: {}]
  %s2 = inlined_call_operand.hbm [shape: f32[1,32], index: 2, kind: input, shape index: {}]
  %s3 = inlined_call_operand.hbm [shape: bf16[128,32], index: 3, kind: output, shape index: {}]
  %s4 = sld [smem:[#allocation0]]
  $region34: #{unet_forward.31} parent=0
    _
  %s6 = ssub.s32 1, %s4
  %s7 = scalar_select 0, %s6, %s4
  $region1: #{unet_forward.31} parent=0
    #allocation2 [shape = 'u8[32768]{0}', space=vmem, size = 0x8000, scoped, tag = 'input window, operand 0, single buffered']
    #allocation3 [shape = 's32[1]{0}', space=sflag, size = 0x4, scoped, tag = 'scoped memory for unet_forward.31']
    #allocation4 [shape = 's32[1]{0}', space=sflag, size = 0x4, scoped, tag = 'scoped memory for unet_forward.31']
    #allocation5 [shape = 'u8[4096]{0}', space=vmem, size = 0x1000, scoped, tag = 'input window, operand 1, single buffered']
    #allocation6 [shape = 's32[1]{0}', space=sflag, size = 0x4, scoped, tag = 'scoped memory for unet_forward.31']
    #allocation7 [shape = 'u8[512]{0}', space=vmem, size = 0x400, scoped, tag = 'input window, operand 2, single buffered']
    #allocation8 [shape = 'u8[32768]{0}', space=vmem, size = 0x8000, scoped, tag = 'output window, operand 0, single buffered']
    %8 = vsyncpa [#allocation3], 0
    %9 = vsyncpa [#allocation6], 0
    %10 = vsyncpa [#allocation4], 0
    // Predicated region
    $region2: #{unet_forward.31} parent=1 // pred_check
      _
    $region3: #{unet_forward.31} parent=1 // pred_check_branch
      %12 = sbr.rel (0) target = $region5
    $region4: #{unet_forward.31} parent=1 // pred_region
      %s14 = ssub.s32 1024, 1024
      %15 = vsyncadd [#allocation3], %s14
      %s16 = sshll.u32 [#allocation2], 4
      %s17 = int_to_ptr.vmem [resolvable:$true] %s16
      %22 = dma.hbm_to_vmem [thread:$0]  %s0, 1024, %s17, [#allocation3], 64, 64, 4
    $region5: #{unet_forward.31} parent=1 // pred_fallthru
      _
    // Predicated region
    $region6: #{unet_forward.31} parent=1 // pred_check
      _
    $region7: #{unet_forward.31} parent=1 // pred_check_branch
      %24 = sbr.rel (0) target = $region9
    $region8: #{unet_forward.31} parent=1 // pred_region
      %s26 = ssub.s32 128, 128
      %27 = vsyncadd [#allocation6], %s26
      %s28 = sshll.u32 [#allocation5], 4
      %s29 = int_to_ptr.vmem [resolvable:$true] %s28
      %34 = dma.hbm_to_vmem [thread:$0]  %s1, 128, %s29, [#allocation6], 64, 64, 4
    $region9: #{unet_forward.31} parent=1 // pred_fallthru
      _
    // Predicated region
    $region10: #{unet_forward.31} parent=1 // pred_check
      _
    $region11: #{unet_forward.31} parent=1 // pred_check_branch
      %36 = sbr.rel (0) target = $region13
    $region12: #{unet_forward.31} parent=1 // pred_region
      %s38 = ssub.s32 16, 16
      %39 = vsyncadd [#allocation6], %s38
      %s41 = sshll.u32 [#allocation7], 4
      %s42 = int_to_ptr.vmem [resolvable:$true] %s41
      %44 = dma.hbm_to_vmem [thread:$0]  %s2, 16, %s42, [#allocation6]
    $region13: #{unet_forward.31} parent=1 // pred_fallthru
      _
    // Predicated region
    $region14: #{unet_forward.31} parent=1 // pred_check
      _
    $region15: #{unet_forward.31} parent=1 // pred_check_branch
      %46 = sbr.rel (0) target = $region17
    $region16: #{unet_forward.31} parent=1 // pred_region
      %47 = dma.done [#allocation3], 1024
    $region17: #{unet_forward.31} parent=1 // pred_fallthru
      _
    // Predicated region
    $region18: #{unet_forward.31} parent=1 // pred_check
      _
    $region19: #{unet_forward.31} parent=1 // pred_check_branch
      %49 = sbr.rel (0) target = $region21
    $region20: #{unet_forward.31} parent=1 // pred_region
      %50 = dma.done [#allocation6], 128
    $region21: #{unet_forward.31} parent=1 // pred_fallthru
      _
    // Predicated region
    $region22: #{unet_forward.31} parent=1 // pred_check
      _
    $region23: #{unet_forward.31} parent=1 // pred_check_branch
      %52 = sbr.rel (0) target = $region25
    $region24: #{unet_forward.31} parent=1 // pred_region
      %53 = dma.done [#allocation6], 16
    $region25: #{unet_forward.31} parent=1 // pred_fallthru
      _
    %v55 = vld [vmem:[#allocation2] sm:$0xf]
    %v56 = vld [vmem:[#allocation2 + $0x4] sm:$0xf]
    %v57 = vld [vmem:[#allocation2 + $0x8] sm:$0xf]
    %v58 = vld [vmem:[#allocation2 + $0xc] sm:$0xf]
    %v59 = vld [vmem:[#allocation2 + $0x10] sm:$0xf]
    %v60 = vld [vmem:[#allocation2 + $0x14] sm:$0xf]
    %v61 = vld [vmem:[#allocation2 + $0x18] sm:$0xf]
    %v62 = vld [vmem:[#allocation2 + $0x1c] sm:$0xf]
    %v63 = vld [vmem:[#allocation2 + $0x20] sm:$0xf]
    %v64 = vld [vmem:[#allocation2 + $0x24] sm:$0xf]
    %v65 = vld [vmem:[#allocation2 + $0x28] sm:$0xf]
    %v66 = vld [vmem:[#allocation2 + $0x2c] sm:$0xf]
    %v67 = vld [vmem:[#allocation2 + $0x30] sm:$0xf]
    %v68 = vld [vmem:[#allocation2 + $0x34] sm:$0xf]
    %v69 = vld [vmem:[#allocation2 + $0x38] sm:$0xf]
    %v70 = vld [vmem:[#allocation2 + $0x3c] sm:$0xf]
    %v71 = vld [vmem:[#allocation5] sm:$0xf]
    %v72 = vld [vmem:[#allocation5 + $0x4] sm:$0xf]
    %v73 = vld [vmem:[#allocation7] sm:$0x1]
    %v75 = vlaneseq
    %v76 = vshrl.u32 %v75, 7
    %v77 = vsub.s32 0, %v76
    %v78 = vrot.slane %v73, %v77
    %v96 = vunpack.c.l.b16 %v55
    %v97 = vunpack.c.l.b16 %v56
    %v98 = vunpack.c.l.b16 %v57
    %v99 = vunpack.c.l.b16 %v58
    %v100 = vunpack.c.l.b16 %v59
    %v101 = vunpack.c.l.b16 %v60
    %v102 = vunpack.c.l.b16 %v61
    %v103 = vunpack.c.l.b16 %v62
    %v104 = vunpack.c.l.b16 %v63
    %v105 = vunpack.c.l.b16 %v64
    %v106 = vunpack.c.l.b16 %v65
    %v107 = vunpack.c.l.b16 %v66
    %v108 = vunpack.c.l.b16 %v67
    %v109 = vunpack.c.l.b16 %v68
    %v110 = vunpack.c.l.b16 %v69
    %v111 = vunpack.c.l.b16 %v70
    %v112 = vpack.c.b16 %v97, %v96
    %v113 = vpack.c.b16 %v99, %v98
    %v114 = vpack.c.b16 %v101, %v100
    %v115 = vpack.c.b16 %v103, %v102
    %v116 = vpack.c.b16 %v105, %v104
    %v117 = vpack.c.b16 %v107, %v106
    %v118 = vpack.c.b16 %v109, %v108
    %v119 = vpack.c.b16 %v111, %v110
    %v122 = vunpack.c.l.b16 %v71
    %v123 = vunpack.c.l.b16 %v72
    %v124 = vpack.c.b16 %v123, %v122
    %vm126 = vcmask 130048
    %v128 = vsel %vm126, %v112, 0
    %v131 = vsel %vm126, %v113, 0
    %v134 = vsel %vm126, %v114, 0
    %v137 = vsel %vm126, %v115, 0
    %v140 = vsel %vm126, %v116, 0
    %v143 = vsel %vm126, %v117, 0
    %v146 = vsel %vm126, %v118, 0
    %v149 = vsel %vm126, %v119, 0
    %151 = vmatprep.subr.bf16.mxu0 0
    %152 = vmatpush1.bf16.msra.mxu0 %v124
    %153 = vmatprep.subr.bf16.mxu0 0
    %154 = vmatpush1.bf16.msra.mxu0 0
    %155 = vmatprep.subr.bf16.mxu0 0
    %156 = vmatpush1.bf16.msra.mxu0 0
    %157 = vmatprep.subr.bf16.mxu0 0
    %158 = vmatpush1.bf16.msra.mxu0 0
    %159 = vmatprep.subr.bf16.mxu0 0
    %160 = vmatpush1.bf16.msra.mxu0 0
    %161 = vmatprep.subr.bf16.mxu0 0
    %162 = vmatpush1.bf16.msra.mxu0 0
    %163 = vmatprep.subr.bf16.mxu0 0
    %164 = vmatpush1.bf16.msra.mxu0 0
    %165 = vmatprep.subr.bf16.mxu0 0
    %166 = vmatpush1.bf16.msra.mxu0 0
    %167 = vmatprep.subr.bf16.mxu0 0
    %168 = vmatpush1.bf16.msra.mxu0 0
    %169 = vmatprep.subr.bf16.mxu0 0
    %170 = vmatpush1.bf16.msra.mxu0 0
    %171 = vmatprep.subr.bf16.mxu0 0
    %172 = vmatpush1.bf16.msra.mxu0 0
    %173 = vmatprep.subr.bf16.mxu0 0
    %174 = vmatpush1.bf16.msra.mxu0 0
    %175 = vmatprep.subr.bf16.mxu0 0
    %176 = vmatpush1.bf16.msra.mxu0 0
    %177 = vmatprep.subr.bf16.mxu0 0
    %178 = vmatpush1.bf16.msra.mxu0 0
    %179 = vmatprep.subr.bf16.mxu0 0
    %180 = vmatpush1.bf16.msra.mxu0 0
    %181 = vmatprep.subr.bf16.mxu0 0
    %182 = vmatpush1.bf16.msra.mxu0 0
    %183 = vmatprep.mubr.bf16.mxu0 0
    %184 = vmatmul.mubr.bf16.gmra.mrb[0].mxu0 %v128
    %v185 = vpop.f32.mrb[0].mxu0
    %v186 = vadd.f32 %v78, %v185
    %v187 = vpop.f32.mrb[0].mxu0
    %v188 = vpop.f32.mrb[0].mxu0
    %v189 = vadd.f32 %v78, %v188
    %v190 = vpop.f32.mrb[0].mxu0
    %191 = vmatprep.mubr.bf16.mxu0 0
    %192 = vmatmul.mubr.bf16.gmra.mrb[0].mxu0 %v131
    %v193 = vpop.f32.mrb[0].mxu0
    %v194 = vadd.f32 %v78, %v193
    %v195 = vpop.f32.mrb[0].mxu0
    %v196 = vpop.f32.mrb[0].mxu0
    %v197 = vadd.f32 %v78, %v196
    %v198 = vpop.f32.mrb[0].mxu0
    %199 = vmatprep.mubr.bf16.mxu0 0
    %200 = vmatmul.mubr.bf16.gmra.mrb[0].mxu0 %v134
    %v201 = vpop.f32.mrb[0].mxu0
    %v202 = vadd.f32 %v78, %v201
    %v203 = vpop.f32.mrb[0].mxu0
    %v204 = vpop.f32.mrb[0].mxu0
    %v205 = vadd.f32 %v78, %v204
    %v206 = vpop.f32.mrb[0].mxu0
    %207 = vmatprep.mubr.bf16.mxu0 0
    %208 = vmatmul.mubr.bf16.gmra.mrb[0].mxu0 %v137
    %v209 = vpop.f32.mrb[0].mxu0
    %v210 = vadd.f32 %v78, %v209
    %v211 = vpop.f32.mrb[0].mxu0
    %v212 = vpop.f32.mrb[0].mxu0
    %v213 = vadd.f32 %v78, %v212
    %v214 = vpop.f32.mrb[0].mxu0
    %215 = vmatprep.mubr.bf16.mxu0 0
    %216 = vmatmul.mubr.bf16.gmra.mrb[0].mxu0 %v140
    %v217 = vpop.f32.mrb[0].mxu0
    %v218 = vadd.f32 %v78, %v217
    %v219 = vpop.f32.mrb[0].mxu0
    %v220 = vpop.f32.mrb[0].mxu0
    %v221 = vadd.f32 %v78, %v220
    %v222 = vpop.f32.mrb[0].mxu0
    %223 = vmatprep.mubr.bf16.mxu0 0
    %224 = vmatmul.mubr.bf16.gmra.mrb[0].mxu0 %v143
    %v225 = vpop.f32.mrb[0].mxu0
    %v226 = vadd.f32 %v78, %v225
    %v227 = vpop.f32.mrb[0].mxu0
    %v228 = vpop.f32.mrb[0].mxu0
    %v229 = vadd.f32 %v78, %v228
    %v230 = vpop.f32.mrb[0].mxu0
    %231 = vmatprep.mubr.bf16.mxu0 0
    %232 = vmatmul.mubr.bf16.gmra.mrb[0].mxu0 %v146
    %v233 = vpop.f32.mrb[0].mxu0
    %v234 = vadd.f32 %v78, %v233
    %v235 = vpop.f32.mrb[0].mxu0
    %v236 = vpop.f32.mrb[0].mxu0
    %v237 = vadd.f32 %v78, %v236
    %v238 = vpop.f32.mrb[0].mxu0
    %239 = vmatprep.mubr.bf16.mxu0 0
    %240 = vmatmul.mubr.bf16.gmra.mrb[0].mxu0 %v149
    %v241 = vpop.f32.mrb[0].mxu0
    %v242 = vadd.f32 %v78, %v241
    %v243 = vpop.f32.mrb[0].mxu0
    %v244 = vpop.f32.mrb[0].mxu0
    %v245 = vadd.f32 %v78, %v244
    %v246 = vpop.f32.mrb[0].mxu0
    %247 = vdwg.mxu0
    %v248 = vpack.c.bf16 %v189, %v186
    %v249 = vpack.c.bf16 %v197, %v194
    %v250 = vpack.c.bf16 %v205, %v202
    %v251 = vpack.c.bf16 %v213, %v210
    %v252 = vpack.c.bf16 %v221, %v218
    %v253 = vpack.c.bf16 %v229, %v226
    %v254 = vpack.c.bf16 %v237, %v234
    %v255 = vpack.c.bf16 %v245, %v242
    %v264 = vunpack.c.l.b16 %v248
    %v265 = vunpack.c.h.b16 %v248
    %v266 = vunpack.c.l.b16 %v249
    %v267 = vunpack.c.h.b16 %v249
    %v268 = vunpack.c.l.b16 %v250
    %v269 = vunpack.c.h.b16 %v250
    %v270 = vunpack.c.l.b16 %v251
    %v271 = vunpack.c.h.b16 %v251
    %v272 = vunpack.c.l.b16 %v252
    %v273 = vunpack.c.h.b16 %v252
    %v274 = vunpack.c.l.b16 %v253
    %v275 = vunpack.c.h.b16 %v253
    %v276 = vunpack.c.l.b16 %v254
    %v277 = vunpack.c.h.b16 %v254
    %v278 = vunpack.c.l.b16 %v255
    %v279 = vunpack.c.h.b16 %v255
    %v280 = vpack.c.b16 %v264, %v264
    %v281 = vpack.c.b16 %v265, %v265
    %v282 = vpack.c.b16 %v266, %v266
    %v283 = vpack.c.b16 %v267, %v267
    %v284 = vpack.c.b16 %v268, %v268
    %v285 = vpack.c.b16 %v269, %v269
    %v286 = vpack.c.b16 %v270, %v270
    %v287 = vpack.c.b16 %v271, %v271
    %v288 = vpack.c.b16 %v272, %v272
    %v289 = vpack.c.b16 %v273, %v273
    %v290 = vpack.c.b16 %v274, %v274
    %v291 = vpack.c.b16 %v275, %v275
    %v292 = vpack.c.b16 %v276, %v276
    %v293 = vpack.c.b16 %v277, %v277
    %v294 = vpack.c.b16 %v278, %v278
    %v295 = vpack.c.b16 %v279, %v279
    %vm312 = vcmask 257024
    %313 = vst.msk [vmem:[#allocation8] sm:$0xf] %vm312, %v280
    %314 = vst.msk [vmem:[#allocation8 + $0x4] sm:$0xf] %vm312, %v281
    %315 = vst.msk [vmem:[#allocation8 + $0x8] sm:$0xf] %vm312, %v282
    %316 = vst.msk [vmem:[#allocation8 + $0xc] sm:$0xf] %vm312, %v283
    %317 = vst.msk [vmem:[#allocation8 + $0x10] sm:$0xf] %vm312, %v284
    %318 = vst.msk [vmem:[#allocation8 + $0x14] sm:$0xf] %vm312, %v285
    %319 = vst.msk [vmem:[#allocation8 + $0x18] sm:$0xf] %vm312, %v286
    %320 = vst.msk [vmem:[#allocation8 + $0x1c] sm:$0xf] %vm312, %v287
    %321 = vst.msk [vmem:[#allocation8 + $0x20] sm:$0xf] %vm312, %v288
    %322 = vst.msk [vmem:[#allocation8 + $0x24] sm:$0xf] %vm312, %v289
    %323 = vst.msk [vmem:[#allocation8 + $0x28] sm:$0xf] %vm312, %v290
    %324 = vst.msk [vmem:[#allocation8 + $0x2c] sm:$0xf] %vm312, %v291
    %325 = vst.msk [vmem:[#allocation8 + $0x30] sm:$0xf] %vm312, %v292
    %326 = vst.msk [vmem:[#allocation8 + $0x34] sm:$0xf] %vm312, %v293
    %327 = vst.msk [vmem:[#allocation8 + $0x38] sm:$0xf] %vm312, %v294
    %328 = vst.msk [vmem:[#allocation8 + $0x3c] sm:$0xf] %vm312, %v295
    // Predicated region
    $region26: #{unet_forward.31} parent=1 // pred_check
      _
    $region27: #{unet_forward.31} parent=1 // pred_check_branch
      %330 = sbr.rel (0) target = $region29
    $region28: #{unet_forward.31} parent=1 // pred_region
      %s332 = ssub.s32 1024, 1024
      %333 = vsyncadd [#allocation4], %s332
      %s334 = sshll.u32 [#allocation8], 4
      %s335 = int_to_ptr.vmem [resolvable:$true] %s334
      %340 = dma.vmem_to_hbm [thread:$0]  %s335, 1024, %s3, [#allocation4], 64, 64, 4
    $region29: #{unet_forward.31} parent=1 // pred_fallthru
      _
    // Predicated region
    $region30: #{unet_forward.31} parent=1 // pred_check
      _
    $region31: #{unet_forward.31} parent=1 // pred_check_branch
      %342 = sbr.rel (0) target = $region33
    $region32: #{unet_forward.31} parent=1 // pred_region
      %343 = dma.done [#allocation4], 1024
    $region33: #{unet_forward.31} parent=1 // pred_fallthru
      _
    %344 = vsyncpa [#allocation3], 1
    %345 = vsyncpa [#allocation6], 1
    %346 = vsyncpa [#allocation4], 1

// kernel: unet_forward.33
$region0: #{unet_forward.33}
  #allocation0 [shape = 'u32[]', space=smem, size = 0x4, offset = 0x4, fixed_abs, tag = 'smem constant byte address 0x4 - core index']
  #allocation1 [shape = 'u32[144,128]{1,0:T(1,128)}', space=vmem, size = 0x12000, scoped, tag = 'internal scratch']
  #allocation2 [shape = 'f32[1,1]{1,0:T(1,128)S(1)}', space=vmem, size = 0x200, scoped, tag = 'scoped memory for unet_forward.33']
  %s0 = inlined_call_operand.hbm [shape: bf16[512,72], index: 0, kind: input, shape index: {}]
  %s1 = inlined_call_operand.hbm [shape: bf16[72,8], index: 1, kind: input, shape index: {}]
  %s2 = inlined_call_operand.hbm [shape: f32[1,8], index: 2, kind: input, shape index: {}]
  %s3 = inlined_call_operand.hbm [shape: f32[1,8], index: 3, kind: input, shape index: {}]
  %s4 = inlined_call_operand.hbm [shape: f32[1,8], index: 4, kind: input, shape index: {}]
  %s5 = inlined_call_operand.hbm [shape: f32[1,8], index: 5, kind: input, shape index: {}]
  %s6 = inlined_call_operand.<no memory space> [shape: f32[1,1], index: 6, kind: input, shape index: {}]
  %s7 = inlined_call_operand.hbm [shape: f32[512,1], index: 7, kind: output, shape index: {}]
  %s8 = sld [smem:[#allocation0]]
  $region85: #{unet_forward.33} parent=0
    _
  %s10 = ssub.s32 1, %s8
  %s11 = scalar_select 0, %s10, %s8
  %v12 = vstv %s6
  %13 = vst [vmem:[#allocation2] sm:$0x1] %v12
  $region1: #{unet_forward.33} parent=0
    #allocation3 [shape = 'u8[131072]{0}', space=vmem, size = 0x20000, scoped, tag = 'input window, operand 0']
    #allocation4 [shape = 's32[2]{0}', space=sflag, size = 0x8, scoped, tag = 'scoped memory for unet_forward.33']
    #allocation5 [shape = 's32[2]{0}', space=sflag, size = 0x8, scoped, tag = 'scoped memory for unet_forward.33']
    #allocation6 [shape = 'u8[18432]{0}', space=vmem, size = 0x4800, scoped, tag = 'input window, operand 1, single buffered']
    #allocation7 [shape = 's32[1]{0}', space=sflag, size = 0x4, scoped, tag = 'scoped memory for unet_forward.33']
    #allocation8 [shape = 'u8[512]{0}', space=vmem, size = 0x400, scoped, tag = 'input window, operand 2, single buffered']
    #allocation9 [shape = 'u8[512]{0}', space=vmem, size = 0x400, scoped, tag = 'input window, operand 3, single buffered']
    #allocation10 [shape = 's32[1]{0}', space=sflag, size = 0x4, scoped, tag = 'scoped memory for unet_forward.33']
    #allocation11 [shape = 'u8[512]{0}', space=vmem, size = 0x400, scoped, tag = 'input window, operand 4, single buffered']
    #allocation12 [shape = 'u8[512]{0}', space=vmem, size = 0x400, scoped, tag = 'input window, operand 5, single buffered']
    #allocation13 [shape = 's32[1]{0}', space=sflag, size = 0x4, scoped, tag = 'scoped memory for unet_forward.33']
    #allocation14 [shape = 'u8[262144]{0}', space=vmem, size = 0x40000, scoped, tag = 'output window, operand 0']
    %14 = vsyncpa [#allocation4], 0
    %s15 = scalar_lea.sflag [#allocation4], 1
    %16 = vsyncpa %s15, 0
    %17 = vsyncpa [#allocation7], 0
    %18 = vsyncpa [#allocation10], 0
    %19 = vsyncpa [#allocation13], 0
    %20 = vsyncpa [#allocation5], 0
    %s21 = scalar_lea.sflag [#allocation5], 1
    %22 = vsyncpa %s21, 0
    loop: start=0, step=1, limit=4
    $region2: #{unet_forward.33} parent=1 // loop_pre_header
      _
    $region3: #{unet_forward.33} parent=1 // loop_header
      %s24 = sphi 0, %s28
      %p25 = scmp.ge.s32.totalorder %s24, 4
      %s34 = sphi 0, %s36
      %s37 = sphi 0, %s34
      %s38 = sphi 0, %s37
      %s54 = sphi 0, %s38
      %s58 = sphi 0, %s58
      %s60 = sphi 0, %s58
      %s61 = sphi 0, %s60
      %s75 = sphi 0, %s61
      %s79 = sphi 0, %s79
      %s81 = sphi 0, %s79
      %s82 = sphi 0, %s81
      %s96 = sphi 0, %s82
      %s100 = sphi 0, %s100
      %s102 = sphi 0, %s100
      %s103 = sphi 0, %s102
      %s117 = sphi 0, %s103
      %s121 = sphi 0, %s121
      %s123 = sphi 0, %s121
      %s124 = sphi 0, %s123
      %s138 = sphi 0, %s124
      %s142 = sphi 0, %s142
      %s144 = sphi 0, %s142
      %s145 = sphi 0, %s144
      %s159 = sphi 0, %s145
      %s163 = sphi 0, %s163
      %s165 = sphi 0, %s163
      %s166 = sphi 0, %s165
      %s180 = sphi 0, %s166
      %s186 = sphi 0, %s188
      %s189 = sphi 0, %s186
      %s190 = sphi 0, %s189
      %s206 = sphi 0, %s190
    $region4: #{unet_forward.33} parent=1 // loop_header_branch
      %27 = sbr.rel (%p25) target = $region8
    $region5: #{unet_forward.33} parent=1 // loop_body
      %s29 = ssub.s32 %s24, 1
      %s30 = ssub.s32 %s24, 2
      %s31 = sadd.s32 %s24, 1
      %s32 = ssub.s32 %s24, %s31
      %p33 = scmp.eq.s32.totalorder %s32, 0
      %s35 = sadd.s32 %s34, 1
      %s36 = scalar_select %p33, %s34, %s35
      %p39 = pneg %p33
      %p40 = scmp.eq.s32.totalorder %s24, 1
      %p41 = por %p39, %p40
      %p42 = scmp.ne.s32.totalorder %s34, %s37
      %p43 = scmp.eq.s32.totalorder %s24, 0
      %p44 = por %p42, %p43
      %p45 = scmp.ne.s32.totalorder %s34, %s37
      %p46 = scmp.eq.s32.totalorder %s29, 1
      %p47 = por %p45, %p46
      %p48 = scmp.ne.s32.totalorder %s37, %s38
      %p49 = scmp.eq.s32.totalorder %s29, 0
      %p50 = por %p48, %p49
      %p51 = scmp.ne.s32.totalorder %s37, %s38
      %p52 = scmp.eq.s32.totalorder %s30, 1
      %p53 = por %p51, %p52
      %p55 = scmp.ne.s32.totalorder %s38, %s54
      %p56 = scmp.eq.s32.totalorder %s30, 0
      %p57 = por %p55, %p56
      %s59 = sadd.s32 %s58, 1
      %p62 = scmp.eq.s32.totalorder %s24, 1
      %p63 = scmp.ne.s32.totalorder %s58, %s60
      %p64 = scmp.eq.s32.totalorder %s24, 0
      %p65 = por %p63, %p64
      %p66 = scmp.ne.s32.totalorder %s58, %s60
      %p67 = scmp.eq.s32.totalorder %s29, 1
      %p68 = por %p66, %p67
      %p69 = scmp.ne.s32.totalorder %s60, %s61
      %p70 = scmp.eq.s32.totalorder %s29, 0
      %p71 = por %p69, %p70
      %p72 = scmp.ne.s32.totalorder %s60, %s61
      %p73 = scmp.eq.s32.totalorder %s30, 1
      %p74 = por %p72, %p73
      %p76 = scmp.ne.s32.totalorder %s61, %s75
      %p77 = scmp.eq.s32.totalorder %s30, 0
      %p78 = por %p76, %p77
      %s80 = sadd.s32 %s79, 1
      %p83 = scmp.eq.s32.totalorder %s24, 1
      %p84 = scmp.ne.s32.totalorder %s79, %s81
      %p85 = scmp.eq.s32.totalorder %s24, 0
      %p86 = por %p84, %p85
      %p87 = scmp.ne.s32.totalorder %s79, %s81
      %p88 = scmp.eq.s32.totalorder %s29, 1
      %p89 = por %p87, %p88
      %p90 = scmp.ne.s32.totalorder %s81, %s82
      %p91 = scmp.eq.s32.totalorder %s29, 0
      %p92 = por %p90, %p91
      %p93 = scmp.ne.s32.totalorder %s81, %s82
      %p94 = scmp.eq.s32.totalorder %s30, 1
      %p95 = por %p93, %p94
      %p97 = scmp.ne.s32.totalorder %s82, %s96
      %p98 = scmp.eq.s32.totalorder %s30, 0
      %p99 = por %p97, %p98
      %s101 = sadd.s32 %s100, 1
      %p104 = scmp.eq.s32.totalorder %s24, 1
      %p105 = scmp.ne.s32.totalorder %s100, %s102
      %p106 = scmp.eq.s32.totalorder %s24, 0
      %p107 = por %p105, %p106
      %p108 = scmp.ne.s32.totalorder %s100, %s102
      %p109 = scmp.eq.s32.totalorder %s29, 1
      %p110 = por %p108, %p109
      %p111 = scmp.ne.s32.totalorder %s102, %s103
      %p112 = scmp.eq.s32.totalorder %s29, 0
      %p113 = por %p111, %p112
      %p114 = scmp.ne.s32.totalorder %s102, %s103
      %p115 = scmp.eq.s32.totalorder %s30, 1
      %p116 = por %p114, %p115
      %p118 = scmp.ne.s32.totalorder %s103, %s117
      %p119 = scmp.eq.s32.totalorder %s30, 0
      %p120 = por %p118, %p119
      %s122 = sadd.s32 %s121, 1
      %p125 = scmp.eq.s32.totalorder %s24, 1
      %p126 = scmp.ne.s32.totalorder %s121, %s123
      %p127 = scmp.eq.s32.totalorder %s24, 0
      %p128 = por %p126, %p127
      %p129 = scmp.ne.s32.totalorder %s121, %s123
      %p130 = scmp.eq.s32.totalorder %s29, 1
      %p131 = por %p129, %p130
      %p132 = scmp.ne.s32.totalorder %s123, %s124
      %p133 = scmp.eq.s32.totalorder %s29, 0
      %p134 = por %p132, %p133
      %p135 = scmp.ne.s32.totalorder %s123, %s124
      %p136 = scmp.eq.s32.totalorder %s30, 1
      %p137 = por %p135, %p136
      %p139 = scmp.ne.s32.totalorder %s124, %s138
      %p140 = scmp.eq.s32.totalorder %s30, 0
      %p141 = por %p139, %p140
      %s143 = sadd.s32 %s142, 1
      %p146 = scmp.eq.s32.totalorder %s24, 1
      %p147 = scmp.ne.s32.totalorder %s142, %s144
      %p148 = scmp.eq.s32.totalorder %s24, 0
      %p149 = por %p147, %p148
      %p150 = scmp.ne.s32.totalorder %s142, %s144
      %p151 = scmp.eq.s32.totalorder %s29, 1
      %p152 = por %p150, %p151
      %p153 = scmp.ne.s32.totalorder %s144, %s145
      %p154 = scmp.eq.s32.totalorder %s29, 0
      %p155 = por %p153, %p154
      %p156 = scmp.ne.s32.totalorder %s144, %s145
      %p157 = scmp.eq.s32.totalorder %s30, 1
      %p158 = por %p156, %p157
      %p160 = scmp.ne.s32.totalorder %s145, %s159
      %p161 = scmp.eq.s32.totalorder %s30, 0
      %p162 = por %p160, %p161
      %s164 = sadd.s32 %s163, 1
      %p167 = scmp.eq.s32.totalorder %s24, 1
      %p168 = scmp.ne.s32.totalorder %s163, %s165
      %p169 = scmp.eq.s32.totalorder %s24, 0
      %p170 = por %p168, %p169
      %p171 = scmp.ne.s32.totalorder %s163, %s165
      %p172 = scmp.eq.s32.totalorder %s29, 1
      %p173 = por %p171, %p172
      %p174 = scmp.ne.s32.totalorder %s165, %s166
      %p175 = scmp.eq.s32.totalorder %s29, 0
      %p176 = por %p174, %p175
      %p177 = scmp.ne.s32.totalorder %s165, %s166
      %p178 = scmp.eq.s32.totalorder %s30, 1
      %p179 = por %p177, %p178
      %p181 = scmp.ne.s32.totalorder %s166, %s180
      %p182 = scmp.eq.s32.totalorder %s30, 0
      %p183 = por %p181, %p182
      %s184 = ssub.s32 %s24, %s31
      %p185 = scmp.eq.s32.totalorder %s184, 0
      %s187 = sadd.s32 %s186, 1
      %s188 = scalar_select %p185, %s186, %s187
      %p191 = pneg %p185
      %p192 = scmp.eq.s32.totalorder %s24, 1
      %p193 = por %p191, %p192
      %p194 = scmp.ne.s32.totalorder %s186, %s189
      %p195 = scmp.eq.s32.totalorder %s24, 0
      %p196 = por %p194, %p195
      %p197 = scmp.ne.s32.totalorder %s186, %s189
      %p198 = scmp.eq.s32.totalorder %s29, 1
      %p199 = por %p197, %p198
      %p200 = scmp.ne.s32.totalorder %s189, %s190
      %p201 = scmp.eq.s32.totalorder %s29, 0
      %p202 = por %p200, %p201
      %p203 = scmp.ne.s32.totalorder %s189, %s190
      %p204 = scmp.eq.s32.totalorder %s30, 1
      %p205 = por %p203, %p204
      %p207 = scmp.ne.s32.totalorder %s190, %s206
      %p208 = scmp.eq.s32.totalorder %s30, 0
      %p209 = por %p207, %p208
      %p210 = scmp.le.s32.totalorder 1, %s24
      %p211 = scmp.lt.s32.totalorder %s24, 3
      %p212 = pnand %p210, %p211
      %p213 = pneg %p212
      // Predicated region
      $region9: #{unet_forward.33} parent=5 // pred_check
        _
      $region10: #{unet_forward.33} parent=5 // pred_check_branch
        %215 = sbr.rel (%p212) target = $region12
      $region11: #{unet_forward.33} parent=5 // pred_region
        %s216 = ssub.s32 %s24, 1
        // Predicated region
        $region13: #{unet_forward.33} parent=11 // pred_check
          %p217 = pneg %p71
        $region14: #{unet_forward.33} parent=11 // pred_check_branch
          %219 = sbr.rel (%p217) target = $region16
        $region15: #{unet_forward.33} parent=11 // pred_region
          %s221 = ssub.s32 576, 576
          %222 = vsyncadd [#allocation7], %s221
          %s223 = sshll.u32 [#allocation6], 4
          %s224 = int_to_ptr.vmem [resolvable:$true] %s223
          %229 = dma.hbm_to_vmem [thread:$0]  %s1, 576, %s224, [#allocation7], 64, 64, 4
        $region16: #{unet_forward.33} parent=11 // pred_fallthru
          _
        // Predicated region
        $region17: #{unet_forward.33} parent=11 // pred_check
          %p230 = pneg %p92
        $region18: #{unet_forward.33} parent=11 // pred_check_branch
          %232 = sbr.rel (%p230) target = $region20
        $region19: #{unet_forward.33} parent=11 // pred_region
          %s234 = ssub.s32 16, 16
          %235 = vsyncadd [#allocation7], %s234
          %s237 = sshll.u32 [#allocation8], 4
          %s238 = int_to_ptr.vmem [resolvable:$true] %s237
          %240 = dma.hbm_to_vmem [thread:$0]  %s2, 16, %s238, [#allocation7]
        $region20: #{unet_forward.33} parent=11 // pred_fallthru
          _
        // Predicated region
        $region21: #{unet_forward.33} parent=11 // pred_check
          %p241 = pneg %p113
        $region22: #{unet_forward.33} parent=11 // pred_check_branch
          %243 = sbr.rel (%p241) target = $region24
        $region23: #{unet_forward.33} parent=11 // pred_region
          %s245 = ssub.s32 16, 16
          %246 = vsyncadd [#allocation10], %s245
          %s248 = sshll.u32 [#allocation9], 4
          %s249 = int_to_ptr.vmem [resolvable:$true] %s248
          %251 = dma.hbm_to_vmem [thread:$0]  %s3, 16, %s249, [#allocation10]
        $region24: #{unet_forward.33} parent=11 // pred_fallthru
          _
        // Predicated region
        $region25: #{unet_forward.33} parent=11 // pred_check
          %p252 = pneg %p134
        $region26: #{unet_forward.33} parent=11 // pred_check_branch
          %254 = sbr.rel (%p252) target = $region28
        $region27: #{unet_forward.33} parent=11 // pred_region
          %s256 = ssub.s32 16, 16
          %257 = vsyncadd [#allocation10], %s256
          %s259 = sshll.u32 [#allocation11], 4
          %s260 = int_to_ptr.vmem [resolvable:$true] %s259
          %262 = dma.hbm_to_vmem [thread:$0]  %s4, 16, %s260, [#allocation10]
        $region28: #{unet_forward.33} parent=11 // pred_fallthru
          _
        // Predicated region
        $region29: #{unet_forward.33} parent=11 // pred_check
          %p263 = pneg %p155
        $region30: #{unet_forward.33} parent=11 // pred_check_branch
          %265 = sbr.rel (%p263) target = $region32
        $region31: #{unet_forward.33} parent=11 // pred_region
          %s267 = ssub.s32 16, 16
          %268 = vsyncadd [#allocation13], %s267
          %s270 = sshll.u32 [#allocation12], 4
          %s271 = int_to_ptr.vmem [resolvable:$true] %s270
          %273 = dma.hbm_to_vmem [thread:$0]  %s5, 16, %s271, [#allocation13]
        $region32: #{unet_forward.33} parent=11 // pred_fallthru
          _
        // Predicated region
        $region33: #{unet_forward.33} parent=11 // pred_check
          %p274 = pneg %p176
        $region34: #{unet_forward.33} parent=11 // pred_check_branch
          %276 = sbr.rel (%p274) target = $region36
        $region35: #{unet_forward.33} parent=11 // pred_region
          _
        $region36: #{unet_forward.33} parent=11 // pred_fallthru
          _
      $region12: #{unet_forward.33} parent=5 // pred_fallthru
        _
      %p277 = scmp.lt.s32.totalorder %s24, 2
      // Predicated region
      $region37: #{unet_forward.33} parent=5 // pred_check
        %p278 = pneg %p277
      $region38: #{unet_forward.33} parent=5 // pred_check_branch
        %280 = sbr.rel (%p278) target = $region40
      $region39: #{unet_forward.33} parent=5 // pred_region
        // Predicated region
        $region41: #{unet_forward.33} parent=39 // pred_check
          %p281 = pneg %p44
        $region42: #{unet_forward.33} parent=39 // pred_check_branch
          %283 = sbr.rel (%p281) target = $region44
        $region43: #{unet_forward.33} parent=39 // pred_region
          %s284 = sand.u32 %s34, 1
          %s285 = scalar_lea.sflag [#allocation4], %s284
          %s286 = sand.u32 %s34, 1
          %s287 = smul.addr %s286, 128
          %s288 = scalar_lea.vmem [#allocation3], %s287
          %s289 = smul.u32 32, %s24
          %s291 = ssub.s32 2048, 2048
          %292 = vsyncadd %s285, %s291
          %s293 = smul.addr %s289, 64
          %s294 = scalar_lea.hbm %s0, %s293
          %s295 = sshll.u32 %s288, 4
          %s296 = int_to_ptr.vmem [resolvable:$true] %s295
          %301 = dma.hbm_to_vmem [thread:$0]  %s294, 2048, %s296, %s285, 64, 64, 4
        $region44: #{unet_forward.33} parent=39 // pred_fallthru
          _
      $region40: #{unet_forward.33} parent=5 // pred_fallthru
        _
      %p302 = scmp.le.s32.totalorder 1, %s24
      %p303 = scmp.lt.s32.totalorder %s24, 3
      %p304 = pnand %p302, %p303
      %p305 = pneg %p304
      // Predicated region
      $region45: #{unet_forward.33} parent=5 // pred_check
        _
      $region46: #{unet_forward.33} parent=5 // pred_check_branch
        %307 = sbr.rel (%p304) target = $region48
      $region47: #{unet_forward.33} parent=5 // pred_region
        %s308 = ssub.s32 %s24, 1
        %s309 = sand.u32 %s37, 1
        %s310 = scalar_lea.sflag [#allocation4], %s309
        %s311 = sand.u32 %s37, 1
        %s312 = smul.addr %s311, 128
        %s313 = scalar_lea.vmem [#allocation3], %s312
        // Predicated region
        $region49: #{unet_forward.33} parent=47 // pred_check
          %p314 = pneg %p50
        $region50: #{unet_forward.33} parent=47 // pred_check_branch
          %316 = sbr.rel (%p314) target = $region52
        $region51: #{unet_forward.33} parent=47 // pred_region
          %317 = dma.done %s310, 2048
        $region52: #{unet_forward.33} parent=47 // pred_fallthru
          _
        // Predicated region
        $region53: #{unet_forward.33} parent=47 // pred_check
          %p318 = pneg %p71
        $region54: #{unet_forward.33} parent=47 // pred_check_branch
          %320 = sbr.rel (%p318) target = $region56
        $region55: #{unet_forward.33} parent=47 // pred_region
          %321 = dma.done [#allocation7], 576
        $region56: #{unet_forward.33} parent=47 // pred_fallthru
          _
        // Predicated region
        $region57: #{unet_forward.33} parent=47 // pred_check
          %p322 = pneg %p92
        $region58: #{unet_forward.33} parent=47 // pred_check_branch
          %324 = sbr.rel (%p322) target = $region60
        $region59: #{unet_forward.33} parent=47 // pred_region
          %325 = dma.done [#allocation7], 16
        $region60: #{unet_forward.33} parent=47 // pred_fallthru
          _
        // Predicated region
        $region61: #{unet_forward.33} parent=47 // pred_check
          %p326 = pneg %p113
        $region62: #{unet_forward.33} parent=47 // pred_check_branch
          %328 = sbr.rel (%p326) target = $region64
        $region63: #{unet_forward.33} parent=47 // pred_region
          %329 = dma.done [#allocation10], 16
        $region64: #{unet_forward.33} parent=47 // pred_fallthru
          _
        // Predicated region
        $region65: #{unet_forward.33} parent=47 // pred_check
          %p330 = pneg %p134
        $region66: #{unet_forward.33} parent=47 // pred_check_branch
          %332 = sbr.rel (%p330) target = $region68
        $region67: #{unet_forward.33} parent=47 // pred_region
          %333 = dma.done [#allocation10], 16
        $region68: #{unet_forward.33} parent=47 // pred_fallthru
          _
        // Predicated region
        $region69: #{unet_forward.33} parent=47 // pred_check
          %p334 = pneg %p155
        $region70: #{unet_forward.33} parent=47 // pred_check_branch
          %336 = sbr.rel (%p334) target = $region72
        $region71: #{unet_forward.33} parent=47 // pred_region
          %337 = dma.done [#allocation13], 16
        $region72: #{unet_forward.33} parent=47 // pred_fallthru
          _
        %s338 = sand.u32 %s37, 1
        %s339 = scalar_lea.sflag [#allocation4], %s338
        %s340 = sand.u32 %s37, 1
        %s341 = smul.addr %s340, 128
        %s342 = scalar_lea.vmem [#allocation3], %s341
        %p343 = pneg %p50
        %p344 = pneg %p47
        %p345 = pneg %p71
        %p346 = pneg %p68
        %p347 = pneg %p92
        %p348 = pneg %p89
        %p349 = pneg %p113
        %p350 = pneg %p110
        %p351 = pneg %p134
        %p352 = pneg %p131
        %p353 = pneg %p155
        %p354 = pneg %p152
        %p355 = pneg %p176
        %p356 = pneg %p173
        %p357 = pneg %p202
        %p358 = pneg %p199
        %s359 = sand.u32 %s189, 1
        %s360 = scalar_lea.sflag [#allocation5], %s359
        %s361 = sand.u32 %s189, 1
        %s362 = smul.addr %s361, 256
        %s363 = scalar_lea.vmem [#allocation14], %s362
        %s364 = smul.u32 32, %s29
        %s365 = smul.u32 32, %s29
        %v367 = vld [vmem:[%s313] sm:$0xf]
        %v368 = vld [vmem:[%s313 + $0x4] sm:$0xf]
        %v369 = vld [vmem:[%s313 + $0x8] sm:$0xf]
        %v370 = vld [vmem:[%s313 + $0xc] sm:$0xf]
        %v371 = vld [vmem:[%s313 + $0x10] sm:$0xf]
        %v372 = vld [vmem:[%s313 + $0x14] sm:$0xf]
        %v373 = vld [vmem:[%s313 + $0x18] sm:$0xf]
        %v374 = vld [vmem:[%s313 + $0x1c] sm:$0xf]
        %v375 = vld [vmem:[%s313 + $0x20] sm:$0xf]
        %v376 = vld [vmem:[%s313 + $0x24] sm:$0xf]
        %v377 = vld [vmem:[%s313 + $0x28] sm:$0xf]
        %v378 = vld [vmem:[%s313 + $0x2c] sm:$0xf]
        %v379 = vld [vmem:[%s313 + $0x30] sm:$0xf]
        %v380 = vld [vmem:[%s313 + $0x34] sm:$0xf]
        %v381 = vld [vmem:[%s313 + $0x38] sm:$0xf]
        %v382 = vld [vmem:[%s313 + $0x3c] sm:$0xf]
        %v383 = vld [vmem:[%s313 + $0x40] sm:$0xf]
        %v384 = vld [vmem:[%s313 + $0x44] sm:$0xf]
        %v385 = vld [vmem:[%s313 + $0x48] sm:$0xf]
        %v386 = vld [vmem:[%s313 + $0x4c] sm:$0xf]
        %v387 = vld [vmem:[%s313 + $0x50] sm:$0xf]
        %v388 = vld [vmem:[%s313 + $0x54] sm:$0xf]
        %v389 = vld [vmem:[%s313 + $0x58] sm:$0xf]
        %v390 = vld [vmem:[%s313 + $0x5c] sm:$0xf]
        %v391 = vld [vmem:[%s313 + $0x60] sm:$0xf]
        %v392 = vld [vmem:[%s313 + $0x64] sm:$0xf]
        %v393 = vld [vmem:[%s313 + $0x68] sm:$0xf]
        %v394 = vld [vmem:[%s313 + $0x6c] sm:$0xf]
        %v395 = vld [vmem:[%s313 + $0x70] sm:$0xf]
        %v396 = vld [vmem:[%s313 + $0x74] sm:$0xf]
        %v397 = vld [vmem:[%s313 + $0x78] sm:$0xf]
        %v398 = vld [vmem:[%s313 + $0x7c] sm:$0xf]
        %v399 = vld [vmem:[#allocation6] sm:$0xf]
        %v400 = vld [vmem:[#allocation6 + $0x4] sm:$0xf]
        %v401 = vld [vmem:[#allocation6 + $0x8] sm:$0xf]
        %v402 = vld [vmem:[#allocation6 + $0xc] sm:$0xf]
        %v403 = vld [vmem:[#allocation6 + $0x10] sm:$0xf]
        %v404 = vld [vmem:[#allocation6 + $0x14] sm:$0xf]
        %v405 = vld [vmem:[#allocation6 + $0x18] sm:$0xf]
        %v406 = vld [vmem:[#allocation6 + $0x1c] sm:$0xf]
        %v407 = vld [vmem:[#allocation6 + $0x20] sm:$0xf]
        %v408 = vld [vmem:[#allocation8] sm:$0x1]
        %v410 = vlaneseq
        %v411 = vshrl.u32 %v410, 7
        %v412 = vsub.s32 0, %v411
        %v413 = vrot.slane %v408, %v412
        %v447 = vunpack.c.l.b16 %v367
        %v448 = vunpack.c.l.b16 %v368
        %v449 = vunpack.c.l.b16 %v369
        %v450 = vunpack.c.l.b16 %v370
        %v451 = vunpack.c.l.b16 %v371
        %v452 = vunpack.c.l.b16 %v372
        %v453 = vunpack.c.l.b16 %v373
        %v454 = vunpack.c.l.b16 %v374
        %v455 = vunpack.c.l.b16 %v375
        %v456 = vunpack.c.l.b16 %v376
        %v457 = vunpack.c.l.b16 %v377
        %v458 = vunpack.c.l.b16 %v378
        %v459 = vunpack.c.l.b16 %v379
        %v460 = vunpack.c.l.b16 %v380
        %v461 = vunpack.c.l.b16 %v381
        %v462 = vunpack.c.l.b16 %v382
        %v463 = vunpack.c.l.b16 %v383
        %v464 = vunpack.c.l.b16 %v384
        %v465 = vunpack.c.l.b16 %v385
        %v466 = vunpack.c.l.b16 %v386
        %v467 = vunpack.c.l.b16 %v387
        %v468 = vunpack.c.l.b16 %v388
        %v469 = vunpack.c.l.b16 %v389
        %v470 = vunpack.c.l.b16 %v390
        %v471 = vunpack.c.l.b16 %v391
        %v472 = vunpack.c.l.b16 %v392
        %v473 = vunpack.c.l.b16 %v393
        %v474 = vunpack.c.l.b16 %v394
        %v475 = vunpack.c.l.b16 %v395
        %v476 = vunpack.c.l.b16 %v396
        %v477 = vunpack.c.l.b16 %v397
        %v478 = vunpack.c.l.b16 %v398
        %v479 = vpack.c.b16 %v448, %v447
        %v480 = vpack.c.b16 %v450, %v449
        %v481 = vpack.c.b16 %v452, %v451
        %v482 = vpack.c.b16 %v454, %v453
        %v483 = vpack.c.b16 %v456, %v455
        %v484 = vpack.c.b16 %v458, %v457
        %v485 = vpack.c.b16 %v460, %v459
        %v486 = vpack.c.b16 %v462, %v461
        %v487 = vpack.c.b16 %v464, %v463
        %v488 = vpack.c.b16 %v466, %v465
        %v489 = vpack.c.b16 %v468, %v467
        %v490 = vpack.c.b16 %v470, %v469
        %v491 = vpack.c.b16 %v472, %v471
        %v492 = vpack.c.b16 %v474, %v473
        %v493 = vpack.c.b16 %v476, %v475
        %v494 = vpack.c.b16 %v478, %v477
        %v504 = vunpack.c.l.b16 %v399
        %v505 = vunpack.c.l.b16 %v400
        %v506 = vunpack.c.l.b16 %v401
        %v507 = vunpack.c.l.b16 %v402
        %v508 = vunpack.c.l.b16 %v403
        %v509 = vunpack.c.l.b16 %v404
        %v510 = vunpack.c.l.b16 %v405
        %v511 = vunpack.c.l.b16 %v406
        %v512 = vunpack.c.l.b16 %v407
        %v513 = vpack.c.b16 %v505, %v504
        %v514 = vpack.c.b16 %v507, %v506
        %v515 = vpack.c.b16 %v509, %v508
        %v516 = vpack.c.b16 %v511, %v510
        %v517 = vpack.c.b16 %v512, %v512
        %vm522 = vcmask 588800
        %v524 = vsel %vm522, %v479, 0
        %v527 = vsel %vm522, %v480, 0
        %v530 = vsel %vm522, %v481, 0
        %v533 = vsel %vm522, %v482, 0
        %v536 = vsel %vm522, %v483, 0
        %v539 = vsel %vm522, %v484, 0
        %v542 = vsel %vm522, %v485, 0
        %v545 = vsel %vm522, %v486, 0
        %v548 = vsel %vm522, %v487, 0
        %v551 = vsel %vm522, %v488, 0
        %v554 = vsel %vm522, %v489, 0
        %v557 = vsel %vm522, %v490, 0
        %v560 = vsel %vm522, %v491, 0
        %v563 = vsel %vm522, %v492, 0
        %v566 = vsel %vm522, %v493, 0
        %v569 = vsel %vm522, %v494, 0
        %vm571 = vcmask 1043456
        %v573 = vsel %vm571, %v517, 0
        %575 = vmatprep.subr.bf16.mxu0 0
        %576 = vmatpush1.bf16.msra.mxu0 %v513
        %577 = vmatprep.subr.bf16.mxu0 0
        %578 = vmatpush1.bf16.msra.mxu0 %v514
        %579 = vmatprep.subr.bf16.mxu0 0
        %580 = vmatpush1.bf16.msra.mxu0 %v515
        %581 = vmatprep.subr.bf16.mxu0 0
        %582 = vmatpush1.bf16.msra.mxu0 %v516
        %583 = vmatprep.subr.bf16.mxu0 0
        %584 = vmatpush1.bf16.msra.mxu0 %v573
        %585 = vmatprep.subr.bf16.mxu0 0
        %586 = vmatpush1.bf16.msra.mxu0 0
        %587 = vmatprep.subr.bf16.mxu0 0
        %588 = vmatpush1.bf16.msra.mxu0 0
        %589 = vmatprep.subr.bf16.mxu0 0
        %590 = vmatpush1.bf16.msra.mxu0 0
        %591 = vmatprep.subr.bf16.mxu0 0
        %592 = vmatpush1.bf16.msra.mxu0 0
        %593 = vmatprep.subr.bf16.mxu0 0
        %594 = vmatpush1.bf16.msra.mxu0 0
        %595 = vmatprep.subr.bf16.mxu0 0
        %596 = vmatpush1.bf16.msra.mxu0 0
        %597 = vmatprep.subr.bf16.mxu0 0
        %598 = vmatpush1.bf16.msra.mxu0 0
        %599 = vmatprep.subr.bf16.mxu0 0
        %600 = vmatpush1.bf16.msra.mxu0 0
        %601 = vmatprep.subr.bf16.mxu0 0
        %602 = vmatpush1.bf16.msra.mxu0 0
        %603 = vmatprep.subr.bf16.mxu0 0
        %604 = vmatpush1.bf16.msra.mxu0 0
        %605 = vmatprep.subr.bf16.mxu0 0
        %606 = vmatpush1.bf16.msra.mxu0 0
        %607 = vmatprep.mubr.bf16.mxu0 0
        %608 = vmatmul.mubr.bf16.gmra.mrb[0].mxu0 %v524
        %v609 = vpop.f32.mrb[0].mxu0
        %v610 = vadd.f32 %v413, %v609
        %v611 = vpop.f32.mrb[0].mxu0
        %v612 = vpop.f32.mrb[0].mxu0
        %v613 = vadd.f32 %v413, %v612
        %v614 = vpop.f32.mrb[0].mxu0
        %615 = vmatprep.mubr.bf16.mxu0 0
        %616 = vmatmul.mubr.bf16.gmra.mrb[0].mxu0 %v527
        %v617 = vpop.f32.mrb[0].mxu0
        %v618 = vadd.f32 %v413, %v617
        %v619 = vpop.f32.mrb[0].mxu0
        %v620 = vpop.f32.mrb[0].mxu0
        %v621 = vadd.f32 %v413, %v620
        %v622 = vpop.f32.mrb[0].mxu0
        %623 = vmatprep.mubr.bf16.mxu0 0
        %624 = vmatmul.mubr.bf16.gmra.mrb[0].mxu0 %v530
        %v625 = vpop.f32.mrb[0].mxu0
        %v626 = vadd.f32 %v413, %v625
        %v627 = vpop.f32.mrb[0].mxu0
        %v628 = vpop.f32.mrb[0].mxu0
        %v629 = vadd.f32 %v413, %v628
        %v630 = vpop.f32.mrb[0].mxu0
        %631 = vmatprep.mubr.bf16.mxu0 0
        %632 = vmatmul.mubr.bf16.gmra.mrb[0].mxu0 %v533
        %v633 = vpop.f32.mrb[0].mxu0
        %v634 = vadd.f32 %v413, %v633
        %v635 = vpop.f32.mrb[0].mxu0
        %v636 = vpop.f32.mrb[0].mxu0
        %v637 = vadd.f32 %v413, %v636
        %v638 = vpop.f32.mrb[0].mxu0
        %639 = vmatprep.mubr.bf16.mxu0 0
        %640 = vmatmul.mubr.bf16.gmra.mrb[0].mxu0 %v536
        %v641 = vpop.f32.mrb[0].mxu0
        %v642 = vadd.f32 %v413, %v641
        %v643 = vpop.f32.mrb[0].mxu0
        %v644 = vpop.f32.mrb[0].mxu0
        %v645 = vadd.f32 %v413, %v644
        %v646 = vpop.f32.mrb[0].mxu0
        %647 = vmatprep.mubr.bf16.mxu0 0
        %648 = vmatmul.mubr.bf16.gmra.mrb[0].mxu0 %v539
        %v649 = vpop.f32.mrb[0].mxu0
        %v650 = vadd.f32 %v413, %v649
        %v651 = vpop.f32.mrb[0].mxu0
        %v652 = vpop.f32.mrb[0].mxu0
        %v653 = vadd.f32 %v413, %v652
        %v654 = vpop.f32.mrb[0].mxu0
        %655 = vmatprep.mubr.bf16.mxu0 0
        %656 = vmatmul.mubr.bf16.gmra.mrb[0].mxu0 %v542
        %v657 = vpop.f32.mrb[0].mxu0
        %v658 = vadd.f32 %v413, %v657
        %v659 = vpop.f32.mrb[0].mxu0
        %v660 = vpop.f32.mrb[0].mxu0
        %v661 = vadd.f32 %v413, %v660
        %v662 = vpop.f32.mrb[0].mxu0
        %663 = vmatprep.mubr.bf16.mxu0 0
        %664 = vmatmul.mubr.bf16.gmra.mrb[0].mxu0 %v545
        %v665 = vpop.f32.mrb[0].mxu0
        %v666 = vadd.f32 %v413, %v665
        %v667 = vpop.f32.mrb[0].mxu0
        %v668 = vpop.f32.mrb[0].mxu0
        %v669 = vadd.f32 %v413, %v668
        %v670 = vpop.f32.mrb[0].mxu0
        %671 = vmatprep.mubr.bf16.mxu0 0
        %672 = vmatmul.mubr.bf16.gmra.mrb[0].mxu0 %v548
        %v673 = vpop.f32.mrb[0].mxu0
        %v674 = vadd.f32 %v413, %v673
        %v675 = vpop.f32.mrb[0].mxu0
        %v676 = vpop.f32.mrb[0].mxu0
        %v677 = vadd.f32 %v413, %v676
        %v678 = vpop.f32.mrb[0].mxu0
        %679 = vmatprep.mubr.bf16.mxu0 0
        %680 = vmatmul.mubr.bf16.gmra.mrb[0].mxu0 %v551
        %v681 = vpop.f32.mrb[0].mxu0
        %v682 = vadd.f32 %v413, %v681
        %v683 = vpop.f32.mrb[0].mxu0
        %v684 = vpop.f32.mrb[0].mxu0
        %v685 = vadd.f32 %v413, %v684
        %v686 = vpop.f32.mrb[0].mxu0
        %687 = vmatprep.mubr.bf16.mxu0 0
        %688 = vmatmul.mubr.bf16.gmra.mrb[0].mxu0 %v554
        %v689 = vpop.f32.mrb[0].mxu0
        %v690 = vadd.f32 %v413, %v689
        %v691 = vpop.f32.mrb[0].mxu0
        %v692 = vpop.f32.mrb[0].mxu0
        %v693 = vadd.f32 %v413, %v692
        %v694 = vpop.f32.mrb[0].mxu0
        %695 = vmatprep.mubr.bf16.mxu0 0
        %696 = vmatmul.mubr.bf16.gmra.mrb[0].mxu0 %v557
        %v697 = vpop.f32.mrb[0].mxu0
        %v698 = vadd.f32 %v413, %v697
        %v699 = vpop.f32.mrb[0].mxu0
        %v700 = vpop.f32.mrb[0].mxu0
        %v701 = vadd.f32 %v413, %v700
        %v702 = vpop.f32.mrb[0].mxu0
        %703 = vmatprep.mubr.bf16.mxu0 0
        %704 = vmatmul.mubr.bf16.gmra.mrb[0].mxu0 %v560
        %v705 = vpop.f32.mrb[0].mxu0
        %v706 = vadd.f32 %v413, %v705
        %v707 = vpop.f32.mrb[0].mxu0
        %v708 = vpop.f32.mrb[0].mxu0
        %v709 = vadd.f32 %v413, %v708
        %v710 = vpop.f32.mrb[0].mxu0
        %711 = vmatprep.mubr.bf16.mxu0 0
        %712 = vmatmul.mubr.bf16.gmra.mrb[0].mxu0 %v563
        %v713 = vpop.f32.mrb[0].mxu0
        %v714 = vadd.f32 %v413, %v713
        %v715 = vpop.f32.mrb[0].mxu0
        %v716 = vpop.f32.mrb[0].mxu0
        %v717 = vadd.f32 %v413, %v716
        %v718 = vpop.f32.mrb[0].mxu0
        %719 = vmatprep.mubr.bf16.mxu0 0
        %720 = vmatmul.mubr.bf16.gmra.mrb[0].mxu0 %v566
        %v721 = vpop.f32.mrb[0].mxu0
        %v722 = vadd.f32 %v413, %v721
        %v723 = vpop.f32.mrb[0].mxu0
        %v724 = vpop.f32.mrb[0].mxu0
        %v725 = vadd.f32 %v413, %v724
        %v726 = vpop.f32.mrb[0].mxu0
        %727 = vmatprep.mubr.bf16.mxu0 0
        %728 = vmatmul.mubr.bf16.gmra.mrb[0].mxu0 %v569
        %v729 = vpop.f32.mrb[0].mxu0
        %v730 = vadd.f32 %v413, %v729
        %v731 = vpop.f32.mrb[0].mxu0
        %v732 = vpop.f32.mrb[0].mxu0
        %v733 = vadd.f32 %v413, %v732
        %v734 = vpop.f32.mrb[0].mxu0
        %735 = vdwg.mxu0
        %v736 = vmax.f32 %v610, 0.0
        %v737 = vmax.f32 %v613, 0.0
        %v738 = vmax.f32 %v618, 0.0
        %v739 = vmax.f32 %v621, 0.0
        %v740 = vmax.f32 %v626, 0.0
        %v741 = vmax.f32 %v629, 0.0
        %v742 = vmax.f32 %v634, 0.0
        %v743 = vmax.f32 %v637, 0.0
        %v744 = vmax.f32 %v642, 0.0
        %v745 = vmax.f32 %v645, 0.0
        %v746 = vmax.f32 %v650, 0.0
        %v747 = vmax.f32 %v653, 0.0
        %v748 = vmax.f32 %v658, 0.0
        %v749 = vmax.f32 %v661, 0.0
        %v750 = vmax.f32 %v666, 0.0
        %v751 = vmax.f32 %v669, 0.0
        %v752 = vmax.f32 %v674, 0.0
        %v753 = vmax.f32 %v677, 0.0
        %v754 = vmax.f32 %v682, 0.0
        %v755 = vmax.f32 %v685, 0.0
        %v756 = vmax.f32 %v690, 0.0
        %v757 = vmax.f32 %v693, 0.0
        %v758 = vmax.f32 %v698, 0.0
        %v759 = vmax.f32 %v701, 0.0
        %v760 = vmax.f32 %v706, 0.0
        %v761 = vmax.f32 %v709, 0.0
        %v762 = vmax.f32 %v714, 0.0
        %v763 = vmax.f32 %v717, 0.0
        %v764 = vmax.f32 %v722, 0.0
        %v765 = vmax.f32 %v725, 0.0
        %v766 = vmax.f32 %v730, 0.0
        %v767 = vmax.f32 %v733, 0.0
        %v768 = vld [vmem:[#allocation9] sm:$0x1]
        %v770 = vlaneseq
        %v771 = vshrl.u32 %v770, 7
        %v772 = vsub.s32 0, %v771
        %v773 = vrot.slane %v768, %v772
        %v775 = vmul.f32 %v736, %v773
        %v776 = vmul.f32 %v737, %v773
        %v777 = vmul.f32 %v738, %v773
        %v778 = vmul.f32 %v739, %v773
        %v779 = vmul.f32 %v740, %v773
        %v780 = vmul.f32 %v741, %v773
        %v781 = vmul.f32 %v742, %v773
        %v782 = vmul.f32 %v743, %v773
        %v783 = vmul.f32 %v744, %v773
        %v784 = vmul.f32 %v745, %v773
        %v785 = vmul.f32 %v746, %v773
        %v786 = vmul.f32 %v747, %v773
        %v787 = vmul.f32 %v748, %v773
        %v788 = vmul.f32 %v749, %v773
        %v789 = vmul.f32 %v750, %v773
        %v790 = vmul.f32 %v751, %v773
        %v791 = vmul.f32 %v752, %v773
        %v792 = vmul.f32 %v753, %v773
        %v793 = vmul.f32 %v754, %v773
        %v794 = vmul.f32 %v755, %v773
        %v795 = vmul.f32 %v756, %v773
        %v796 = vmul.f32 %v757, %v773
        %v797 = vmul.f32 %v758, %v773
        %v798 = vmul.f32 %v759, %v773
        %v799 = vmul.f32 %v760, %v773
        %v800 = vmul.f32 %v761, %v773
        %v801 = vmul.f32 %v762, %v773
        %v802 = vmul.f32 %v763, %v773
        %v803 = vmul.f32 %v764, %v773
        %v804 = vmul.f32 %v765, %v773
        %v805 = vmul.f32 %v766, %v773
        %v806 = vmul.f32 %v767, %v773
        %v807 = vld [vmem:[#allocation11] sm:$0x1]
        %v809 = vlaneseq
        %v810 = vshrl.u32 %v809, 7
        %v811 = vsub.s32 0, %v810
        %v812 = vrot.slane %v807, %v811
        %v814 = vadd.f32 %v775, %v812
        %v815 = vadd.f32 %v776, %v812
        %v816 = vadd.f32 %v777, %v812
        %v817 = vadd.f32 %v778, %v812
        %v818 = vadd.f32 %v779, %v812
        %v819 = vadd.f32 %v780, %v812
        %v820 = vadd.f32 %v781, %v812
        %v821 = vadd.f32 %v782, %v812
        %v822 = vadd.f32 %v783, %v812
        %v823 = vadd.f32 %v784, %v812
        %v824 = vadd.f32 %v785, %v812
        %v825 = vadd.f32 %v786, %v812
        %v826 = vadd.f32 %v787, %v812
        %v827 = vadd.f32 %v788, %v812
        %v828 = vadd.f32 %v789, %v812
        %v829 = vadd.f32 %v790, %v812
        %v830 = vadd.f32 %v791, %v812
        %v831 = vadd.f32 %v792, %v812
        %v832 = vadd.f32 %v793, %v812
        %v833 = vadd.f32 %v794, %v812
        %v834 = vadd.f32 %v795, %v812
        %v835 = vadd.f32 %v796, %v812
        %v836 = vadd.f32 %v797, %v812
        %v837 = vadd.f32 %v798, %v812
        %v838 = vadd.f32 %v799, %v812
        %v839 = vadd.f32 %v800, %v812
        %v840 = vadd.f32 %v801, %v812
        %v841 = vadd.f32 %v802, %v812
        %v842 = vadd.f32 %v803, %v812
        %v843 = vadd.f32 %v804, %v812
        %v844 = vadd.f32 %v805, %v812
        %v845 = vadd.f32 %v806, %v812
        %v846 = vld [vmem:[#allocation12] sm:$0x1]
        %v848 = vlaneseq
        %v849 = vshrl.u32 %v848, 7
        %v850 = vsub.s32 0, %v849
        %v851 = vrot.slane %v846, %v850
        %v853 = vmul.f32 %v814, %v851
        %v854 = vmul.f32 %v815, %v851
        %v855 = vmul.f32 %v816, %v851
        %v856 = vmul.f32 %v817, %v851
        %v857 = vmul.f32 %v818, %v851
        %v858 = vmul.f32 %v819, %v851
        %v859 = vmul.f32 %v820, %v851
        %v860 = vmul.f32 %v821, %v851
        %v861 = vmul.f32 %v822, %v851
        %v862 = vmul.f32 %v823, %v851
        %v863 = vmul.f32 %v824, %v851
        %v864 = vmul.f32 %v825, %v851
        %v865 = vmul.f32 %v826, %v851
        %v866 = vmul.f32 %v827, %v851
        %v867 = vmul.f32 %v828, %v851
        %v868 = vmul.f32 %v829, %v851
        %v869 = vmul.f32 %v830, %v851
        %v870 = vmul.f32 %v831, %v851
        %v871 = vmul.f32 %v832, %v851
        %v872 = vmul.f32 %v833, %v851
        %v873 = vmul.f32 %v834, %v851
        %v874 = vmul.f32 %v835, %v851
        %v875 = vmul.f32 %v836, %v851
        %v876 = vmul.f32 %v837, %v851
        %v877 = vmul.f32 %v838, %v851
        %v878 = vmul.f32 %v839, %v851
        %v879 = vmul.f32 %v840, %v851
        %v880 = vmul.f32 %v841, %v851
        %v881 = vmul.f32 %v842, %v851
        %v882 = vmul.f32 %v843, %v851
        %v883 = vmul.f32 %v844, %v851
        %v884 = vmul.f32 %v845, %v851
        %vm885 = vcmask 64512
        %v886 = vsel %vm885, %v853, 0.0
        %887 = vadd.xlane.f32.xlu0 %v886
        %v888 = vpop.xlane.xlu0 %887
        %v889 = vsel %vm885, %v854, 0.0
        %890 = vadd.xlane.f32.xlu0 %v889
        %v891 = vpop.xlane.xlu0 %890
        %v892 = vsel %vm885, %v855, 0.0
        %893 = vadd.xlane.f32.xlu0 %v892
        %v894 = vpop.xlane.xlu0 %893
        %v895 = vsel %vm885, %v856, 0.0
        %896 = vadd.xlane.f32.xlu0 %v895
        %v897 = vpop.xlane.xlu0 %896
        %v898 = vsel %vm885, %v857, 0.0
        %899 = vadd.xlane.f32.xlu0 %v898
        %v900 = vpop.xlane.xlu0 %899
        %v901 = vsel %vm885, %v858, 0.0
        %902 = vadd.xlane.f32.xlu0 %v901
        %v903 = vpop.xlane.xlu0 %902
        %v904 = vsel %vm885, %v859, 0.0
        %905 = vadd.xlane.f32.xlu0 %v904
        %v906 = vpop.xlane.xlu0 %905
        %v907 = vsel %vm885, %v860, 0.0
        %908 = vadd.xlane.f32.xlu0 %v907
        %v909 = vpop.xlane.xlu0 %908
        %v910 = vsel %vm885, %v861, 0.0
        %911 = vadd.xlane.f32.xlu0 %v910
        %v912 = vpop.xlane.xlu0 %911
        %v913 = vsel %vm885, %v862, 0.0
        %914 = vadd.xlane.f32.xlu0 %v913
        %v915 = vpop.xlane.xlu0 %914
        %v916 = vsel %vm885, %v863, 0.0
        %917 = vadd.xlane.f32.xlu0 %v916
        %v918 = vpop.xlane.xlu0 %917
        %v919 = vsel %vm885, %v864, 0.0
        %920 = vadd.xlane.f32.xlu0 %v919
        %v921 = vpop.xlane.xlu0 %920
        %v922 = vsel %vm885, %v865, 0.0
        %923 = vadd.xlane.f32.xlu0 %v922
        %v924 = vpop.xlane.xlu0 %923
        %v925 = vsel %vm885, %v866, 0.0
        %926 = vadd.xlane.f32.xlu0 %v925
        %v927 = vpop.xlane.xlu0 %926
        %v928 = vsel %vm885, %v867, 0.0
        %929 = vadd.xlane.f32.xlu0 %v928
        %v930 = vpop.xlane.xlu0 %929
        %v931 = vsel %vm885, %v868, 0.0
        %932 = vadd.xlane.f32.xlu0 %v931
        %v933 = vpop.xlane.xlu0 %932
        %v934 = vsel %vm885, %v869, 0.0
        %935 = vadd.xlane.f32.xlu0 %v934
        %v936 = vpop.xlane.xlu0 %935
        %v937 = vsel %vm885, %v870, 0.0
        %938 = vadd.xlane.f32.xlu0 %v937
        %v939 = vpop.xlane.xlu0 %938
        %v940 = vsel %vm885, %v871, 0.0
        %941 = vadd.xlane.f32.xlu0 %v940
        %v942 = vpop.xlane.xlu0 %941
        %v943 = vsel %vm885, %v872, 0.0
        %944 = vadd.xlane.f32.xlu0 %v943
        %v945 = vpop.xlane.xlu0 %944
        %v946 = vsel %vm885, %v873, 0.0
        %947 = vadd.xlane.f32.xlu0 %v946
        %v948 = vpop.xlane.xlu0 %947
        %v949 = vsel %vm885, %v874, 0.0
        %950 = vadd.xlane.f32.xlu0 %v949
        %v951 = vpop.xlane.xlu0 %950
        %v952 = vsel %vm885, %v875, 0.0
        %953 = vadd.xlane.f32.xlu0 %v952
        %v954 = vpop.xlane.xlu0 %953
        %v955 = vsel %vm885, %v876, 0.0
        %956 = vadd.xlane.f32.xlu0 %v955
        %v957 = vpop.xlane.xlu0 %956
        %v958 = vsel %vm885, %v877, 0.0
        %959 = vadd.xlane.f32.xlu0 %v958
        %v960 = vpop.xlane.xlu0 %959
        %v961 = vsel %vm885, %v878, 0.0
        %962 = vadd.xlane.f32.xlu0 %v961
        %v963 = vpop.xlane.xlu0 %962
        %v964 = vsel %vm885, %v879, 0.0
        %965 = vadd.xlane.f32.xlu0 %v964
        %v966 = vpop.xlane.xlu0 %965
        %v967 = vsel %vm885, %v880, 0.0
        %968 = vadd.xlane.f32.xlu0 %v967
        %v969 = vpop.xlane.xlu0 %968
        %v970 = vsel %vm885, %v881, 0.0
        %971 = vadd.xlane.f32.xlu0 %v970
        %v972 = vpop.xlane.xlu0 %971
        %v973 = vsel %vm885, %v882, 0.0
        %974 = vadd.xlane.f32.xlu0 %v973
        %v975 = vpop.xlane.xlu0 %974
        %v976 = vsel %vm885, %v883, 0.0
        %977 = vadd.xlane.f32.xlu0 %v976
        %v978 = vpop.xlane.xlu0 %977
        %v979 = vsel %vm885, %v884, 0.0
        %980 = vadd.xlane.f32.xlu0 %v979
        %v981 = vpop.xlane.xlu0 %980
        %v982 = vld [vmem:[#allocation2] sm:$0x1]
        %v984 = vlaneseq
        %v985 = vshrl.u32 %v984, 7
        %v986 = vsub.s32 0, %v985
        %v987 = vrot.slane %v982, %v986
        %v989 = vadd.f32 %v888, %v987
        %v990 = vadd.f32 %v891, %v987
        %v991 = vadd.f32 %v894, %v987
        %v992 = vadd.f32 %v897, %v987
        %v993 = vadd.f32 %v900, %v987
        %v994 = vadd.f32 %v903, %v987
        %v995 = vadd.f32 %v906, %v987
        %v996 = vadd.f32 %v909, %v987
        %v997 = vadd.f32 %v912, %v987
        %v998 = vadd.f32 %v915, %v987
        %v999 = vadd.f32 %v918, %v987
        %v1000 = vadd.f32 %v921, %v987
        %v1001 = vadd.f32 %v924, %v987
        %v1002 = vadd.f32 %v927, %v987
        %v1003 = vadd.f32 %v930, %v987
        %v1004 = vadd.f32 %v933, %v987
        %v1005 = vadd.f32 %v936, %v987
        %v1006 = vadd.f32 %v939, %v987
        %v1007 = vadd.f32 %v942, %v987
        %v1008 = vadd.f32 %v945, %v987
        %v1009 = vadd.f32 %v948, %v987
        %v1010 = vadd.f32 %v951, %v987
        %v1011 = vadd.f32 %v954, %v987
        %v1012 = vadd.f32 %v957, %v987
        %v1013 = vadd.f32 %v960, %v987
        %v1014 = vadd.f32 %v963, %v987
        %v1015 = vadd.f32 %v966, %v987
        %v1016 = vadd.f32 %v969, %v987
        %v1017 = vadd.f32 %v972, %v987
        %v1018 = vadd.f32 %v975, %v987
        %v1019 = vadd.f32 %v978, %v987
        %v1020 = vadd.f32 %v981, %v987
        %vm1021 = vcmask 7168
        %1022 = vst.msk [vmem:[%s363] sm:$0xff] %vm1021, %v989
        %1023 = vst.msk [vmem:[%s363 + $0x8] sm:$0xff] %vm1021, %v990
        %1024 = vst.msk [vmem:[%s363 + $0x10] sm:$0xff] %vm1021, %v991
        %1025 = vst.msk [vmem:[%s363 + $0x18] sm:$0xff] %vm1021, %v992
        %1026 = vst.msk [vmem:[%s363 + $0x20] sm:$0xff] %vm1021, %v993
        %1027 = vst.msk [vmem:[%s363 + $0x28] sm:$0xff] %vm1021, %v994
        %1028 = vst.msk [vmem:[%s363 + $0x30] sm:$0xff] %vm1021, %v995
        %1029 = vst.msk [vmem:[%s363 + $0x38] sm:$0xff] %vm1021, %v996
        %1030 = vst.msk [vmem:[%s363 + $0x40] sm:$0xff] %vm1021, %v997
        %1031 = vst.msk [vmem:[%s363 + $0x48] sm:$0xff] %vm1021, %v998
        %1032 = vst.msk [vmem:[%s363 + $0x50] sm:$0xff] %vm1021, %v999
        %1033 = vst.msk [vmem:[%s363 + $0x58] sm:$0xff] %vm1021, %v1000
        %1034 = vst.msk [vmem:[%s363 + $0x60] sm:$0xff] %vm1021, %v1001
        %1035 = vst.msk [vmem:[%s363 + $0x68] sm:$0xff] %vm1021, %v1002
        %1036 = vst.msk [vmem:[%s363 + $0x70] sm:$0xff] %vm1021, %v1003
        %1037 = vst.msk [vmem:[%s363 + $0x78] sm:$0xff] %vm1021, %v1004
        %1038 = vst.msk [vmem:[%s363 + $0x80] sm:$0xff] %vm1021, %v1005
        %1039 = vst.msk [vmem:[%s363 + $0x88] sm:$0xff] %vm1021, %v1006
        %1040 = vst.msk [vmem:[%s363 + $0x90] sm:$0xff] %vm1021, %v1007
        %1041 = vst.msk [vmem:[%s363 + $0x98] sm:$0xff] %vm1021, %v1008
        %1042 = vst.msk [vmem:[%s363 + $0xa0] sm:$0xff] %vm1021, %v1009
        %1043 = vst.msk [vmem:[%s363 + $0xa8] sm:$0xff] %vm1021, %v1010
        %1044 = vst.msk [vmem:[%s363 + $0xb0] sm:$0xff] %vm1021, %v1011
        %1045 = vst.msk [vmem:[%s363 + $0xb8] sm:$0xff] %vm1021, %v1012
        %1046 = vst.msk [vmem:[%s363 + $0xc0] sm:$0xff] %vm1021, %v1013
        %1047 = vst.msk [vmem:[%s363 + $0xc8] sm:$0xff] %vm1021, %v1014
        %1048 = vst.msk [vmem:[%s363 + $0xd0] sm:$0xff] %vm1021, %v1015
        %1049 = vst.msk [vmem:[%s363 + $0xd8] sm:$0xff] %vm1021, %v1016
        %1050 = vst.msk [vmem:[%s363 + $0xe0] sm:$0xff] %vm1021, %v1017
        %1051 = vst.msk [vmem:[%s363 + $0xe8] sm:$0xff] %vm1021, %v1018
        %1052 = vst.msk [vmem:[%s363 + $0xf0] sm:$0xff] %vm1021, %v1019
        %1053 = vst.msk [vmem:[%s363 + $0xf8] sm:$0xff] %vm1021, %v1020
        %s1054 = sand.u32 %s189, 1
        %s1055 = scalar_lea.sflag [#allocation5], %s1054
        %s1056 = sand.u32 %s189, 1
        %s1057 = smul.addr %s1056, 256
        %s1058 = scalar_lea.vmem [#allocation14], %s1057
        // Predicated region
        $region73: #{unet_forward.33} parent=47 // pred_check
          %p1059 = pneg %p199
        $region74: #{unet_forward.33} parent=47 // pred_check_branch
          %1061 = sbr.rel (%p1059) target = $region76
        $region75: #{unet_forward.33} parent=47 // pred_region
          %s1062 = smul.u32 32, %s29
          %s1064 = ssub.s32 4096, 4096
          %1065 = vsyncadd %s1055, %s1064
          %s1066 = smul.addr %s1062, 128
          %s1067 = scalar_lea.hbm %s7, %s1066
          %s1068 = sshll.u32 %s1058, 4
          %s1069 = int_to_ptr.vmem [resolvable:$true] %s1068
          %1074 = dma.vmem_to_hbm [thread:$0]  %s1069, 4096, %s1067, %s1055, 128, 128, 8
        $region76: #{unet_forward.33} parent=47 // pred_fallthru
          _
      $region48: #{unet_forward.33} parent=5 // pred_fallthru
        _
      %p1075 = scmp.le.s32.totalorder 2, %s24
      // Predicated region
      $region77: #{unet_forward.33} parent=5 // pred_check
        %p1076 = pneg %p1075
      $region78: #{unet_forward.33} parent=5 // pred_check_branch
        %1078 = sbr.rel (%p1076) target = $region80
      $region79: #{unet_forward.33} parent=5 // pred_region
        %s1079 = ssub.s32 %s24, 2
        // Predicated region
        $region81: #{unet_forward.33} parent=79 // pred_check
          %p1080 = pneg %p205
        $region82: #{unet_forward.33} parent=79 // pred_check_branch
          %1082 = sbr.rel (%p1080) target = $region84
        $region83: #{unet_forward.33} parent=79 // pred_region
          %s1083 = sand.u32 %s190, 1
          %s1084 = scalar_lea.sflag [#allocation5], %s1083
          %s1085 = sand.u32 %s190, 1
          %s1086 = smul.addr %s1085, 256
          %s1087 = scalar_lea.vmem [#allocation14], %s1086
          %1088 = dma.done %s1084, 4096
        $region84: #{unet_forward.33} parent=79 // pred_fallthru
          _
      $region80: #{unet_forward.33} parent=5 // pred_fallthru
        _
    $region6: #{unet_forward.33} parent=1 // loop_footer
      %s28 = sadd.s32 1, %s24
    $region7: #{unet_forward.33} parent=1 // loop_footer_branch
      %23 = sbr.rel target = $region3
    $region8: #{unet_forward.33} parent=1 // loop_exit
      _
    %1089 = vsyncpa [#allocation4], 1
    %s1090 = scalar_lea.sflag [#allocation4], 1
    %1091 = vsyncpa %s1090, 1
    %1092 = vsyncpa [#allocation7], 1
    %1093 = vsyncpa [#allocation10], 1
    %1094 = vsyncpa [#allocation13], 1
    %1095 = vsyncpa [#allocation5], 1
    %s1096 = scalar_lea.sflag [#allocation5], 1
    %1097 = vsyncpa %s1096, 1

// kernel: unet_forward.32
$region0: #{unet_forward.32}
  #allocation0 [shape = 'u32[]', space=smem, size = 0x4, offset = 0x4, fixed_abs, tag = 'smem constant byte address 0x4 - core index']
  #allocation1 [shape = 'u32[144,128]{1,0:T(1,128)}', space=vmem, size = 0x12000, scoped, tag = 'internal scratch']
  %s0 = inlined_call_operand.hbm [shape: bf16[512,144], index: 0, kind: input, shape index: {}]
  %s1 = inlined_call_operand.hbm [shape: bf16[144,8], index: 1, kind: input, shape index: {}]
  %s2 = inlined_call_operand.hbm [shape: f32[1,8], index: 2, kind: input, shape index: {}]
  %s3 = inlined_call_operand.hbm [shape: f32[1,8], index: 3, kind: input, shape index: {}]
  %s4 = inlined_call_operand.hbm [shape: f32[1,8], index: 4, kind: input, shape index: {}]
  %s5 = inlined_call_operand.hbm [shape: bf16[512,8], index: 5, kind: output, shape index: {}]
  %s6 = sld [smem:[#allocation0]]
  $region73: #{unet_forward.32} parent=0
    _
  %s8 = ssub.s32 1, %s6
  %s9 = scalar_select 0, %s8, %s6
  $region1: #{unet_forward.32} parent=0
    #allocation2 [shape = 'u8[262144]{0}', space=vmem, size = 0x40000, scoped, tag = 'input window, operand 0']
    #allocation3 [shape = 's32[2]{0}', space=sflag, size = 0x8, scoped, tag = 'scoped memory for unet_forward.32']
    #allocation4 [shape = 's32[2]{0}', space=sflag, size = 0x8, scoped, tag = 'scoped memory for unet_forward.32']
    #allocation5 [shape = 'u8[36864]{0}', space=vmem, size = 0x9000, scoped, tag = 'input window, operand 1, single buffered']
    #allocation6 [shape = 's32[1]{0}', space=sflag, size = 0x4, scoped, tag = 'scoped memory for unet_forward.32']
    #allocation7 [shape = 'u8[512]{0}', space=vmem, size = 0x400, scoped, tag = 'input window, operand 2, single buffered']
    #allocation8 [shape = 'u8[512]{0}', space=vmem, size = 0x400, scoped, tag = 'input window, operand 3, single buffered']
    #allocation9 [shape = 's32[1]{0}', space=sflag, size = 0x4, scoped, tag = 'scoped memory for unet_forward.32']
    #allocation10 [shape = 'u8[512]{0}', space=vmem, size = 0x400, scoped, tag = 'input window, operand 4, single buffered']
    #allocation11 [shape = 'u8[131072]{0}', space=vmem, size = 0x20000, scoped, tag = 'output window, operand 0']
    %10 = vsyncpa [#allocation3], 0
    %s11 = scalar_lea.sflag [#allocation3], 1
    %12 = vsyncpa %s11, 0
    %13 = vsyncpa [#allocation6], 0
    %14 = vsyncpa [#allocation9], 0
    %15 = vsyncpa [#allocation4], 0
    %s16 = scalar_lea.sflag [#allocation4], 1
    %17 = vsyncpa %s16, 0
    loop: start=0, step=1, limit=4
    $region2: #{unet_forward.32} parent=1 // loop_pre_header
      _
    $region3: #{unet_forward.32} parent=1 // loop_header
      %s19 = sphi 0, %s23
      %p20 = scmp.ge.s32.totalorder %s19, 4
      %s29 = sphi 0, %s31
      %s32 = sphi 0, %s29
      %s33 = sphi 0, %s32
      %s49 = sphi 0, %s33
      %s53 = sphi 0, %s53
      %s55 = sphi 0, %s53
      %s56 = sphi 0, %s55
      %s70 = sphi 0, %s56
      %s74 = sphi 0, %s74
      %s76 = sphi 0, %s74
      %s77 = sphi 0, %s76
      %s91 = sphi 0, %s77
      %s95 = sphi 0, %s95
      %s97 = sphi 0, %s95
      %s98 = sphi 0, %s97
      %s112 = sphi 0, %s98
      %s116 = sphi 0, %s116
      %s118 = sphi 0, %s116
      %s119 = sphi 0, %s118
      %s133 = sphi 0, %s119
      %s139 = sphi 0, %s141
      %s142 = sphi 0, %s139
      %s143 = sphi 0, %s142
      %s159 = sphi 0, %s143
    $region4: #{unet_forward.32} parent=1 // loop_header_branch
      %22 = sbr.rel (%p20) target = $region8
    $region5: #{unet_forward.32} parent=1 // loop_body
      %s24 = ssub.s32 %s19, 1
      %s25 = ssub.s32 %s19, 2
      %s26 = sadd.s32 %s19, 1
      %s27 = ssub.s32 %s19, %s26
      %p28 = scmp.eq.s32.totalorder %s27, 0
      %s30 = sadd.s32 %s29, 1
      %s31 = scalar_select %p28, %s29, %s30
      %p34 = pneg %p28
      %p35 = scmp.eq.s32.totalorder %s19, 1
      %p36 = por %p34, %p35
      %p37 = scmp.ne.s32.totalorder %s29, %s32
      %p38 = scmp.eq.s32.totalorder %s19, 0
      %p39 = por %p37, %p38
      %p40 = scmp.ne.s32.totalorder %s29, %s32
      %p41 = scmp.eq.s32.totalorder %s24, 1
      %p42 = por %p40, %p41
      %p43 = scmp.ne.s32.totalorder %s32, %s33
      %p44 = scmp.eq.s32.totalorder %s24, 0
      %p45 = por %p43, %p44
      %p46 = scmp.ne.s32.totalorder %s32, %s33
      %p47 = scmp.eq.s32.totalorder %s25, 1
      %p48 = por %p46, %p47
      %p50 = scmp.ne.s32.totalorder %s33, %s49
      %p51 = scmp.eq.s32.totalorder %s25, 0
      %p52 = por %p50, %p51
      %s54 = sadd.s32 %s53, 1
      %p57 = scmp.eq.s32.totalorder %s19, 1
      %p58 = scmp.ne.s32.totalorder %s53, %s55
      %p59 = scmp.eq.s32.totalorder %s19, 0
      %p60 = por %p58, %p59
      %p61 = scmp.ne.s32.totalorder %s53, %s55
      %p62 = scmp.eq.s32.totalorder %s24, 1
      %p63 = por %p61, %p62
      %p64 = scmp.ne.s32.totalorder %s55, %s56
      %p65 = scmp.eq.s32.totalorder %s24, 0
      %p66 = por %p64, %p65
      %p67 = scmp.ne.s32.totalorder %s55, %s56
      %p68 = scmp.eq.s32.totalorder %s25, 1
      %p69 = por %p67, %p68
      %p71 = scmp.ne.s32.totalorder %s56, %s70
      %p72 = scmp.eq.s32.totalorder %s25, 0
      %p73 = por %p71, %p72
      %s75 = sadd.s32 %s74, 1
      %p78 = scmp.eq.s32.totalorder %s19, 1
      %p79 = scmp.ne.s32.totalorder %s74, %s76
      %p80 = scmp.eq.s32.totalorder %s19, 0
      %p81 = por %p79, %p80
      %p82 = scmp.ne.s32.totalorder %s74, %s76
      %p83 = scmp.eq.s32.totalorder %s24, 1
      %p84 = por %p82, %p83
      %p85 = scmp.ne.s32.totalorder %s76, %s77
      %p86 = scmp.eq.s32.totalorder %s24, 0
      %p87 = por %p85, %p86
      %p88 = scmp.ne.s32.totalorder %s76, %s77
      %p89 = scmp.eq.s32.totalorder %s25, 1
      %p90 = por %p88, %p89
      %p92 = scmp.ne.s32.totalorder %s77, %s91
      %p93 = scmp.eq.s32.totalorder %s25, 0
      %p94 = por %p92, %p93
      %s96 = sadd.s32 %s95, 1
      %p99 = scmp.eq.s32.totalorder %s19, 1
      %p100 = scmp.ne.s32.totalorder %s95, %s97
      %p101 = scmp.eq.s32.totalorder %s19, 0
      %p102 = por %p100, %p101
      %p103 = scmp.ne.s32.totalorder %s95, %s97
      %p104 = scmp.eq.s32.totalorder %s24, 1
      %p105 = por %p103, %p104
      %p106 = scmp.ne.s32.totalorder %s97, %s98
      %p107 = scmp.eq.s32.totalorder %s24, 0
      %p108 = por %p106, %p107
      %p109 = scmp.ne.s32.totalorder %s97, %s98
      %p110 = scmp.eq.s32.totalorder %s25, 1
      %p111 = por %p109, %p110
      %p113 = scmp.ne.s32.totalorder %s98, %s112
      %p114 = scmp.eq.s32.totalorder %s25, 0
      %p115 = por %p113, %p114
      %s117 = sadd.s32 %s116, 1
      %p120 = scmp.eq.s32.totalorder %s19, 1
      %p121 = scmp.ne.s32.totalorder %s116, %s118
      %p122 = scmp.eq.s32.totalorder %s19, 0
      %p123 = por %p121, %p122
      %p124 = scmp.ne.s32.totalorder %s116, %s118
      %p125 = scmp.eq.s32.totalorder %s24, 1
      %p126 = por %p124, %p125
      %p127 = scmp.ne.s32.totalorder %s118, %s119
      %p128 = scmp.eq.s32.totalorder %s24, 0
      %p129 = por %p127, %p128
      %p130 = scmp.ne.s32.totalorder %s118, %s119
      %p131 = scmp.eq.s32.totalorder %s25, 1
      %p132 = por %p130, %p131
      %p134 = scmp.ne.s32.totalorder %s119, %s133
      %p135 = scmp.eq.s32.totalorder %s25, 0
      %p136 = por %p134, %p135
      %s137 = ssub.s32 %s19, %s26
      %p138 = scmp.eq.s32.totalorder %s137, 0
      %s140 = sadd.s32 %s139, 1
      %s141 = scalar_select %p138, %s139, %s140
      %p144 = pneg %p138
      %p145 = scmp.eq.s32.totalorder %s19, 1
      %p146 = por %p144, %p145
      %p147 = scmp.ne.s32.totalorder %s139, %s142
      %p148 = scmp.eq.s32.totalorder %s19, 0
      %p149 = por %p147, %p148
      %p150 = scmp.ne.s32.totalorder %s139, %s142
      %p151 = scmp.eq.s32.totalorder %s24, 1
      %p152 = por %p150, %p151
      %p153 = scmp.ne.s32.totalorder %s142, %s143
      %p154 = scmp.eq.s32.totalorder %s24, 0
      %p155 = por %p153, %p154
      %p156 = scmp.ne.s32.totalorder %s142, %s143
      %p157 = scmp.eq.s32.totalorder %s25, 1
      %p158 = por %p156, %p157
      %p160 = scmp.ne.s32.totalorder %s143, %s159
      %p161 = scmp.eq.s32.totalorder %s25, 0
      %p162 = por %p160, %p161
      %p163 = scmp.le.s32.totalorder 1, %s19
      %p164 = scmp.lt.s32.totalorder %s19, 3
      %p165 = pnand %p163, %p164
      %p166 = pneg %p165
      // Predicated region
      $region9: #{unet_forward.32} parent=5 // pred_check
        _
      $region10: #{unet_forward.32} parent=5 // pred_check_branch
        %168 = sbr.rel (%p165) target = $region12
      $region11: #{unet_forward.32} parent=5 // pred_region
        %s169 = ssub.s32 %s19, 1
        // Predicated region
        $region13: #{unet_forward.32} parent=11 // pred_check
          %p170 = pneg %p66
        $region14: #{unet_forward.32} parent=11 // pred_check_branch
          %172 = sbr.rel (%p170) target = $region16
        $region15: #{unet_forward.32} parent=11 // pred_region
          %s174 = ssub.s32 1152, 1152
          %175 = vsyncadd [#allocation6], %s174
          %s176 = sshll.u32 [#allocation5], 4
          %s177 = int_to_ptr.vmem [resolvable:$true] %s176
          %182 = dma.hbm_to_vmem [thread:$0]  %s1, 1152, %s177, [#allocation6], 64, 64, 4
        $region16: #{unet_forward.32} parent=11 // pred_fallthru
          _
        // Predicated region
        $region17: #{unet_forward.32} parent=11 // pred_check
          %p183 = pneg %p87
        $region18: #{unet_forward.32} parent=11 // pred_check_branch
          %185 = sbr.rel (%p183) target = $region20
        $region19: #{unet_forward.32} parent=11 // pred_region
          %s187 = ssub.s32 16, 16
          %188 = vsyncadd [#allocation6], %s187
          %s190 = sshll.u32 [#allocation7], 4
          %s191 = int_to_ptr.vmem [resolvable:$true] %s190
          %193 = dma.hbm_to_vmem [thread:$0]  %s2, 16, %s191, [#allocation6]
        $region20: #{unet_forward.32} parent=11 // pred_fallthru
          _
        // Predicated region
        $region21: #{unet_forward.32} parent=11 // pred_check
          %p194 = pneg %p108
        $region22: #{unet_forward.32} parent=11 // pred_check_branch
          %196 = sbr.rel (%p194) target = $region24
        $region23: #{unet_forward.32} parent=11 // pred_region
          %s198 = ssub.s32 16, 16
          %199 = vsyncadd [#allocation9], %s198
          %s201 = sshll.u32 [#allocation8], 4
          %s202 = int_to_ptr.vmem [resolvable:$true] %s201
          %204 = dma.hbm_to_vmem [thread:$0]  %s3, 16, %s202, [#allocation9]
        $region24: #{unet_forward.32} parent=11 // pred_fallthru
          _
        // Predicated region
        $region25: #{unet_forward.32} parent=11 // pred_check
          %p205 = pneg %p129
        $region26: #{unet_forward.32} parent=11 // pred_check_branch
          %207 = sbr.rel (%p205) target = $region28
        $region27: #{unet_forward.32} parent=11 // pred_region
          %s209 = ssub.s32 16, 16
          %210 = vsyncadd [#allocation9], %s209
          %s212 = sshll.u32 [#allocation10], 4
          %s213 = int_to_ptr.vmem [resolvable:$true] %s212
          %215 = dma.hbm_to_vmem [thread:$0]  %s4, 16, %s213, [#allocation9]
        $region28: #{unet_forward.32} parent=11 // pred_fallthru
          _
      $region12: #{unet_forward.32} parent=5 // pred_fallthru
        _
      %p216 = scmp.lt.s32.totalorder %s19, 2
      // Predicated region
      $region29: #{unet_forward.32} parent=5 // pred_check
        %p217 = pneg %p216
      $region30: #{unet_forward.32} parent=5 // pred_check_branch
        %219 = sbr.rel (%p217) target = $region32
      $region31: #{unet_forward.32} parent=5 // pred_region
        // Predicated region
        $region33: #{unet_forward.32} parent=31 // pred_check
          %p220 = pneg %p39
        $region34: #{unet_forward.32} parent=31 // pred_check_branch
          %222 = sbr.rel (%p220) target = $region36
        $region35: #{unet_forward.32} parent=31 // pred_region
          %s223 = sand.u32 %s29, 1
          %s224 = scalar_lea.sflag [#allocation3], %s223
          %s225 = sand.u32 %s29, 1
          %s226 = smul.addr %s225, 256
          %s227 = scalar_lea.vmem [#allocation2], %s226
          %s228 = smul.u32 32, %s19
          %s230 = ssub.s32 4096, 4096
          %231 = vsyncadd %s224, %s230
          %s232 = smul.addr %s228, 2
          %s233 = smul.addr %s232, 64
          %s234 = scalar_lea.hbm %s0, %s233
          %s235 = sshll.u32 %s227, 4
          %s236 = int_to_ptr.vmem [resolvable:$true] %s235
          %241 = dma.hbm_to_vmem [thread:$0]  %s234, 4096, %s236, %s224, 128, 128, 8
        $region36: #{unet_forward.32} parent=31 // pred_fallthru
          _
      $region32: #{unet_forward.32} parent=5 // pred_fallthru
        _
      %p242 = scmp.le.s32.totalorder 1, %s19
      %p243 = scmp.lt.s32.totalorder %s19, 3
      %p244 = pnand %p242, %p243
      %p245 = pneg %p244
      // Predicated region
      $region37: #{unet_forward.32} parent=5 // pred_check
        _
      $region38: #{unet_forward.32} parent=5 // pred_check_branch
        %247 = sbr.rel (%p244) target = $region40
      $region39: #{unet_forward.32} parent=5 // pred_region
        %s248 = ssub.s32 %s19, 1
        %s249 = sand.u32 %s32, 1
        %s250 = scalar_lea.sflag [#allocation3], %s249
        %s251 = sand.u32 %s32, 1
        %s252 = smul.addr %s251, 256
        %s253 = scalar_lea.vmem [#allocation2], %s252
        // Predicated region
        $region41: #{unet_forward.32} parent=39 // pred_check
          %p254 = pneg %p45
        $region42: #{unet_forward.32} parent=39 // pred_check_branch
          %256 = sbr.rel (%p254) target = $region44
        $region43: #{unet_forward.32} parent=39 // pred_region
          %257 = dma.done %s250, 4096
        $region44: #{unet_forward.32} parent=39 // pred_fallthru
          _
        // Predicated region
        $region45: #{unet_forward.32} parent=39 // pred_check
          %p258 = pneg %p66
        $region46: #{unet_forward.32} parent=39 // pred_check_branch
          %260 = sbr.rel (%p258) target = $region48
        $region47: #{unet_forward.32} parent=39 // pred_region
          %261 = dma.done [#allocation6], 1152
        $region48: #{unet_forward.32} parent=39 // pred_fallthru
          _
        // Predicated region
        $region49: #{unet_forward.32} parent=39 // pred_check
          %p262 = pneg %p87
        $region50: #{unet_forward.32} parent=39 // pred_check_branch
          %264 = sbr.rel (%p262) target = $region52
        $region51: #{unet_forward.32} parent=39 // pred_region
          %265 = dma.done [#allocation6], 16
        $region52: #{unet_forward.32} parent=39 // pred_fallthru
          _
        // Predicated region
        $region53: #{unet_forward.32} parent=39 // pred_check
          %p266 = pneg %p108
        $region54: #{unet_forward.32} parent=39 // pred_check_branch
          %268 = sbr.rel (%p266) target = $region56
        $region55: #{unet_forward.32} parent=39 // pred_region
          %269 = dma.done [#allocation9], 16
        $region56: #{unet_forward.32} parent=39 // pred_fallthru
          _
        // Predicated region
        $region57: #{unet_forward.32} parent=39 // pred_check
          %p270 = pneg %p129
        $region58: #{unet_forward.32} parent=39 // pred_check_branch
          %272 = sbr.rel (%p270) target = $region60
        $region59: #{unet_forward.32} parent=39 // pred_region
          %273 = dma.done [#allocation9], 16
        $region60: #{unet_forward.32} parent=39 // pred_fallthru
          _
        %s274 = sand.u32 %s32, 1
        %s275 = scalar_lea.sflag [#allocation3], %s274
        %s276 = sand.u32 %s32, 1
        %s277 = smul.addr %s276, 256
        %s278 = scalar_lea.vmem [#allocation2], %s277
        %p279 = pneg %p45
        %p280 = pneg %p42
        %p281 = pneg %p66
        %p282 = pneg %p63
        %p283 = pneg %p87
        %p284 = pneg %p84
        %p285 = pneg %p108
        %p286 = pneg %p105
        %p287 = pneg %p129
        %p288 = pneg %p126
        %p289 = pneg %p155
        %p290 = pneg %p152
        %s291 = sand.u32 %s142, 1
        %s292 = scalar_lea.sflag [#allocation4], %s291
        %s293 = sand.u32 %s142, 1
        %s294 = smul.addr %s293, 128
        %s295 = scalar_lea.vmem [#allocation11], %s294
        %s296 = smul.u32 32, %s24
        %s297 = smul.u32 32, %s24
        %v299 = vld [vmem:[%s253] sm:$0xff]
        %v300 = vld [vmem:[%s253 + $0x8] sm:$0xff]
        %v301 = vld [vmem:[%s253 + $0x10] sm:$0xff]
        %v302 = vld [vmem:[%s253 + $0x18] sm:$0xff]
        %v303 = vld [vmem:[%s253 + $0x20] sm:$0xff]
        %v304 = vld [vmem:[%s253 + $0x28] sm:$0xff]
        %v305 = vld [vmem:[%s253 + $0x30] sm:$0xff]
        %v306 = vld [vmem:[%s253 + $0x38] sm:$0xff]
        %v307 = vld [vmem:[%s253 + $0x40] sm:$0xff]
        %v308 = vld [vmem:[%s253 + $0x48] sm:$0xff]
        %v309 = vld [vmem:[%s253 + $0x50] sm:$0xff]
        %v310 = vld [vmem:[%s253 + $0x58] sm:$0xff]
        %v311 = vld [vmem:[%s253 + $0x60] sm:$0xff]
        %v312 = vld [vmem:[%s253 + $0x68] sm:$0xff]
        %v313 = vld [vmem:[%s253 + $0x70] sm:$0xff]
        %v314 = vld [vmem:[%s253 + $0x78] sm:$0xff]
        %v315 = vld [vmem:[%s253 + $0x80] sm:$0xff]
        %v316 = vld [vmem:[%s253 + $0x88] sm:$0xff]
        %v317 = vld [vmem:[%s253 + $0x90] sm:$0xff]
        %v318 = vld [vmem:[%s253 + $0x98] sm:$0xff]
        %v319 = vld [vmem:[%s253 + $0xa0] sm:$0xff]
        %v320 = vld [vmem:[%s253 + $0xa8] sm:$0xff]
        %v321 = vld [vmem:[%s253 + $0xb0] sm:$0xff]
        %v322 = vld [vmem:[%s253 + $0xb8] sm:$0xff]
        %v323 = vld [vmem:[%s253 + $0xc0] sm:$0xff]
        %v324 = vld [vmem:[%s253 + $0xc8] sm:$0xff]
        %v325 = vld [vmem:[%s253 + $0xd0] sm:$0xff]
        %v326 = vld [vmem:[%s253 + $0xd8] sm:$0xff]
        %v327 = vld [vmem:[%s253 + $0xe0] sm:$0xff]
        %v328 = vld [vmem:[%s253 + $0xe8] sm:$0xff]
        %v329 = vld [vmem:[%s253 + $0xf0] sm:$0xff]
        %v330 = vld [vmem:[%s253 + $0xf8] sm:$0xff]
        %v331 = vld [vmem:[#allocation5] sm:$0xf]
        %v332 = vld [vmem:[#allocation5 + $0x4] sm:$0xf]
        %v333 = vld [vmem:[#allocation5 + $0x8] sm:$0xf]
        %v334 = vld [vmem:[#allocation5 + $0xc] sm:$0xf]
        %v335 = vld [vmem:[#allocation5 + $0x10] sm:$0xf]
        %v336 = vld [vmem:[#allocation5 + $0x14] sm:$0xf]
        %v337 = vld [vmem:[#allocation5 + $0x18] sm:$0xf]
        %v338 = vld [vmem:[#allocation5 + $0x1c] sm:$0xf]
        %v339 = vld [vmem:[#allocation5 + $0x20] sm:$0xf]
        %v340 = vld [vmem:[#allocation5 + $0x24] sm:$0xf]
        %v341 = vld [vmem:[#allocation5 + $0x28] sm:$0xf]
        %v342 = vld [vmem:[#allocation5 + $0x2c] sm:$0xf]
        %v343 = vld [vmem:[#allocation5 + $0x30] sm:$0xf]
        %v344 = vld [vmem:[#allocation5 + $0x34] sm:$0xf]
        %v345 = vld [vmem:[#allocation5 + $0x38] sm:$0xf]
        %v346 = vld [vmem:[#allocation5 + $0x3c] sm:$0xf]
        %v347 = vld [vmem:[#allocation5 + $0x40] sm:$0xf]
        %v348 = vld [vmem:[#allocation5 + $0x44] sm:$0xf]
        %v349 = vld [vmem:[#allocation7] sm:$0x1]
        %v351 = vlaneseq
        %v352 = vshrl.u32 %v351, 7
        %v353 = vsub.s32 0, %v352
        %v354 = vrot.slane %v349, %v353
        %v388 = vunpack.c.l.b16 %v299
        %v389 = vunpack.c.h.b16 %v299
        %v390 = vunpack.c.l.b16 %v300
        %v391 = vunpack.c.h.b16 %v300
        %v392 = vunpack.c.l.b16 %v301
        %v393 = vunpack.c.h.b16 %v301
        %v394 = vunpack.c.l.b16 %v302
        %v395 = vunpack.c.h.b16 %v302
        %v396 = vunpack.c.l.b16 %v303
        %v397 = vunpack.c.h.b16 %v303
        %v398 = vunpack.c.l.b16 %v304
        %v399 = vunpack.c.h.b16 %v304
        %v400 = vunpack.c.l.b16 %v305
        %v401 = vunpack.c.h.b16 %v305
        %v402 = vunpack.c.l.b16 %v306
        %v403 = vunpack.c.h.b16 %v306
        %v404 = vunpack.c.l.b16 %v307
        %v405 = vunpack.c.h.b16 %v307
        %v406 = vunpack.c.l.b16 %v308
        %v407 = vunpack.c.h.b16 %v308
        %v408 = vunpack.c.l.b16 %v309
        %v409 = vunpack.c.h.b16 %v309
        %v410 = vunpack.c.l.b16 %v310
        %v411 = vunpack.c.h.b16 %v310
        %v412 = vunpack.c.l.b16 %v311
        %v413 = vunpack.c.h.b16 %v311
        %v414 = vunpack.c.l.b16 %v312
        %v415 = vunpack.c.h.b16 %v312
        %v416 = vunpack.c.l.b16 %v313
        %v417 = vunpack.c.h.b16 %v313
        %v418 = vunpack.c.l.b16 %v314
        %v419 = vunpack.c.h.b16 %v314
        %v420 = vunpack.c.l.b16 %v315
        %v421 = vunpack.c.h.b16 %v315
        %v422 = vunpack.c.l.b16 %v316
        %v423 = vunpack.c.h.b16 %v316
        %v424 = vunpack.c.l.b16 %v317
        %v425 = vunpack.c.h.b16 %v317
        %v426 = vunpack.c.l.b16 %v318
        %v427 = vunpack.c.h.b16 %v318
        %v428 = vunpack.c.l.b16 %v319
        %v429 = vunpack.c.h.b16 %v319
        %v430 = vunpack.c.l.b16 %v320
        %v431 = vunpack.c.h.b16 %v320
        %v432 = vunpack.c.l.b16 %v321
        %v433 = vunpack.c.h.b16 %v321
        %v434 = vunpack.c.l.b16 %v322
        %v435 = vunpack.c.h.b16 %v322
        %v436 = vunpack.c.l.b16 %v323
        %v437 = vunpack.c.h.b16 %v323
        %v438 = vunpack.c.l.b16 %v324
        %v439 = vunpack.c.h.b16 %v324
        %v440 = vunpack.c.l.b16 %v325
        %v441 = vunpack.c.h.b16 %v325
        %v442 = vunpack.c.l.b16 %v326
        %v443 = vunpack.c.h.b16 %v326
        %v444 = vunpack.c.l.b16 %v327
        %v445 = vunpack.c.h.b16 %v327
        %v446 = vunpack.c.l.b16 %v328
        %v447 = vunpack.c.h.b16 %v328
        %v448 = vunpack.c.l.b16 %v329
        %v449 = vunpack.c.h.b16 %v329
        %v450 = vunpack.c.l.b16 %v330
        %v451 = vunpack.c.h.b16 %v330
        %v452 = vpack.c.b16 %v390, %v388
        %v453 = vpack.c.b16 %v391, %v389
        %v454 = vpack.c.b16 %v394, %v392
        %v455 = vpack.c.b16 %v395, %v393
        %v456 = vpack.c.b16 %v398, %v396
        %v457 = vpack.c.b16 %v399, %v397
        %v458 = vpack.c.b16 %v402, %v400
        %v459 = vpack.c.b16 %v403, %v401
        %v460 = vpack.c.b16 %v406, %v404
        %v461 = vpack.c.b16 %v407, %v405
        %v462 = vpack.c.b16 %v410, %v408
        %v463 = vpack.c.b16 %v411, %v409
        %v464 = vpack.c.b16 %v414, %v412
        %v465 = vpack.c.b16 %v415, %v413
        %v466 = vpack.c.b16 %v418, %v416
        %v467 = vpack.c.b16 %v419, %v417
        %v468 = vpack.c.b16 %v422, %v420
        %v469 = vpack.c.b16 %v423, %v421
        %v470 = vpack.c.b16 %v426, %v424
        %v471 = vpack.c.b16 %v427, %v425
        %v472 = vpack.c.b16 %v430, %v428
        %v473 = vpack.c.b16 %v431, %v429
        %v474 = vpack.c.b16 %v434, %v432
        %v475 = vpack.c.b16 %v435, %v433
        %v476 = vpack.c.b16 %v438, %v436
        %v477 = vpack.c.b16 %v439, %v437
        %v478 = vpack.c.b16 %v442, %v440
        %v479 = vpack.c.b16 %v443, %v441
        %v480 = vpack.c.b16 %v446, %v444
        %v481 = vpack.c.b16 %v447, %v445
        %v482 = vpack.c.b16 %v450, %v448
        %v483 = vpack.c.b16 %v451, %v449
        %v518 = vunpack.c.l.b16 %v331
        %v519 = vunpack.c.l.b16 %v332
        %v520 = vunpack.c.l.b16 %v333
        %v521 = vunpack.c.l.b16 %v334
        %v522 = vunpack.c.l.b16 %v335
        %v523 = vunpack.c.l.b16 %v336
        %v524 = vunpack.c.l.b16 %v337
        %v525 = vunpack.c.l.b16 %v338
        %v526 = vunpack.c.l.b16 %v339
        %v527 = vunpack.c.l.b16 %v340
        %v528 = vunpack.c.l.b16 %v341
        %v529 = vunpack.c.l.b16 %v342
        %v530 = vunpack.c.l.b16 %v343
        %v531 = vunpack.c.l.b16 %v344
        %v532 = vunpack.c.l.b16 %v345
        %v533 = vunpack.c.l.b16 %v346
        %v534 = vunpack.c.l.b16 %v347
        %v535 = vunpack.c.l.b16 %v348
        %v536 = vpack.c.b16 %v519, %v518
        %v537 = vpack.c.b16 %v521, %v520
        %v538 = vpack.c.b16 %v523, %v522
        %v539 = vpack.c.b16 %v525, %v524
        %v540 = vpack.c.b16 %v527, %v526
        %v541 = vpack.c.b16 %v529, %v528
        %v542 = vpack.c.b16 %v531, %v530
        %v543 = vpack.c.b16 %v533, %v532
        %v544 = vpack.c.b16 %v535, %v534
        %vm554 = vcmask 130048
        %v556 = vsel %vm554, %v453, 0
        %v559 = vsel %vm554, %v455, 0
        %v562 = vsel %vm554, %v457, 0
        %v565 = vsel %vm554, %v459, 0
        %v568 = vsel %vm554, %v461, 0
        %v571 = vsel %vm554, %v463, 0
        %v574 = vsel %vm554, %v465, 0
        %v577 = vsel %vm554, %v467, 0
        %v580 = vsel %vm554, %v469, 0
        %v583 = vsel %vm554, %v471, 0
        %v586 = vsel %vm554, %v473, 0
        %v589 = vsel %vm554, %v475, 0
        %v592 = vsel %vm554, %v477, 0
        %v595 = vsel %vm554, %v479, 0
        %v598 = vsel %vm554, %v481, 0
        %v601 = vsel %vm554, %v483, 0
        %603 = vmatprep.subr.bf16.mxu0 0
        %604 = vmatpush1.bf16.msra.mxu0 %v536
        %605 = vmatprep.subr.bf16.mxu0 0
        %606 = vmatpush1.bf16.msra.mxu0 %v537
        %607 = vmatprep.subr.bf16.mxu0 0
        %608 = vmatpush1.bf16.msra.mxu0 %v538
        %609 = vmatprep.subr.bf16.mxu0 0
        %610 = vmatpush1.bf16.msra.mxu0 %v539
        %611 = vmatprep.subr.bf16.mxu0 0
        %612 = vmatpush1.bf16.msra.mxu0 %v540
        %613 = vmatprep.subr.bf16.mxu0 0
        %614 = vmatpush1.bf16.msra.mxu0 %v541
        %615 = vmatprep.subr.bf16.mxu0 0
        %616 = vmatpush1.bf16.msra.mxu0 %v542
        %617 = vmatprep.subr.bf16.mxu0 0
        %618 = vmatpush1.bf16.msra.mxu0 %v543
        %619 = vmatprep.subr.bf16.mxu0 0
        %620 = vmatpush1.bf16.msra.mxu0 %v544
        %621 = vmatprep.subr.bf16.mxu0 0
        %622 = vmatpush1.bf16.msra.mxu0 0
        %623 = vmatprep.subr.bf16.mxu0 0
        %624 = vmatpush1.bf16.msra.mxu0 0
        %625 = vmatprep.subr.bf16.mxu0 0
        %626 = vmatpush1.bf16.msra.mxu0 0
        %627 = vmatprep.subr.bf16.mxu0 0
        %628 = vmatpush1.bf16.msra.mxu0 0
        %629 = vmatprep.subr.bf16.mxu0 0
        %630 = vmatpush1.bf16.msra.mxu0 0
        %631 = vmatprep.subr.bf16.mxu0 0
        %632 = vmatpush1.bf16.msra.mxu0 0
        %633 = vmatprep.subr.bf16.mxu0 0
        %634 = vmatpush1.bf16.msra.mxu0 0
        %635 = vmatprep.mubr.bf16.mxu0 %v556
        %636 = vmatmul.mubr.bf16.gmra.mrb[0].mxu0 %v452
        %v637 = vpop.f32.mrb[0].mxu0
        %v638 = vadd.f32 %v354, %v637
        %v639 = vpop.f32.mrb[0].mxu0
        %v640 = vpop.f32.mrb[0].mxu0
        %v641 = vadd.f32 %v354, %v640
        %v642 = vpop.f32.mrb[0].mxu0
        %643 = vmatprep.mubr.bf16.mxu0 %v559
        %644 = vmatmul.mubr.bf16.gmra.mrb[0].mxu0 %v454
        %v645 = vpop.f32.mrb[0].mxu0
        %v646 = vadd.f32 %v354, %v645
        %v647 = vpop.f32.mrb[0].mxu0
        %v648 = vpop.f32.mrb[0].mxu0
        %v649 = vadd.f32 %v354, %v648
        %v650 = vpop.f32.mrb[0].mxu0
        %651 = vmatprep.mubr.bf16.mxu0 %v562
        %652 = vmatmul.mubr.bf16.gmra.mrb[0].mxu0 %v456
        %v653 = vpop.f32.mrb[0].mxu0
        %v654 = vadd.f32 %v354, %v653
        %v655 = vpop.f32.mrb[0].mxu0
        %v656 = vpop.f32.mrb[0].mxu0
        %v657 = vadd.f32 %v354, %v656
        %v658 = vpop.f32.mrb[0].mxu0
        %659 = vmatprep.mubr.bf16.mxu0 %v565
        %660 = vmatmul.mubr.bf16.gmra.mrb[0].mxu0 %v458
        %v661 = vpop.f32.mrb[0].mxu0
        %v662 = vadd.f32 %v354, %v661
        %v663 = vpop.f32.mrb[0].mxu0
        %v664 = vpop.f32.mrb[0].mxu0
        %v665 = vadd.f32 %v354, %v664
        %v666 = vpop.f32.mrb[0].mxu0
        %667 = vmatprep.mubr.bf16.mxu0 %v568
        %668 = vmatmul.mubr.bf16.gmra.mrb[0].mxu0 %v460
        %v669 = vpop.f32.mrb[0].mxu0
        %v670 = vadd.f32 %v354, %v669
        %v671 = vpop.f32.mrb[0].mxu0
        %v672 = vpop.f32.mrb[0].mxu0
        %v673 = vadd.f32 %v354, %v672
        %v674 = vpop.f32.mrb[0].mxu0
        %675 = vmatprep.mubr.bf16.mxu0 %v571
        %676 = vmatmul.mubr.bf16.gmra.mrb[0].mxu0 %v462
        %v677 = vpop.f32.mrb[0].mxu0
        %v678 = vadd.f32 %v354, %v677
        %v679 = vpop.f32.mrb[0].mxu0
        %v680 = vpop.f32.mrb[0].mxu0
        %v681 = vadd.f32 %v354, %v680
        %v682 = vpop.f32.mrb[0].mxu0
        %683 = vmatprep.mubr.bf16.mxu0 %v574
        %684 = vmatmul.mubr.bf16.gmra.mrb[0].mxu0 %v464
        %v685 = vpop.f32.mrb[0].mxu0
        %v686 = vadd.f32 %v354, %v685
        %v687 = vpop.f32.mrb[0].mxu0
        %v688 = vpop.f32.mrb[0].mxu0
        %v689 = vadd.f32 %v354, %v688
        %v690 = vpop.f32.mrb[0].mxu0
        %691 = vmatprep.mubr.bf16.mxu0 %v577
        %692 = vmatmul.mubr.bf16.gmra.mrb[0].mxu0 %v466
        %v693 = vpop.f32.mrb[0].mxu0
        %v694 = vadd.f32 %v354, %v693
        %v695 = vpop.f32.mrb[0].mxu0
        %v696 = vpop.f32.mrb[0].mxu0
        %v697 = vadd.f32 %v354, %v696
        %v698 = vpop.f32.mrb[0].mxu0
        %699 = vmatprep.mubr.bf16.mxu0 %v580
        %700 = vmatmul.mubr.bf16.gmra.mrb[0].mxu0 %v468
        %v701 = vpop.f32.mrb[0].mxu0
        %v702 = vadd.f32 %v354, %v701
        %v703 = vpop.f32.mrb[0].mxu0
        %v704 = vpop.f32.mrb[0].mxu0
        %v705 = vadd.f32 %v354, %v704
        %v706 = vpop.f32.mrb[0].mxu0
        %707 = vmatprep.mubr.bf16.mxu0 %v583
        %708 = vmatmul.mubr.bf16.gmra.mrb[0].mxu0 %v470
        %v709 = vpop.f32.mrb[0].mxu0
        %v710 = vadd.f32 %v354, %v709
        %v711 = vpop.f32.mrb[0].mxu0
        %v712 = vpop.f32.mrb[0].mxu0
        %v713 = vadd.f32 %v354, %v712
        %v714 = vpop.f32.mrb[0].mxu0
        %715 = vmatprep.mubr.bf16.mxu0 %v586
        %716 = vmatmul.mubr.bf16.gmra.mrb[0].mxu0 %v472
        %v717 = vpop.f32.mrb[0].mxu0
        %v718 = vadd.f32 %v354, %v717
        %v719 = vpop.f32.mrb[0].mxu0
        %v720 = vpop.f32.mrb[0].mxu0
        %v721 = vadd.f32 %v354, %v720
        %v722 = vpop.f32.mrb[0].mxu0
        %723 = vmatprep.mubr.bf16.mxu0 %v589
        %724 = vmatmul.mubr.bf16.gmra.mrb[0].mxu0 %v474
        %v725 = vpop.f32.mrb[0].mxu0
        %v726 = vadd.f32 %v354, %v725
        %v727 = vpop.f32.mrb[0].mxu0
        %v728 = vpop.f32.mrb[0].mxu0
        %v729 = vadd.f32 %v354, %v728
        %v730 = vpop.f32.mrb[0].mxu0
        %731 = vmatprep.mubr.bf16.mxu0 %v592
        %732 = vmatmul.mubr.bf16.gmra.mrb[0].mxu0 %v476
        %v733 = vpop.f32.mrb[0].mxu0
        %v734 = vadd.f32 %v354, %v733
        %v735 = vpop.f32.mrb[0].mxu0
        %v736 = vpop.f32.mrb[0].mxu0
        %v737 = vadd.f32 %v354, %v736
        %v738 = vpop.f32.mrb[0].mxu0
        %739 = vmatprep.mubr.bf16.mxu0 %v595
        %740 = vmatmul.mubr.bf16.gmra.mrb[0].mxu0 %v478
        %v741 = vpop.f32.mrb[0].mxu0
        %v742 = vadd.f32 %v354, %v741
        %v743 = vpop.f32.mrb[0].mxu0
        %v744 = vpop.f32.mrb[0].mxu0
        %v745 = vadd.f32 %v354, %v744
        %v746 = vpop.f32.mrb[0].mxu0
        %747 = vmatprep.mubr.bf16.mxu0 %v598
        %748 = vmatmul.mubr.bf16.gmra.mrb[0].mxu0 %v480
        %v749 = vpop.f32.mrb[0].mxu0
        %v750 = vadd.f32 %v354, %v749
        %v751 = vpop.f32.mrb[0].mxu0
        %v752 = vpop.f32.mrb[0].mxu0
        %v753 = vadd.f32 %v354, %v752
        %v754 = vpop.f32.mrb[0].mxu0
        %755 = vmatprep.mubr.bf16.mxu0 %v601
        %756 = vmatmul.mubr.bf16.gmra.mrb[0].mxu0 %v482
        %v757 = vpop.f32.mrb[0].mxu0
        %v758 = vadd.f32 %v354, %v757
        %v759 = vpop.f32.mrb[0].mxu0
        %v760 = vpop.f32.mrb[0].mxu0
        %v761 = vadd.f32 %v354, %v760
        %v762 = vpop.f32.mrb[0].mxu0
        %763 = vdwg.mxu0
        %v764 = vmax.f32 %v638, 0.0
        %v765 = vmax.f32 %v641, 0.0
        %v766 = vmax.f32 %v646, 0.0
        %v767 = vmax.f32 %v649, 0.0
        %v768 = vmax.f32 %v654, 0.0
        %v769 = vmax.f32 %v657, 0.0
        %v770 = vmax.f32 %v662, 0.0
        %v771 = vmax.f32 %v665, 0.0
        %v772 = vmax.f32 %v670, 0.0
        %v773 = vmax.f32 %v673, 0.0
        %v774 = vmax.f32 %v678, 0.0
        %v775 = vmax.f32 %v681, 0.0
        %v776 = vmax.f32 %v686, 0.0
        %v777 = vmax.f32 %v689, 0.0
        %v778 = vmax.f32 %v694, 0.0
        %v779 = vmax.f32 %v697, 0.0
        %v780 = vmax.f32 %v702, 0.0
        %v781 = vmax.f32 %v705, 0.0
        %v782 = vmax.f32 %v710, 0.0
        %v783 = vmax.f32 %v713, 0.0
        %v784 = vmax.f32 %v718, 0.0
        %v785 = vmax.f32 %v721, 0.0
        %v786 = vmax.f32 %v726, 0.0
        %v787 = vmax.f32 %v729, 0.0
        %v788 = vmax.f32 %v734, 0.0
        %v789 = vmax.f32 %v737, 0.0
        %v790 = vmax.f32 %v742, 0.0
        %v791 = vmax.f32 %v745, 0.0
        %v792 = vmax.f32 %v750, 0.0
        %v793 = vmax.f32 %v753, 0.0
        %v794 = vmax.f32 %v758, 0.0
        %v795 = vmax.f32 %v761, 0.0
        %v796 = vld [vmem:[#allocation8] sm:$0x1]
        %v798 = vlaneseq
        %v799 = vshrl.u32 %v798, 7
        %v800 = vsub.s32 0, %v799
        %v801 = vrot.slane %v796, %v800
        %v803 = vmul.f32 %v764, %v801
        %v804 = vmul.f32 %v765, %v801
        %v805 = vmul.f32 %v766, %v801
        %v806 = vmul.f32 %v767, %v801
        %v807 = vmul.f32 %v768, %v801
        %v808 = vmul.f32 %v769, %v801
        %v809 = vmul.f32 %v770, %v801
        %v810 = vmul.f32 %v771, %v801
        %v811 = vmul.f32 %v772, %v801
        %v812 = vmul.f32 %v773, %v801
        %v813 = vmul.f32 %v774, %v801
        %v814 = vmul.f32 %v775, %v801
        %v815 = vmul.f32 %v776, %v801
        %v816 = vmul.f32 %v777, %v801
        %v817 = vmul.f32 %v778, %v801
        %v818 = vmul.f32 %v779, %v801
        %v819 = vmul.f32 %v780, %v801
        %v820 = vmul.f32 %v781, %v801
        %v821 = vmul.f32 %v782, %v801
        %v822 = vmul.f32 %v783, %v801
        %v823 = vmul.f32 %v784, %v801
        %v824 = vmul.f32 %v785, %v801
        %v825 = vmul.f32 %v786, %v801
        %v826 = vmul.f32 %v787, %v801
        %v827 = vmul.f32 %v788, %v801
        %v828 = vmul.f32 %v789, %v801
        %v829 = vmul.f32 %v790, %v801
        %v830 = vmul.f32 %v791, %v801
        %v831 = vmul.f32 %v792, %v801
        %v832 = vmul.f32 %v793, %v801
        %v833 = vmul.f32 %v794, %v801
        %v834 = vmul.f32 %v795, %v801
        %v835 = vld [vmem:[#allocation10] sm:$0x1]
        %v837 = vlaneseq
        %v838 = vshrl.u32 %v837, 7
        %v839 = vsub.s32 0, %v838
        %v840 = vrot.slane %v835, %v839
        %v842 = vadd.f32 %v803, %v840
        %v843 = vadd.f32 %v804, %v840
        %v844 = vadd.f32 %v805, %v840
        %v845 = vadd.f32 %v806, %v840
        %v846 = vadd.f32 %v807, %v840
        %v847 = vadd.f32 %v808, %v840
        %v848 = vadd.f32 %v809, %v840
        %v849 = vadd.f32 %v810, %v840
        %v850 = vadd.f32 %v811, %v840
        %v851 = vadd.f32 %v812, %v840
        %v852 = vadd.f32 %v813, %v840
        %v853 = vadd.f32 %v814, %v840
        %v854 = vadd.f32 %v815, %v840
        %v855 = vadd.f32 %v816, %v840
        %v856 = vadd.f32 %v817, %v840
        %v857 = vadd.f32 %v818, %v840
        %v858 = vadd.f32 %v819, %v840
        %v859 = vadd.f32 %v820, %v840
        %v860 = vadd.f32 %v821, %v840
        %v861 = vadd.f32 %v822, %v840
        %v862 = vadd.f32 %v823, %v840
        %v863 = vadd.f32 %v824, %v840
        %v864 = vadd.f32 %v825, %v840
        %v865 = vadd.f32 %v826, %v840
        %v866 = vadd.f32 %v827, %v840
        %v867 = vadd.f32 %v828, %v840
        %v868 = vadd.f32 %v829, %v840
        %v869 = vadd.f32 %v830, %v840
        %v870 = vadd.f32 %v831, %v840
        %v871 = vadd.f32 %v832, %v840
        %v872 = vadd.f32 %v833, %v840
        %v873 = vadd.f32 %v834, %v840
        %v874 = vpack.c.bf16 %v843, %v842
        %v875 = vpack.c.bf16 %v845, %v844
        %v876 = vpack.c.bf16 %v847, %v846
        %v877 = vpack.c.bf16 %v849, %v848
        %v878 = vpack.c.bf16 %v851, %v850
        %v879 = vpack.c.bf16 %v853, %v852
        %v880 = vpack.c.bf16 %v855, %v854
        %v881 = vpack.c.bf16 %v857, %v856
        %v882 = vpack.c.bf16 %v859, %v858
        %v883 = vpack.c.bf16 %v861, %v860
        %v884 = vpack.c.bf16 %v863, %v862
        %v885 = vpack.c.bf16 %v865, %v864
        %v886 = vpack.c.bf16 %v867, %v866
        %v887 = vpack.c.bf16 %v869, %v868
        %v888 = vpack.c.bf16 %v871, %v870
        %v889 = vpack.c.bf16 %v873, %v872
        %v906 = vunpack.c.l.b16 %v874
        %v907 = vunpack.c.h.b16 %v874
        %v908 = vunpack.c.l.b16 %v875
        %v909 = vunpack.c.h.b16 %v875
        %v910 = vunpack.c.l.b16 %v876
        %v911 = vunpack.c.h.b16 %v876
        %v912 = vunpack.c.l.b16 %v877
        %v913 = vunpack.c.h.b16 %v877
        %v914 = vunpack.c.l.b16 %v878
        %v915 = vunpack.c.h.b16 %v878
        %v916 = vunpack.c.l.b16 %v879
        %v917 = vunpack.c.h.b16 %v879
        %v918 = vunpack.c.l.b16 %v880
        %v919 = vunpack.c.h.b16 %v880
        %v920 = vunpack.c.l.b16 %v881
        %v921 = vunpack.c.h.b16 %v881
        %v922 = vunpack.c.l.b16 %v882
        %v923 = vunpack.c.h.b16 %v882
        %v924 = vunpack.c.l.b16 %v883
        %v925 = vunpack.c.h.b16 %v883
        %v926 = vunpack.c.l.b16 %v884
        %v927 = vunpack.c.h.b16 %v884
        %v928 = vunpack.c.l.b16 %v885
        %v929 = vunpack.c.h.b16 %v885
        %v930 = vunpack.c.l.b16 %v886
        %v931 = vunpack.c.h.b16 %v886
        %v932 = vunpack.c.l.b16 %v887
        %v933 = vunpack.c.h.b16 %v887
        %v934 = vunpack.c.l.b16 %v888
        %v935 = vunpack.c.h.b16 %v888
        %v936 = vunpack.c.l.b16 %v889
        %v937 = vunpack.c.h.b16 %v889
        %v938 = vpack.c.b16 %v906, %v906
        %v939 = vpack.c.b16 %v907, %v907
        %v940 = vpack.c.b16 %v908, %v908
        %v941 = vpack.c.b16 %v909, %v909
        %v942 = vpack.c.b16 %v910, %v910
        %v943 = vpack.c.b16 %v911, %v911
        %v944 = vpack.c.b16 %v912, %v912
        %v945 = vpack.c.b16 %v913, %v913
        %v946 = vpack.c.b16 %v914, %v914
        %v947 = vpack.c.b16 %v915, %v915
        %v948 = vpack.c.b16 %v916, %v916
        %v949 = vpack.c.b16 %v917, %v917
        %v950 = vpack.c.b16 %v918, %v918
        %v951 = vpack.c.b16 %v919, %v919
        %v952 = vpack.c.b16 %v920, %v920
        %v953 = vpack.c.b16 %v921, %v921
        %v954 = vpack.c.b16 %v922, %v922
        %v955 = vpack.c.b16 %v923, %v923
        %v956 = vpack.c.b16 %v924, %v924
        %v957 = vpack.c.b16 %v925, %v925
        %v958 = vpack.c.b16 %v926, %v926
        %v959 = vpack.c.b16 %v927, %v927
        %v960 = vpack.c.b16 %v928, %v928
        %v961 = vpack.c.b16 %v929, %v929
        %v962 = vpack.c.b16 %v930, %v930
        %v963 = vpack.c.b16 %v931, %v931
        %v964 = vpack.c.b16 %v932, %v932
        %v965 = vpack.c.b16 %v933, %v933
        %v966 = vpack.c.b16 %v934, %v934
        %v967 = vpack.c.b16 %v935, %v935
        %v968 = vpack.c.b16 %v936, %v936
        %v969 = vpack.c.b16 %v937, %v937
        %vm1002 = vcmask 60416
        %1003 = vst.msk [vmem:[%s295] sm:$0xf] %vm1002, %v938
        %1004 = vst.msk [vmem:[%s295 + $0x4] sm:$0xf] %vm1002, %v939
        %1005 = vst.msk [vmem:[%s295 + $0x8] sm:$0xf] %vm1002, %v940
        %1006 = vst.msk [vmem:[%s295 + $0xc] sm:$0xf] %vm1002, %v941
        %1007 = vst.msk [vmem:[%s295 + $0x10] sm:$0xf] %vm1002, %v942
        %1008 = vst.msk [vmem:[%s295 + $0x14] sm:$0xf] %vm1002, %v943
        %1009 = vst.msk [vmem:[%s295 + $0x18] sm:$0xf] %vm1002, %v944
        %1010 = vst.msk [vmem:[%s295 + $0x1c] sm:$0xf] %vm1002, %v945
        %1011 = vst.msk [vmem:[%s295 + $0x20] sm:$0xf] %vm1002, %v946
        %1012 = vst.msk [vmem:[%s295 + $0x24] sm:$0xf] %vm1002, %v947
        %1013 = vst.msk [vmem:[%s295 + $0x28] sm:$0xf] %vm1002, %v948
        %1014 = vst.msk [vmem:[%s295 + $0x2c] sm:$0xf] %vm1002, %v949
        %1015 = vst.msk [vmem:[%s295 + $0x30] sm:$0xf] %vm1002, %v950
        %1016 = vst.msk [vmem:[%s295 + $0x34] sm:$0xf] %vm1002, %v951
        %1017 = vst.msk [vmem:[%s295 + $0x38] sm:$0xf] %vm1002, %v952
        %1018 = vst.msk [vmem:[%s295 + $0x3c] sm:$0xf] %vm1002, %v953
        %1019 = vst.msk [vmem:[%s295 + $0x40] sm:$0xf] %vm1002, %v954
        %1020 = vst.msk [vmem:[%s295 + $0x44] sm:$0xf] %vm1002, %v955
        %1021 = vst.msk [vmem:[%s295 + $0x48] sm:$0xf] %vm1002, %v956
        %1022 = vst.msk [vmem:[%s295 + $0x4c] sm:$0xf] %vm1002, %v957
        %1023 = vst.msk [vmem:[%s295 + $0x50] sm:$0xf] %vm1002, %v958
        %1024 = vst.msk [vmem:[%s295 + $0x54] sm:$0xf] %vm1002, %v959
        %1025 = vst.msk [vmem:[%s295 + $0x58] sm:$0xf] %vm1002, %v960
        %1026 = vst.msk [vmem:[%s295 + $0x5c] sm:$0xf] %vm1002, %v961
        %1027 = vst.msk [vmem:[%s295 + $0x60] sm:$0xf] %vm1002, %v962
        %1028 = vst.msk [vmem:[%s295 + $0x64] sm:$0xf] %vm1002, %v963
        %1029 = vst.msk [vmem:[%s295 + $0x68] sm:$0xf] %vm1002, %v964
        %1030 = vst.msk [vmem:[%s295 + $0x6c] sm:$0xf] %vm1002, %v965
        %1031 = vst.msk [vmem:[%s295 + $0x70] sm:$0xf] %vm1002, %v966
        %1032 = vst.msk [vmem:[%s295 + $0x74] sm:$0xf] %vm1002, %v967
        %1033 = vst.msk [vmem:[%s295 + $0x78] sm:$0xf] %vm1002, %v968
        %1034 = vst.msk [vmem:[%s295 + $0x7c] sm:$0xf] %vm1002, %v969
        %s1035 = sand.u32 %s142, 1
        %s1036 = scalar_lea.sflag [#allocation4], %s1035
        %s1037 = sand.u32 %s142, 1
        %s1038 = smul.addr %s1037, 128
        %s1039 = scalar_lea.vmem [#allocation11], %s1038
        // Predicated region
        $region61: #{unet_forward.32} parent=39 // pred_check
          %p1040 = pneg %p152
        $region62: #{unet_forward.32} parent=39 // pred_check_branch
          %1042 = sbr.rel (%p1040) target = $region64
        $region63: #{unet_forward.32} parent=39 // pred_region
          %s1043 = smul.u32 32, %s24
          %s1045 = ssub.s32 2048, 2048
          %1046 = vsyncadd %s1036, %s1045
          %s1047 = smul.addr %s1043, 64
          %s1048 = scalar_lea.hbm %s5, %s1047
          %s1049 = sshll.u32 %s1039, 4
          %s1050 = int_to_ptr.vmem [resolvable:$true] %s1049
          %1055 = dma.vmem_to_hbm [thread:$0]  %s1050, 2048, %s1048, %s1036, 64, 64, 4
        $region64: #{unet_forward.32} parent=39 // pred_fallthru
          _
      $region40: #{unet_forward.32} parent=5 // pred_fallthru
        _
      %p1056 = scmp.le.s32.totalorder 2, %s19
      // Predicated region
      $region65: #{unet_forward.32} parent=5 // pred_check
        %p1057 = pneg %p1056
      $region66: #{unet_forward.32} parent=5 // pred_check_branch
        %1059 = sbr.rel (%p1057) target = $region68
      $region67: #{unet_forward.32} parent=5 // pred_region
        %s1060 = ssub.s32 %s19, 2
        // Predicated region
        $region69: #{unet_forward.32} parent=67 // pred_check
          %p1061 = pneg %p158
        $region70: #{unet_forward.32} parent=67 // pred_check_branch
          %1063 = sbr.rel (%p1061) target = $region72
        $region71: #{unet_forward.32} parent=67 // pred_region
          %s1064 = sand.u32 %s143, 1
          %s1065 = scalar_lea.sflag [#allocation4], %s1064
          %s1066 = sand.u32 %s143, 1
          %s1067 = smul.addr %s1066, 128
          %s1068 = scalar_lea.vmem [#allocation11], %s1067
          %1069 = dma.done %s1065, 2048
        $region72: #{unet_forward.32} parent=67 // pred_fallthru
          _
      $region68: #{unet_forward.32} parent=5 // pred_fallthru
        _
    $region6: #{unet_forward.32} parent=1 // loop_footer
      %s23 = sadd.s32 1, %s19
    $region7: #{unet_forward.32} parent=1 // loop_footer_branch
      %18 = sbr.rel target = $region3
    $region8: #{unet_forward.32} parent=1 // loop_exit
      _
    %1070 = vsyncpa [#allocation3], 1
    %s1071 = scalar_lea.sflag [#allocation3], 1
    %1072 = vsyncpa %s1071, 1
    %1073 = vsyncpa [#allocation6], 1
    %1074 = vsyncpa [#allocation9], 1
    %1075 = vsyncpa [#allocation4], 1
    %s1076 = scalar_lea.sflag [#allocation4], 1
    %1077 = vsyncpa %s1076, 1

</llo_original>
